<compile_context>
chip_gen: v7x
topology: tpu7x:2x2x1
jax: 0.10.0
libtpu: 0.0.40
codegen_flags: <defaults>
</compile_context>

<pallas_src>
import functools
import math

import jax
import jax.numpy as jnp
from jax.experimental import pallas as pl
from jax.experimental.pallas import tpu as pltpu

LN_EPS = 1e-5  # PyTorch LayerNorm default


# ------------------------- in-kernel math helpers --------------------------
# These operate on traced jnp values inside kernel bodies; all intermediates
# stay in vregs/VMEM (a few KiB at these sizes).

def _add_layernorm(x, y, gamma, beta):
    z = x + y
    mu = jnp.mean(z, axis=-1, keepdims=True)
    var = jnp.mean(jnp.square(z - mu), axis=-1, keepdims=True)
    return (z - mu) * jax.lax.rsqrt(var + LN_EPS) * gamma + beta


def _ffn(x, w1, b1, w2, b2):
    h = jnp.maximum(jnp.dot(x, w1, preferred_element_type=jnp.float32) + b1, 0.0)
    return jnp.dot(h, w2, preferred_element_type=jnp.float32) + b2


def _attn_core(q, k, v, wo, bo, *, B, S, E, H):
    """Multi-head attention core + output projection.

    q, k, v: (B*S, E) f32; wo: (E, E); bo: (1, E).  Returns (B*S, E).
    All H heads run inside one program (static unroll, no per-head grid steps).
    The output projection is folded into the per-head loop
    (o @ Wo == sum_h o_h @ Wo[h*Dh:(h+1)*Dh, :]), avoiding an in-kernel concat.
    At large S this loop body would become a flash-style online softmax over
    Sk tiles instead of a full (S, S) score block.
    """
    Dh = E // H
    scale = 1.0 / math.sqrt(Dh)
    q3 = q.reshape(B, S, E) * scale
    k3 = k.reshape(B, S, E)
    v3 = v.reshape(B, S, E)
    acc = jnp.zeros((B * S, E), jnp.float32)
    for h in range(H):
        sl = slice(h * Dh, (h + 1) * Dh)
        qh = q3[:, :, sl]
        kh = k3[:, :, sl]
        vh = v3[:, :, sl]
        s = jnp.einsum("bqd,bkd->bqk", qh, kh, preferred_element_type=jnp.float32)
        m = jnp.max(s, axis=-1, keepdims=True)
        p = jnp.exp(s - m)
        # Softmax denominator via the (otherwise idle) EUP reciprocal slot.
        p = p * pl.reciprocal(jnp.sum(p, axis=-1, keepdims=True), approx=True)
        oh = jnp.einsum("bqk,bkd->bqd", p, vh, preferred_element_type=jnp.float32)
        acc = acc + jnp.dot(oh.reshape(B * S, Dh), wo[sl, :],
                            preferred_element_type=jnp.float32)
    return acc + bo


# --------------------- kernel 1: fused encoder stacks ----------------------

def _encoder_stack_kernel(x_ref, wqkv_ref, bqkv_ref, wo_ref, bo_ref,
                          w1_ref, b1_ref, w2_ref, b2_ref,
                          ln1g_ref, ln1b_ref, ln2g_ref, ln2b_ref,
                          o_ref, act_ref, *, B, S, E, H):
    """One post-norm TransformerEncoderLayer per grid step.

    grid = (stream, layer); the activation is carried across the layer axis in
    the VMEM scratch `act_ref` (initialized from the tokens at layer 0, written
    back to HBM only at the last layer).
    """
    l = pl.program_id(1)

    @pl.when(l == 0)
    def _():
        act_ref[...] = x_ref[0].reshape(B * S, E)

    x2 = act_ref[...]                                                # (B*S, E)

    # Fused QKV projection: one (E, 3E) matmul instead of three.
    qkv = (jnp.dot(x2, wqkv_ref[0, 0], preferred_element_type=jnp.float32)
           + bqkv_ref[0, 0])                                         # (B*S, 3E)
    q = qkv[:, 0:E]
    k = qkv[:, E:2 * E]
    v = qkv[:, 2 * E:3 * E]

    attn = _attn_core(q, k, v, wo_ref[0, 0], bo_ref[0, 0], B=B, S=S, E=E, H=H)
    x2 = _add_layernorm(x2, attn, ln1g_ref[0, 0], ln1b_ref[0, 0])
    ff = _ffn(x2, w1_ref[0, 0], b1_ref[0, 0], w2_ref[0, 0], b2_ref[0, 0])
    x2 = _add_layernorm(x2, ff, ln2g_ref[0, 0], ln2b_ref[0, 0])
    act_ref[...] = x2

    @pl.when(l == pl.num_programs(1) - 1)
    def _():
        o_ref[0] = x2.reshape(B, S, E)


def encoder_stacks(x_stacked, enc, nhead):
    """Run both (gene, protein) encoder stacks with one pallas_call.

    x_stacked: (2, B, S, E); enc[*]: weights stacked as (2, L, ...)."""
    _, B, S, E = x_stacked.shape
    L = enc["wqkv"].shape[1]
    F = enc["w1"].shape[-1]

    def w_spec(*shape):
        return pl.BlockSpec((1, 1) + shape,
                            lambda s, l: (s, l) + (0,) * len(shape))

    in_specs = [
        pl.BlockSpec((1, B, S, E), lambda s, l: (s, 0, 0, 0)),   # tokens
        w_spec(E, 3 * E), w_spec(1, 3 * E),                      # fused QKV
        w_spec(E, E), w_spec(1, E),                              # out proj
        w_spec(E, F), w_spec(1, F),                              # FF linear1
        w_spec(F, E), w_spec(1, E),                              # FF linear2
        w_spec(1, E), w_spec(1, E),                              # LN1
        w_spec(1, E), w_spec(1, E),                              # LN2
    ]
    kernel = functools.partial(_encoder_stack_kernel, B=B, S=S, E=E, H=nhead)
    return pl.pallas_call(
        kernel,
        out_shape=jax.ShapeDtypeStruct((2, B, S, E), x_stacked.dtype),
        grid=(2, L),
        in_specs=in_specs,
        out_specs=pl.BlockSpec((1, B, S, E), lambda s, l: (s, 0, 0, 0)),
        scratch_shapes=[pltpu.VMEM((B * S, E), jnp.float32)],
        compiler_params=pltpu.CompilerParams(
            dimension_semantics=("parallel", "arbitrary")),
    )(x_stacked, enc["wqkv"], enc["bqkv"], enc["wo"], enc["bo"],
      enc["w1"], enc["b1"], enc["w2"], enc["b2"],
      enc["ln1_g"], enc["ln1_b"], enc["ln2_g"], enc["ln2_b"])


# ------------- kernel 2: fused cross-attention + pooling head --------------

def _cross_head_kernel(enc_ref,
                       g2p_wq, g2p_bq, g2p_wkv, g2p_bkv, g2p_wo, g2p_bo,
                       ng_g, ng_b,
                       ffg_w1, ffg_b1, ffg_w2, ffg_b2,
                       p2g_wq, p2g_bq, p2g_wkv, p2g_bkv, p2g_wo, p2g_bo,
                       np_g, np_b,
                       ffp_w1, ffp_b1, ffp_w2, ffp_b2,
                       wcg, wcp, bc, wf, bf,
                       o_ref, *, B, S, E, H):
    gene = enc_ref[0].reshape(B * S, E)
    prot = enc_ref[1].reshape(B * S, E)

    def mha(q_in, kv_in, wq, bq, wkv, bkv, wo, bo):
        q = jnp.dot(q_in, wq[...], preferred_element_type=jnp.float32) + bq[...]
        kv = jnp.dot(kv_in, wkv[...], preferred_element_type=jnp.float32) + bkv[...]
        k = kv[:, 0:E]
        v = kv[:, E:2 * E]
        return _attn_core(q, k, v, wo[...], bo[...], B=B, S=S, E=E, H=H)

    # gene attends to protein; norm_gene is (intentionally) applied twice with
    # the same parameters, matching the PyTorch reference.
    gu = mha(gene, prot, g2p_wq, g2p_bq, g2p_wkv, g2p_bkv, g2p_wo, g2p_bo)
    ge = _add_layernorm(gene, gu, ng_g[...], ng_b[...])
    ge = _add_layernorm(ge, _ffn(ge, ffg_w1[...], ffg_b1[...],
                                 ffg_w2[...], ffg_b2[...]),
                        ng_g[...], ng_b[...])

    # protein attends to the UPDATED gene encoding.
    pu = mha(prot, ge, p2g_wq, p2g_bq, p2g_wkv, p2g_bkv, p2g_wo, p2g_bo)
    pe = _add_layernorm(prot, pu, np_g[...], np_b[...])
    pe = _add_layernorm(pe, _ffn(pe, ffp_w1[...], ffp_b1[...],
                                 ffp_w2[...], ffp_b2[...]),
                        np_g[...], np_b[...])

    # Pooling: mean over the BATCH axis (== torch.mean(dim=1) on (S, B, E)).
    gp = jnp.mean(ge.reshape(B, S, E), axis=0)                       # (S, E)
    pp = jnp.mean(pe.reshape(B, S, E), axis=0)                       # (S, E)
    # cat([gp, pp], -1) @ W_combine == gp @ Wc[:E] + pp @ Wc[E:]
    h = (jnp.dot(gp, wcg[...], preferred_element_type=jnp.float32)
         + jnp.dot(pp, wcp[...], preferred_element_type=jnp.float32) + bc[...])
    logits = jnp.dot(h, wf[...], preferred_element_type=jnp.float32) + bf[...]
    o_ref[...] = logits.astype(o_ref.dtype)


def cross_and_head(enc_stacked, cp, w_combine, b_combine, w_final, b_final, nhead):
    _, B, S, E = enc_stacked.shape
    C = w_final.shape[1]
    wcg = w_combine[:E]
    wcp = w_combine[E:]
    kernel = functools.partial(_cross_head_kernel, B=B, S=S, E=E, H=nhead)
    return pl.pallas_call(
        kernel,
        out_shape=jax.ShapeDtypeStruct((S, C), enc_stacked.dtype),
    )(enc_stacked,
      cp["g2p_wq"], cp["g2p_bq"], cp["g2p_wkv"], cp["g2p_bkv"],
      cp["g2p_wo"], cp["g2p_bo"],
      cp["ng_g"], cp["ng_b"],
      cp["ffg_w1"], cp["ffg_b1"], cp["ffg_w2"], cp["ffg_b2"],
      cp["p2g_wq"], cp["p2g_bq"], cp["p2g_wkv"], cp["p2g_bkv"],
      cp["p2g_wo"], cp["p2g_bo"],
      cp["np_g"], cp["np_b"],
      cp["ffp_w1"], cp["ffp_b1"], cp["ffp_w2"], cp["ffp_b2"],
      wcg, wcp, b_combine.reshape(1, E), w_final, b_final.reshape(1, C))


# ------------------------------- model glue --------------------------------

def omics_transformer_forward(gene_tokens, protein_tokens, params, nhead):
    """gene_tokens / protein_tokens: (B, S, E) — same call convention as the
    PyTorch module before its internal permute(1, 0, 2)."""
    x = jnp.stack([gene_tokens, protein_tokens], axis=0)             # (2, B, S, E)
    enc = encoder_stacks(x, params["enc"], nhead)                    # (2, B, S, E)
    return cross_and_head(enc, params["cross"], params["w_combine"],
                          params["b_combine"], params["w_final"],
                          params["b_final"], nhead)


# ----------------------------- parameter init ------------------------------

def _init_dense(key, fan_in, fan_out, scale=0.05):
    kw, kb = jax.random.split(key)
    w = jax.random.normal(kw, (fan_in, fan_out), jnp.float32) * scale
    b = jax.random.normal(kb, (fan_out,), jnp.float32) * scale
    return w, b


def _init_encoder_stacks(key, E, dff, num_layers):
    """Weights for both streams stacked as (2, L, ...) for the fused kernel."""
    keys = jax.random.split(key, 2 * num_layers)
    per = []
    for k in keys:
        kq, kk, kv, ko, k1, k2 = jax.random.split(k, 6)
        wq, bq = _init_dense(kq, E, E)
        wk, bk = _init_dense(kk, E, E)
        wv, bv = _init_dense(kv, E, E)
        wo, bo = _init_dense(ko, E, E)
        w1, b1 = _init_dense(k1, E, dff)
        w2, b2 = _init_dense(k2, dff, E)
        per.append(dict(
            wqkv=jnp.concatenate([wq, wk, wv], axis=1),
            bqkv=jnp.concatenate([bq, bk, bv]).reshape(1, 3 * E),
            wo=wo, bo=bo.reshape(1, E),
            w1=w1, b1=b1.reshape(1, dff),
            w2=w2, b2=b2.reshape(1, E),
            ln1_g=jnp.ones((1, E), jnp.float32),
            ln1_b=jnp.zeros((1, E), jnp.float32),
            ln2_g=jnp.ones((1, E), jnp.float32),
            ln2_b=jnp.zeros((1, E), jnp.float32),
        ))

    def stack(name):
        a = jnp.stack([p[name] for p in per])                        # (2L, ...)
        return a.reshape((2, num_layers) + a.shape[1:])

    return {name: stack(name) for name in per[0]}


def _init_cross(key, E):
    ks = jax.random.split(key, 12)
    g2p_wq, g2p_bq = _init_dense(ks[0], E, E)
    g2p_wk, g2p_bk = _init_dense(ks[1], E, E)
    g2p_wv, g2p_bv = _init_dense(ks[2], E, E)
    g2p_wo, g2p_bo = _init_dense(ks[3], E, E)
    p2g_wq, p2g_bq = _init_dense(ks[4], E, E)
    p2g_wk, p2g_bk = _init_dense(ks[5], E, E)
    p2g_wv, p2g_bv = _init_dense(ks[6], E, E)
    p2g_wo, p2g_bo = _init_dense(ks[7], E, E)
    ffg_w1, ffg_b1 = _init_dense(ks[8], E, 4 * E)
    ffg_w2, ffg_b2 = _init_dense(ks[9], 4 * E, E)
    ffp_w1, ffp_b1 = _init_dense(ks[10], E, 4 * E)
    ffp_w2, ffp_b2 = _init_dense(ks[11], 4 * E, E)
    ones = jnp.ones((1, E), jnp.float32)
    zeros = jnp.zeros((1, E), jnp.float32)
    return {
        "g2p_wq": g2p_wq, "g2p_bq": g2p_bq.reshape(1, E),
        "g2p_wkv": jnp.concatenate([g2p_wk, g2p_wv], axis=1),
        "g2p_bkv": jnp.concatenate([g2p_bk, g2p_bv]).reshape(1, 2 * E),
        "g2p_wo": g2p_wo, "g2p_bo": g2p_bo.reshape(1, E),
        "ng_g": ones, "ng_b": zeros,
        "ffg_w1": ffg_w1, "ffg_b1": ffg_b1.reshape(1, 4 * E),
        "ffg_w2": ffg_w2, "ffg_b2": ffg_b2.reshape(1, E),
        "p2g_wq": p2g_wq, "p2g_bq": p2g_bq.reshape(1, E),
        "p2g_wkv": jnp.concatenate([p2g_wk, p2g_wv], axis=1),
        "p2g_bkv": jnp.concatenate([p2g_bk, p2g_bv]).reshape(1, 2 * E),
        "p2g_wo": p2g_wo, "p2g_bo": p2g_bo.reshape(1, E),
        "np_g": ones, "np_b": zeros,
        "ffp_w1": ffp_w1, "ffp_b1": ffp_b1.reshape(1, 4 * E),
        "ffp_w2": ffp_w2, "ffp_b2": ffp_b2.reshape(1, E),
    }


def init_params(key, E, num_cancers, num_layers, dff):
    k_enc, k_cross, k_comb, k_fin = jax.random.split(key, 4)
    enc = _init_encoder_stacks(k_enc, E, dff, num_layers)
    cross = _init_cross(k_cross, E)
    w_combine, b_combine = _init_dense(k_comb, 2 * E, E)
    w_final, b_final = _init_dense(k_fin, E, num_cancers)
    return {"enc": enc, "cross": cross, "w_combine": w_combine,
            "b_combine": b_combine, "w_final": w_final, "b_final": b_final}


# ---------------------------------- main ------------------------------------

if __name__ == "__main__":
    B = 2            # batch
    S = 8            # sequence length (gene == protein; required by torch.cat)
    E = 32           # embedding_dim
    NHEAD = 4
    NUM_LAYERS = 2   # module default is 10; small here for a quick run
    DFF = 64         # dim_feedforward of the encoder layers
    NUM_CANCERS = 5

    key = jax.random.PRNGKey(0)
    k_params, k_gene, k_prot = jax.random.split(key, 3)
    params = init_params(k_params, E, NUM_CANCERS, NUM_LAYERS, DFF)

    gene_tokens = jax.random.normal(k_gene, (B, S, E), jnp.float32)
    protein_tokens = jax.random.normal(k_prot, (B, S, E), jnp.float32)

    fwd = jax.jit(functools.partial(omics_transformer_forward, nhead=NHEAD))
    logits = fwd(gene_tokens, protein_tokens, params)
    jax.block_until_ready(logits)

    assert logits.shape == (S, NUM_CANCERS), logits.shape
    assert bool(jnp.all(jnp.isfinite(logits)))
    print("KERNEL_OK")
</pallas_src>

<mosaic_0001>
module attributes {stable_mosaic.version = 11 : i64} {
  func.func @_encoder_stack_kernel(%arg0: i32, %arg1: i32, %arg2: memref<1x2x8x32xf32, #tpu.memory_space<vmem>>, %arg3: memref<1x1x32x96xf32, #tpu.memory_space<vmem>>, %arg4: memref<1x1x1x96xf32, #tpu.memory_space<vmem>>, %arg5: memref<1x1x32x32xf32, #tpu.memory_space<vmem>>, %arg6: memref<1x1x1x32xf32, #tpu.memory_space<vmem>>, %arg7: memref<1x1x32x64xf32, #tpu.memory_space<vmem>>, %arg8: memref<1x1x1x64xf32, #tpu.memory_space<vmem>>, %arg9: memref<1x1x64x32xf32, #tpu.memory_space<vmem>>, %arg10: memref<1x1x1x32xf32, #tpu.memory_space<vmem>>, %arg11: memref<1x1x1x32xf32, #tpu.memory_space<vmem>>, %arg12: memref<1x1x1x32xf32, #tpu.memory_space<vmem>>, %arg13: memref<1x1x1x32xf32, #tpu.memory_space<vmem>>, %arg14: memref<1x1x1x32xf32, #tpu.memory_space<vmem>>, %arg15: memref<1x2x8x32xf32, #tpu.memory_space<vmem>>, %arg16: memref<16x32xf32, #tpu.memory_space<vmem>>) attributes {dimension_semantics = [#tpu.dimension_semantics<parallel>, #tpu.dimension_semantics<arbitrary>], iteration_bounds = array<i64: 2, 2>, scalar_prefetch = 0 : i64, scratch_operands = 1 : i64, tpu.core_type = #tpu.core_type<tc>, window_params = [{transform_indices = @transform_0, window_bounds = array<i64: 1, 2, 8, 32>}, {transform_indices = @transform_1, window_bounds = array<i64: 1, 1, 32, 96>}, {transform_indices = @transform_2, window_bounds = array<i64: 1, 1, 1, 96>}, {transform_indices = @transform_3, window_bounds = array<i64: 1, 1, 32, 32>}, {transform_indices = @transform_4, window_bounds = array<i64: 1, 1, 1, 32>}, {transform_indices = @transform_5, window_bounds = array<i64: 1, 1, 32, 64>}, {transform_indices = @transform_6, window_bounds = array<i64: 1, 1, 1, 64>}, {transform_indices = @transform_7, window_bounds = array<i64: 1, 1, 64, 32>}, {transform_indices = @transform_8, window_bounds = array<i64: 1, 1, 1, 32>}, {transform_indices = @transform_9, window_bounds = array<i64: 1, 1, 1, 32>}, {transform_indices = @transform_10, window_bounds = array<i64: 1, 1, 1, 32>}, {transform_indices = @transform_11, window_bounds = array<i64: 1, 1, 1, 32>}, {transform_indices = @transform_12, window_bounds = array<i64: 1, 1, 1, 32>}, {transform_indices = @transform_13, window_bounds = array<i64: 1, 2, 8, 32>}]} {
    %c0_i32 = arith.constant 0 : i32
    %0 = arith.cmpi eq, %arg1, %c0_i32 : i32
    %1 = arith.extui %0 : i1 to i32
    %c0_i32_0 = arith.constant 0 : i32
    %2 = arith.cmpi ne, %1, %c0_i32_0 : i32
    scf.if %2 {
      %c0_88 = arith.constant 0 : index
      %c0_89 = arith.constant 0 : index
      %c0_90 = arith.constant 0 : index
      %c0_91 = arith.constant 0 : index
      %176 = vector.load %arg2[%c0_88, %c0_89, %c0_90, %c0_91] : memref<1x2x8x32xf32, #tpu.memory_space<vmem>>, vector<1x2x8x32xf32>
      %177 = vector.shape_cast %176 : vector<1x2x8x32xf32> to vector<2x8x32xf32>
      %178 = vector.shape_cast %177 : vector<2x8x32xf32> to vector<16x32xf32>
      %c0_92 = arith.constant 0 : index
      %c0_93 = arith.constant 0 : index
      %179 = vector.load %arg16[%c0_92, %c0_93] : memref<16x32xf32, #tpu.memory_space<vmem>>, vector<16x32xf32>
      tpu.vector_store %arg16[%c0_92, %c0_93], %178 {strides = array<i32>} : memref<16x32xf32, #tpu.memory_space<vmem>>, vector<16x32xf32>,
    } else {
    }
    %c0 = arith.constant 0 : index
    %c0_1 = arith.constant 0 : index
    %3 = vector.load %arg16[%c0, %c0_1] : memref<16x32xf32, #tpu.memory_space<vmem>>, vector<16x32xf32>
    %c0_2 = arith.constant 0 : index
    %c0_3 = arith.constant 0 : index
    %c0_4 = arith.constant 0 : index
    %c0_5 = arith.constant 0 : index
    %4 = vector.load %arg3[%c0_2, %c0_3, %c0_4, %c0_5] : memref<1x1x32x96xf32, #tpu.memory_space<vmem>>, vector<1x1x32x96xf32>
    %5 = vector.shape_cast %4 : vector<1x1x32x96xf32> to vector<32x96xf32>
    %cst = arith.constant dense<0.000000e+00> : vector<16x96xf32>
    %6 = tpu.matmul %3, %5, %cst {dimension_numbers = #tpu.dot_dimension_numbers<[1], [0], [0], [1], [0, 0, 1, 1], [], []>} : vector<16x32xf32>, vector<32x96xf32>, vector<16x96xf32> -> vector<16x96xf32>
    %c0_6 = arith.constant 0 : index
    %c0_7 = arith.constant 0 : index
    %c0_8 = arith.constant 0 : index
    %c0_9 = arith.constant 0 : index
    %7 = vector.load %arg4[%c0_6, %c0_7, %c0_8, %c0_9] : memref<1x1x1x96xf32, #tpu.memory_space<vmem>>, vector<1x1x1x96xf32>
    %8 = vector.shape_cast %7 : vector<1x1x1x96xf32> to vector<1x96xf32>
    %9 = vector.broadcast %8 : vector<1x96xf32> to vector<16x96xf32>
    %10 = arith.addf %6, %9 : vector<16x96xf32>
    %11 = vector.extract_strided_slice %10 {offsets = [0, 0], sizes = [16, 32], strides = [1, 1]} : vector<16x96xf32> to vector<16x32xf32>
    %12 = vector.extract_strided_slice %10 {offsets = [0, 32], sizes = [16, 32], strides = [1, 1]} : vector<16x96xf32> to vector<16x32xf32>
    %13 = vector.extract_strided_slice %10 {offsets = [0, 64], sizes = [16, 32], strides = [1, 1]} : vector<16x96xf32> to vector<16x32xf32>
    %c0_10 = arith.constant 0 : index
    %c0_11 = arith.constant 0 : index
    %c0_12 = arith.constant 0 : index
    %c0_13 = arith.constant 0 : index
    %14 = vector.load %arg5[%c0_10, %c0_11, %c0_12, %c0_13] : memref<1x1x32x32xf32, #tpu.memory_space<vmem>>, vector<1x1x32x32xf32>
    %15 = vector.shape_cast %14 : vector<1x1x32x32xf32> to vector<32x32xf32>
    %c0_14 = arith.constant 0 : index
    %c0_15 = arith.constant 0 : index
    %c0_16 = arith.constant 0 : index
    %c0_17 = arith.constant 0 : index
    %16 = vector.load %arg6[%c0_14, %c0_15, %c0_16, %c0_17] : memref<1x1x1x32xf32, #tpu.memory_space<vmem>>, vector<1x1x1x32xf32>
    %17 = vector.shape_cast %16 : vector<1x1x1x32xf32> to vector<1x32xf32>
    %18 = vector.shape_cast %11 : vector<16x32xf32> to vector<2x8x32xf32>
    %cst_18 = arith.constant 0.353553385 : f32
    %19 = vector.broadcast %cst_18 : f32 to vector<2x8x32xf32>
    %20 = arith.mulf %18, %19 : vector<2x8x32xf32>
    %21 = vector.shape_cast %12 : vector<16x32xf32> to vector<2x8x32xf32>
    %22 = vector.shape_cast %13 : vector<16x32xf32> to vector<2x8x32xf32>
    %cst_19 = arith.constant 0.000000e+00 : f32
    %23 = vector.broadcast %cst_19 : f32 to vector<16x32xf32>
    %24 = vector.extract_strided_slice %20 {offsets = [0, 0, 0], sizes = [2, 8, 8], strides = [1, 1, 1]} : vector<2x8x32xf32> to vector<2x8x8xf32>
    %25 = vector.extract_strided_slice %21 {offsets = [0, 0, 0], sizes = [2, 8, 8], strides = [1, 1, 1]} : vector<2x8x32xf32> to vector<2x8x8xf32>
    %26 = vector.extract_strided_slice %22 {offsets = [0, 0, 0], sizes = [2, 8, 8], strides = [1, 1, 1]} : vector<2x8x32xf32> to vector<2x8x8xf32>
    "tpu.trace_start"() <{level = 10 : i32, message = "bqd,bkd->bqk"}> : () -> ()
    %cst_20 = arith.constant dense<0.000000e+00> : vector<2x8x8xf32>
    %27 = tpu.matmul %24, %25, %cst_20 {dimension_numbers = #tpu.dot_dimension_numbers<[2], [2], [1], [1], [0, 0, 0, 1, 1, 1], [0], [0]>} : vector<2x8x8xf32>, vector<2x8x8xf32>, vector<2x8x8xf32> -> vector<2x8x8xf32>
    "tpu.trace_stop"() : () -> ()
    %cst_21 = arith.constant dense<0xFF800000> : vector<2x8xf32>
    %28 = vector.multi_reduction <maximumf>, %27, %cst_21 [2] : vector<2x8x8xf32> to vector<2x8xf32>
    %29 = vector.shape_cast %28 : vector<2x8xf32> to vector<2x8x1xf32>
    %30 = vector.broadcast %29 : vector<2x8x1xf32> to vector<2x8x8xf32>
    %31 = arith.subf %27, %30 : vector<2x8x8xf32>
    %32 = math.exp %31 : vector<2x8x8xf32>
    %cst_22 = arith.constant dense<0.000000e+00> : vector<2x8xf32>
    %33 = vector.multi_reduction <add>, %32, %cst_22 [2] : vector<2x8x8xf32> to vector<2x8xf32>
    %34 = vector.shape_cast %33 : vector<2x8xf32> to vector<2x8x1xf32>
    %35 = tpu.reciprocal %34 {approx = true} : vector<2x8x1xf32> -> vector<2x8x1xf32>
    %36 = vector.broadcast %35 : vector<2x8x1xf32> to vector<2x8x8xf32>
    %37 = arith.mulf %32, %36 : vector<2x8x8xf32>
    "tpu.trace_start"() <{level = 10 : i32, message = "bqk,bkd->bqd"}> : () -> ()
    %cst_23 = arith.constant dense<0.000000e+00> : vector<2x8x8xf32>
    %38 = tpu.matmul %37, %26, %cst_23 {dimension_numbers = #tpu.dot_dimension_numbers<[2], [1], [1], [2], [0, 0, 0, 1, 1, 2], [0], [0]>} : vector<2x8x8xf32>, vector<2x8x8xf32>, vector<2x8x8xf32> -> vector<2x8x8xf32>
    "tpu.trace_stop"() : () -> ()
    %39 = vector.shape_cast %38 : vector<2x8x8xf32> to vector<16x8xf32>
    %40 = vector.extract_strided_slice %15 {offsets = [0, 0], sizes = [8, 32], strides = [1, 1]} : vector<32x32xf32> to vector<8x32xf32>
    %cst_24 = arith.constant dense<0.000000e+00> : vector<16x32xf32>
    %41 = tpu.matmul %39, %40, %cst_24 {dimension_numbers = #tpu.dot_dimension_numbers<[1], [0], [0], [1], [0, 0, 1, 1], [], []>} : vector<16x8xf32>, vector<8x32xf32>, vector<16x32xf32> -> vector<16x32xf32>
    %42 = arith.addf %23, %41 : vector<16x32xf32>
    %43 = vector.extract_strided_slice %20 {offsets = [0, 0, 8], sizes = [2, 8, 8], strides = [1, 1, 1]} : vector<2x8x32xf32> to vector<2x8x8xf32>
    %44 = vector.extract_strided_slice %21 {offsets = [0, 0, 8], sizes = [2, 8, 8], strides = [1, 1, 1]} : vector<2x8x32xf32> to vector<2x8x8xf32>
    %45 = vector.extract_strided_slice %22 {offsets = [0, 0, 8], sizes = [2, 8, 8], strides = [1, 1, 1]} : vector<2x8x32xf32> to vector<2x8x8xf32>
    "tpu.trace_start"() <{level = 10 : i32, message = "bqd,bkd->bqk"}> : () -> ()
    %cst_25 = arith.constant dense<0.000000e+00> : vector<2x8x8xf32>
    %46 = tpu.matmul %43, %44, %cst_25 {dimension_numbers = #tpu.dot_dimension_numbers<[2], [2], [1], [1], [0, 0, 0, 1, 1, 1], [0], [0]>} : vector<2x8x8xf32>, vector<2x8x8xf32>, vector<2x8x8xf32> -> vector<2x8x8xf32>
    "tpu.trace_stop"() : () -> ()
    %cst_26 = arith.constant dense<0xFF800000> : vector<2x8xf32>
    %47 = vector.multi_reduction <maximumf>, %46, %cst_26 [2] : vector<2x8x8xf32> to vector<2x8xf32>
    %48 = vector.shape_cast %47 : vector<2x8xf32> to vector<2x8x1xf32>
    %49 = vector.broadcast %48 : vector<2x8x1xf32> to vector<2x8x8xf32>
    %50 = arith.subf %46, %49 : vector<2x8x8xf32>
    %51 = math.exp %50 : vector<2x8x8xf32>
    %cst_27 = arith.constant dense<0.000000e+00> : vector<2x8xf32>
    %52 = vector.multi_reduction <add>, %51, %cst_27 [2] : vector<2x8x8xf32> to vector<2x8xf32>
    %53 = vector.shape_cast %52 : vector<2x8xf32> to vector<2x8x1xf32>
    %54 = tpu.reciprocal %53 {approx = true} : vector<2x8x1xf32> -> vector<2x8x1xf32>
    %55 = vector.broadcast %54 : vector<2x8x1xf32> to vector<2x8x8xf32>
    %56 = arith.mulf %51, %55 : vector<2x8x8xf32>
    "tpu.trace_start"() <{level = 10 : i32, message = "bqk,bkd->bqd"}> : () -> ()
    %cst_28 = arith.constant dense<0.000000e+00> : vector<2x8x8xf32>
    %57 = tpu.matmul %56, %45, %cst_28 {dimension_numbers = #tpu.dot_dimension_numbers<[2], [1], [1], [2], [0, 0, 0, 1, 1, 2], [0], [0]>} : vector<2x8x8xf32>, vector<2x8x8xf32>, vector<2x8x8xf32> -> vector<2x8x8xf32>
    "tpu.trace_stop"() : () -> ()
    %58 = vector.shape_cast %57 : vector<2x8x8xf32> to vector<16x8xf32>
    %59 = vector.extract_strided_slice %15 {offsets = [8, 0], sizes = [8, 32], strides = [1, 1]} : vector<32x32xf32> to vector<8x32xf32>
    %cst_29 = arith.constant dense<0.000000e+00> : vector<16x32xf32>
    %60 = tpu.matmul %58, %59, %cst_29 {dimension_numbers = #tpu.dot_dimension_numbers<[1], [0], [0], [1], [0, 0, 1, 1], [], []>} : vector<16x8xf32>, vector<8x32xf32>, vector<16x32xf32> -> vector<16x32xf32>
    %61 = arith.addf %42, %60 : vector<16x32xf32>
    %62 = vector.extract_strided_slice %20 {offsets = [0, 0, 16], sizes = [2, 8, 8], strides = [1, 1, 1]} : vector<2x8x32xf32> to vector<2x8x8xf32>
    %63 = vector.extract_strided_slice %21 {offsets = [0, 0, 16], sizes = [2, 8, 8], strides = [1, 1, 1]} : vector<2x8x32xf32> to vector<2x8x8xf32>
    %64 = vector.extract_strided_slice %22 {offsets = [0, 0, 16], sizes = [2, 8, 8], strides = [1, 1, 1]} : vector<2x8x32xf32> to vector<2x8x8xf32>
    "tpu.trace_start"() <{level = 10 : i32, message = "bqd,bkd->bqk"}> : () -> ()
    %cst_30 = arith.constant dense<0.000000e+00> : vector<2x8x8xf32>
    %65 = tpu.matmul %62, %63, %cst_30 {dimension_numbers = #tpu.dot_dimension_numbers<[2], [2], [1], [1], [0, 0, 0, 1, 1, 1], [0], [0]>} : vector<2x8x8xf32>, vector<2x8x8xf32>, vector<2x8x8xf32> -> vector<2x8x8xf32>
    "tpu.trace_stop"() : () -> ()
    %cst_31 = arith.constant dense<0xFF800000> : vector<2x8xf32>
    %66 = vector.multi_reduction <maximumf>, %65, %cst_31 [2] : vector<2x8x8xf32> to vector<2x8xf32>
    %67 = vector.shape_cast %66 : vector<2x8xf32> to vector<2x8x1xf32>
    %68 = vector.broadcast %67 : vector<2x8x1xf32> to vector<2x8x8xf32>
    %69 = arith.subf %65, %68 : vector<2x8x8xf32>
    %70 = math.exp %69 : vector<2x8x8xf32>
    %cst_32 = arith.constant dense<0.000000e+00> : vector<2x8xf32>
    %71 = vector.multi_reduction <add>, %70, %cst_32 [2] : vector<2x8x8xf32> to vector<2x8xf32>
    %72 = vector.shape_cast %71 : vector<2x8xf32> to vector<2x8x1xf32>
    %73 = tpu.reciprocal %72 {approx = true} : vector<2x8x1xf32> -> vector<2x8x1xf32>
    %74 = vector.broadcast %73 : vector<2x8x1xf32> to vector<2x8x8xf32>
    %75 = arith.mulf %70, %74 : vector<2x8x8xf32>
    "tpu.trace_start"() <{level = 10 : i32, message = "bqk,bkd->bqd"}> : () -> ()
    %cst_33 = arith.constant dense<0.000000e+00> : vector<2x8x8xf32>
    %76 = tpu.matmul %75, %64, %cst_33 {dimension_numbers = #tpu.dot_dimension_numbers<[2], [1], [1], [2], [0, 0, 0, 1, 1, 2], [0], [0]>} : vector<2x8x8xf32>, vector<2x8x8xf32>, vector<2x8x8xf32> -> vector<2x8x8xf32>
    "tpu.trace_stop"() : () -> ()
    %77 = vector.shape_cast %76 : vector<2x8x8xf32> to vector<16x8xf32>
    %78 = vector.extract_strided_slice %15 {offsets = [16, 0], sizes = [8, 32], strides = [1, 1]} : vector<32x32xf32> to vector<8x32xf32>
    %cst_34 = arith.constant dense<0.000000e+00> : vector<16x32xf32>
    %79 = tpu.matmul %77, %78, %cst_34 {dimension_numbers = #tpu.dot_dimension_numbers<[1], [0], [0], [1], [0, 0, 1, 1], [], []>} : vector<16x8xf32>, vector<8x32xf32>, vector<16x32xf32> -> vector<16x32xf32>
    %80 = arith.addf %61, %79 : vector<16x32xf32>
    %81 = vector.extract_strided_slice %20 {offsets = [0, 0, 24], sizes = [2, 8, 8], strides = [1, 1, 1]} : vector<2x8x32xf32> to vector<2x8x8xf32>
    %82 = vector.extract_strided_slice %21 {offsets = [0, 0, 24], sizes = [2, 8, 8], strides = [1, 1, 1]} : vector<2x8x32xf32> to vector<2x8x8xf32>
    %83 = vector.extract_strided_slice %22 {offsets = [0, 0, 24], sizes = [2, 8, 8], strides = [1, 1, 1]} : vector<2x8x32xf32> to vector<2x8x8xf32>
    "tpu.trace_start"() <{level = 10 : i32, message = "bqd,bkd->bqk"}> : () -> ()
    %cst_35 = arith.constant dense<0.000000e+00> : vector<2x8x8xf32>
    %84 = tpu.matmul %81, %82, %cst_35 {dimension_numbers = #tpu.dot_dimension_numbers<[2], [2], [1], [1], [0, 0, 0, 1, 1, 1], [0], [0]>} : vector<2x8x8xf32>, vector<2x8x8xf32>, vector<2x8x8xf32> -> vector<2x8x8xf32>
    "tpu.trace_stop"() : () -> ()
    %cst_36 = arith.constant dense<0xFF800000> : vector<2x8xf32>
    %85 = vector.multi_reduction <maximumf>, %84, %cst_36 [2] : vector<2x8x8xf32> to vector<2x8xf32>
    %86 = vector.shape_cast %85 : vector<2x8xf32> to vector<2x8x1xf32>
    %87 = vector.broadcast %86 : vector<2x8x1xf32> to vector<2x8x8xf32>
    %88 = arith.subf %84, %87 : vector<2x8x8xf32>
    %89 = math.exp %88 : vector<2x8x8xf32>
    %cst_37 = arith.constant dense<0.000000e+00> : vector<2x8xf32>
    %90 = vector.multi_reduction <add>, %89, %cst_37 [2] : vector<2x8x8xf32> to vector<2x8xf32>
    %91 = vector.shape_cast %90 : vector<2x8xf32> to vector<2x8x1xf32>
    %92 = tpu.reciprocal %91 {approx = true} : vector<2x8x1xf32> -> vector<2x8x1xf32>
    %93 = vector.broadcast %92 : vector<2x8x1xf32> to vector<2x8x8xf32>
    %94 = arith.mulf %89, %93 : vector<2x8x8xf32>
    "tpu.trace_start"() <{level = 10 : i32, message = "bqk,bkd->bqd"}> : () -> ()
    %cst_38 = arith.constant dense<0.000000e+00> : vector<2x8x8xf32>
    %95 = tpu.matmul %94, %83, %cst_38 {dimension_numbers = #tpu.dot_dimension_numbers<[2], [1], [1], [2], [0, 0, 0, 1, 1, 2], [0], [0]>} : vector<2x8x8xf32>, vector<2x8x8xf32>, vector<2x8x8xf32> -> vector<2x8x8xf32>
    "tpu.trace_stop"() : () -> ()
    %96 = vector.shape_cast %95 : vector<2x8x8xf32> to vector<16x8xf32>
    %97 = vector.extract_strided_slice %15 {offsets = [24, 0], sizes = [8, 32], strides = [1, 1]} : vector<32x32xf32> to vector<8x32xf32>
    %cst_39 = arith.constant dense<0.000000e+00> : vector<16x32xf32>
    %98 = tpu.matmul %96, %97, %cst_39 {dimension_numbers = #tpu.dot_dimension_numbers<[1], [0], [0], [1], [0, 0, 1, 1], [], []>} : vector<16x8xf32>, vector<8x32xf32>, vector<16x32xf32> -> vector<16x32xf32>
    %99 = arith.addf %80, %98 : vector<16x32xf32>
    %100 = vector.broadcast %17 : vector<1x32xf32> to vector<16x32xf32>
    %101 = arith.addf %99, %100 : vector<16x32xf32>
    %c0_40 = arith.constant 0 : index
    %c0_41 = arith.constant 0 : index
    %c0_42 = arith.constant 0 : index
    %c0_43 = arith.constant 0 : index
    %102 = vector.load %arg11[%c0_40, %c0_41, %c0_42, %c0_43] : memref<1x1x1x32xf32, #tpu.memory_space<vmem>>, vector<1x1x1x32xf32>
    %103 = vector.shape_cast %102 : vector<1x1x1x32xf32> to vector<1x32xf32>
    %c0_44 = arith.constant 0 : index
    %c0_45 = arith.constant 0 : index
    %c0_46 = arith.constant 0 : index
    %c0_47 = arith.constant 0 : index
    %104 = vector.load %arg12[%c0_44, %c0_45, %c0_46, %c0_47] : memref<1x1x1x32xf32, #tpu.memory_space<vmem>>, vector<1x1x1x32xf32>
    %105 = vector.shape_cast %104 : vector<1x1x1x32xf32> to vector<1x32xf32>
    %106 = arith.addf %3, %101 : vector<16x32xf32>
    %cst_48 = arith.constant dense<0.000000e+00> : vector<16xf32>
    %107 = vector.multi_reduction <add>, %106, %cst_48 [1] : vector<16x32xf32> to vector<16xf32>
    %108 = vector.shape_cast %107 : vector<16xf32> to vector<16x1xf32>
    %cst_49 = arith.constant 3.200000e+01 : f32
    %109 = vector.broadcast %cst_49 : f32 to vector<16x1xf32>
    %110 = arith.divf %108, %109 : vector<16x1xf32>
    %111 = vector.broadcast %110 : vector<16x1xf32> to vector<16x32xf32>
    %112 = arith.subf %106, %111 : vector<16x32xf32>
    %113 = arith.mulf %112, %112 : vector<16x32xf32>
    %cst_50 = arith.constant dense<0.000000e+00> : vector<16xf32>
    %114 = vector.multi_reduction <add>, %113, %cst_50 [1] : vector<16x32xf32> to vector<16xf32>
    %115 = vector.shape_cast %114 : vector<16xf32> to vector<16x1xf32>
    %cst_51 = arith.constant 3.200000e+01 : f32
    %116 = vector.broadcast %cst_51 : f32 to vector<16x1xf32>
    %117 = arith.divf %115, %116 : vector<16x1xf32>
    %118 = vector.broadcast %110 : vector<16x1xf32> to vector<16x32xf32>
    %119 = arith.subf %106, %118 : vector<16x32xf32>
    %cst_52 = arith.constant 9.99999974E-6 : f32
    %120 = vector.broadcast %cst_52 : f32 to vector<16x1xf32>
    %121 = arith.addf %117, %120 : vector<16x1xf32>
    %122 = math.rsqrt %121 : vector<16x1xf32>
    %123 = vector.broadcast %122 : vector<16x1xf32> to vector<16x32xf32>
    %124 = arith.mulf %119, %123 : vector<16x32xf32>
    %125 = vector.broadcast %103 : vector<1x32xf32> to vector<16x32xf32>
    %126 = arith.mulf %124, %125 : vector<16x32xf32>
    %127 = vector.broadcast %105 : vector<1x32xf32> to vector<16x32xf32>
    %128 = arith.addf %126, %127 : vector<16x32xf32>
    %c0_53 = arith.constant 0 : index
    %c0_54 = arith.constant 0 : index
    %c0_55 = arith.constant 0 : index
    %c0_56 = arith.constant 0 : index
    %129 = vector.load %arg7[%c0_53, %c0_54, %c0_55, %c0_56] : memref<1x1x32x64xf32, #tpu.memory_space<vmem>>, vector<1x1x32x64xf32>
    %130 = vector.shape_cast %129 : vector<1x1x32x64xf32> to vector<32x64xf32>
    %c0_57 = arith.constant 0 : index
    %c0_58 = arith.constant 0 : index
    %c0_59 = arith.constant 0 : index
    %c0_60 = arith.constant 0 : index
    %131 = vector.load %arg8[%c0_57, %c0_58, %c0_59, %c0_60] : memref<1x1x1x64xf32, #tpu.memory_space<vmem>>, vector<1x1x1x64xf32>
    %132 = vector.shape_cast %131 : vector<1x1x1x64xf32> to vector<1x64xf32>
    %c0_61 = arith.constant 0 : index
    %c0_62 = arith.constant 0 : index
    %c0_63 = arith.constant 0 : index
    %c0_64 = arith.constant 0 : index
    %133 = vector.load %arg9[%c0_61, %c0_62, %c0_63, %c0_64] : memref<1x1x64x32xf32, #tpu.memory_space<vmem>>, vector<1x1x64x32xf32>
    %134 = vector.shape_cast %133 : vector<1x1x64x32xf32> to vector<64x32xf32>
    %c0_65 = arith.constant 0 : index
    %c0_66 = arith.constant 0 : index
    %c0_67 = arith.constant 0 : index
    %c0_68 = arith.constant 0 : index
    %135 = vector.load %arg10[%c0_65, %c0_66, %c0_67, %c0_68] : memref<1x1x1x32xf32, #tpu.memory_space<vmem>>, vector<1x1x1x32xf32>
    %136 = vector.shape_cast %135 : vector<1x1x1x32xf32> to vector<1x32xf32>
    %cst_69 = arith.constant dense<0.000000e+00> : vector<16x64xf32>
    %137 = tpu.matmul %128, %130, %cst_69 {dimension_numbers = #tpu.dot_dimension_numbers<[1], [0], [0], [1], [0, 0, 1, 1], [], []>} : vector<16x32xf32>, vector<32x64xf32>, vector<16x64xf32> -> vector<16x64xf32>
    %138 = vector.broadcast %132 : vector<1x64xf32> to vector<16x64xf32>
    %139 = arith.addf %137, %138 : vector<16x64xf32>
    %cst_70 = arith.constant 0.000000e+00 : f32
    %140 = vector.broadcast %cst_70 : f32 to vector<16x64xf32>
    %141 = arith.maximumf %139, %140 : vector<16x64xf32>
    %cst_71 = arith.constant dense<0.000000e+00> : vector<16x32xf32>
    %142 = tpu.matmul %141, %134, %cst_71 {dimension_numbers = #tpu.dot_dimension_numbers<[1], [0], [0], [1], [0, 0, 1, 1], [], []>} : vector<16x64xf32>, vector<64x32xf32>, vector<16x32xf32> -> vector<16x32xf32>
    %143 = vector.broadcast %136 : vector<1x32xf32> to vector<16x32xf32>
    %144 = arith.addf %142, %143 : vector<16x32xf32>
    %c0_72 = arith.constant 0 : index
    %c0_73 = arith.constant 0 : index
    %c0_74 = arith.constant 0 : index
    %c0_75 = arith.constant 0 : index
    %145 = vector.load %arg13[%c0_72, %c0_73, %c0_74, %c0_75] : memref<1x1x1x32xf32, #tpu.memory_space<vmem>>, vector<1x1x1x32xf32>
    %146 = vector.shape_cast %145 : vector<1x1x1x32xf32> to vector<1x32xf32>
    %c0_76 = arith.constant 0 : index
    %c0_77 = arith.constant 0 : index
    %c0_78 = arith.constant 0 : index
    %c0_79 = arith.constant 0 : index
    %147 = vector.load %arg14[%c0_76, %c0_77, %c0_78, %c0_79] : memref<1x1x1x32xf32, #tpu.memory_space<vmem>>, vector<1x1x1x32xf32>
    %148 = vector.shape_cast %147 : vector<1x1x1x32xf32> to vector<1x32xf32>
    %149 = arith.addf %128, %144 : vector<16x32xf32>
    %cst_80 = arith.constant dense<0.000000e+00> : vector<16xf32>
    %150 = vector.multi_reduction <add>, %149, %cst_80 [1] : vector<16x32xf32> to vector<16xf32>
    %151 = vector.shape_cast %150 : vector<16xf32> to vector<16x1xf32>
    %cst_81 = arith.constant 3.200000e+01 : f32
    %152 = vector.broadcast %cst_81 : f32 to vector<16x1xf32>
    %153 = arith.divf %151, %152 : vector<16x1xf32>
    %154 = vector.broadcast %153 : vector<16x1xf32> to vector<16x32xf32>
    %155 = arith.subf %149, %154 : vector<16x32xf32>
    %156 = arith.mulf %155, %155 : vector<16x32xf32>
    %cst_82 = arith.constant dense<0.000000e+00> : vector<16xf32>
    %157 = vector.multi_reduction <add>, %156, %cst_82 [1] : vector<16x32xf32> to vector<16xf32>
    %158 = vector.shape_cast %157 : vector<16xf32> to vector<16x1xf32>
    %cst_83 = arith.constant 3.200000e+01 : f32
    %159 = vector.broadcast %cst_83 : f32 to vector<16x1xf32>
    %160 = arith.divf %158, %159 : vector<16x1xf32>
    %161 = vector.broadcast %153 : vector<16x1xf32> to vector<16x32xf32>
    %162 = arith.subf %149, %161 : vector<16x32xf32>
    %cst_84 = arith.constant 9.99999974E-6 : f32
    %163 = vector.broadcast %cst_84 : f32 to vector<16x1xf32>
    %164 = arith.addf %160, %163 : vector<16x1xf32>
    %165 = math.rsqrt %164 : vector<16x1xf32>
    %166 = vector.broadcast %165 : vector<16x1xf32> to vector<16x32xf32>
    %167 = arith.mulf %162, %166 : vector<16x32xf32>
    %168 = vector.broadcast %146 : vector<1x32xf32> to vector<16x32xf32>
    %169 = arith.mulf %167, %168 : vector<16x32xf32>
    %170 = vector.broadcast %148 : vector<1x32xf32> to vector<16x32xf32>
    %171 = arith.addf %169, %170 : vector<16x32xf32>
    %c0_85 = arith.constant 0 : index
    %c0_86 = arith.constant 0 : index
    %172 = vector.load %arg16[%c0_85, %c0_86] : memref<16x32xf32, #tpu.memory_space<vmem>>, vector<16x32xf32>
    tpu.vector_store %arg16[%c0_85, %c0_86], %171 {strides = array<i32>} : memref<16x32xf32, #tpu.memory_space<vmem>>, vector<16x32xf32>,
    %c1_i32 = arith.constant 1 : i32
    %173 = arith.cmpi eq, %arg1, %c1_i32 : i32
    %174 = arith.extui %173 : i1 to i32
    %c0_i32_87 = arith.constant 0 : i32
    %175 = arith.cmpi ne, %174, %c0_i32_87 : i32
    scf.if %175 {
      %176 = vector.shape_cast %171 : vector<16x32xf32> to vector<2x8x32xf32>
      %c0_88 = arith.constant 0 : index
      %c0_89 = arith.constant 0 : index
      %c0_90 = arith.constant 0 : index
      %c0_91 = arith.constant 0 : index
      %177 = vector.load %arg15[%c0_88, %c0_89, %c0_90, %c0_91] : memref<1x2x8x32xf32, #tpu.memory_space<vmem>>, vector<1x2x8x32xf32>
      %178 = vector.shape_cast %177 : vector<1x2x8x32xf32> to vector<2x8x32xf32>
      %179 = vector.shape_cast %176 : vector<2x8x32xf32> to vector<1x2x8x32xf32>
      tpu.vector_store %arg15[%c0_88, %c0_89, %c0_90, %c0_91], %179 {strides = array<i32>} : memref<1x2x8x32xf32, #tpu.memory_space<vmem>>, vector<1x2x8x32xf32>,
    } else {
    }
    return
  }
  func.func @transform_0(%arg0: i32, %arg1: i32) -> (i32, i32, i32, i32) {
    %c0_i32 = arith.constant 0 : i32
    %c0_i32_0 = arith.constant 0 : i32
    %c0_i32_1 = arith.constant 0 : i32
    %c0_i32_2 = arith.constant 0 : i32
    return %arg0, %c0_i32, %c0_i32_0, %c0_i32_1 : i32, i32, i32, i32
  }
  func.func @transform_1(%arg0: i32, %arg1: i32) -> (i32, i32, i32, i32) {
    %c0_i32 = arith.constant 0 : i32
    %c0_i32_0 = arith.constant 0 : i32
    %c0_i32_1 = arith.constant 0 : i32
    return %arg0, %arg1, %c0_i32, %c0_i32_0 : i32, i32, i32, i32
  }
  func.func @transform_2(%arg0: i32, %arg1: i32) -> (i32, i32, i32, i32) {
    %c0_i32 = arith.constant 0 : i32
    %c0_i32_0 = arith.constant 0 : i32
    %c0_i32_1 = arith.constant 0 : i32
    return %arg0, %arg1, %c0_i32, %c0_i32_0 : i32, i32, i32, i32
  }
  func.func @transform_3(%arg0: i32, %arg1: i32) -> (i32, i32, i32, i32) {
    %c0_i32 = arith.constant 0 : i32
    %c0_i32_0 = arith.constant 0 : i32
    %c0_i32_1 = arith.constant 0 : i32
    return %arg0, %arg1, %c0_i32, %c0_i32_0 : i32, i32, i32, i32
  }
  func.func @transform_4(%arg0: i32, %arg1: i32) -> (i32, i32, i32, i32) {
    %c0_i32 = arith.constant 0 : i32
    %c0_i32_0 = arith.constant 0 : i32
    %c0_i32_1 = arith.constant 0 : i32
    return %arg0, %arg1, %c0_i32, %c0_i32_0 : i32, i32, i32, i32
  }
  func.func @transform_5(%arg0: i32, %arg1: i32) -> (i32, i32, i32, i32) {
    %c0_i32 = arith.constant 0 : i32
    %c0_i32_0 = arith.constant 0 : i32
    %c0_i32_1 = arith.constant 0 : i32
    return %arg0, %arg1, %c0_i32, %c0_i32_0 : i32, i32, i32, i32
  }
  func.func @transform_6(%arg0: i32, %arg1: i32) -> (i32, i32, i32, i32) {
    %c0_i32 = arith.constant 0 : i32
    %c0_i32_0 = arith.constant 0 : i32
    %c0_i32_1 = arith.constant 0 : i32
    return %arg0, %arg1, %c0_i32, %c0_i32_0 : i32, i32, i32, i32
  }
  func.func @transform_7(%arg0: i32, %arg1: i32) -> (i32, i32, i32, i32) {
    %c0_i32 = arith.constant 0 : i32
    %c0_i32_0 = arith.constant 0 : i32
    %c0_i32_1 = arith.constant 0 : i32
    return %arg0, %arg1, %c0_i32, %c0_i32_0 : i32, i32, i32, i32
  }
  func.func @transform_8(%arg0: i32, %arg1: i32) -> (i32, i32, i32, i32) {
    %c0_i32 = arith.constant 0 : i32
    %c0_i32_0 = arith.constant 0 : i32
    %c0_i32_1 = arith.constant 0 : i32
    return %arg0, %arg1, %c0_i32, %c0_i32_0 : i32, i32, i32, i32
  }
  func.func @transform_9(%arg0: i32, %arg1: i32) -> (i32, i32, i32, i32) {
    %c0_i32 = arith.constant 0 : i32
    %c0_i32_0 = arith.constant 0 : i32
    %c0_i32_1 = arith.constant 0 : i32
    return %arg0, %arg1, %c0_i32, %c0_i32_0 : i32, i32, i32, i32
  }
  func.func @transform_10(%arg0: i32, %arg1: i32) -> (i32, i32, i32, i32) {
    %c0_i32 = arith.constant 0 : i32
    %c0_i32_0 = arith.constant 0 : i32
    %c0_i32_1 = arith.constant 0 : i32
    return %arg0, %arg1, %c0_i32, %c0_i32_0 : i32, i32, i32, i32
  }
  func.func @transform_11(%arg0: i32, %arg1: i32) -> (i32, i32, i32, i32) {
    %c0_i32 = arith.constant 0 : i32
    %c0_i32_0 = arith.constant 0 : i32
    %c0_i32_1 = arith.constant 0 : i32
    return %arg0, %arg1, %c0_i32, %c0_i32_0 : i32, i32, i32, i32
  }
  func.func @transform_12(%arg0: i32, %arg1: i32) -> (i32, i32, i32, i32) {
    %c0_i32 = arith.constant 0 : i32
    %c0_i32_0 = arith.constant 0 : i32
    %c0_i32_1 = arith.constant 0 : i32
    return %arg0, %arg1, %c0_i32, %c0_i32_0 : i32, i32, i32, i32
  }
  func.func @transform_13(%arg0: i32, %arg1: i32) -> (i32, i32, i32, i32) {
    %c0_i32 = arith.constant 0 : i32
    %c0_i32_0 = arith.constant 0 : i32
    %c0_i32_1 = arith.constant 0 : i32
    %c0_i32_2 = arith.constant 0 : i32
    return %arg0, %c0_i32, %c0_i32_0, %c0_i32_1 : i32, i32, i32, i32
  }
}

module attributes {stable_mosaic.version = 11 : i64} {
  func.func @_cross_head_kernel(%arg0: memref<2x2x8x32xf32, #tpu.memory_space<vmem>>, %arg1: memref<32x32xf32, #tpu.memory_space<vmem>>, %arg2: memref<1x32xf32, #tpu.memory_space<vmem>>, %arg3: memref<32x64xf32, #tpu.memory_space<vmem>>, %arg4: memref<1x64xf32, #tpu.memory_space<vmem>>, %arg5: memref<32x32xf32, #tpu.memory_space<vmem>>, %arg6: memref<1x32xf32, #tpu.memory_space<vmem>>, %arg7: memref<1x32xf32, #tpu.memory_space<vmem>>, %arg8: memref<1x32xf32, #tpu.memory_space<vmem>>, %arg9: memref<32x128xf32, #tpu.memory_space<vmem>>, %arg10: memref<1x128xf32, #tpu.memory_space<vmem>>, %arg11: memref<128x32xf32, #tpu.memory_space<vmem>>, %arg12: memref<1x32xf32, #tpu.memory_space<vmem>>, %arg13: memref<32x32xf32, #tpu.memory_space<vmem>>, %arg14: memref<1x32xf32, #tpu.memory_space<vmem>>, %arg15: memref<32x64xf32, #tpu.memory_space<vmem>>, %arg16: memref<1x64xf32, #tpu.memory_space<vmem>>, %arg17: memref<32x32xf32, #tpu.memory_space<vmem>>, %arg18: memref<1x32xf32, #tpu.memory_space<vmem>>, %arg19: memref<1x32xf32, #tpu.memory_space<vmem>>, %arg20: memref<1x32xf32, #tpu.memory_space<vmem>>, %arg21: memref<32x128xf32, #tpu.memory_space<vmem>>, %arg22: memref<1x128xf32, #tpu.memory_space<vmem>>, %arg23: memref<128x32xf32, #tpu.memory_space<vmem>>, %arg24: memref<1x32xf32, #tpu.memory_space<vmem>>, %arg25: memref<32x32xf32, #tpu.memory_space<vmem>>, %arg26: memref<32x32xf32, #tpu.memory_space<vmem>>, %arg27: memref<1x32xf32, #tpu.memory_space<vmem>>, %arg28: memref<32x5xf32, #tpu.memory_space<vmem>>, %arg29: memref<1x5xf32, #tpu.memory_space<vmem>>, %arg30: memref<8x5xf32, #tpu.memory_space<vmem>>) attributes {dimension_semantics = [], scalar_prefetch = 0 : i64, scratch_operands = 0 : i64, tpu.core_type = #tpu.core_type<tc>} {
    %c0 = arith.constant 0 : index
    %c0_0 = arith.constant 0 : index
    %c0_1 = arith.constant 0 : index
    %c0_2 = arith.constant 0 : index
    %0 = vector.load %arg0[%c0, %c0_0, %c0_1, %c0_2] : memref<2x2x8x32xf32, #tpu.memory_space<vmem>>, vector<1x2x8x32xf32>
    %1 = vector.shape_cast %0 : vector<1x2x8x32xf32> to vector<2x8x32xf32>
    %2 = vector.shape_cast %1 : vector<2x8x32xf32> to vector<16x32xf32>
    %c1 = arith.constant 1 : index
    %c0_3 = arith.constant 0 : index
    %c0_4 = arith.constant 0 : index
    %c0_5 = arith.constant 0 : index
    %3 = vector.load %arg0[%c1, %c0_3, %c0_4, %c0_5] : memref<2x2x8x32xf32, #tpu.memory_space<vmem>>, vector<1x2x8x32xf32>
    %4 = vector.shape_cast %3 : vector<1x2x8x32xf32> to vector<2x8x32xf32>
    %5 = vector.shape_cast %4 : vector<2x8x32xf32> to vector<16x32xf32>
    %c0_6 = arith.constant 0 : index
    %c0_7 = arith.constant 0 : index
    %6 = vector.load %arg1[%c0_6, %c0_7] : memref<32x32xf32, #tpu.memory_space<vmem>>, vector<32x32xf32>
    %cst = arith.constant dense<0.000000e+00> : vector<16x32xf32>
    %7 = tpu.matmul %2, %6, %cst {dimension_numbers = #tpu.dot_dimension_numbers<[1], [0], [0], [1], [0, 0, 1, 1], [], []>} : vector<16x32xf32>, vector<32x32xf32>, vector<16x32xf32> -> vector<16x32xf32>
    %c0_8 = arith.constant 0 : index
    %c0_9 = arith.constant 0 : index
    %8 = vector.load %arg2[%c0_8, %c0_9] : memref<1x32xf32, #tpu.memory_space<vmem>>, vector<1x32xf32>
    %9 = vector.broadcast %8 : vector<1x32xf32> to vector<16x32xf32>
    %10 = arith.addf %7, %9 : vector<16x32xf32>
    %c0_10 = arith.constant 0 : index
    %c0_11 = arith.constant 0 : index
    %11 = vector.load %arg3[%c0_10, %c0_11] : memref<32x64xf32, #tpu.memory_space<vmem>>, vector<32x64xf32>
    %cst_12 = arith.constant dense<0.000000e+00> : vector<16x64xf32>
    %12 = tpu.matmul %5, %11, %cst_12 {dimension_numbers = #tpu.dot_dimension_numbers<[1], [0], [0], [1], [0, 0, 1, 1], [], []>} : vector<16x32xf32>, vector<32x64xf32>, vector<16x64xf32> -> vector<16x64xf32>
    %c0_13 = arith.constant 0 : index
    %c0_14 = arith.constant 0 : index
    %13 = vector.load %arg4[%c0_13, %c0_14] : memref<1x64xf32, #tpu.memory_space<vmem>>, vector<1x64xf32>
    %14 = vector.broadcast %13 : vector<1x64xf32> to vector<16x64xf32>
    %15 = arith.addf %12, %14 : vector<16x64xf32>
    %16 = vector.extract_strided_slice %15 {offsets = [0, 0], sizes = [16, 32], strides = [1, 1]} : vector<16x64xf32> to vector<16x32xf32>
    %17 = vector.extract_strided_slice %15 {offsets = [0, 32], sizes = [16, 32], strides = [1, 1]} : vector<16x64xf32> to vector<16x32xf32>
    %c0_15 = arith.constant 0 : index
    %c0_16 = arith.constant 0 : index
    %18 = vector.load %arg5[%c0_15, %c0_16] : memref<32x32xf32, #tpu.memory_space<vmem>>, vector<32x32xf32>
    %c0_17 = arith.constant 0 : index
    %c0_18 = arith.constant 0 : index
    %19 = vector.load %arg6[%c0_17, %c0_18] : memref<1x32xf32, #tpu.memory_space<vmem>>, vector<1x32xf32>
    %20 = vector.shape_cast %10 : vector<16x32xf32> to vector<2x8x32xf32>
    %cst_19 = arith.constant 0.353553385 : f32
    %21 = vector.broadcast %cst_19 : f32 to vector<2x8x32xf32>
    %22 = arith.mulf %20, %21 : vector<2x8x32xf32>
    %23 = vector.shape_cast %16 : vector<16x32xf32> to vector<2x8x32xf32>
    %24 = vector.shape_cast %17 : vector<16x32xf32> to vector<2x8x32xf32>
    %cst_20 = arith.constant 0.000000e+00 : f32
    %25 = vector.broadcast %cst_20 : f32 to vector<16x32xf32>
    %26 = vector.extract_strided_slice %22 {offsets = [0, 0, 0], sizes = [2, 8, 8], strides = [1, 1, 1]} : vector<2x8x32xf32> to vector<2x8x8xf32>
    %27 = vector.extract_strided_slice %23 {offsets = [0, 0, 0], sizes = [2, 8, 8], strides = [1, 1, 1]} : vector<2x8x32xf32> to vector<2x8x8xf32>
    %28 = vector.extract_strided_slice %24 {offsets = [0, 0, 0], sizes = [2, 8, 8], strides = [1, 1, 1]} : vector<2x8x32xf32> to vector<2x8x8xf32>
    "tpu.trace_start"() <{level = 10 : i32, message = "bqd,bkd->bqk"}> : () -> ()
    %cst_21 = arith.constant dense<0.000000e+00> : vector<2x8x8xf32>
    %29 = tpu.matmul %26, %27, %cst_21 {dimension_numbers = #tpu.dot_dimension_numbers<[2], [2], [1], [1], [0, 0, 0, 1, 1, 1], [0], [0]>} : vector<2x8x8xf32>, vector<2x8x8xf32>, vector<2x8x8xf32> -> vector<2x8x8xf32>
    "tpu.trace_stop"() : () -> ()
    %cst_22 = arith.constant dense<0xFF800000> : vector<2x8xf32>
    %30 = vector.multi_reduction <maximumf>, %29, %cst_22 [2] : vector<2x8x8xf32> to vector<2x8xf32>
    %31 = vector.shape_cast %30 : vector<2x8xf32> to vector<2x8x1xf32>
    %32 = vector.broadcast %31 : vector<2x8x1xf32> to vector<2x8x8xf32>
    %33 = arith.subf %29, %32 : vector<2x8x8xf32>
    %34 = math.exp %33 : vector<2x8x8xf32>
    %cst_23 = arith.constant dense<0.000000e+00> : vector<2x8xf32>
    %35 = vector.multi_reduction <add>, %34, %cst_23 [2] : vector<2x8x8xf32> to vector<2x8xf32>
    %36 = vector.shape_cast %35 : vector<2x8xf32> to vector<2x8x1xf32>
    %37 = tpu.reciprocal %36 {approx = true} : vector<2x8x1xf32> -> vector<2x8x1xf32>
    %38 = vector.broadcast %37 : vector<2x8x1xf32> to vector<2x8x8xf32>
    %39 = arith.mulf %34, %38 : vector<2x8x8xf32>
    "tpu.trace_start"() <{level = 10 : i32, message = "bqk,bkd->bqd"}> : () -> ()
    %cst_24 = arith.constant dense<0.000000e+00> : vector<2x8x8xf32>
    %40 = tpu.matmul %39, %28, %cst_24 {dimension_numbers = #tpu.dot_dimension_numbers<[2], [1], [1], [2], [0, 0, 0, 1, 1, 2], [0], [0]>} : vector<2x8x8xf32>, vector<2x8x8xf32>, vector<2x8x8xf32> -> vector<2x8x8xf32>
    "tpu.trace_stop"() : () -> ()
    %41 = vector.shape_cast %40 : vector<2x8x8xf32> to vector<16x8xf32>
    %42 = vector.extract_strided_slice %18 {offsets = [0, 0], sizes = [8, 32], strides = [1, 1]} : vector<32x32xf32> to vector<8x32xf32>
    %cst_25 = arith.constant dense<0.000000e+00> : vector<16x32xf32>
    %43 = tpu.matmul %41, %42, %cst_25 {dimension_numbers = #tpu.dot_dimension_numbers<[1], [0], [0], [1], [0, 0, 1, 1], [], []>} : vector<16x8xf32>, vector<8x32xf32>, vector<16x32xf32> -> vector<16x32xf32>
    %44 = arith.addf %25, %43 : vector<16x32xf32>
    %45 = vector.extract_strided_slice %22 {offsets = [0, 0, 8], sizes = [2, 8, 8], strides = [1, 1, 1]} : vector<2x8x32xf32> to vector<2x8x8xf32>
    %46 = vector.extract_strided_slice %23 {offsets = [0, 0, 8], sizes = [2, 8, 8], strides = [1, 1, 1]} : vector<2x8x32xf32> to vector<2x8x8xf32>
    %47 = vector.extract_strided_slice %24 {offsets = [0, 0, 8], sizes = [2, 8, 8], strides = [1, 1, 1]} : vector<2x8x32xf32> to vector<2x8x8xf32>
    "tpu.trace_start"() <{level = 10 : i32, message = "bqd,bkd->bqk"}> : () -> ()
    %cst_26 = arith.constant dense<0.000000e+00> : vector<2x8x8xf32>
    %48 = tpu.matmul %45, %46, %cst_26 {dimension_numbers = #tpu.dot_dimension_numbers<[2], [2], [1], [1], [0, 0, 0, 1, 1, 1], [0], [0]>} : vector<2x8x8xf32>, vector<2x8x8xf32>, vector<2x8x8xf32> -> vector<2x8x8xf32>
    "tpu.trace_stop"() : () -> ()
    %cst_27 = arith.constant dense<0xFF800000> : vector<2x8xf32>
    %49 = vector.multi_reduction <maximumf>, %48, %cst_27 [2] : vector<2x8x8xf32> to vector<2x8xf32>
    %50 = vector.shape_cast %49 : vector<2x8xf32> to vector<2x8x1xf32>
    %51 = vector.broadcast %50 : vector<2x8x1xf32> to vector<2x8x8xf32>
    %52 = arith.subf %48, %51 : vector<2x8x8xf32>
    %53 = math.exp %52 : vector<2x8x8xf32>
    %cst_28 = arith.constant dense<0.000000e+00> : vector<2x8xf32>
    %54 = vector.multi_reduction <add>, %53, %cst_28 [2] : vector<2x8x8xf32> to vector<2x8xf32>
    %55 = vector.shape_cast %54 : vector<2x8xf32> to vector<2x8x1xf32>
    %56 = tpu.reciprocal %55 {approx = true} : vector<2x8x1xf32> -> vector<2x8x1xf32>
    %57 = vector.broadcast %56 : vector<2x8x1xf32> to vector<2x8x8xf32>
    %58 = arith.mulf %53, %57 : vector<2x8x8xf32>
    "tpu.trace_start"() <{level = 10 : i32, message = "bqk,bkd->bqd"}> : () -> ()
    %cst_29 = arith.constant dense<0.000000e+00> : vector<2x8x8xf32>
    %59 = tpu.matmul %58, %47, %cst_29 {dimension_numbers = #tpu.dot_dimension_numbers<[2], [1], [1], [2], [0, 0, 0, 1, 1, 2], [0], [0]>} : vector<2x8x8xf32>, vector<2x8x8xf32>, vector<2x8x8xf32> -> vector<2x8x8xf32>
    "tpu.trace_stop"() : () -> ()
    %60 = vector.shape_cast %59 : vector<2x8x8xf32> to vector<16x8xf32>
    %61 = vector.extract_strided_slice %18 {offsets = [8, 0], sizes = [8, 32], strides = [1, 1]} : vector<32x32xf32> to vector<8x32xf32>
    %cst_30 = arith.constant dense<0.000000e+00> : vector<16x32xf32>
    %62 = tpu.matmul %60, %61, %cst_30 {dimension_numbers = #tpu.dot_dimension_numbers<[1], [0], [0], [1], [0, 0, 1, 1], [], []>} : vector<16x8xf32>, vector<8x32xf32>, vector<16x32xf32> -> vector<16x32xf32>
    %63 = arith.addf %44, %62 : vector<16x32xf32>
    %64 = vector.extract_strided_slice %22 {offsets = [0, 0, 16], sizes = [2, 8, 8], strides = [1, 1, 1]} : vector<2x8x32xf32> to vector<2x8x8xf32>
    %65 = vector.extract_strided_slice %23 {offsets = [0, 0, 16], sizes = [2, 8, 8], strides = [1, 1, 1]} : vector<2x8x32xf32> to vector<2x8x8xf32>
    %66 = vector.extract_strided_slice %24 {offsets = [0, 0, 16], sizes = [2, 8, 8], strides = [1, 1, 1]} : vector<2x8x32xf32> to vector<2x8x8xf32>
    "tpu.trace_start"() <{level = 10 : i32, message = "bqd,bkd->bqk"}> : () -> ()
    %cst_31 = arith.constant dense<0.000000e+00> : vector<2x8x8xf32>
    %67 = tpu.matmul %64, %65, %cst_31 {dimension_numbers = #tpu.dot_dimension_numbers<[2], [2], [1], [1], [0, 0, 0, 1, 1, 1], [0], [0]>} : vector<2x8x8xf32>, vector<2x8x8xf32>, vector<2x8x8xf32> -> vector<2x8x8xf32>
    "tpu.trace_stop"() : () -> ()
    %cst_32 = arith.constant dense<0xFF800000> : vector<2x8xf32>
    %68 = vector.multi_reduction <maximumf>, %67, %cst_32 [2] : vector<2x8x8xf32> to vector<2x8xf32>
    %69 = vector.shape_cast %68 : vector<2x8xf32> to vector<2x8x1xf32>
    %70 = vector.broadcast %69 : vector<2x8x1xf32> to vector<2x8x8xf32>
    %71 = arith.subf %67, %70 : vector<2x8x8xf32>
    %72 = math.exp %71 : vector<2x8x8xf32>
    %cst_33 = arith.constant dense<0.000000e+00> : vector<2x8xf32>
    %73 = vector.multi_reduction <add>, %72, %cst_33 [2] : vector<2x8x8xf32> to vector<2x8xf32>
    %74 = vector.shape_cast %73 : vector<2x8xf32> to vector<2x8x1xf32>
    %75 = tpu.reciprocal %74 {approx = true} : vector<2x8x1xf32> -> vector<2x8x1xf32>
    %76 = vector.broadcast %75 : vector<2x8x1xf32> to vector<2x8x8xf32>
    %77 = arith.mulf %72, %76 : vector<2x8x8xf32>
    "tpu.trace_start"() <{level = 10 : i32, message = "bqk,bkd->bqd"}> : () -> ()
    %cst_34 = arith.constant dense<0.000000e+00> : vector<2x8x8xf32>
    %78 = tpu.matmul %77, %66, %cst_34 {dimension_numbers = #tpu.dot_dimension_numbers<[2], [1], [1], [2], [0, 0, 0, 1, 1, 2], [0], [0]>} : vector<2x8x8xf32>, vector<2x8x8xf32>, vector<2x8x8xf32> -> vector<2x8x8xf32>
    "tpu.trace_stop"() : () -> ()
    %79 = vector.shape_cast %78 : vector<2x8x8xf32> to vector<16x8xf32>
    %80 = vector.extract_strided_slice %18 {offsets = [16, 0], sizes = [8, 32], strides = [1, 1]} : vector<32x32xf32> to vector<8x32xf32>
    %cst_35 = arith.constant dense<0.000000e+00> : vector<16x32xf32>
    %81 = tpu.matmul %79, %80, %cst_35 {dimension_numbers = #tpu.dot_dimension_numbers<[1], [0], [0], [1], [0, 0, 1, 1], [], []>} : vector<16x8xf32>, vector<8x32xf32>, vector<16x32xf32> -> vector<16x32xf32>
    %82 = arith.addf %63, %81 : vector<16x32xf32>
    %83 = vector.extract_strided_slice %22 {offsets = [0, 0, 24], sizes = [2, 8, 8], strides = [1, 1, 1]} : vector<2x8x32xf32> to vector<2x8x8xf32>
    %84 = vector.extract_strided_slice %23 {offsets = [0, 0, 24], sizes = [2, 8, 8], strides = [1, 1, 1]} : vector<2x8x32xf32> to vector<2x8x8xf32>
    %85 = vector.extract_strided_slice %24 {offsets = [0, 0, 24], sizes = [2, 8, 8], strides = [1, 1, 1]} : vector<2x8x32xf32> to vector<2x8x8xf32>
    "tpu.trace_start"() <{level = 10 : i32, message = "bqd,bkd->bqk"}> : () -> ()
    %cst_36 = arith.constant dense<0.000000e+00> : vector<2x8x8xf32>
    %86 = tpu.matmul %83, %84, %cst_36 {dimension_numbers = #tpu.dot_dimension_numbers<[2], [2], [1], [1], [0, 0, 0, 1, 1, 1], [0], [0]>} : vector<2x8x8xf32>, vector<2x8x8xf32>, vector<2x8x8xf32> -> vector<2x8x8xf32>
    "tpu.trace_stop"() : () -> ()
    %cst_37 = arith.constant dense<0xFF800000> : vector<2x8xf32>
    %87 = vector.multi_reduction <maximumf>, %86, %cst_37 [2] : vector<2x8x8xf32> to vector<2x8xf32>
    %88 = vector.shape_cast %87 : vector<2x8xf32> to vector<2x8x1xf32>
    %89 = vector.broadcast %88 : vector<2x8x1xf32> to vector<2x8x8xf32>
    %90 = arith.subf %86, %89 : vector<2x8x8xf32>
    %91 = math.exp %90 : vector<2x8x8xf32>
    %cst_38 = arith.constant dense<0.000000e+00> : vector<2x8xf32>
    %92 = vector.multi_reduction <add>, %91, %cst_38 [2] : vector<2x8x8xf32> to vector<2x8xf32>
    %93 = vector.shape_cast %92 : vector<2x8xf32> to vector<2x8x1xf32>
    %94 = tpu.reciprocal %93 {approx = true} : vector<2x8x1xf32> -> vector<2x8x1xf32>
    %95 = vector.broadcast %94 : vector<2x8x1xf32> to vector<2x8x8xf32>
    %96 = arith.mulf %91, %95 : vector<2x8x8xf32>
    "tpu.trace_start"() <{level = 10 : i32, message = "bqk,bkd->bqd"}> : () -> ()
    %cst_39 = arith.constant dense<0.000000e+00> : vector<2x8x8xf32>
    %97 = tpu.matmul %96, %85, %cst_39 {dimension_numbers = #tpu.dot_dimension_numbers<[2], [1], [1], [2], [0, 0, 0, 1, 1, 2], [0], [0]>} : vector<2x8x8xf32>, vector<2x8x8xf32>, vector<2x8x8xf32> -> vector<2x8x8xf32>
    "tpu.trace_stop"() : () -> ()
    %98 = vector.shape_cast %97 : vector<2x8x8xf32> to vector<16x8xf32>
    %99 = vector.extract_strided_slice %18 {offsets = [24, 0], sizes = [8, 32], strides = [1, 1]} : vector<32x32xf32> to vector<8x32xf32>
    %cst_40 = arith.constant dense<0.000000e+00> : vector<16x32xf32>
    %100 = tpu.matmul %98, %99, %cst_40 {dimension_numbers = #tpu.dot_dimension_numbers<[1], [0], [0], [1], [0, 0, 1, 1], [], []>} : vector<16x8xf32>, vector<8x32xf32>, vector<16x32xf32> -> vector<16x32xf32>
    %101 = arith.addf %82, %100 : vector<16x32xf32>
    %102 = vector.broadcast %19 : vector<1x32xf32> to vector<16x32xf32>
    %103 = arith.addf %101, %102 : vector<16x32xf32>
    %c0_41 = arith.constant 0 : index
    %c0_42 = arith.constant 0 : index
    %104 = vector.load %arg7[%c0_41, %c0_42] : memref<1x32xf32, #tpu.memory_space<vmem>>, vector<1x32xf32>
    %c0_43 = arith.constant 0 : index
    %c0_44 = arith.constant 0 : index
    %105 = vector.load %arg8[%c0_43, %c0_44] : memref<1x32xf32, #tpu.memory_space<vmem>>, vector<1x32xf32>
    %106 = arith.addf %2, %103 : vector<16x32xf32>
    %cst_45 = arith.constant dense<0.000000e+00> : vector<16xf32>
    %107 = vector.multi_reduction <add>, %106, %cst_45 [1] : vector<16x32xf32> to vector<16xf32>
    %108 = vector.shape_cast %107 : vector<16xf32> to vector<16x1xf32>
    %cst_46 = arith.constant 3.200000e+01 : f32
    %109 = vector.broadcast %cst_46 : f32 to vector<16x1xf32>
    %110 = arith.divf %108, %109 : vector<16x1xf32>
    %111 = vector.broadcast %110 : vector<16x1xf32> to vector<16x32xf32>
    %112 = arith.subf %106, %111 : vector<16x32xf32>
    %113 = arith.mulf %112, %112 : vector<16x32xf32>
    %cst_47 = arith.constant dense<0.000000e+00> : vector<16xf32>
    %114 = vector.multi_reduction <add>, %113, %cst_47 [1] : vector<16x32xf32> to vector<16xf32>
    %115 = vector.shape_cast %114 : vector<16xf32> to vector<16x1xf32>
    %cst_48 = arith.constant 3.200000e+01 : f32
    %116 = vector.broadcast %cst_48 : f32 to vector<16x1xf32>
    %117 = arith.divf %115, %116 : vector<16x1xf32>
    %118 = vector.broadcast %110 : vector<16x1xf32> to vector<16x32xf32>
    %119 = arith.subf %106, %118 : vector<16x32xf32>
    %cst_49 = arith.constant 9.99999974E-6 : f32
    %120 = vector.broadcast %cst_49 : f32 to vector<16x1xf32>
    %121 = arith.addf %117, %120 : vector<16x1xf32>
    %122 = math.rsqrt %121 : vector<16x1xf32>
    %123 = vector.broadcast %122 : vector<16x1xf32> to vector<16x32xf32>
    %124 = arith.mulf %119, %123 : vector<16x32xf32>
    %125 = vector.broadcast %104 : vector<1x32xf32> to vector<16x32xf32>
    %126 = arith.mulf %124, %125 : vector<16x32xf32>
    %127 = vector.broadcast %105 : vector<1x32xf32> to vector<16x32xf32>
    %128 = arith.addf %126, %127 : vector<16x32xf32>
    %c0_50 = arith.constant 0 : index
    %c0_51 = arith.constant 0 : index
    %129 = vector.load %arg9[%c0_50, %c0_51] : memref<32x128xf32, #tpu.memory_space<vmem>>, vector<32x128xf32>
    %c0_52 = arith.constant 0 : index
    %c0_53 = arith.constant 0 : index
    %130 = vector.load %arg10[%c0_52, %c0_53] : memref<1x128xf32, #tpu.memory_space<vmem>>, vector<1x128xf32>
    %c0_54 = arith.constant 0 : index
    %c0_55 = arith.constant 0 : index
    %131 = vector.load %arg11[%c0_54, %c0_55] : memref<128x32xf32, #tpu.memory_space<vmem>>, vector<128x32xf32>
    %c0_56 = arith.constant 0 : index
    %c0_57 = arith.constant 0 : index
    %132 = vector.load %arg12[%c0_56, %c0_57] : memref<1x32xf32, #tpu.memory_space<vmem>>, vector<1x32xf32>
    %cst_58 = arith.constant dense<0.000000e+00> : vector<16x128xf32>
    %133 = tpu.matmul %128, %129, %cst_58 {dimension_numbers = #tpu.dot_dimension_numbers<[1], [0], [0], [1], [0, 0, 1, 1], [], []>} : vector<16x32xf32>, vector<32x128xf32>, vector<16x128xf32> -> vector<16x128xf32>
    %134 = vector.broadcast %130 : vector<1x128xf32> to vector<16x128xf32>
    %135 = arith.addf %133, %134 : vector<16x128xf32>
    %cst_59 = arith.constant 0.000000e+00 : f32
    %136 = vector.broadcast %cst_59 : f32 to vector<16x128xf32>
    %137 = arith.maximumf %135, %136 : vector<16x128xf32>
    %cst_60 = arith.constant dense<0.000000e+00> : vector<16x32xf32>
    %138 = tpu.matmul %137, %131, %cst_60 {dimension_numbers = #tpu.dot_dimension_numbers<[1], [0], [0], [1], [0, 0, 1, 1], [], []>} : vector<16x128xf32>, vector<128x32xf32>, vector<16x32xf32> -> vector<16x32xf32>
    %139 = vector.broadcast %132 : vector<1x32xf32> to vector<16x32xf32>
    %140 = arith.addf %138, %139 : vector<16x32xf32>
    %c0_61 = arith.constant 0 : index
    %c0_62 = arith.constant 0 : index
    %141 = vector.load %arg7[%c0_61, %c0_62] : memref<1x32xf32, #tpu.memory_space<vmem>>, vector<1x32xf32>
    %c0_63 = arith.constant 0 : index
    %c0_64 = arith.constant 0 : index
    %142 = vector.load %arg8[%c0_63, %c0_64] : memref<1x32xf32, #tpu.memory_space<vmem>>, vector<1x32xf32>
    %143 = arith.addf %128, %140 : vector<16x32xf32>
    %cst_65 = arith.constant dense<0.000000e+00> : vector<16xf32>
    %144 = vector.multi_reduction <add>, %143, %cst_65 [1] : vector<16x32xf32> to vector<16xf32>
    %145 = vector.shape_cast %144 : vector<16xf32> to vector<16x1xf32>
    %cst_66 = arith.constant 3.200000e+01 : f32
    %146 = vector.broadcast %cst_66 : f32 to vector<16x1xf32>
    %147 = arith.divf %145, %146 : vector<16x1xf32>
    %148 = vector.broadcast %147 : vector<16x1xf32> to vector<16x32xf32>
    %149 = arith.subf %143, %148 : vector<16x32xf32>
    %150 = arith.mulf %149, %149 : vector<16x32xf32>
    %cst_67 = arith.constant dense<0.000000e+00> : vector<16xf32>
    %151 = vector.multi_reduction <add>, %150, %cst_67 [1] : vector<16x32xf32> to vector<16xf32>
    %152 = vector.shape_cast %151 : vector<16xf32> to vector<16x1xf32>
    %cst_68 = arith.constant 3.200000e+01 : f32
    %153 = vector.broadcast %cst_68 : f32 to vector<16x1xf32>
    %154 = arith.divf %152, %153 : vector<16x1xf32>
    %155 = vector.broadcast %147 : vector<16x1xf32> to vector<16x32xf32>
    %156 = arith.subf %143, %155 : vector<16x32xf32>
    %cst_69 = arith.constant 9.99999974E-6 : f32
    %157 = vector.broadcast %cst_69 : f32 to vector<16x1xf32>
    %158 = arith.addf %154, %157 : vector<16x1xf32>
    %159 = math.rsqrt %158 : vector<16x1xf32>
    %160 = vector.broadcast %159 : vector<16x1xf32> to vector<16x32xf32>
    %161 = arith.mulf %156, %160 : vector<16x32xf32>
    %162 = vector.broadcast %141 : vector<1x32xf32> to vector<16x32xf32>
    %163 = arith.mulf %161, %162 : vector<16x32xf32>
    %164 = vector.broadcast %142 : vector<1x32xf32> to vector<16x32xf32>
    %165 = arith.addf %163, %164 : vector<16x32xf32>
    %c0_70 = arith.constant 0 : index
    %c0_71 = arith.constant 0 : index
    %166 = vector.load %arg13[%c0_70, %c0_71] : memref<32x32xf32, #tpu.memory_space<vmem>>, vector<32x32xf32>
    %cst_72 = arith.constant dense<0.000000e+00> : vector<16x32xf32>
    %167 = tpu.matmul %5, %166, %cst_72 {dimension_numbers = #tpu.dot_dimension_numbers<[1], [0], [0], [1], [0, 0, 1, 1], [], []>} : vector<16x32xf32>, vector<32x32xf32>, vector<16x32xf32> -> vector<16x32xf32>
    %c0_73 = arith.constant 0 : index
    %c0_74 = arith.constant 0 : index
    %168 = vector.load %arg14[%c0_73, %c0_74] : memref<1x32xf32, #tpu.memory_space<vmem>>, vector<1x32xf32>
    %169 = vector.broadcast %168 : vector<1x32xf32> to vector<16x32xf32>
    %170 = arith.addf %167, %169 : vector<16x32xf32>
    %c0_75 = arith.constant 0 : index
    %c0_76 = arith.constant 0 : index
    %171 = vector.load %arg15[%c0_75, %c0_76] : memref<32x64xf32, #tpu.memory_space<vmem>>, vector<32x64xf32>
    %cst_77 = arith.constant dense<0.000000e+00> : vector<16x64xf32>
    %172 = tpu.matmul %165, %171, %cst_77 {dimension_numbers = #tpu.dot_dimension_numbers<[1], [0], [0], [1], [0, 0, 1, 1], [], []>} : vector<16x32xf32>, vector<32x64xf32>, vector<16x64xf32> -> vector<16x64xf32>
    %c0_78 = arith.constant 0 : index
    %c0_79 = arith.constant 0 : index
    %173 = vector.load %arg16[%c0_78, %c0_79] : memref<1x64xf32, #tpu.memory_space<vmem>>, vector<1x64xf32>
    %174 = vector.broadcast %173 : vector<1x64xf32> to vector<16x64xf32>
    %175 = arith.addf %172, %174 : vector<16x64xf32>
    %176 = vector.extract_strided_slice %175 {offsets = [0, 0], sizes = [16, 32], strides = [1, 1]} : vector<16x64xf32> to vector<16x32xf32>
    %177 = vector.extract_strided_slice %175 {offsets = [0, 32], sizes = [16, 32], strides = [1, 1]} : vector<16x64xf32> to vector<16x32xf32>
    %c0_80 = arith.constant 0 : index
    %c0_81 = arith.constant 0 : index
    %178 = vector.load %arg17[%c0_80, %c0_81] : memref<32x32xf32, #tpu.memory_space<vmem>>, vector<32x32xf32>
    %c0_82 = arith.constant 0 : index
    %c0_83 = arith.constant 0 : index
    %179 = vector.load %arg18[%c0_82, %c0_83] : memref<1x32xf32, #tpu.memory_space<vmem>>, vector<1x32xf32>
    %180 = vector.shape_cast %170 : vector<16x32xf32> to vector<2x8x32xf32>
    %cst_84 = arith.constant 0.353553385 : f32
    %181 = vector.broadcast %cst_84 : f32 to vector<2x8x32xf32>
    %182 = arith.mulf %180, %181 : vector<2x8x32xf32>
    %183 = vector.shape_cast %176 : vector<16x32xf32> to vector<2x8x32xf32>
    %184 = vector.shape_cast %177 : vector<16x32xf32> to vector<2x8x32xf32>
    %cst_85 = arith.constant 0.000000e+00 : f32
    %185 = vector.broadcast %cst_85 : f32 to vector<16x32xf32>
    %186 = vector.extract_strided_slice %182 {offsets = [0, 0, 0], sizes = [2, 8, 8], strides = [1, 1, 1]} : vector<2x8x32xf32> to vector<2x8x8xf32>
    %187 = vector.extract_strided_slice %183 {offsets = [0, 0, 0], sizes = [2, 8, 8], strides = [1, 1, 1]} : vector<2x8x32xf32> to vector<2x8x8xf32>
    %188 = vector.extract_strided_slice %184 {offsets = [0, 0, 0], sizes = [2, 8, 8], strides = [1, 1, 1]} : vector<2x8x32xf32> to vector<2x8x8xf32>
    "tpu.trace_start"() <{level = 10 : i32, message = "bqd,bkd->bqk"}> : () -> ()
    %cst_86 = arith.constant dense<0.000000e+00> : vector<2x8x8xf32>
    %189 = tpu.matmul %186, %187, %cst_86 {dimension_numbers = #tpu.dot_dimension_numbers<[2], [2], [1], [1], [0, 0, 0, 1, 1, 1], [0], [0]>} : vector<2x8x8xf32>, vector<2x8x8xf32>, vector<2x8x8xf32> -> vector<2x8x8xf32>
    "tpu.trace_stop"() : () -> ()
    %cst_87 = arith.constant dense<0xFF800000> : vector<2x8xf32>
    %190 = vector.multi_reduction <maximumf>, %189, %cst_87 [2] : vector<2x8x8xf32> to vector<2x8xf32>
    %191 = vector.shape_cast %190 : vector<2x8xf32> to vector<2x8x1xf32>
    %192 = vector.broadcast %191 : vector<2x8x1xf32> to vector<2x8x8xf32>
    %193 = arith.subf %189, %192 : vector<2x8x8xf32>
    %194 = math.exp %193 : vector<2x8x8xf32>
    %cst_88 = arith.constant dense<0.000000e+00> : vector<2x8xf32>
    %195 = vector.multi_reduction <add>, %194, %cst_88 [2] : vector<2x8x8xf32> to vector<2x8xf32>
    %196 = vector.shape_cast %195 : vector<2x8xf32> to vector<2x8x1xf32>
    %197 = tpu.reciprocal %196 {approx = true} : vector<2x8x1xf32> -> vector<2x8x1xf32>
    %198 = vector.broadcast %197 : vector<2x8x1xf32> to vector<2x8x8xf32>
    %199 = arith.mulf %194, %198 : vector<2x8x8xf32>
    "tpu.trace_start"() <{level = 10 : i32, message = "bqk,bkd->bqd"}> : () -> ()
    %cst_89 = arith.constant dense<0.000000e+00> : vector<2x8x8xf32>
    %200 = tpu.matmul %199, %188, %cst_89 {dimension_numbers = #tpu.dot_dimension_numbers<[2], [1], [1], [2], [0, 0, 0, 1, 1, 2], [0], [0]>} : vector<2x8x8xf32>, vector<2x8x8xf32>, vector<2x8x8xf32> -> vector<2x8x8xf32>
    "tpu.trace_stop"() : () -> ()
    %201 = vector.shape_cast %200 : vector<2x8x8xf32> to vector<16x8xf32>
    %202 = vector.extract_strided_slice %178 {offsets = [0, 0], sizes = [8, 32], strides = [1, 1]} : vector<32x32xf32> to vector<8x32xf32>
    %cst_90 = arith.constant dense<0.000000e+00> : vector<16x32xf32>
    %203 = tpu.matmul %201, %202, %cst_90 {dimension_numbers = #tpu.dot_dimension_numbers<[1], [0], [0], [1], [0, 0, 1, 1], [], []>} : vector<16x8xf32>, vector<8x32xf32>, vector<16x32xf32> -> vector<16x32xf32>
    %204 = arith.addf %185, %203 : vector<16x32xf32>
    %205 = vector.extract_strided_slice %182 {offsets = [0, 0, 8], sizes = [2, 8, 8], strides = [1, 1, 1]} : vector<2x8x32xf32> to vector<2x8x8xf32>
    %206 = vector.extract_strided_slice %183 {offsets = [0, 0, 8], sizes = [2, 8, 8], strides = [1, 1, 1]} : vector<2x8x32xf32> to vector<2x8x8xf32>
    %207 = vector.extract_strided_slice %184 {offsets = [0, 0, 8], sizes = [2, 8, 8], strides = [1, 1, 1]} : vector<2x8x32xf32> to vector<2x8x8xf32>
    "tpu.trace_start"() <{level = 10 : i32, message = "bqd,bkd->bqk"}> : () -> ()
    %cst_91 = arith.constant dense<0.000000e+00> : vector<2x8x8xf32>
    %208 = tpu.matmul %205, %206, %cst_91 {dimension_numbers = #tpu.dot_dimension_numbers<[2], [2], [1], [1], [0, 0, 0, 1, 1, 1], [0], [0]>} : vector<2x8x8xf32>, vector<2x8x8xf32>, vector<2x8x8xf32> -> vector<2x8x8xf32>
    "tpu.trace_stop"() : () -> ()
    %cst_92 = arith.constant dense<0xFF800000> : vector<2x8xf32>
    %209 = vector.multi_reduction <maximumf>, %208, %cst_92 [2] : vector<2x8x8xf32> to vector<2x8xf32>
    %210 = vector.shape_cast %209 : vector<2x8xf32> to vector<2x8x1xf32>
    %211 = vector.broadcast %210 : vector<2x8x1xf32> to vector<2x8x8xf32>
    %212 = arith.subf %208, %211 : vector<2x8x8xf32>
    %213 = math.exp %212 : vector<2x8x8xf32>
    %cst_93 = arith.constant dense<0.000000e+00> : vector<2x8xf32>
    %214 = vector.multi_reduction <add>, %213, %cst_93 [2] : vector<2x8x8xf32> to vector<2x8xf32>
    %215 = vector.shape_cast %214 : vector<2x8xf32> to vector<2x8x1xf32>
    %216 = tpu.reciprocal %215 {approx = true} : vector<2x8x1xf32> -> vector<2x8x1xf32>
    %217 = vector.broadcast %216 : vector<2x8x1xf32> to vector<2x8x8xf32>
    %218 = arith.mulf %213, %217 : vector<2x8x8xf32>
    "tpu.trace_start"() <{level = 10 : i32, message = "bqk,bkd->bqd"}> : () -> ()
    %cst_94 = arith.constant dense<0.000000e+00> : vector<2x8x8xf32>
    %219 = tpu.matmul %218, %207, %cst_94 {dimension_numbers = #tpu.dot_dimension_numbers<[2], [1], [1], [2], [0, 0, 0, 1, 1, 2], [0], [0]>} : vector<2x8x8xf32>, vector<2x8x8xf32>, vector<2x8x8xf32> -> vector<2x8x8xf32>
    "tpu.trace_stop"() : () -> ()
    %220 = vector.shape_cast %219 : vector<2x8x8xf32> to vector<16x8xf32>
    %221 = vector.extract_strided_slice %178 {offsets = [8, 0], sizes = [8, 32], strides = [1, 1]} : vector<32x32xf32> to vector<8x32xf32>
    %cst_95 = arith.constant dense<0.000000e+00> : vector<16x32xf32>
    %222 = tpu.matmul %220, %221, %cst_95 {dimension_numbers = #tpu.dot_dimension_numbers<[1], [0], [0], [1], [0, 0, 1, 1], [], []>} : vector<16x8xf32>, vector<8x32xf32>, vector<16x32xf32> -> vector<16x32xf32>
    %223 = arith.addf %204, %222 : vector<16x32xf32>
    %224 = vector.extract_strided_slice %182 {offsets = [0, 0, 16], sizes = [2, 8, 8], strides = [1, 1, 1]} : vector<2x8x32xf32> to vector<2x8x8xf32>
    %225 = vector.extract_strided_slice %183 {offsets = [0, 0, 16], sizes = [2, 8, 8], strides = [1, 1, 1]} : vector<2x8x32xf32> to vector<2x8x8xf32>
    %226 = vector.extract_strided_slice %184 {offsets = [0, 0, 16], sizes = [2, 8, 8], strides = [1, 1, 1]} : vector<2x8x32xf32> to vector<2x8x8xf32>
    "tpu.trace_start"() <{level = 10 : i32, message = "bqd,bkd->bqk"}> : () -> ()
    %cst_96 = arith.constant dense<0.000000e+00> : vector<2x8x8xf32>
    %227 = tpu.matmul %224, %225, %cst_96 {dimension_numbers = #tpu.dot_dimension_numbers<[2], [2], [1], [1], [0, 0, 0, 1, 1, 1], [0], [0]>} : vector<2x8x8xf32>, vector<2x8x8xf32>, vector<2x8x8xf32> -> vector<2x8x8xf32>
    "tpu.trace_stop"() : () -> ()
    %cst_97 = arith.constant dense<0xFF800000> : vector<2x8xf32>
    %228 = vector.multi_reduction <maximumf>, %227, %cst_97 [2] : vector<2x8x8xf32> to vector<2x8xf32>
    %229 = vector.shape_cast %228 : vector<2x8xf32> to vector<2x8x1xf32>
    %230 = vector.broadcast %229 : vector<2x8x1xf32> to vector<2x8x8xf32>
    %231 = arith.subf %227, %230 : vector<2x8x8xf32>
    %232 = math.exp %231 : vector<2x8x8xf32>
    %cst_98 = arith.constant dense<0.000000e+00> : vector<2x8xf32>
    %233 = vector.multi_reduction <add>, %232, %cst_98 [2] : vector<2x8x8xf32> to vector<2x8xf32>
    %234 = vector.shape_cast %233 : vector<2x8xf32> to vector<2x8x1xf32>
    %235 = tpu.reciprocal %234 {approx = true} : vector<2x8x1xf32> -> vector<2x8x1xf32>
    %236 = vector.broadcast %235 : vector<2x8x1xf32> to vector<2x8x8xf32>
    %237 = arith.mulf %232, %236 : vector<2x8x8xf32>
    "tpu.trace_start"() <{level = 10 : i32, message = "bqk,bkd->bqd"}> : () -> ()
    %cst_99 = arith.constant dense<0.000000e+00> : vector<2x8x8xf32>
    %238 = tpu.matmul %237, %226, %cst_99 {dimension_numbers = #tpu.dot_dimension_numbers<[2], [1], [1], [2], [0, 0, 0, 1, 1, 2], [0], [0]>} : vector<2x8x8xf32>, vector<2x8x8xf32>, vector<2x8x8xf32> -> vector<2x8x8xf32>
    "tpu.trace_stop"() : () -> ()
    %239 = vector.shape_cast %238 : vector<2x8x8xf32> to vector<16x8xf32>
    %240 = vector.extract_strided_slice %178 {offsets = [16, 0], sizes = [8, 32], strides = [1, 1]} : vector<32x32xf32> to vector<8x32xf32>
    %cst_100 = arith.constant dense<0.000000e+00> : vector<16x32xf32>
    %241 = tpu.matmul %239, %240, %cst_100 {dimension_numbers = #tpu.dot_dimension_numbers<[1], [0], [0], [1], [0, 0, 1, 1], [], []>} : vector<16x8xf32>, vector<8x32xf32>, vector<16x32xf32> -> vector<16x32xf32>
    %242 = arith.addf %223, %241 : vector<16x32xf32>
    %243 = vector.extract_strided_slice %182 {offsets = [0, 0, 24], sizes = [2, 8, 8], strides = [1, 1, 1]} : vector<2x8x32xf32> to vector<2x8x8xf32>
    %244 = vector.extract_strided_slice %183 {offsets = [0, 0, 24], sizes = [2, 8, 8], strides = [1, 1, 1]} : vector<2x8x32xf32> to vector<2x8x8xf32>
    %245 = vector.extract_strided_slice %184 {offsets = [0, 0, 24], sizes = [2, 8, 8], strides = [1, 1, 1]} : vector<2x8x32xf32> to vector<2x8x8xf32>
    "tpu.trace_start"() <{level = 10 : i32, message = "bqd,bkd->bqk"}> : () -> ()
    %cst_101 = arith.constant dense<0.000000e+00> : vector<2x8x8xf32>
    %246 = tpu.matmul %243, %244, %cst_101 {dimension_numbers = #tpu.dot_dimension_numbers<[2], [2], [1], [1], [0, 0, 0, 1, 1, 1], [0], [0]>} : vector<2x8x8xf32>, vector<2x8x8xf32>, vector<2x8x8xf32> -> vector<2x8x8xf32>
    "tpu.trace_stop"() : () -> ()
    %cst_102 = arith.constant dense<0xFF800000> : vector<2x8xf32>
    %247 = vector.multi_reduction <maximumf>, %246, %cst_102 [2] : vector<2x8x8xf32> to vector<2x8xf32>
    %248 = vector.shape_cast %247 : vector<2x8xf32> to vector<2x8x1xf32>
    %249 = vector.broadcast %248 : vector<2x8x1xf32> to vector<2x8x8xf32>
    %250 = arith.subf %246, %249 : vector<2x8x8xf32>
    %251 = math.exp %250 : vector<2x8x8xf32>
    %cst_103 = arith.constant dense<0.000000e+00> : vector<2x8xf32>
    %252 = vector.multi_reduction <add>, %251, %cst_103 [2] : vector<2x8x8xf32> to vector<2x8xf32>
    %253 = vector.shape_cast %252 : vector<2x8xf32> to vector<2x8x1xf32>
    %254 = tpu.reciprocal %253 {approx = true} : vector<2x8x1xf32> -> vector<2x8x1xf32>
    %255 = vector.broadcast %254 : vector<2x8x1xf32> to vector<2x8x8xf32>
    %256 = arith.mulf %251, %255 : vector<2x8x8xf32>
    "tpu.trace_start"() <{level = 10 : i32, message = "bqk,bkd->bqd"}> : () -> ()
    %cst_104 = arith.constant dense<0.000000e+00> : vector<2x8x8xf32>
    %257 = tpu.matmul %256, %245, %cst_104 {dimension_numbers = #tpu.dot_dimension_numbers<[2], [1], [1], [2], [0, 0, 0, 1, 1, 2], [0], [0]>} : vector<2x8x8xf32>, vector<2x8x8xf32>, vector<2x8x8xf32> -> vector<2x8x8xf32>
    "tpu.trace_stop"() : () -> ()
    %258 = vector.shape_cast %257 : vector<2x8x8xf32> to vector<16x8xf32>
    %259 = vector.extract_strided_slice %178 {offsets = [24, 0], sizes = [8, 32], strides = [1, 1]} : vector<32x32xf32> to vector<8x32xf32>
    %cst_105 = arith.constant dense<0.000000e+00> : vector<16x32xf32>
    %260 = tpu.matmul %258, %259, %cst_105 {dimension_numbers = #tpu.dot_dimension_numbers<[1], [0], [0], [1], [0, 0, 1, 1], [], []>} : vector<16x8xf32>, vector<8x32xf32>, vector<16x32xf32> -> vector<16x32xf32>
    %261 = arith.addf %242, %260 : vector<16x32xf32>
    %262 = vector.broadcast %179 : vector<1x32xf32> to vector<16x32xf32>
    %263 = arith.addf %261, %262 : vector<16x32xf32>
    %c0_106 = arith.constant 0 : index
    %c0_107 = arith.constant 0 : index
    %264 = vector.load %arg19[%c0_106, %c0_107] : memref<1x32xf32, #tpu.memory_space<vmem>>, vector<1x32xf32>
    %c0_108 = arith.constant 0 : index
    %c0_109 = arith.constant 0 : index
    %265 = vector.load %arg20[%c0_108, %c0_109] : memref<1x32xf32, #tpu.memory_space<vmem>>, vector<1x32xf32>
    %266 = arith.addf %5, %263 : vector<16x32xf32>
    %cst_110 = arith.constant dense<0.000000e+00> : vector<16xf32>
    %267 = vector.multi_reduction <add>, %266, %cst_110 [1] : vector<16x32xf32> to vector<16xf32>
    %268 = vector.shape_cast %267 : vector<16xf32> to vector<16x1xf32>
    %cst_111 = arith.constant 3.200000e+01 : f32
    %269 = vector.broadcast %cst_111 : f32 to vector<16x1xf32>
    %270 = arith.divf %268, %269 : vector<16x1xf32>
    %271 = vector.broadcast %270 : vector<16x1xf32> to vector<16x32xf32>
    %272 = arith.subf %266, %271 : vector<16x32xf32>
    %273 = arith.mulf %272, %272 : vector<16x32xf32>
    %cst_112 = arith.constant dense<0.000000e+00> : vector<16xf32>
    %274 = vector.multi_reduction <add>, %273, %cst_112 [1] : vector<16x32xf32> to vector<16xf32>
    %275 = vector.shape_cast %274 : vector<16xf32> to vector<16x1xf32>
    %cst_113 = arith.constant 3.200000e+01 : f32
    %276 = vector.broadcast %cst_113 : f32 to vector<16x1xf32>
    %277 = arith.divf %275, %276 : vector<16x1xf32>
    %278 = vector.broadcast %270 : vector<16x1xf32> to vector<16x32xf32>
    %279 = arith.subf %266, %278 : vector<16x32xf32>
    %cst_114 = arith.constant 9.99999974E-6 : f32
    %280 = vector.broadcast %cst_114 : f32 to vector<16x1xf32>
    %281 = arith.addf %277, %280 : vector<16x1xf32>
    %282 = math.rsqrt %281 : vector<16x1xf32>
    %283 = vector.broadcast %282 : vector<16x1xf32> to vector<16x32xf32>
    %284 = arith.mulf %279, %283 : vector<16x32xf32>
    %285 = vector.broadcast %264 : vector<1x32xf32> to vector<16x32xf32>
    %286 = arith.mulf %284, %285 : vector<16x32xf32>
    %287 = vector.broadcast %265 : vector<1x32xf32> to vector<16x32xf32>
    %288 = arith.addf %286, %287 : vector<16x32xf32>
    %c0_115 = arith.constant 0 : index
    %c0_116 = arith.constant 0 : index
    %289 = vector.load %arg21[%c0_115, %c0_116] : memref<32x128xf32, #tpu.memory_space<vmem>>, vector<32x128xf32>
    %c0_117 = arith.constant 0 : index
    %c0_118 = arith.constant 0 : index
    %290 = vector.load %arg22[%c0_117, %c0_118] : memref<1x128xf32, #tpu.memory_space<vmem>>, vector<1x128xf32>
    %c0_119 = arith.constant 0 : index
    %c0_120 = arith.constant 0 : index
    %291 = vector.load %arg23[%c0_119, %c0_120] : memref<128x32xf32, #tpu.memory_space<vmem>>, vector<128x32xf32>
    %c0_121 = arith.constant 0 : index
    %c0_122 = arith.constant 0 : index
    %292 = vector.load %arg24[%c0_121, %c0_122] : memref<1x32xf32, #tpu.memory_space<vmem>>, vector<1x32xf32>
    %cst_123 = arith.constant dense<0.000000e+00> : vector<16x128xf32>
    %293 = tpu.matmul %288, %289, %cst_123 {dimension_numbers = #tpu.dot_dimension_numbers<[1], [0], [0], [1], [0, 0, 1, 1], [], []>} : vector<16x32xf32>, vector<32x128xf32>, vector<16x128xf32> -> vector<16x128xf32>
    %294 = vector.broadcast %290 : vector<1x128xf32> to vector<16x128xf32>
    %295 = arith.addf %293, %294 : vector<16x128xf32>
    %cst_124 = arith.constant 0.000000e+00 : f32
    %296 = vector.broadcast %cst_124 : f32 to vector<16x128xf32>
    %297 = arith.maximumf %295, %296 : vector<16x128xf32>
    %cst_125 = arith.constant dense<0.000000e+00> : vector<16x32xf32>
    %298 = tpu.matmul %297, %291, %cst_125 {dimension_numbers = #tpu.dot_dimension_numbers<[1], [0], [0], [1], [0, 0, 1, 1], [], []>} : vector<16x128xf32>, vector<128x32xf32>, vector<16x32xf32> -> vector<16x32xf32>
    %299 = vector.broadcast %292 : vector<1x32xf32> to vector<16x32xf32>
    %300 = arith.addf %298, %299 : vector<16x32xf32>
    %c0_126 = arith.constant 0 : index
    %c0_127 = arith.constant 0 : index
    %301 = vector.load %arg19[%c0_126, %c0_127] : memref<1x32xf32, #tpu.memory_space<vmem>>, vector<1x32xf32>
    %c0_128 = arith.constant 0 : index
    %c0_129 = arith.constant 0 : index
    %302 = vector.load %arg20[%c0_128, %c0_129] : memref<1x32xf32, #tpu.memory_space<vmem>>, vector<1x32xf32>
    %303 = arith.addf %288, %300 : vector<16x32xf32>
    %cst_130 = arith.constant dense<0.000000e+00> : vector<16xf32>
    %304 = vector.multi_reduction <add>, %303, %cst_130 [1] : vector<16x32xf32> to vector<16xf32>
    %305 = vector.shape_cast %304 : vector<16xf32> to vector<16x1xf32>
    %cst_131 = arith.constant 3.200000e+01 : f32
    %306 = vector.broadcast %cst_131 : f32 to vector<16x1xf32>
    %307 = arith.divf %305, %306 : vector<16x1xf32>
    %308 = vector.broadcast %307 : vector<16x1xf32> to vector<16x32xf32>
    %309 = arith.subf %303, %308 : vector<16x32xf32>
    %310 = arith.mulf %309, %309 : vector<16x32xf32>
    %cst_132 = arith.constant dense<0.000000e+00> : vector<16xf32>
    %311 = vector.multi_reduction <add>, %310, %cst_132 [1] : vector<16x32xf32> to vector<16xf32>
    %312 = vector.shape_cast %311 : vector<16xf32> to vector<16x1xf32>
    %cst_133 = arith.constant 3.200000e+01 : f32
    %313 = vector.broadcast %cst_133 : f32 to vector<16x1xf32>
    %314 = arith.divf %312, %313 : vector<16x1xf32>
    %315 = vector.broadcast %307 : vector<16x1xf32> to vector<16x32xf32>
    %316 = arith.subf %303, %315 : vector<16x32xf32>
    %cst_134 = arith.constant 9.99999974E-6 : f32
    %317 = vector.broadcast %cst_134 : f32 to vector<16x1xf32>
    %318 = arith.addf %314, %317 : vector<16x1xf32>
    %319 = math.rsqrt %318 : vector<16x1xf32>
    %320 = vector.broadcast %319 : vector<16x1xf32> to vector<16x32xf32>
    %321 = arith.mulf %316, %320 : vector<16x32xf32>
    %322 = vector.broadcast %301 : vector<1x32xf32> to vector<16x32xf32>
    %323 = arith.mulf %321, %322 : vector<16x32xf32>
    %324 = vector.broadcast %302 : vector<1x32xf32> to vector<16x32xf32>
    %325 = arith.addf %323, %324 : vector<16x32xf32>
    %326 = vector.shape_cast %165 : vector<16x32xf32> to vector<2x8x32xf32>
    %cst_135 = arith.constant dense<0.000000e+00> : vector<8x32xf32>
    %327 = vector.multi_reduction <add>, %326, %cst_135 [0] : vector<2x8x32xf32> to vector<8x32xf32>
    %cst_136 = arith.constant 2.000000e+00 : f32
    %328 = vector.broadcast %cst_136 : f32 to vector<8x32xf32>
    %329 = arith.divf %327, %328 : vector<8x32xf32>
    %330 = vector.shape_cast %325 : vector<16x32xf32> to vector<2x8x32xf32>
    %cst_137 = arith.constant dense<0.000000e+00> : vector<8x32xf32>
    %331 = vector.multi_reduction <add>, %330, %cst_137 [0] : vector<2x8x32xf32> to vector<8x32xf32>
    %cst_138 = arith.constant 2.000000e+00 : f32
    %332 = vector.broadcast %cst_138 : f32 to vector<8x32xf32>
    %333 = arith.divf %331, %332 : vector<8x32xf32>
    %c0_139 = arith.constant 0 : index
    %c0_140 = arith.constant 0 : index
    %334 = vector.load %arg25[%c0_139, %c0_140] : memref<32x32xf32, #tpu.memory_space<vmem>>, vector<32x32xf32>
    %cst_141 = arith.constant dense<0.000000e+00> : vector<8x32xf32>
    %335 = tpu.matmul %329, %334, %cst_141 {dimension_numbers = #tpu.dot_dimension_numbers<[1], [0], [0], [1], [0, 0, 1, 1], [], []>} : vector<8x32xf32>, vector<32x32xf32>, vector<8x32xf32> -> vector<8x32xf32>
    %c0_142 = arith.constant 0 : index
    %c0_143 = arith.constant 0 : index
    %336 = vector.load %arg26[%c0_142, %c0_143] : memref<32x32xf32, #tpu.memory_space<vmem>>, vector<32x32xf32>
    %cst_144 = arith.constant dense<0.000000e+00> : vector<8x32xf32>
    %337 = tpu.matmul %333, %336, %cst_144 {dimension_numbers = #tpu.dot_dimension_numbers<[1], [0], [0], [1], [0, 0, 1, 1], [], []>} : vector<8x32xf32>, vector<32x32xf32>, vector<8x32xf32> -> vector<8x32xf32>
    %338 = arith.addf %335, %337 : vector<8x32xf32>
    %c0_145 = arith.constant 0 : index
    %c0_146 = arith.constant 0 : index
    %339 = vector.load %arg27[%c0_145, %c0_146] : memref<1x32xf32, #tpu.memory_space<vmem>>, vector<1x32xf32>
    %340 = vector.broadcast %339 : vector<1x32xf32> to vector<8x32xf32>
    %341 = arith.addf %338, %340 : vector<8x32xf32>
    %c0_147 = arith.constant 0 : index
    %c0_148 = arith.constant 0 : index
    %342 = vector.load %arg28[%c0_147, %c0_148] : memref<32x5xf32, #tpu.memory_space<vmem>>, vector<32x5xf32>
    %cst_149 = arith.constant dense<0.000000e+00> : vector<8x5xf32>
    %343 = tpu.matmul %341, %342, %cst_149 {dimension_numbers = #tpu.dot_dimension_numbers<[1], [0], [0], [1], [0, 0, 1, 1], [], []>} : vector<8x32xf32>, vector<32x5xf32>, vector<8x5xf32> -> vector<8x5xf32>
    %c0_150 = arith.constant 0 : index
    %c0_151 = arith.constant 0 : index
    %344 = vector.load %arg29[%c0_150, %c0_151] : memref<1x5xf32, #tpu.memory_space<vmem>>, vector<1x5xf32>
    %345 = vector.broadcast %344 : vector<1x5xf32> to vector<8x5xf32>
    %346 = arith.addf %343, %345 : vector<8x5xf32>
    %c0_152 = arith.constant 0 : index
    %c0_153 = arith.constant 0 : index
    %347 = vector.load %arg30[%c0_152, %c0_153] : memref<8x5xf32, #tpu.memory_space<vmem>>, vector<8x5xf32>
    tpu.vector_store %arg30[%c0_152, %c0_153], %346 {strides = array<i32>} : memref<8x5xf32, #tpu.memory_space<vmem>>, vector<8x5xf32>,
    return
  }
}

</mosaic_0001>

<llo_original>
// kernel: omics_transformer_forward.2
$region0: #{omics_transformer_forward.2}
  #allocation0 [shape = 'u32[]', space=smem, size = 0x4, offset = 0x4, fixed_abs, tag = 'smem constant byte address 0x4 - core index']
  #allocation1 [shape = 'u32[144,128]{1,0:T(1,128)}', space=vmem, size = 0x12000, scoped, tag = 'internal scratch']
  #allocation2 [shape = 'f32[16,32]{1,0:T(8,128)}', space=vmem, size = 0x2000, scoped, tag = 'scratch operand']
  %s0 = inlined_call_operand.vmem [shape: f32[2,2,8,32], index: 0, kind: input, shape index: {}]
  %s1 = inlined_call_operand.vmem [shape: f32[2,2,32,96], index: 1, kind: input, shape index: {}]
  %s2 = inlined_call_operand.vmem [shape: f32[2,2,1,96], index: 2, kind: input, shape index: {}]
  %s3 = inlined_call_operand.vmem [shape: f32[2,2,32,32], index: 3, kind: input, shape index: {}]
  %s4 = inlined_call_operand.vmem [shape: f32[2,2,1,32], index: 4, kind: input, shape index: {}]
  %s5 = inlined_call_operand.vmem [shape: f32[2,2,32,64], index: 5, kind: input, shape index: {}]
  %s6 = inlined_call_operand.vmem [shape: f32[2,2,1,64], index: 6, kind: input, shape index: {}]
  %s7 = inlined_call_operand.vmem [shape: f32[2,2,64,32], index: 7, kind: input, shape index: {}]
  %s8 = inlined_call_operand.vmem [shape: f32[2,2,1,32], index: 8, kind: input, shape index: {}]
  %s9 = inlined_call_operand.vmem [shape: f32[2,2,1,32], index: 9, kind: input, shape index: {}]
  %s10 = inlined_call_operand.vmem [shape: f32[2,2,1,32], index: 10, kind: input, shape index: {}]
  %s11 = inlined_call_operand.vmem [shape: f32[2,2,1,32], index: 11, kind: input, shape index: {}]
  %s12 = inlined_call_operand.vmem [shape: f32[2,2,1,32], index: 12, kind: input, shape index: {}]
  %s13 = inlined_call_operand.vmem [shape: f32[2,2,8,32], index: 13, kind: output, shape index: {}]
  %s14 = sld [smem:[#allocation0]]
  $region93: #{omics_transformer_forward.2} parent=0
    _
  %s16 = ssub.s32 1, %s14
  %s17 = scalar_select 0, %s16, %s14
  loop: start=0, step=1, limit=6
  $region2: #{omics_transformer_forward.2} parent=0 // loop_pre_header
    _
  $region3: #{omics_transformer_forward.2} parent=0 // loop_header
    %s19 = sphi 0, %s23
    %p20 = scmp.ge.s32.totalorder %s19, 6
    %s26 = sphi 0, %s38
    %s27 = sphi 0, %s34
    %s28 = sphi 0, %s26
    %s29 = sphi 0, %s27
    %s30 = sphi 0, %s28
    %s31 = sphi 0, %s29
    %s41 = sphi 0, %s43
    %s44 = sphi 0, %s41
    %s45 = sphi 0, %s44
    %s61 = sphi 0, %s45
    %s69 = sphi 0, %s71
    %s72 = sphi 0, %s69
    %s73 = sphi 0, %s72
    %s89 = sphi 0, %s73
    %s97 = sphi 0, %s99
    %s100 = sphi 0, %s97
    %s101 = sphi 0, %s100
    %s117 = sphi 0, %s101
    %s125 = sphi 0, %s127
    %s128 = sphi 0, %s125
    %s129 = sphi 0, %s128
    %s145 = sphi 0, %s129
    %s153 = sphi 0, %s155
    %s156 = sphi 0, %s153
    %s157 = sphi 0, %s156
    %s173 = sphi 0, %s157
    %s181 = sphi 0, %s183
    %s184 = sphi 0, %s181
    %s185 = sphi 0, %s184
    %s201 = sphi 0, %s185
    %s209 = sphi 0, %s211
    %s212 = sphi 0, %s209
    %s213 = sphi 0, %s212
    %s229 = sphi 0, %s213
    %s237 = sphi 0, %s239
    %s240 = sphi 0, %s237
    %s241 = sphi 0, %s240
    %s257 = sphi 0, %s241
    %s265 = sphi 0, %s267
    %s268 = sphi 0, %s265
    %s269 = sphi 0, %s268
    %s285 = sphi 0, %s269
    %s293 = sphi 0, %s295
    %s296 = sphi 0, %s293
    %s297 = sphi 0, %s296
    %s313 = sphi 0, %s297
    %s321 = sphi 0, %s323
    %s324 = sphi 0, %s321
    %s325 = sphi 0, %s324
    %s341 = sphi 0, %s325
    %s349 = sphi 0, %s351
    %s352 = sphi 0, %s349
    %s353 = sphi 0, %s352
    %s369 = sphi 0, %s353
    %s377 = sphi 0, %s379
    %s380 = sphi 0, %s377
    %s381 = sphi 0, %s380
    %s397 = sphi 0, %s381
    %s403 = sphi 0, %s405
    %s406 = sphi 0, %s403
    %s407 = sphi 0, %s406
    %s423 = sphi 0, %s407
  $region4: #{omics_transformer_forward.2} parent=0 // loop_header_branch
    %22 = sbr.rel (%p20) target = $region8
  $region5: #{omics_transformer_forward.2} parent=0 // loop_body
    %s24 = ssub.s32 %s19, 1
    %s25 = ssub.s32 %s19, 2
    %s32 = sadd.s32 1, %s27
    %p33 = scmp.ge.s32.totalorder %s32, 2
    %s34 = scalar_select %p33, 0, %s32
    %s35 = sadd.s32 1, %s26
    %s36 = scalar_select %p33, %s35, %s26
    %p37 = scmp.ge.s32.totalorder %s36, 2
    %s38 = scalar_select %p37, 0, %s36
    %s39 = ssub.s32 %s26, %s38
    %p40 = scmp.eq.s32.totalorder %s39, 0
    %s42 = sadd.s32 %s41, 1
    %s43 = scalar_select %p40, %s41, %s42
    %p46 = pneg %p40
    %p47 = scmp.eq.s32.totalorder %s19, 3
    %p48 = por %p46, %p47
    %p49 = scmp.ne.s32.totalorder %s41, %s44
    %p50 = scmp.eq.s32.totalorder %s19, 0
    %p51 = por %p49, %p50
    %p52 = scmp.ne.s32.totalorder %s41, %s44
    %p53 = scmp.eq.s32.totalorder %s24, 3
    %p54 = por %p52, %p53
    %p55 = scmp.ne.s32.totalorder %s44, %s45
    %p56 = scmp.eq.s32.totalorder %s24, 0
    %p57 = por %p55, %p56
    %p58 = scmp.ne.s32.totalorder %s44, %s45
    %p59 = scmp.eq.s32.totalorder %s25, 3
    %p60 = por %p58, %p59
    %p62 = scmp.ne.s32.totalorder %s45, %s61
    %p63 = scmp.eq.s32.totalorder %s25, 0
    %p64 = por %p62, %p63
    %s65 = ssub.s32 %s26, %s38
    %s66 = ssub.s32 %s27, %s34
    %s67 = sor.u32 %s65, %s66
    %p68 = scmp.eq.s32.totalorder %s67, 0
    %s70 = sadd.s32 %s69, 1
    %s71 = scalar_select %p68, %s69, %s70
    %p74 = pneg %p68
    %p75 = scmp.eq.s32.totalorder %s19, 3
    %p76 = por %p74, %p75
    %p77 = scmp.ne.s32.totalorder %s69, %s72
    %p78 = scmp.eq.s32.totalorder %s19, 0
    %p79 = por %p77, %p78
    %p80 = scmp.ne.s32.totalorder %s69, %s72
    %p81 = scmp.eq.s32.totalorder %s24, 3
    %p82 = por %p80, %p81
    %p83 = scmp.ne.s32.totalorder %s72, %s73
    %p84 = scmp.eq.s32.totalorder %s24, 0
    %p85 = por %p83, %p84
    %p86 = scmp.ne.s32.totalorder %s72, %s73
    %p87 = scmp.eq.s32.totalorder %s25, 3
    %p88 = por %p86, %p87
    %p90 = scmp.ne.s32.totalorder %s73, %s89
    %p91 = scmp.eq.s32.totalorder %s25, 0
    %p92 = por %p90, %p91
    %s93 = ssub.s32 %s26, %s38
    %s94 = ssub.s32 %s27, %s34
    %s95 = sor.u32 %s93, %s94
    %p96 = scmp.eq.s32.totalorder %s95, 0
    %s98 = sadd.s32 %s97, 1
    %s99 = scalar_select %p96, %s97, %s98
    %p102 = pneg %p96
    %p103 = scmp.eq.s32.totalorder %s19, 3
    %p104 = por %p102, %p103
    %p105 = scmp.ne.s32.totalorder %s97, %s100
    %p106 = scmp.eq.s32.totalorder %s19, 0
    %p107 = por %p105, %p106
    %p108 = scmp.ne.s32.totalorder %s97, %s100
    %p109 = scmp.eq.s32.totalorder %s24, 3
    %p110 = por %p108, %p109
    %p111 = scmp.ne.s32.totalorder %s100, %s101
    %p112 = scmp.eq.s32.totalorder %s24, 0
    %p113 = por %p111, %p112
    %p114 = scmp.ne.s32.totalorder %s100, %s101
    %p115 = scmp.eq.s32.totalorder %s25, 3
    %p116 = por %p114, %p115
    %p118 = scmp.ne.s32.totalorder %s101, %s117
    %p119 = scmp.eq.s32.totalorder %s25, 0
    %p120 = por %p118, %p119
    %s121 = ssub.s32 %s26, %s38
    %s122 = ssub.s32 %s27, %s34
    %s123 = sor.u32 %s121, %s122
    %p124 = scmp.eq.s32.totalorder %s123, 0
    %s126 = sadd.s32 %s125, 1
    %s127 = scalar_select %p124, %s125, %s126
    %p130 = pneg %p124
    %p131 = scmp.eq.s32.totalorder %s19, 3
    %p132 = por %p130, %p131
    %p133 = scmp.ne.s32.totalorder %s125, %s128
    %p134 = scmp.eq.s32.totalorder %s19, 0
    %p135 = por %p133, %p134
    %p136 = scmp.ne.s32.totalorder %s125, %s128
    %p137 = scmp.eq.s32.totalorder %s24, 3
    %p138 = por %p136, %p137
    %p139 = scmp.ne.s32.totalorder %s128, %s129
    %p140 = scmp.eq.s32.totalorder %s24, 0
    %p141 = por %p139, %p140
    %p142 = scmp.ne.s32.totalorder %s128, %s129
    %p143 = scmp.eq.s32.totalorder %s25, 3
    %p144 = por %p142, %p143
    %p146 = scmp.ne.s32.totalorder %s129, %s145
    %p147 = scmp.eq.s32.totalorder %s25, 0
    %p148 = por %p146, %p147
    %s149 = ssub.s32 %s26, %s38
    %s150 = ssub.s32 %s27, %s34
    %s151 = sor.u32 %s149, %s150
    %p152 = scmp.eq.s32.totalorder %s151, 0
    %s154 = sadd.s32 %s153, 1
    %s155 = scalar_select %p152, %s153, %s154
    %p158 = pneg %p152
    %p159 = scmp.eq.s32.totalorder %s19, 3
    %p160 = por %p158, %p159
    %p161 = scmp.ne.s32.totalorder %s153, %s156
    %p162 = scmp.eq.s32.totalorder %s19, 0
    %p163 = por %p161, %p162
    %p164 = scmp.ne.s32.totalorder %s153, %s156
    %p165 = scmp.eq.s32.totalorder %s24, 3
    %p166 = por %p164, %p165
    %p167 = scmp.ne.s32.totalorder %s156, %s157
    %p168 = scmp.eq.s32.totalorder %s24, 0
    %p169 = por %p167, %p168
    %p170 = scmp.ne.s32.totalorder %s156, %s157
    %p171 = scmp.eq.s32.totalorder %s25, 3
    %p172 = por %p170, %p171
    %p174 = scmp.ne.s32.totalorder %s157, %s173
    %p175 = scmp.eq.s32.totalorder %s25, 0
    %p176 = por %p174, %p175
    %s177 = ssub.s32 %s26, %s38
    %s178 = ssub.s32 %s27, %s34
    %s179 = sor.u32 %s177, %s178
    %p180 = scmp.eq.s32.totalorder %s179, 0
    %s182 = sadd.s32 %s181, 1
    %s183 = scalar_select %p180, %s181, %s182
    %p186 = pneg %p180
    %p187 = scmp.eq.s32.totalorder %s19, 3
    %p188 = por %p186, %p187
    %p189 = scmp.ne.s32.totalorder %s181, %s184
    %p190 = scmp.eq.s32.totalorder %s19, 0
    %p191 = por %p189, %p190
    %p192 = scmp.ne.s32.totalorder %s181, %s184
    %p193 = scmp.eq.s32.totalorder %s24, 3
    %p194 = por %p192, %p193
    %p195 = scmp.ne.s32.totalorder %s184, %s185
    %p196 = scmp.eq.s32.totalorder %s24, 0
    %p197 = por %p195, %p196
    %p198 = scmp.ne.s32.totalorder %s184, %s185
    %p199 = scmp.eq.s32.totalorder %s25, 3
    %p200 = por %p198, %p199
    %p202 = scmp.ne.s32.totalorder %s185, %s201
    %p203 = scmp.eq.s32.totalorder %s25, 0
    %p204 = por %p202, %p203
    %s205 = ssub.s32 %s26, %s38
    %s206 = ssub.s32 %s27, %s34
    %s207 = sor.u32 %s205, %s206
    %p208 = scmp.eq.s32.totalorder %s207, 0
    %s210 = sadd.s32 %s209, 1
    %s211 = scalar_select %p208, %s209, %s210
    %p214 = pneg %p208
    %p215 = scmp.eq.s32.totalorder %s19, 3
    %p216 = por %p214, %p215
    %p217 = scmp.ne.s32.totalorder %s209, %s212
    %p218 = scmp.eq.s32.totalorder %s19, 0
    %p219 = por %p217, %p218
    %p220 = scmp.ne.s32.totalorder %s209, %s212
    %p221 = scmp.eq.s32.totalorder %s24, 3
    %p222 = por %p220, %p221
    %p223 = scmp.ne.s32.totalorder %s212, %s213
    %p224 = scmp.eq.s32.totalorder %s24, 0
    %p225 = por %p223, %p224
    %p226 = scmp.ne.s32.totalorder %s212, %s213
    %p227 = scmp.eq.s32.totalorder %s25, 3
    %p228 = por %p226, %p227
    %p230 = scmp.ne.s32.totalorder %s213, %s229
    %p231 = scmp.eq.s32.totalorder %s25, 0
    %p232 = por %p230, %p231
    %s233 = ssub.s32 %s26, %s38
    %s234 = ssub.s32 %s27, %s34
    %s235 = sor.u32 %s233, %s234
    %p236 = scmp.eq.s32.totalorder %s235, 0
    %s238 = sadd.s32 %s237, 1
    %s239 = scalar_select %p236, %s237, %s238
    %p242 = pneg %p236
    %p243 = scmp.eq.s32.totalorder %s19, 3
    %p244 = por %p242, %p243
    %p245 = scmp.ne.s32.totalorder %s237, %s240
    %p246 = scmp.eq.s32.totalorder %s19, 0
    %p247 = por %p245, %p246
    %p248 = scmp.ne.s32.totalorder %s237, %s240
    %p249 = scmp.eq.s32.totalorder %s24, 3
    %p250 = por %p248, %p249
    %p251 = scmp.ne.s32.totalorder %s240, %s241
    %p252 = scmp.eq.s32.totalorder %s24, 0
    %p253 = por %p251, %p252
    %p254 = scmp.ne.s32.totalorder %s240, %s241
    %p255 = scmp.eq.s32.totalorder %s25, 3
    %p256 = por %p254, %p255
    %p258 = scmp.ne.s32.totalorder %s241, %s257
    %p259 = scmp.eq.s32.totalorder %s25, 0
    %p260 = por %p258, %p259
    %s261 = ssub.s32 %s26, %s38
    %s262 = ssub.s32 %s27, %s34
    %s263 = sor.u32 %s261, %s262
    %p264 = scmp.eq.s32.totalorder %s263, 0
    %s266 = sadd.s32 %s265, 1
    %s267 = scalar_select %p264, %s265, %s266
    %p270 = pneg %p264
    %p271 = scmp.eq.s32.totalorder %s19, 3
    %p272 = por %p270, %p271
    %p273 = scmp.ne.s32.totalorder %s265, %s268
    %p274 = scmp.eq.s32.totalorder %s19, 0
    %p275 = por %p273, %p274
    %p276 = scmp.ne.s32.totalorder %s265, %s268
    %p277 = scmp.eq.s32.totalorder %s24, 3
    %p278 = por %p276, %p277
    %p279 = scmp.ne.s32.totalorder %s268, %s269
    %p280 = scmp.eq.s32.totalorder %s24, 0
    %p281 = por %p279, %p280
    %p282 = scmp.ne.s32.totalorder %s268, %s269
    %p283 = scmp.eq.s32.totalorder %s25, 3
    %p284 = por %p282, %p283
    %p286 = scmp.ne.s32.totalorder %s269, %s285
    %p287 = scmp.eq.s32.totalorder %s25, 0
    %p288 = por %p286, %p287
    %s289 = ssub.s32 %s26, %s38
    %s290 = ssub.s32 %s27, %s34
    %s291 = sor.u32 %s289, %s290
    %p292 = scmp.eq.s32.totalorder %s291, 0
    %s294 = sadd.s32 %s293, 1
    %s295 = scalar_select %p292, %s293, %s294
    %p298 = pneg %p292
    %p299 = scmp.eq.s32.totalorder %s19, 3
    %p300 = por %p298, %p299
    %p301 = scmp.ne.s32.totalorder %s293, %s296
    %p302 = scmp.eq.s32.totalorder %s19, 0
    %p303 = por %p301, %p302
    %p304 = scmp.ne.s32.totalorder %s293, %s296
    %p305 = scmp.eq.s32.totalorder %s24, 3
    %p306 = por %p304, %p305
    %p307 = scmp.ne.s32.totalorder %s296, %s297
    %p308 = scmp.eq.s32.totalorder %s24, 0
    %p309 = por %p307, %p308
    %p310 = scmp.ne.s32.totalorder %s296, %s297
    %p311 = scmp.eq.s32.totalorder %s25, 3
    %p312 = por %p310, %p311
    %p314 = scmp.ne.s32.totalorder %s297, %s313
    %p315 = scmp.eq.s32.totalorder %s25, 0
    %p316 = por %p314, %p315
    %s317 = ssub.s32 %s26, %s38
    %s318 = ssub.s32 %s27, %s34
    %s319 = sor.u32 %s317, %s318
    %p320 = scmp.eq.s32.totalorder %s319, 0
    %s322 = sadd.s32 %s321, 1
    %s323 = scalar_select %p320, %s321, %s322
    %p326 = pneg %p320
    %p327 = scmp.eq.s32.totalorder %s19, 3
    %p328 = por %p326, %p327
    %p329 = scmp.ne.s32.totalorder %s321, %s324
    %p330 = scmp.eq.s32.totalorder %s19, 0
    %p331 = por %p329, %p330
    %p332 = scmp.ne.s32.totalorder %s321, %s324
    %p333 = scmp.eq.s32.totalorder %s24, 3
    %p334 = por %p332, %p333
    %p335 = scmp.ne.s32.totalorder %s324, %s325
    %p336 = scmp.eq.s32.totalorder %s24, 0
    %p337 = por %p335, %p336
    %p338 = scmp.ne.s32.totalorder %s324, %s325
    %p339 = scmp.eq.s32.totalorder %s25, 3
    %p340 = por %p338, %p339
    %p342 = scmp.ne.s32.totalorder %s325, %s341
    %p343 = scmp.eq.s32.totalorder %s25, 0
    %p344 = por %p342, %p343
    %s345 = ssub.s32 %s26, %s38
    %s346 = ssub.s32 %s27, %s34
    %s347 = sor.u32 %s345, %s346
    %p348 = scmp.eq.s32.totalorder %s347, 0
    %s350 = sadd.s32 %s349, 1
    %s351 = scalar_select %p348, %s349, %s350
    %p354 = pneg %p348
    %p355 = scmp.eq.s32.totalorder %s19, 3
    %p356 = por %p354, %p355
    %p357 = scmp.ne.s32.totalorder %s349, %s352
    %p358 = scmp.eq.s32.totalorder %s19, 0
    %p359 = por %p357, %p358
    %p360 = scmp.ne.s32.totalorder %s349, %s352
    %p361 = scmp.eq.s32.totalorder %s24, 3
    %p362 = por %p360, %p361
    %p363 = scmp.ne.s32.totalorder %s352, %s353
    %p364 = scmp.eq.s32.totalorder %s24, 0
    %p365 = por %p363, %p364
    %p366 = scmp.ne.s32.totalorder %s352, %s353
    %p367 = scmp.eq.s32.totalorder %s25, 3
    %p368 = por %p366, %p367
    %p370 = scmp.ne.s32.totalorder %s353, %s369
    %p371 = scmp.eq.s32.totalorder %s25, 0
    %p372 = por %p370, %p371
    %s373 = ssub.s32 %s26, %s38
    %s374 = ssub.s32 %s27, %s34
    %s375 = sor.u32 %s373, %s374
    %p376 = scmp.eq.s32.totalorder %s375, 0
    %s378 = sadd.s32 %s377, 1
    %s379 = scalar_select %p376, %s377, %s378
    %p382 = pneg %p376
    %p383 = scmp.eq.s32.totalorder %s19, 3
    %p384 = por %p382, %p383
    %p385 = scmp.ne.s32.totalorder %s377, %s380
    %p386 = scmp.eq.s32.totalorder %s19, 0
    %p387 = por %p385, %p386
    %p388 = scmp.ne.s32.totalorder %s377, %s380
    %p389 = scmp.eq.s32.totalorder %s24, 3
    %p390 = por %p388, %p389
    %p391 = scmp.ne.s32.totalorder %s380, %s381
    %p392 = scmp.eq.s32.totalorder %s24, 0
    %p393 = por %p391, %p392
    %p394 = scmp.ne.s32.totalorder %s380, %s381
    %p395 = scmp.eq.s32.totalorder %s25, 3
    %p396 = por %p394, %p395
    %p398 = scmp.ne.s32.totalorder %s381, %s397
    %p399 = scmp.eq.s32.totalorder %s25, 0
    %p400 = por %p398, %p399
    %s401 = ssub.s32 %s26, %s38
    %p402 = scmp.eq.s32.totalorder %s401, 0
    %s404 = sadd.s32 %s403, 1
    %s405 = scalar_select %p402, %s403, %s404
    %p408 = pneg %p402
    %p409 = scmp.eq.s32.totalorder %s19, 3
    %p410 = por %p408, %p409
    %p411 = scmp.ne.s32.totalorder %s403, %s406
    %p412 = scmp.eq.s32.totalorder %s19, 0
    %p413 = por %p411, %p412
    %p414 = scmp.ne.s32.totalorder %s403, %s406
    %p415 = scmp.eq.s32.totalorder %s24, 3
    %p416 = por %p414, %p415
    %p417 = scmp.ne.s32.totalorder %s406, %s407
    %p418 = scmp.eq.s32.totalorder %s24, 0
    %p419 = por %p417, %p418
    %p420 = scmp.ne.s32.totalorder %s406, %s407
    %p421 = scmp.eq.s32.totalorder %s25, 3
    %p422 = por %p420, %p421
    %p424 = scmp.ne.s32.totalorder %s407, %s423
    %p425 = scmp.eq.s32.totalorder %s25, 0
    %p426 = por %p424, %p425
    %p427 = scmp.le.s32.totalorder 1, %s19
    %p428 = scmp.lt.s32.totalorder %s19, 5
    %p429 = pnand %p427, %p428
    %p430 = pneg %p429
    // Predicated region
    $region9: #{omics_transformer_forward.2} parent=5 // pred_check
      _
    $region10: #{omics_transformer_forward.2} parent=5 // pred_check_branch
      %432 = sbr.rel (%p429) target = $region12
    $region11: #{omics_transformer_forward.2} parent=5 // pred_region
      %s433 = ssub.s32 %s19, 1
    $region12: #{omics_transformer_forward.2} parent=5 // pred_fallthru
      _
    %p434 = scmp.lt.s32.totalorder %s19, 4
    // Predicated region
    $region13: #{omics_transformer_forward.2} parent=5 // pred_check
      %p435 = pneg %p434
    $region14: #{omics_transformer_forward.2} parent=5 // pred_check_branch
      %437 = sbr.rel (%p435) target = $region16
    $region15: #{omics_transformer_forward.2} parent=5 // pred_region
      // Predicated region
      $region17: #{omics_transformer_forward.2} parent=15 // pred_check
        %p438 = pneg %p51
      $region18: #{omics_transformer_forward.2} parent=15 // pred_check_branch
        %440 = sbr.rel (%p438) target = $region20
      $region19: #{omics_transformer_forward.2} parent=15 // pred_region
        %p441 = scmp.lt.s32.totalorder %s26, 1
        %s442 = scalar_select %p441, %s26, 1
        %s443 = smul.addr %s442, 2
        %s444 = smul.addr %s443, 8
        %s445 = scalar_lea.vmem %s0, %s444
      $region20: #{omics_transformer_forward.2} parent=15 // pred_fallthru
        _
      // Predicated region
      $region21: #{omics_transformer_forward.2} parent=15 // pred_check
        %p446 = pneg %p79
      $region22: #{omics_transformer_forward.2} parent=15 // pred_check_branch
        %448 = sbr.rel (%p446) target = $region24
      $region23: #{omics_transformer_forward.2} parent=15 // pred_region
        %p449 = scmp.lt.s32.totalorder %s26, 1
        %s450 = scalar_select %p449, %s26, 1
        %p451 = scmp.lt.s32.totalorder %s27, 1
        %s452 = scalar_select %p451, %s27, 1
        %s453 = smul.addr %s452, 4
        %s454 = smul.addr %s450, 8
        %s455 = sadd.s32 %s453, %s454
        %s456 = smul.addr %s455, 8
        %s457 = scalar_lea.vmem %s1, %s456
      $region24: #{omics_transformer_forward.2} parent=15 // pred_fallthru
        _
      // Predicated region
      $region25: #{omics_transformer_forward.2} parent=15 // pred_check
        %p458 = pneg %p107
      $region26: #{omics_transformer_forward.2} parent=15 // pred_check_branch
        %460 = sbr.rel (%p458) target = $region28
      $region27: #{omics_transformer_forward.2} parent=15 // pred_region
        %p461 = scmp.lt.s32.totalorder %s26, 1
        %s462 = scalar_select %p461, %s26, 1
        %p463 = scmp.lt.s32.totalorder %s27, 1
        %s464 = scalar_select %p463, %s27, 1
        %s465 = smul.addr %s462, 2
        %s466 = sadd.s32 %s464, %s465
        %s467 = scalar_lea.vmem %s2, %s466
      $region28: #{omics_transformer_forward.2} parent=15 // pred_fallthru
        _
      // Predicated region
      $region29: #{omics_transformer_forward.2} parent=15 // pred_check
        %p468 = pneg %p135
      $region30: #{omics_transformer_forward.2} parent=15 // pred_check_branch
        %470 = sbr.rel (%p468) target = $region32
      $region31: #{omics_transformer_forward.2} parent=15 // pred_region
        %p471 = scmp.lt.s32.totalorder %s26, 1
        %s472 = scalar_select %p471, %s26, 1
        %p473 = scmp.lt.s32.totalorder %s27, 1
        %s474 = scalar_select %p473, %s27, 1
        %s475 = smul.addr %s474, 4
        %s476 = smul.addr %s472, 8
        %s477 = sadd.s32 %s475, %s476
        %s478 = smul.addr %s477, 8
        %s479 = scalar_lea.vmem %s3, %s478
      $region32: #{omics_transformer_forward.2} parent=15 // pred_fallthru
        _
      // Predicated region
      $region33: #{omics_transformer_forward.2} parent=15 // pred_check
        %p480 = pneg %p163
      $region34: #{omics_transformer_forward.2} parent=15 // pred_check_branch
        %482 = sbr.rel (%p480) target = $region36
      $region35: #{omics_transformer_forward.2} parent=15 // pred_region
        %p483 = scmp.lt.s32.totalorder %s26, 1
        %s484 = scalar_select %p483, %s26, 1
        %p485 = scmp.lt.s32.totalorder %s27, 1
        %s486 = scalar_select %p485, %s27, 1
        %s487 = smul.addr %s484, 2
        %s488 = sadd.s32 %s486, %s487
        %s489 = scalar_lea.vmem %s4, %s488
      $region36: #{omics_transformer_forward.2} parent=15 // pred_fallthru
        _
      // Predicated region
      $region37: #{omics_transformer_forward.2} parent=15 // pred_check
        %p490 = pneg %p191
      $region38: #{omics_transformer_forward.2} parent=15 // pred_check_branch
        %492 = sbr.rel (%p490) target = $region40
      $region39: #{omics_transformer_forward.2} parent=15 // pred_region
        %p493 = scmp.lt.s32.totalorder %s26, 1
        %s494 = scalar_select %p493, %s26, 1
        %p495 = scmp.lt.s32.totalorder %s27, 1
        %s496 = scalar_select %p495, %s27, 1
        %s497 = smul.addr %s496, 4
        %s498 = smul.addr %s494, 8
        %s499 = sadd.s32 %s497, %s498
        %s500 = smul.addr %s499, 8
        %s501 = scalar_lea.vmem %s5, %s500
      $region40: #{omics_transformer_forward.2} parent=15 // pred_fallthru
        _
      // Predicated region
      $region41: #{omics_transformer_forward.2} parent=15 // pred_check
        %p502 = pneg %p219
      $region42: #{omics_transformer_forward.2} parent=15 // pred_check_branch
        %504 = sbr.rel (%p502) target = $region44
      $region43: #{omics_transformer_forward.2} parent=15 // pred_region
        %p505 = scmp.lt.s32.totalorder %s26, 1
        %s506 = scalar_select %p505, %s26, 1
        %p507 = scmp.lt.s32.totalorder %s27, 1
        %s508 = scalar_select %p507, %s27, 1
        %s509 = smul.addr %s506, 2
        %s510 = sadd.s32 %s508, %s509
        %s511 = scalar_lea.vmem %s6, %s510
      $region44: #{omics_transformer_forward.2} parent=15 // pred_fallthru
        _
      // Predicated region
      $region45: #{omics_transformer_forward.2} parent=15 // pred_check
        %p512 = pneg %p247
      $region46: #{omics_transformer_forward.2} parent=15 // pred_check_branch
        %514 = sbr.rel (%p512) target = $region48
      $region47: #{omics_transformer_forward.2} parent=15 // pred_region
        %p515 = scmp.lt.s32.totalorder %s26, 1
        %s516 = scalar_select %p515, %s26, 1
        %p517 = scmp.lt.s32.totalorder %s27, 1
        %s518 = scalar_select %p517, %s27, 1
        %s519 = smul.addr %s518, 8
        %s520 = smul.addr %s516, 16
        %s521 = sadd.s32 %s519, %s520
        %s522 = smul.addr %s521, 8
        %s523 = scalar_lea.vmem %s7, %s522
      $region48: #{omics_transformer_forward.2} parent=15 // pred_fallthru
        _
      // Predicated region
      $region49: #{omics_transformer_forward.2} parent=15 // pred_check
        %p524 = pneg %p275
      $region50: #{omics_transformer_forward.2} parent=15 // pred_check_branch
        %526 = sbr.rel (%p524) target = $region52
      $region51: #{omics_transformer_forward.2} parent=15 // pred_region
        %p527 = scmp.lt.s32.totalorder %s26, 1
        %s528 = scalar_select %p527, %s26, 1
        %p529 = scmp.lt.s32.totalorder %s27, 1
        %s530 = scalar_select %p529, %s27, 1
        %s531 = smul.addr %s528, 2
        %s532 = sadd.s32 %s530, %s531
        %s533 = scalar_lea.vmem %s8, %s532
      $region52: #{omics_transformer_forward.2} parent=15 // pred_fallthru
        _
      // Predicated region
      $region53: #{omics_transformer_forward.2} parent=15 // pred_check
        %p534 = pneg %p303
      $region54: #{omics_transformer_forward.2} parent=15 // pred_check_branch
        %536 = sbr.rel (%p534) target = $region56
      $region55: #{omics_transformer_forward.2} parent=15 // pred_region
        %p537 = scmp.lt.s32.totalorder %s26, 1
        %s538 = scalar_select %p537, %s26, 1
        %p539 = scmp.lt.s32.totalorder %s27, 1
        %s540 = scalar_select %p539, %s27, 1
        %s541 = smul.addr %s538, 2
        %s542 = sadd.s32 %s540, %s541
        %s543 = scalar_lea.vmem %s9, %s542
      $region56: #{omics_transformer_forward.2} parent=15 // pred_fallthru
        _
      // Predicated region
      $region57: #{omics_transformer_forward.2} parent=15 // pred_check
        %p544 = pneg %p331
      $region58: #{omics_transformer_forward.2} parent=15 // pred_check_branch
        %546 = sbr.rel (%p544) target = $region60
      $region59: #{omics_transformer_forward.2} parent=15 // pred_region
        %p547 = scmp.lt.s32.totalorder %s26, 1
        %s548 = scalar_select %p547, %s26, 1
        %p549 = scmp.lt.s32.totalorder %s27, 1
        %s550 = scalar_select %p549, %s27, 1
        %s551 = smul.addr %s548, 2
        %s552 = sadd.s32 %s550, %s551
        %s553 = scalar_lea.vmem %s10, %s552
      $region60: #{omics_transformer_forward.2} parent=15 // pred_fallthru
        _
      // Predicated region
      $region61: #{omics_transformer_forward.2} parent=15 // pred_check
        %p554 = pneg %p359
      $region62: #{omics_transformer_forward.2} parent=15 // pred_check_branch
        %556 = sbr.rel (%p554) target = $region64
      $region63: #{omics_transformer_forward.2} parent=15 // pred_region
        %p557 = scmp.lt.s32.totalorder %s26, 1
        %s558 = scalar_select %p557, %s26, 1
        %p559 = scmp.lt.s32.totalorder %s27, 1
        %s560 = scalar_select %p559, %s27, 1
        %s561 = smul.addr %s558, 2
        %s562 = sadd.s32 %s560, %s561
        %s563 = scalar_lea.vmem %s11, %s562
      $region64: #{omics_transformer_forward.2} parent=15 // pred_fallthru
        _
      // Predicated region
      $region65: #{omics_transformer_forward.2} parent=15 // pred_check
        %p564 = pneg %p387
      $region66: #{omics_transformer_forward.2} parent=15 // pred_check_branch
        %566 = sbr.rel (%p564) target = $region68
      $region67: #{omics_transformer_forward.2} parent=15 // pred_region
        %p567 = scmp.lt.s32.totalorder %s26, 1
        %s568 = scalar_select %p567, %s26, 1
        %p569 = scmp.lt.s32.totalorder %s27, 1
        %s570 = scalar_select %p569, %s27, 1
        %s571 = smul.addr %s568, 2
        %s572 = sadd.s32 %s570, %s571
        %s573 = scalar_lea.vmem %s12, %s572
      $region68: #{omics_transformer_forward.2} parent=15 // pred_fallthru
        _
    $region16: #{omics_transformer_forward.2} parent=5 // pred_fallthru
      _
    %p574 = scmp.le.s32.totalorder 1, %s19
    %p575 = scmp.lt.s32.totalorder %s19, 5
    %p576 = pnand %p574, %p575
    %p577 = pneg %p576
    // Predicated region
    $region69: #{omics_transformer_forward.2} parent=5 // pred_check
      _
    $region70: #{omics_transformer_forward.2} parent=5 // pred_check_branch
      %579 = sbr.rel (%p576) target = $region72
    $region71: #{omics_transformer_forward.2} parent=5 // pred_region
      %s580 = ssub.s32 %s19, 1
      %p581 = scmp.lt.s32.totalorder %s28, 1
      %s582 = scalar_select %p581, %s28, 1
      %s583 = smul.addr %s582, 2
      %s584 = smul.addr %s583, 8
      %s585 = scalar_lea.vmem %s0, %s584
      %p586 = pneg %p57
      %p587 = pneg %p54
      %p588 = scmp.lt.s32.totalorder %s28, 1
      %s589 = scalar_select %p588, %s28, 1
      %p590 = scmp.lt.s32.totalorder %s29, 1
      %s591 = scalar_select %p590, %s29, 1
      %s592 = smul.addr %s591, 4
      %s593 = smul.addr %s589, 8
      %s594 = sadd.s32 %s592, %s593
      %s595 = smul.addr %s594, 8
      %s596 = scalar_lea.vmem %s1, %s595
      %p597 = pneg %p85
      %p598 = pneg %p82
      %p599 = scmp.lt.s32.totalorder %s28, 1
      %s600 = scalar_select %p599, %s28, 1
      %p601 = scmp.lt.s32.totalorder %s29, 1
      %s602 = scalar_select %p601, %s29, 1
      %s603 = smul.addr %s600, 2
      %s604 = sadd.s32 %s602, %s603
      %s605 = scalar_lea.vmem %s2, %s604
      %p606 = pneg %p113
      %p607 = pneg %p110
      %p608 = scmp.lt.s32.totalorder %s28, 1
      %s609 = scalar_select %p608, %s28, 1
      %p610 = scmp.lt.s32.totalorder %s29, 1
      %s611 = scalar_select %p610, %s29, 1
      %s612 = smul.addr %s611, 4
      %s613 = smul.addr %s609, 8
      %s614 = sadd.s32 %s612, %s613
      %s615 = smul.addr %s614, 8
      %s616 = scalar_lea.vmem %s3, %s615
      %p617 = pneg %p141
      %p618 = pneg %p138
      %p619 = scmp.lt.s32.totalorder %s28, 1
      %s620 = scalar_select %p619, %s28, 1
      %p621 = scmp.lt.s32.totalorder %s29, 1
      %s622 = scalar_select %p621, %s29, 1
      %s623 = smul.addr %s620, 2
      %s624 = sadd.s32 %s622, %s623
      %s625 = scalar_lea.vmem %s4, %s624
      %p626 = pneg %p169
      %p627 = pneg %p166
      %p628 = scmp.lt.s32.totalorder %s28, 1
      %s629 = scalar_select %p628, %s28, 1
      %p630 = scmp.lt.s32.totalorder %s29, 1
      %s631 = scalar_select %p630, %s29, 1
      %s632 = smul.addr %s631, 4
      %s633 = smul.addr %s629, 8
      %s634 = sadd.s32 %s632, %s633
      %s635 = smul.addr %s634, 8
      %s636 = scalar_lea.vmem %s5, %s635
      %p637 = pneg %p197
      %p638 = pneg %p194
      %p639 = scmp.lt.s32.totalorder %s28, 1
      %s640 = scalar_select %p639, %s28, 1
      %p641 = scmp.lt.s32.totalorder %s29, 1
      %s642 = scalar_select %p641, %s29, 1
      %s643 = smul.addr %s640, 2
      %s644 = sadd.s32 %s642, %s643
      %s645 = scalar_lea.vmem %s6, %s644
      %p646 = pneg %p225
      %p647 = pneg %p222
      %p648 = scmp.lt.s32.totalorder %s28, 1
      %s649 = scalar_select %p648, %s28, 1
      %p650 = scmp.lt.s32.totalorder %s29, 1
      %s651 = scalar_select %p650, %s29, 1
      %s652 = smul.addr %s651, 8
      %s653 = smul.addr %s649, 16
      %s654 = sadd.s32 %s652, %s653
      %s655 = smul.addr %s654, 8
      %s656 = scalar_lea.vmem %s7, %s655
      %p657 = pneg %p253
      %p658 = pneg %p250
      %p659 = scmp.lt.s32.totalorder %s28, 1
      %s660 = scalar_select %p659, %s28, 1
      %p661 = scmp.lt.s32.totalorder %s29, 1
      %s662 = scalar_select %p661, %s29, 1
      %s663 = smul.addr %s660, 2
      %s664 = sadd.s32 %s662, %s663
      %s665 = scalar_lea.vmem %s8, %s664
      %p666 = pneg %p281
      %p667 = pneg %p278
      %p668 = scmp.lt.s32.totalorder %s28, 1
      %s669 = scalar_select %p668, %s28, 1
      %p670 = scmp.lt.s32.totalorder %s29, 1
      %s671 = scalar_select %p670, %s29, 1
      %s672 = smul.addr %s669, 2
      %s673 = sadd.s32 %s671, %s672
      %s674 = scalar_lea.vmem %s9, %s673
      %p675 = pneg %p309
      %p676 = pneg %p306
      %p677 = scmp.lt.s32.totalorder %s28, 1
      %s678 = scalar_select %p677, %s28, 1
      %p679 = scmp.lt.s32.totalorder %s29, 1
      %s680 = scalar_select %p679, %s29, 1
      %s681 = smul.addr %s678, 2
      %s682 = sadd.s32 %s680, %s681
      %s683 = scalar_lea.vmem %s10, %s682
      %p684 = pneg %p337
      %p685 = pneg %p334
      %p686 = scmp.lt.s32.totalorder %s28, 1
      %s687 = scalar_select %p686, %s28, 1
      %p688 = scmp.lt.s32.totalorder %s29, 1
      %s689 = scalar_select %p688, %s29, 1
      %s690 = smul.addr %s687, 2
      %s691 = sadd.s32 %s689, %s690
      %s692 = scalar_lea.vmem %s11, %s691
      %p693 = pneg %p365
      %p694 = pneg %p362
      %p695 = scmp.lt.s32.totalorder %s28, 1
      %s696 = scalar_select %p695, %s28, 1
      %p697 = scmp.lt.s32.totalorder %s29, 1
      %s698 = scalar_select %p697, %s29, 1
      %s699 = smul.addr %s696, 2
      %s700 = sadd.s32 %s698, %s699
      %s701 = scalar_lea.vmem %s12, %s700
      %p702 = pneg %p393
      %p703 = pneg %p390
      %p704 = pneg %p419
      %p705 = pneg %p416
      %p706 = scmp.lt.s32.totalorder %s28, 1
      %s707 = scalar_select %p706, %s28, 1
      %s708 = smul.addr %s707, 2
      %s709 = smul.addr %s708, 8
      %s710 = scalar_lea.vmem %s13, %s709
      %p711 = scmp.lt.s32.totalorder %s28, 1
      %s712 = scalar_select %p711, %s28, 1
      %s713 = smul.addr %s712, 2
      %s714 = smul.addr %s713, 8
      %s715 = scalar_lea.vmem %s0, %s714
      %p716 = scmp.lt.s32.totalorder %s28, 1
      %s717 = scalar_select %p716, %s28, 1
      %p718 = scmp.lt.s32.totalorder %s29, 1
      %s719 = scalar_select %p718, %s29, 1
      %s720 = smul.addr %s719, 4
      %s721 = smul.addr %s717, 8
      %s722 = sadd.s32 %s720, %s721
      %s723 = smul.addr %s722, 8
      %s724 = scalar_lea.vmem %s1, %s723
      %p725 = scmp.lt.s32.totalorder %s28, 1
      %s726 = scalar_select %p725, %s28, 1
      %p727 = scmp.lt.s32.totalorder %s29, 1
      %s728 = scalar_select %p727, %s29, 1
      %s729 = smul.addr %s726, 2
      %s730 = sadd.s32 %s728, %s729
      %s731 = scalar_lea.vmem %s2, %s730
      %p732 = scmp.lt.s32.totalorder %s28, 1
      %s733 = scalar_select %p732, %s28, 1
      %p734 = scmp.lt.s32.totalorder %s29, 1
      %s735 = scalar_select %p734, %s29, 1
      %s736 = smul.addr %s735, 4
      %s737 = smul.addr %s733, 8
      %s738 = sadd.s32 %s736, %s737
      %s739 = smul.addr %s738, 8
      %s740 = scalar_lea.vmem %s3, %s739
      %p741 = scmp.lt.s32.totalorder %s28, 1
      %s742 = scalar_select %p741, %s28, 1
      %p743 = scmp.lt.s32.totalorder %s29, 1
      %s744 = scalar_select %p743, %s29, 1
      %s745 = smul.addr %s742, 2
      %s746 = sadd.s32 %s744, %s745
      %s747 = scalar_lea.vmem %s4, %s746
      %p748 = scmp.lt.s32.totalorder %s28, 1
      %s749 = scalar_select %p748, %s28, 1
      %p750 = scmp.lt.s32.totalorder %s29, 1
      %s751 = scalar_select %p750, %s29, 1
      %s752 = smul.addr %s751, 4
      %s753 = smul.addr %s749, 8
      %s754 = sadd.s32 %s752, %s753
      %s755 = smul.addr %s754, 8
      %s756 = scalar_lea.vmem %s5, %s755
      %p757 = scmp.lt.s32.totalorder %s28, 1
      %s758 = scalar_select %p757, %s28, 1
      %p759 = scmp.lt.s32.totalorder %s29, 1
      %s760 = scalar_select %p759, %s29, 1
      %s761 = smul.addr %s758, 2
      %s762 = sadd.s32 %s760, %s761
      %s763 = scalar_lea.vmem %s6, %s762
      %p764 = scmp.lt.s32.totalorder %s28, 1
      %s765 = scalar_select %p764, %s28, 1
      %p766 = scmp.lt.s32.totalorder %s29, 1
      %s767 = scalar_select %p766, %s29, 1
      %s768 = smul.addr %s767, 8
      %s769 = smul.addr %s765, 16
      %s770 = sadd.s32 %s768, %s769
      %s771 = smul.addr %s770, 8
      %s772 = scalar_lea.vmem %s7, %s771
      %p773 = scmp.lt.s32.totalorder %s28, 1
      %s774 = scalar_select %p773, %s28, 1
      %p775 = scmp.lt.s32.totalorder %s29, 1
      %s776 = scalar_select %p775, %s29, 1
      %s777 = smul.addr %s774, 2
      %s778 = sadd.s32 %s776, %s777
      %s779 = scalar_lea.vmem %s8, %s778
      %p780 = scmp.lt.s32.totalorder %s28, 1
      %s781 = scalar_select %p780, %s28, 1
      %p782 = scmp.lt.s32.totalorder %s29, 1
      %s783 = scalar_select %p782, %s29, 1
      %s784 = smul.addr %s781, 2
      %s785 = sadd.s32 %s783, %s784
      %s786 = scalar_lea.vmem %s9, %s785
      %p787 = scmp.lt.s32.totalorder %s28, 1
      %s788 = scalar_select %p787, %s28, 1
      %p789 = scmp.lt.s32.totalorder %s29, 1
      %s790 = scalar_select %p789, %s29, 1
      %s791 = smul.addr %s788, 2
      %s792 = sadd.s32 %s790, %s791
      %s793 = scalar_lea.vmem %s10, %s792
      %p794 = scmp.lt.s32.totalorder %s28, 1
      %s795 = scalar_select %p794, %s28, 1
      %p796 = scmp.lt.s32.totalorder %s29, 1
      %s797 = scalar_select %p796, %s29, 1
      %s798 = smul.addr %s795, 2
      %s799 = sadd.s32 %s797, %s798
      %s800 = scalar_lea.vmem %s11, %s799
      %p801 = scmp.lt.s32.totalorder %s28, 1
      %s802 = scalar_select %p801, %s28, 1
      %p803 = scmp.lt.s32.totalorder %s29, 1
      %s804 = scalar_select %p803, %s29, 1
      %s805 = smul.addr %s802, 2
      %s806 = sadd.s32 %s804, %s805
      %s807 = scalar_lea.vmem %s12, %s806
      %p808 = scmp.lt.s32.totalorder %s28, 1
      %s809 = scalar_select %p808, %s28, 1
      %s810 = smul.addr %s809, 2
      %s811 = smul.addr %s810, 8
      %s812 = scalar_lea.vmem %s13, %s811
      %p813 = scmp.eq.s32.totalorder %s29, 0
      // Predicated region
      $region73: #{omics_transformer_forward.2} parent=71 // pred_check
        %p814 = pneg %p813
      $region74: #{omics_transformer_forward.2} parent=71 // pred_check_branch
        %816 = sbr.rel (%p814) target = $region76
      $region75: #{omics_transformer_forward.2} parent=71 // pred_region
        %v817 = vld [vmem:[%s715] sm:$0xff]
        %v818 = vld [vmem:[%s715 + $0x8] sm:$0xff]
        %vm819 = vcmask 261120
        %820 = vst.msk [vmem:[#allocation2] sm:$0xff] %vm819, %v817
        %821 = vst.msk [vmem:[#allocation2 + $0x8] sm:$0xff] %vm819, %v818
      $region76: #{omics_transformer_forward.2} parent=71 // pred_fallthru
        _
      %v822 = vld [vmem:[#allocation2] sm:$0xff]
      %v823 = vld [vmem:[#allocation2 + $0x8] sm:$0xff]
      %v824 = vld [vmem:[%s724] sm:$0xff]
      %v825 = vld [vmem:[%s724 + $0x8] sm:$0xff]
      %v826 = vld [vmem:[%s724 + $0x10] sm:$0xff]
      %v827 = vld [vmem:[%s724 + $0x18] sm:$0xff]
      %v828 = vld [vmem:[%s731] sm:$0x1]
      %v830 = vlaneseq
      %v831 = vshrl.u32 %v830, 7
      %v832 = vsub.s32 0, %v831
      %v833 = vrot.slane %v828, %v832
      %vm835 = vcmask 261120
      %v837 = vsel %vm835, %v822, 0
      %v840 = vsel %vm835, %v823, 0
      %842 = vmatprep.subr.mxu0 0.0
      %843 = vmatpush1.msra.mxu0 %v824
      %844 = vmatprep.subr.mxu0 0.0
      %845 = vmatpush1.msra.mxu0 %v825
      %846 = vmatprep.subr.mxu0 0.0
      %847 = vmatpush1.msra.mxu0 %v826
      %848 = vmatprep.subr.mxu0 0.0
      %849 = vmatpush1.msra.mxu0 %v827
      %850 = vmatprep.subr.mxu0 0.0
      %851 = vmatpush1.msra.mxu0 0.0
      %852 = vmatprep.subr.mxu0 0.0
      %853 = vmatpush1.msra.mxu0 0.0
      %854 = vmatprep.subr.mxu0 0.0
      %855 = vmatpush1.msra.mxu0 0.0
      %856 = vmatprep.subr.mxu0 0.0
      %857 = vmatpush1.msra.mxu0 0.0
      %858 = vmatprep.subr.mxu0 0.0
      %859 = vmatpush1.msra.mxu0 0.0
      %860 = vmatprep.subr.mxu0 0.0
      %861 = vmatpush1.msra.mxu0 0.0
      %862 = vmatprep.subr.mxu0 0.0
      %863 = vmatpush1.msra.mxu0 0.0
      %864 = vmatprep.subr.mxu0 0.0
      %865 = vmatpush1.msra.mxu0 0.0
      %866 = vmatprep.subr.mxu0 0.0
      %867 = vmatpush1.msra.mxu0 0.0
      %868 = vmatprep.subr.mxu0 0.0
      %869 = vmatpush1.msra.mxu0 0.0
      %870 = vmatprep.subr.mxu0 0.0
      %871 = vmatpush1.msra.mxu0 0.0
      %872 = vmatprep.subr.mxu0 0.0
      %873 = vmatpush1.msra.mxu0 0.0
      %874 = vmatprep.subr.mxu0 0.0
      %875 = vmatpush1.msra.mxu0 0.0
      %876 = vmatprep.subr.mxu0 0.0
      %877 = vmatpush1.msra.mxu0 0.0
      %878 = vmatprep.subr.mxu0 0.0
      %879 = vmatpush1.msra.mxu0 0.0
      %880 = vmatprep.subr.mxu0 0.0
      %881 = vmatpush1.msra.mxu0 0.0
      %882 = vmatprep.subr.mxu0 0.0
      %883 = vmatpush1.msra.mxu0 0.0
      %884 = vmatprep.subr.mxu0 0.0
      %885 = vmatpush1.msra.mxu0 0.0
      %886 = vmatprep.subr.mxu0 0.0
      %887 = vmatpush1.msra.mxu0 0.0
      %888 = vmatprep.subr.mxu0 0.0
      %889 = vmatpush1.msra.mxu0 0.0
      %890 = vmatprep.subr.mxu0 0.0
      %891 = vmatpush1.msra.mxu0 0.0
      %892 = vmatprep.subr.mxu0 0.0
      %893 = vmatpush1.msra.mxu0 0.0
      %894 = vmatprep.subr.mxu0 0.0
      %895 = vmatpush1.msra.mxu0 0.0
      %896 = vmatprep.subr.mxu0 0.0
      %897 = vmatpush1.msra.mxu0 0.0
      %898 = vmatprep.subr.mxu0 0.0
      %899 = vmatpush1.msra.mxu0 0.0
      %900 = vmatprep.subr.mxu0 0.0
      %901 = vmatpush1.msra.mxu0 0.0
      %902 = vmatprep.subr.mxu0 0.0
      %903 = vmatpush1.msra.mxu0 0.0
      %904 = vmatprep.subr.mxu0 0.0
      %905 = vmatpush1.msra.mxu0 0.0
      %906 = vmatprep.mubr.f32.mxu0 0.0
      %907 = vmatmul.mubr.f32.gmra.mrb[0].mxu0 %v837
      %v908 = vpop.f32.mrb[0].mxu0
      %v909 = vadd.f32 %v833, %v908
      %v910 = vpop.f32.mrb[0].mxu0
      %911 = vmatprep.mubr.f32.mxu0 0.0
      %912 = vmatmul.mubr.f32.gmra.mrb[0].mxu0 %v840
      %v913 = vpop.f32.mrb[0].mxu0
      %v914 = vadd.f32 %v833, %v913
      %v915 = vpop.f32.mrb[0].mxu0
      %916 = vdwg.mxu0
      %v917 = vld [vmem:[%s740] sm:$0xff]
      %v918 = vld [vmem:[%s740 + $0x8] sm:$0xff]
      %v919 = vld [vmem:[%s740 + $0x10] sm:$0xff]
      %v920 = vld [vmem:[%s740 + $0x18] sm:$0xff]
      %v921 = vld [vmem:[%s747] sm:$0x1]
      %v922 = vmul.f32 %v909, 0.35355338
      %v923 = vmul.f32 %v914, 0.35355338
      %925 = vrot.lane.b32.xlu0 %v909, 96
      %v926 = vpop.permute.xlu0 %925
      %vm927 = vcmask 64512
      %v929 = vsel %vm927, %v922, 0
      %v931 = vsel %vm927, %v926, 0
      %933 = vmatprep.subr.mxu0 0.0
      %934 = vmatpush1.xpose.msra.mxu0 %v931
      %935 = vmatprep.subr.mxu0 0.0
      %936 = vmatpush1.xpose.msra.mxu0 0.0
      %937 = vmatprep.subr.mxu0 0.0
      %938 = vmatpush1.xpose.msra.mxu0 0.0
      %939 = vmatprep.subr.mxu0 0.0
      %940 = vmatpush1.xpose.msra.mxu0 0.0
      %941 = vmatprep.subr.mxu0 0.0
      %942 = vmatpush1.xpose.msra.mxu0 0.0
      %943 = vmatprep.subr.mxu0 0.0
      %944 = vmatpush1.xpose.msra.mxu0 0.0
      %945 = vmatprep.subr.mxu0 0.0
      %946 = vmatpush1.xpose.msra.mxu0 0.0
      %947 = vmatprep.subr.mxu0 0.0
      %948 = vmatpush1.xpose.msra.mxu0 0.0
      %949 = vmatprep.subr.mxu0 0.0
      %950 = vmatpush1.xpose.msra.mxu0 0.0
      %951 = vmatprep.subr.mxu0 0.0
      %952 = vmatpush1.xpose.msra.mxu0 0.0
      %953 = vmatprep.subr.mxu0 0.0
      %954 = vmatpush1.xpose.msra.mxu0 0.0
      %955 = vmatprep.subr.mxu0 0.0
      %956 = vmatpush1.xpose.msra.mxu0 0.0
      %957 = vmatprep.subr.mxu0 0.0
      %958 = vmatpush1.xpose.msra.mxu0 0.0
      %959 = vmatprep.subr.mxu0 0.0
      %960 = vmatpush1.xpose.msra.mxu0 0.0
      %961 = vmatprep.subr.mxu0 0.0
      %962 = vmatpush1.xpose.msra.mxu0 0.0
      %963 = vmatprep.subr.mxu0 0.0
      %964 = vmatpush1.xpose.msra.mxu0 0.0
      %965 = vmatprep.subr.mxu0 0.0
      %966 = vmatpush1.xpose.msra.mxu0 0.0
      %967 = vmatprep.subr.mxu0 0.0
      %968 = vmatpush1.xpose.msra.mxu0 0.0
      %969 = vmatprep.subr.mxu0 0.0
      %970 = vmatpush1.xpose.msra.mxu0 0.0
      %971 = vmatprep.subr.mxu0 0.0
      %972 = vmatpush1.xpose.msra.mxu0 0.0
      %973 = vmatprep.subr.mxu0 0.0
      %974 = vmatpush1.xpose.msra.mxu0 0.0
      %975 = vmatprep.subr.mxu0 0.0
      %976 = vmatpush1.xpose.msra.mxu0 0.0
      %977 = vmatprep.subr.mxu0 0.0
      %978 = vmatpush1.xpose.msra.mxu0 0.0
      %979 = vmatprep.subr.mxu0 0.0
      %980 = vmatpush1.xpose.msra.mxu0 0.0
      %981 = vmatprep.subr.mxu0 0.0
      %982 = vmatpush1.xpose.msra.mxu0 0.0
      %983 = vmatprep.subr.mxu0 0.0
      %984 = vmatpush1.xpose.msra.mxu0 0.0
      %985 = vmatprep.subr.mxu0 0.0
      %986 = vmatpush1.xpose.msra.mxu0 0.0
      %987 = vmatprep.subr.mxu0 0.0
      %988 = vmatpush1.xpose.msra.mxu0 0.0
      %989 = vmatprep.subr.mxu0 0.0
      %990 = vmatpush1.xpose.msra.mxu0 0.0
      %991 = vmatprep.subr.mxu0 0.0
      %992 = vmatpush1.xpose.msra.mxu0 0.0
      %993 = vmatprep.subr.mxu0 0.0
      %994 = vmatpush1.xpose.msra.mxu0 0.0
      %995 = vmatprep.subr.mxu0 0.0
      %996 = vmatpush1.xpose.msra.mxu0 0.0
      %997 = vmatprep.mubr.f32.mxu0 0.0
      %998 = vmatmul.mubr.f32.gmra.mrb[0].mxu0 %v929
      %v999 = vpop.f32.mrb[0].mxu0
      %v1000 = vadd.f32 0.0, %v999
      %v1001 = vpop.f32.mrb[0].mxu0
      %1002 = vdwg.mxu0
      %1004 = vrot.lane.b32.xlu0 %v914, 96
      %v1005 = vpop.permute.xlu0 %1004
      %v1007 = vsel %vm927, %v923, 0
      %v1009 = vsel %vm927, %v1005, 0
      %1011 = vmatprep.subr.mxu0 0.0
      %1012 = vmatpush1.xpose.msra.mxu0 %v1009
      %1013 = vmatprep.subr.mxu0 0.0
      %1014 = vmatpush1.xpose.msra.mxu0 0.0
      %1015 = vmatprep.subr.mxu0 0.0
      %1016 = vmatpush1.xpose.msra.mxu0 0.0
      %1017 = vmatprep.subr.mxu0 0.0
      %1018 = vmatpush1.xpose.msra.mxu0 0.0
      %1019 = vmatprep.subr.mxu0 0.0
      %1020 = vmatpush1.xpose.msra.mxu0 0.0
      %1021 = vmatprep.subr.mxu0 0.0
      %1022 = vmatpush1.xpose.msra.mxu0 0.0
      %1023 = vmatprep.subr.mxu0 0.0
      %1024 = vmatpush1.xpose.msra.mxu0 0.0
      %1025 = vmatprep.subr.mxu0 0.0
      %1026 = vmatpush1.xpose.msra.mxu0 0.0
      %1027 = vmatprep.subr.mxu0 0.0
      %1028 = vmatpush1.xpose.msra.mxu0 0.0
      %1029 = vmatprep.subr.mxu0 0.0
      %1030 = vmatpush1.xpose.msra.mxu0 0.0
      %1031 = vmatprep.subr.mxu0 0.0
      %1032 = vmatpush1.xpose.msra.mxu0 0.0
      %1033 = vmatprep.subr.mxu0 0.0
      %1034 = vmatpush1.xpose.msra.mxu0 0.0
      %1035 = vmatprep.subr.mxu0 0.0
      %1036 = vmatpush1.xpose.msra.mxu0 0.0
      %1037 = vmatprep.subr.mxu0 0.0
      %1038 = vmatpush1.xpose.msra.mxu0 0.0
      %1039 = vmatprep.subr.mxu0 0.0
      %1040 = vmatpush1.xpose.msra.mxu0 0.0
      %1041 = vmatprep.subr.mxu0 0.0
      %1042 = vmatpush1.xpose.msra.mxu0 0.0
      %1043 = vmatprep.subr.mxu0 0.0
      %1044 = vmatpush1.xpose.msra.mxu0 0.0
      %1045 = vmatprep.subr.mxu0 0.0
      %1046 = vmatpush1.xpose.msra.mxu0 0.0
      %1047 = vmatprep.subr.mxu0 0.0
      %1048 = vmatpush1.xpose.msra.mxu0 0.0
      %1049 = vmatprep.subr.mxu0 0.0
      %1050 = vmatpush1.xpose.msra.mxu0 0.0
      %1051 = vmatprep.subr.mxu0 0.0
      %1052 = vmatpush1.xpose.msra.mxu0 0.0
      %1053 = vmatprep.subr.mxu0 0.0
      %1054 = vmatpush1.xpose.msra.mxu0 0.0
      %1055 = vmatprep.subr.mxu0 0.0
      %1056 = vmatpush1.xpose.msra.mxu0 0.0
      %1057 = vmatprep.subr.mxu0 0.0
      %1058 = vmatpush1.xpose.msra.mxu0 0.0
      %1059 = vmatprep.subr.mxu0 0.0
      %1060 = vmatpush1.xpose.msra.mxu0 0.0
      %1061 = vmatprep.subr.mxu0 0.0
      %1062 = vmatpush1.xpose.msra.mxu0 0.0
      %1063 = vmatprep.subr.mxu0 0.0
      %1064 = vmatpush1.xpose.msra.mxu0 0.0
      %1065 = vmatprep.subr.mxu0 0.0
      %1066 = vmatpush1.xpose.msra.mxu0 0.0
      %1067 = vmatprep.subr.mxu0 0.0
      %1068 = vmatpush1.xpose.msra.mxu0 0.0
      %1069 = vmatprep.subr.mxu0 0.0
      %1070 = vmatpush1.xpose.msra.mxu0 0.0
      %1071 = vmatprep.subr.mxu0 0.0
      %1072 = vmatpush1.xpose.msra.mxu0 0.0
      %1073 = vmatprep.subr.mxu0 0.0
      %1074 = vmatpush1.xpose.msra.mxu0 0.0
      %1075 = vmatprep.mubr.f32.mxu0 0.0
      %1076 = vmatmul.mubr.f32.gmra.mrb[0].mxu0 %v1007
      %v1077 = vpop.f32.mrb[0].mxu0
      %v1078 = vadd.f32 0.0, %v1077
      %v1079 = vpop.f32.mrb[0].mxu0
      %1080 = vdwg.mxu0
      %v1081 = vsel %vm927, %v1000, -inf
      %1082 = vmax.xlane.f32.xlu0 %v1081
      %v1083 = vpop.xlane.xlu0 %1082
      %v1084 = vsel %vm927, %v1078, -inf
      %1085 = vmax.xlane.f32.xlu0 %v1084
      %v1086 = vpop.xlane.xlu0 %1085
      %v1087 = vsub.f32 %v1000, %v1083
      %v1088 = vsub.f32 %v1078, %v1086
      %v1089 = vmul.f32 %v1087, 1.442695
      %v1090 = vpow.pop %v1089
      %v1091 = vmul.f32 %v1088, 1.442695
      %v1092 = vpow.pop %v1091
      %v1093 = vsel %vm927, %v1090, 0.0
      %1094 = vadd.xlane.f32.xlu0 %v1093
      %v1095 = vpop.xlane.xlu0 %1094
      %v1096 = vsel %vm927, %v1092, 0.0
      %1097 = vadd.xlane.f32.xlu0 %v1096
      %v1098 = vpop.xlane.xlu0 %1097
      %v1099 = vrcp.pop %v1095
      %v1100 = vrcp.pop %v1098
      %v1101 = vmul.f32 %v1090, %v1099
      %v1102 = vmul.f32 %v1092, %v1100
      %1103 = vrot.lane.b32.xlu0 %v909, 64
      %v1104 = vpop.permute.xlu0 %1103
      %v1107 = vsel %vm927, %v1101, 0
      %1109 = vmatprep.subr.mxu0 0.0
      %1110 = vmatpush1.msra.mxu0 %v1104
      %1111 = vmatprep.subr.mxu0 0.0
      %1112 = vmatpush1.msra.mxu0 0.0
      %1113 = vmatprep.subr.mxu0 0.0
      %1114 = vmatpush1.msra.mxu0 0.0
      %1115 = vmatprep.subr.mxu0 0.0
      %1116 = vmatpush1.msra.mxu0 0.0
      %1117 = vmatprep.subr.mxu0 0.0
      %1118 = vmatpush1.msra.mxu0 0.0
      %1119 = vmatprep.subr.mxu0 0.0
      %1120 = vmatpush1.msra.mxu0 0.0
      %1121 = vmatprep.subr.mxu0 0.0
      %1122 = vmatpush1.msra.mxu0 0.0
      %1123 = vmatprep.subr.mxu0 0.0
      %1124 = vmatpush1.msra.mxu0 0.0
      %1125 = vmatprep.subr.mxu0 0.0
      %1126 = vmatpush1.msra.mxu0 0.0
      %1127 = vmatprep.subr.mxu0 0.0
      %1128 = vmatpush1.msra.mxu0 0.0
      %1129 = vmatprep.subr.mxu0 0.0
      %1130 = vmatpush1.msra.mxu0 0.0
      %1131 = vmatprep.subr.mxu0 0.0
      %1132 = vmatpush1.msra.mxu0 0.0
      %1133 = vmatprep.subr.mxu0 0.0
      %1134 = vmatpush1.msra.mxu0 0.0
      %1135 = vmatprep.subr.mxu0 0.0
      %1136 = vmatpush1.msra.mxu0 0.0
      %1137 = vmatprep.subr.mxu0 0.0
      %1138 = vmatpush1.msra.mxu0 0.0
      %1139 = vmatprep.subr.mxu0 0.0
      %1140 = vmatpush1.msra.mxu0 0.0
      %1141 = vmatprep.subr.mxu0 0.0
      %1142 = vmatpush1.msra.mxu0 0.0
      %1143 = vmatprep.subr.mxu0 0.0
      %1144 = vmatpush1.msra.mxu0 0.0
      %1145 = vmatprep.subr.mxu0 0.0
      %1146 = vmatpush1.msra.mxu0 0.0
      %1147 = vmatprep.subr.mxu0 0.0
      %1148 = vmatpush1.msra.mxu0 0.0
      %1149 = vmatprep.subr.mxu0 0.0
      %1150 = vmatpush1.msra.mxu0 0.0
      %1151 = vmatprep.subr.mxu0 0.0
      %1152 = vmatpush1.msra.mxu0 0.0
      %1153 = vmatprep.subr.mxu0 0.0
      %1154 = vmatpush1.msra.mxu0 0.0
      %1155 = vmatprep.subr.mxu0 0.0
      %1156 = vmatpush1.msra.mxu0 0.0
      %1157 = vmatprep.subr.mxu0 0.0
      %1158 = vmatpush1.msra.mxu0 0.0
      %1159 = vmatprep.subr.mxu0 0.0
      %1160 = vmatpush1.msra.mxu0 0.0
      %1161 = vmatprep.subr.mxu0 0.0
      %1162 = vmatpush1.msra.mxu0 0.0
      %1163 = vmatprep.subr.mxu0 0.0
      %1164 = vmatpush1.msra.mxu0 0.0
      %1165 = vmatprep.subr.mxu0 0.0
      %1166 = vmatpush1.msra.mxu0 0.0
      %1167 = vmatprep.subr.mxu0 0.0
      %1168 = vmatpush1.msra.mxu0 0.0
      %1169 = vmatprep.subr.mxu0 0.0
      %1170 = vmatpush1.msra.mxu0 0.0
      %1171 = vmatprep.subr.mxu0 0.0
      %1172 = vmatpush1.msra.mxu0 0.0
      %1173 = vmatprep.mubr.f32.mxu0 0.0
      %1174 = vmatmul.mubr.f32.gmra.mrb[0].mxu0 %v1107
      %v1175 = vpop.f32.mrb[0].mxu0
      %v1176 = vadd.f32 0.0, %v1175
      %v1177 = vpop.f32.mrb[0].mxu0
      %1178 = vdwg.mxu0
      %1179 = vrot.lane.b32.xlu0 %v914, 64
      %v1180 = vpop.permute.xlu0 %1179
      %v1183 = vsel %vm927, %v1102, 0
      %1185 = vmatprep.subr.mxu0 0.0
      %1186 = vmatpush1.msra.mxu0 %v1180
      %1187 = vmatprep.subr.mxu0 0.0
      %1188 = vmatpush1.msra.mxu0 0.0
      %1189 = vmatprep.subr.mxu0 0.0
      %1190 = vmatpush1.msra.mxu0 0.0
      %1191 = vmatprep.subr.mxu0 0.0
      %1192 = vmatpush1.msra.mxu0 0.0
      %1193 = vmatprep.subr.mxu0 0.0
      %1194 = vmatpush1.msra.mxu0 0.0
      %1195 = vmatprep.subr.mxu0 0.0
      %1196 = vmatpush1.msra.mxu0 0.0
      %1197 = vmatprep.subr.mxu0 0.0
      %1198 = vmatpush1.msra.mxu0 0.0
      %1199 = vmatprep.subr.mxu0 0.0
      %1200 = vmatpush1.msra.mxu0 0.0
      %1201 = vmatprep.subr.mxu0 0.0
      %1202 = vmatpush1.msra.mxu0 0.0
      %1203 = vmatprep.subr.mxu0 0.0
      %1204 = vmatpush1.msra.mxu0 0.0
      %1205 = vmatprep.subr.mxu0 0.0
      %1206 = vmatpush1.msra.mxu0 0.0
      %1207 = vmatprep.subr.mxu0 0.0
      %1208 = vmatpush1.msra.mxu0 0.0
      %1209 = vmatprep.subr.mxu0 0.0
      %1210 = vmatpush1.msra.mxu0 0.0
      %1211 = vmatprep.subr.mxu0 0.0
      %1212 = vmatpush1.msra.mxu0 0.0
      %1213 = vmatprep.subr.mxu0 0.0
      %1214 = vmatpush1.msra.mxu0 0.0
      %1215 = vmatprep.subr.mxu0 0.0
      %1216 = vmatpush1.msra.mxu0 0.0
      %1217 = vmatprep.subr.mxu0 0.0
      %1218 = vmatpush1.msra.mxu0 0.0
      %1219 = vmatprep.subr.mxu0 0.0
      %1220 = vmatpush1.msra.mxu0 0.0
      %1221 = vmatprep.subr.mxu0 0.0
      %1222 = vmatpush1.msra.mxu0 0.0
      %1223 = vmatprep.subr.mxu0 0.0
      %1224 = vmatpush1.msra.mxu0 0.0
      %1225 = vmatprep.subr.mxu0 0.0
      %1226 = vmatpush1.msra.mxu0 0.0
      %1227 = vmatprep.subr.mxu0 0.0
      %1228 = vmatpush1.msra.mxu0 0.0
      %1229 = vmatprep.subr.mxu0 0.0
      %1230 = vmatpush1.msra.mxu0 0.0
      %1231 = vmatprep.subr.mxu0 0.0
      %1232 = vmatpush1.msra.mxu0 0.0
      %1233 = vmatprep.subr.mxu0 0.0
      %1234 = vmatpush1.msra.mxu0 0.0
      %1235 = vmatprep.subr.mxu0 0.0
      %1236 = vmatpush1.msra.mxu0 0.0
      %1237 = vmatprep.subr.mxu0 0.0
      %1238 = vmatpush1.msra.mxu0 0.0
      %1239 = vmatprep.subr.mxu0 0.0
      %1240 = vmatpush1.msra.mxu0 0.0
      %1241 = vmatprep.subr.mxu0 0.0
      %1242 = vmatpush1.msra.mxu0 0.0
      %1243 = vmatprep.subr.mxu0 0.0
      %1244 = vmatpush1.msra.mxu0 0.0
      %1245 = vmatprep.subr.mxu0 0.0
      %1246 = vmatpush1.msra.mxu0 0.0
      %1247 = vmatprep.subr.mxu0 0.0
      %1248 = vmatpush1.msra.mxu0 0.0
      %1249 = vmatprep.mubr.f32.mxu0 0.0
      %1250 = vmatmul.mubr.f32.gmra.mrb[0].mxu0 %v1183
      %v1251 = vpop.f32.mrb[0].mxu0
      %v1252 = vadd.f32 0.0, %v1251
      %v1253 = vpop.f32.mrb[0].mxu0
      %1254 = vdwg.mxu0
      %1255 = vrot.lane.b32.xlu0 %v922, 120
      %v1256 = vpop.permute.xlu0 %1255
      %1257 = vrot.lane.b32.xlu0 %v909, 88
      %v1258 = vpop.permute.xlu0 %1257
      %v1259 = vsel %vm927, %v1256, 0
      %v1261 = vsel %vm927, %v1258, 0
      %1263 = vmatprep.subr.mxu0 0.0
      %1264 = vmatpush1.xpose.msra.mxu0 %v1261
      %1265 = vmatprep.subr.mxu0 0.0
      %1266 = vmatpush1.xpose.msra.mxu0 0.0
      %1267 = vmatprep.subr.mxu0 0.0
      %1268 = vmatpush1.xpose.msra.mxu0 0.0
      %1269 = vmatprep.subr.mxu0 0.0
      %1270 = vmatpush1.xpose.msra.mxu0 0.0
      %1271 = vmatprep.subr.mxu0 0.0
      %1272 = vmatpush1.xpose.msra.mxu0 0.0
      %1273 = vmatprep.subr.mxu0 0.0
      %1274 = vmatpush1.xpose.msra.mxu0 0.0
      %1275 = vmatprep.subr.mxu0 0.0
      %1276 = vmatpush1.xpose.msra.mxu0 0.0
      %1277 = vmatprep.subr.mxu0 0.0
      %1278 = vmatpush1.xpose.msra.mxu0 0.0
      %1279 = vmatprep.subr.mxu0 0.0
      %1280 = vmatpush1.xpose.msra.mxu0 0.0
      %1281 = vmatprep.subr.mxu0 0.0
      %1282 = vmatpush1.xpose.msra.mxu0 0.0
      %1283 = vmatprep.subr.mxu0 0.0
      %1284 = vmatpush1.xpose.msra.mxu0 0.0
      %1285 = vmatprep.subr.mxu0 0.0
      %1286 = vmatpush1.xpose.msra.mxu0 0.0
      %1287 = vmatprep.subr.mxu0 0.0
      %1288 = vmatpush1.xpose.msra.mxu0 0.0
      %1289 = vmatprep.subr.mxu0 0.0
      %1290 = vmatpush1.xpose.msra.mxu0 0.0
      %1291 = vmatprep.subr.mxu0 0.0
      %1292 = vmatpush1.xpose.msra.mxu0 0.0
      %1293 = vmatprep.subr.mxu0 0.0
      %1294 = vmatpush1.xpose.msra.mxu0 0.0
      %1295 = vmatprep.subr.mxu0 0.0
      %1296 = vmatpush1.xpose.msra.mxu0 0.0
      %1297 = vmatprep.subr.mxu0 0.0
      %1298 = vmatpush1.xpose.msra.mxu0 0.0
      %1299 = vmatprep.subr.mxu0 0.0
      %1300 = vmatpush1.xpose.msra.mxu0 0.0
      %1301 = vmatprep.subr.mxu0 0.0
      %1302 = vmatpush1.xpose.msra.mxu0 0.0
      %1303 = vmatprep.subr.mxu0 0.0
      %1304 = vmatpush1.xpose.msra.mxu0 0.0
      %1305 = vmatprep.subr.mxu0 0.0
      %1306 = vmatpush1.xpose.msra.mxu0 0.0
      %1307 = vmatprep.subr.mxu0 0.0
      %1308 = vmatpush1.xpose.msra.mxu0 0.0
      %1309 = vmatprep.subr.mxu0 0.0
      %1310 = vmatpush1.xpose.msra.mxu0 0.0
      %1311 = vmatprep.subr.mxu0 0.0
      %1312 = vmatpush1.xpose.msra.mxu0 0.0
      %1313 = vmatprep.subr.mxu0 0.0
      %1314 = vmatpush1.xpose.msra.mxu0 0.0
      %1315 = vmatprep.subr.mxu0 0.0
      %1316 = vmatpush1.xpose.msra.mxu0 0.0
      %1317 = vmatprep.subr.mxu0 0.0
      %1318 = vmatpush1.xpose.msra.mxu0 0.0
      %1319 = vmatprep.subr.mxu0 0.0
      %1320 = vmatpush1.xpose.msra.mxu0 0.0
      %1321 = vmatprep.subr.mxu0 0.0
      %1322 = vmatpush1.xpose.msra.mxu0 0.0
      %1323 = vmatprep.subr.mxu0 0.0
      %1324 = vmatpush1.xpose.msra.mxu0 0.0
      %1325 = vmatprep.subr.mxu0 0.0
      %1326 = vmatpush1.xpose.msra.mxu0 0.0
      %1327 = vmatprep.mubr.f32.mxu0 0.0
      %1328 = vmatmul.mubr.f32.gmra.mrb[0].mxu0 %v1259
      %v1329 = vpop.f32.mrb[0].mxu0
      %v1330 = vadd.f32 0.0, %v1329
      %v1331 = vpop.f32.mrb[0].mxu0
      %1332 = vdwg.mxu0
      %1333 = vrot.lane.b32.xlu0 %v923, 120
      %v1334 = vpop.permute.xlu0 %1333
      %1335 = vrot.lane.b32.xlu0 %v914, 88
      %v1336 = vpop.permute.xlu0 %1335
      %v1337 = vsel %vm927, %v1334, 0
      %v1339 = vsel %vm927, %v1336, 0
      %1341 = vmatprep.subr.mxu0 0.0
      %1342 = vmatpush1.xpose.msra.mxu0 %v1339
      %1343 = vmatprep.subr.mxu0 0.0
      %1344 = vmatpush1.xpose.msra.mxu0 0.0
      %1345 = vmatprep.subr.mxu0 0.0
      %1346 = vmatpush1.xpose.msra.mxu0 0.0
      %1347 = vmatprep.subr.mxu0 0.0
      %1348 = vmatpush1.xpose.msra.mxu0 0.0
      %1349 = vmatprep.subr.mxu0 0.0
      %1350 = vmatpush1.xpose.msra.mxu0 0.0
      %1351 = vmatprep.subr.mxu0 0.0
      %1352 = vmatpush1.xpose.msra.mxu0 0.0
      %1353 = vmatprep.subr.mxu0 0.0
      %1354 = vmatpush1.xpose.msra.mxu0 0.0
      %1355 = vmatprep.subr.mxu0 0.0
      %1356 = vmatpush1.xpose.msra.mxu0 0.0
      %1357 = vmatprep.subr.mxu0 0.0
      %1358 = vmatpush1.xpose.msra.mxu0 0.0
      %1359 = vmatprep.subr.mxu0 0.0
      %1360 = vmatpush1.xpose.msra.mxu0 0.0
      %1361 = vmatprep.subr.mxu0 0.0
      %1362 = vmatpush1.xpose.msra.mxu0 0.0
      %1363 = vmatprep.subr.mxu0 0.0
      %1364 = vmatpush1.xpose.msra.mxu0 0.0
      %1365 = vmatprep.subr.mxu0 0.0
      %1366 = vmatpush1.xpose.msra.mxu0 0.0
      %1367 = vmatprep.subr.mxu0 0.0
      %1368 = vmatpush1.xpose.msra.mxu0 0.0
      %1369 = vmatprep.subr.mxu0 0.0
      %1370 = vmatpush1.xpose.msra.mxu0 0.0
      %1371 = vmatprep.subr.mxu0 0.0
      %1372 = vmatpush1.xpose.msra.mxu0 0.0
      %1373 = vmatprep.subr.mxu0 0.0
      %1374 = vmatpush1.xpose.msra.mxu0 0.0
      %1375 = vmatprep.subr.mxu0 0.0
      %1376 = vmatpush1.xpose.msra.mxu0 0.0
      %1377 = vmatprep.subr.mxu0 0.0
      %1378 = vmatpush1.xpose.msra.mxu0 0.0
      %1379 = vmatprep.subr.mxu0 0.0
      %1380 = vmatpush1.xpose.msra.mxu0 0.0
      %1381 = vmatprep.subr.mxu0 0.0
      %1382 = vmatpush1.xpose.msra.mxu0 0.0
      %1383 = vmatprep.subr.mxu0 0.0
      %1384 = vmatpush1.xpose.msra.mxu0 0.0
      %1385 = vmatprep.subr.mxu0 0.0
      %1386 = vmatpush1.xpose.msra.mxu0 0.0
      %1387 = vmatprep.subr.mxu0 0.0
      %1388 = vmatpush1.xpose.msra.mxu0 0.0
      %1389 = vmatprep.subr.mxu0 0.0
      %1390 = vmatpush1.xpose.msra.mxu0 0.0
      %1391 = vmatprep.subr.mxu0 0.0
      %1392 = vmatpush1.xpose.msra.mxu0 0.0
      %1393 = vmatprep.subr.mxu0 0.0
      %1394 = vmatpush1.xpose.msra.mxu0 0.0
      %1395 = vmatprep.subr.mxu0 0.0
      %1396 = vmatpush1.xpose.msra.mxu0 0.0
      %1397 = vmatprep.subr.mxu0 0.0
      %1398 = vmatpush1.xpose.msra.mxu0 0.0
      %1399 = vmatprep.subr.mxu0 0.0
      %1400 = vmatpush1.xpose.msra.mxu0 0.0
      %1401 = vmatprep.subr.mxu0 0.0
      %1402 = vmatpush1.xpose.msra.mxu0 0.0
      %1403 = vmatprep.subr.mxu0 0.0
      %1404 = vmatpush1.xpose.msra.mxu0 0.0
      %1405 = vmatprep.mubr.f32.mxu0 0.0
      %1406 = vmatmul.mubr.f32.gmra.mrb[0].mxu0 %v1337
      %v1407 = vpop.f32.mrb[0].mxu0
      %v1408 = vadd.f32 0.0, %v1407
      %v1409 = vpop.f32.mrb[0].mxu0
      %1410 = vdwg.mxu0
      %v1411 = vsel %vm927, %v1330, -inf
      %1412 = vmax.xlane.f32.xlu0 %v1411
      %v1413 = vpop.xlane.xlu0 %1412
      %v1414 = vsel %vm927, %v1408, -inf
      %1415 = vmax.xlane.f32.xlu0 %v1414
      %v1416 = vpop.xlane.xlu0 %1415
      %v1417 = vsub.f32 %v1330, %v1413
      %v1418 = vsub.f32 %v1408, %v1416
      %v1419 = vmul.f32 %v1417, 1.442695
      %v1420 = vpow.pop %v1419
      %v1421 = vmul.f32 %v1418, 1.442695
      %v1422 = vpow.pop %v1421
      %v1423 = vsel %vm927, %v1420, 0.0
      %1424 = vadd.xlane.f32.xlu0 %v1423
      %v1425 = vpop.xlane.xlu0 %1424
      %v1426 = vsel %vm927, %v1422, 0.0
      %1427 = vadd.xlane.f32.xlu0 %v1426
      %v1428 = vpop.xlane.xlu0 %1427
      %v1429 = vrcp.pop %v1425
      %v1430 = vrcp.pop %v1428
      %v1431 = vmul.f32 %v1420, %v1429
      %v1432 = vmul.f32 %v1422, %v1430
      %1433 = vrot.lane.b32.xlu0 %v909, 56
      %v1434 = vpop.permute.xlu0 %1433
      %v1437 = vsel %vm927, %v1431, 0
      %1439 = vmatprep.subr.mxu0 0.0
      %1440 = vmatpush1.msra.mxu0 %v1434
      %1441 = vmatprep.subr.mxu0 0.0
      %1442 = vmatpush1.msra.mxu0 0.0
      %1443 = vmatprep.subr.mxu0 0.0
      %1444 = vmatpush1.msra.mxu0 0.0
      %1445 = vmatprep.subr.mxu0 0.0
      %1446 = vmatpush1.msra.mxu0 0.0
      %1447 = vmatprep.subr.mxu0 0.0
      %1448 = vmatpush1.msra.mxu0 0.0
      %1449 = vmatprep.subr.mxu0 0.0
      %1450 = vmatpush1.msra.mxu0 0.0
      %1451 = vmatprep.subr.mxu0 0.0
      %1452 = vmatpush1.msra.mxu0 0.0
      %1453 = vmatprep.subr.mxu0 0.0
      %1454 = vmatpush1.msra.mxu0 0.0
      %1455 = vmatprep.subr.mxu0 0.0
      %1456 = vmatpush1.msra.mxu0 0.0
      %1457 = vmatprep.subr.mxu0 0.0
      %1458 = vmatpush1.msra.mxu0 0.0
      %1459 = vmatprep.subr.mxu0 0.0
      %1460 = vmatpush1.msra.mxu0 0.0
      %1461 = vmatprep.subr.mxu0 0.0
      %1462 = vmatpush1.msra.mxu0 0.0
      %1463 = vmatprep.subr.mxu0 0.0
      %1464 = vmatpush1.msra.mxu0 0.0
      %1465 = vmatprep.subr.mxu0 0.0
      %1466 = vmatpush1.msra.mxu0 0.0
      %1467 = vmatprep.subr.mxu0 0.0
      %1468 = vmatpush1.msra.mxu0 0.0
      %1469 = vmatprep.subr.mxu0 0.0
      %1470 = vmatpush1.msra.mxu0 0.0
      %1471 = vmatprep.subr.mxu0 0.0
      %1472 = vmatpush1.msra.mxu0 0.0
      %1473 = vmatprep.subr.mxu0 0.0
      %1474 = vmatpush1.msra.mxu0 0.0
      %1475 = vmatprep.subr.mxu0 0.0
      %1476 = vmatpush1.msra.mxu0 0.0
      %1477 = vmatprep.subr.mxu0 0.0
      %1478 = vmatpush1.msra.mxu0 0.0
      %1479 = vmatprep.subr.mxu0 0.0
      %1480 = vmatpush1.msra.mxu0 0.0
      %1481 = vmatprep.subr.mxu0 0.0
      %1482 = vmatpush1.msra.mxu0 0.0
      %1483 = vmatprep.subr.mxu0 0.0
      %1484 = vmatpush1.msra.mxu0 0.0
      %1485 = vmatprep.subr.mxu0 0.0
      %1486 = vmatpush1.msra.mxu0 0.0
      %1487 = vmatprep.subr.mxu0 0.0
      %1488 = vmatpush1.msra.mxu0 0.0
      %1489 = vmatprep.subr.mxu0 0.0
      %1490 = vmatpush1.msra.mxu0 0.0
      %1491 = vmatprep.subr.mxu0 0.0
      %1492 = vmatpush1.msra.mxu0 0.0
      %1493 = vmatprep.subr.mxu0 0.0
      %1494 = vmatpush1.msra.mxu0 0.0
      %1495 = vmatprep.subr.mxu0 0.0
      %1496 = vmatpush1.msra.mxu0 0.0
      %1497 = vmatprep.subr.mxu0 0.0
      %1498 = vmatpush1.msra.mxu0 0.0
      %1499 = vmatprep.subr.mxu0 0.0
      %1500 = vmatpush1.msra.mxu0 0.0
      %1501 = vmatprep.subr.mxu0 0.0
      %1502 = vmatpush1.msra.mxu0 0.0
      %1503 = vmatprep.mubr.f32.mxu0 0.0
      %1504 = vmatmul.mubr.f32.gmra.mrb[0].mxu0 %v1437
      %v1505 = vpop.f32.mrb[0].mxu0
      %v1506 = vadd.f32 0.0, %v1505
      %v1507 = vpop.f32.mrb[0].mxu0
      %1508 = vdwg.mxu0
      %1509 = vrot.lane.b32.xlu0 %v914, 56
      %v1510 = vpop.permute.xlu0 %1509
      %v1513 = vsel %vm927, %v1432, 0
      %1515 = vmatprep.subr.mxu0 0.0
      %1516 = vmatpush1.msra.mxu0 %v1510
      %1517 = vmatprep.subr.mxu0 0.0
      %1518 = vmatpush1.msra.mxu0 0.0
      %1519 = vmatprep.subr.mxu0 0.0
      %1520 = vmatpush1.msra.mxu0 0.0
      %1521 = vmatprep.subr.mxu0 0.0
      %1522 = vmatpush1.msra.mxu0 0.0
      %1523 = vmatprep.subr.mxu0 0.0
      %1524 = vmatpush1.msra.mxu0 0.0
      %1525 = vmatprep.subr.mxu0 0.0
      %1526 = vmatpush1.msra.mxu0 0.0
      %1527 = vmatprep.subr.mxu0 0.0
      %1528 = vmatpush1.msra.mxu0 0.0
      %1529 = vmatprep.subr.mxu0 0.0
      %1530 = vmatpush1.msra.mxu0 0.0
      %1531 = vmatprep.subr.mxu0 0.0
      %1532 = vmatpush1.msra.mxu0 0.0
      %1533 = vmatprep.subr.mxu0 0.0
      %1534 = vmatpush1.msra.mxu0 0.0
      %1535 = vmatprep.subr.mxu0 0.0
      %1536 = vmatpush1.msra.mxu0 0.0
      %1537 = vmatprep.subr.mxu0 0.0
      %1538 = vmatpush1.msra.mxu0 0.0
      %1539 = vmatprep.subr.mxu0 0.0
      %1540 = vmatpush1.msra.mxu0 0.0
      %1541 = vmatprep.subr.mxu0 0.0
      %1542 = vmatpush1.msra.mxu0 0.0
      %1543 = vmatprep.subr.mxu0 0.0
      %1544 = vmatpush1.msra.mxu0 0.0
      %1545 = vmatprep.subr.mxu0 0.0
      %1546 = vmatpush1.msra.mxu0 0.0
      %1547 = vmatprep.subr.mxu0 0.0
      %1548 = vmatpush1.msra.mxu0 0.0
      %1549 = vmatprep.subr.mxu0 0.0
      %1550 = vmatpush1.msra.mxu0 0.0
      %1551 = vmatprep.subr.mxu0 0.0
      %1552 = vmatpush1.msra.mxu0 0.0
      %1553 = vmatprep.subr.mxu0 0.0
      %1554 = vmatpush1.msra.mxu0 0.0
      %1555 = vmatprep.subr.mxu0 0.0
      %1556 = vmatpush1.msra.mxu0 0.0
      %1557 = vmatprep.subr.mxu0 0.0
      %1558 = vmatpush1.msra.mxu0 0.0
      %1559 = vmatprep.subr.mxu0 0.0
      %1560 = vmatpush1.msra.mxu0 0.0
      %1561 = vmatprep.subr.mxu0 0.0
      %1562 = vmatpush1.msra.mxu0 0.0
      %1563 = vmatprep.subr.mxu0 0.0
      %1564 = vmatpush1.msra.mxu0 0.0
      %1565 = vmatprep.subr.mxu0 0.0
      %1566 = vmatpush1.msra.mxu0 0.0
      %1567 = vmatprep.subr.mxu0 0.0
      %1568 = vmatpush1.msra.mxu0 0.0
      %1569 = vmatprep.subr.mxu0 0.0
      %1570 = vmatpush1.msra.mxu0 0.0
      %1571 = vmatprep.subr.mxu0 0.0
      %1572 = vmatpush1.msra.mxu0 0.0
      %1573 = vmatprep.subr.mxu0 0.0
      %1574 = vmatpush1.msra.mxu0 0.0
      %1575 = vmatprep.subr.mxu0 0.0
      %1576 = vmatpush1.msra.mxu0 0.0
      %1577 = vmatprep.subr.mxu0 0.0
      %1578 = vmatpush1.msra.mxu0 0.0
      %1579 = vmatprep.mubr.f32.mxu0 0.0
      %1580 = vmatmul.mubr.f32.gmra.mrb[0].mxu0 %v1513
      %v1581 = vpop.f32.mrb[0].mxu0
      %v1582 = vadd.f32 0.0, %v1581
      %v1583 = vpop.f32.mrb[0].mxu0
      %1584 = vdwg.mxu0
      %v1586 = vsel %vm927, %v1506, 0
      %v1589 = vsel %vm927, %v1582, 0
      %1591 = vmatprep.subr.mxu0 0.0
      %1592 = vmatpush1.msra.mxu0 %v918
      %1593 = vmatprep.subr.mxu0 0.0
      %1594 = vmatpush1.msra.mxu0 0.0
      %1595 = vmatprep.subr.mxu0 0.0
      %1596 = vmatpush1.msra.mxu0 0.0
      %1597 = vmatprep.subr.mxu0 0.0
      %1598 = vmatpush1.msra.mxu0 0.0
      %1599 = vmatprep.subr.mxu0 0.0
      %1600 = vmatpush1.msra.mxu0 0.0
      %1601 = vmatprep.subr.mxu0 0.0
      %1602 = vmatpush1.msra.mxu0 0.0
      %1603 = vmatprep.subr.mxu0 0.0
      %1604 = vmatpush1.msra.mxu0 0.0
      %1605 = vmatprep.subr.mxu0 0.0
      %1606 = vmatpush1.msra.mxu0 0.0
      %1607 = vmatprep.subr.mxu0 0.0
      %1608 = vmatpush1.msra.mxu0 0.0
      %1609 = vmatprep.subr.mxu0 0.0
      %1610 = vmatpush1.msra.mxu0 0.0
      %1611 = vmatprep.subr.mxu0 0.0
      %1612 = vmatpush1.msra.mxu0 0.0
      %1613 = vmatprep.subr.mxu0 0.0
      %1614 = vmatpush1.msra.mxu0 0.0
      %1615 = vmatprep.subr.mxu0 0.0
      %1616 = vmatpush1.msra.mxu0 0.0
      %1617 = vmatprep.subr.mxu0 0.0
      %1618 = vmatpush1.msra.mxu0 0.0
      %1619 = vmatprep.subr.mxu0 0.0
      %1620 = vmatpush1.msra.mxu0 0.0
      %1621 = vmatprep.subr.mxu0 0.0
      %1622 = vmatpush1.msra.mxu0 0.0
      %1623 = vmatprep.subr.mxu0 0.0
      %1624 = vmatpush1.msra.mxu0 0.0
      %1625 = vmatprep.subr.mxu0 0.0
      %1626 = vmatpush1.msra.mxu0 0.0
      %1627 = vmatprep.subr.mxu0 0.0
      %1628 = vmatpush1.msra.mxu0 0.0
      %1629 = vmatprep.subr.mxu0 0.0
      %1630 = vmatpush1.msra.mxu0 0.0
      %1631 = vmatprep.subr.mxu0 0.0
      %1632 = vmatpush1.msra.mxu0 0.0
      %1633 = vmatprep.subr.mxu0 0.0
      %1634 = vmatpush1.msra.mxu0 0.0
      %1635 = vmatprep.subr.mxu0 0.0
      %1636 = vmatpush1.msra.mxu0 0.0
      %1637 = vmatprep.subr.mxu0 0.0
      %1638 = vmatpush1.msra.mxu0 0.0
      %1639 = vmatprep.subr.mxu0 0.0
      %1640 = vmatpush1.msra.mxu0 0.0
      %1641 = vmatprep.subr.mxu0 0.0
      %1642 = vmatpush1.msra.mxu0 0.0
      %1643 = vmatprep.subr.mxu0 0.0
      %1644 = vmatpush1.msra.mxu0 0.0
      %1645 = vmatprep.subr.mxu0 0.0
      %1646 = vmatpush1.msra.mxu0 0.0
      %1647 = vmatprep.subr.mxu0 0.0
      %1648 = vmatpush1.msra.mxu0 0.0
      %1649 = vmatprep.subr.mxu0 0.0
      %1650 = vmatpush1.msra.mxu0 0.0
      %1651 = vmatprep.subr.mxu0 0.0
      %1652 = vmatpush1.msra.mxu0 0.0
      %1653 = vmatprep.subr.mxu0 0.0
      %1654 = vmatpush1.msra.mxu0 0.0
      %1655 = vmatprep.mubr.f32.mxu0 0.0
      %1656 = vmatmul.mubr.f32.gmra.mrb[0].mxu0 %v1586
      %v1657 = vpop.f32.mrb[0].mxu0
      %v1658 = vadd.f32 0.0, %v1657
      %v1659 = vpop.f32.mrb[0].mxu0
      %1660 = vmatprep.mubr.f32.mxu0 0.0
      %1661 = vmatmul.mubr.f32.gmra.mrb[0].mxu0 %v1589
      %v1662 = vpop.f32.mrb[0].mxu0
      %v1663 = vadd.f32 0.0, %v1662
      %v1664 = vpop.f32.mrb[0].mxu0
      %1665 = vdwg.mxu0
      %v1667 = vsel %vm927, %v1176, 0
      %v1670 = vsel %vm927, %v1252, 0
      %1672 = vmatprep.subr.mxu0 0.0
      %1673 = vmatpush1.msra.mxu0 %v917
      %1674 = vmatprep.subr.mxu0 0.0
      %1675 = vmatpush1.msra.mxu0 0.0
      %1676 = vmatprep.subr.mxu0 0.0
      %1677 = vmatpush1.msra.mxu0 0.0
      %1678 = vmatprep.subr.mxu0 0.0
      %1679 = vmatpush1.msra.mxu0 0.0
      %1680 = vmatprep.subr.mxu0 0.0
      %1681 = vmatpush1.msra.mxu0 0.0
      %1682 = vmatprep.subr.mxu0 0.0
      %1683 = vmatpush1.msra.mxu0 0.0
      %1684 = vmatprep.subr.mxu0 0.0
      %1685 = vmatpush1.msra.mxu0 0.0
      %1686 = vmatprep.subr.mxu0 0.0
      %1687 = vmatpush1.msra.mxu0 0.0
      %1688 = vmatprep.subr.mxu0 0.0
      %1689 = vmatpush1.msra.mxu0 0.0
      %1690 = vmatprep.subr.mxu0 0.0
      %1691 = vmatpush1.msra.mxu0 0.0
      %1692 = vmatprep.subr.mxu0 0.0
      %1693 = vmatpush1.msra.mxu0 0.0
      %1694 = vmatprep.subr.mxu0 0.0
      %1695 = vmatpush1.msra.mxu0 0.0
      %1696 = vmatprep.subr.mxu0 0.0
      %1697 = vmatpush1.msra.mxu0 0.0
      %1698 = vmatprep.subr.mxu0 0.0
      %1699 = vmatpush1.msra.mxu0 0.0
      %1700 = vmatprep.subr.mxu0 0.0
      %1701 = vmatpush1.msra.mxu0 0.0
      %1702 = vmatprep.subr.mxu0 0.0
      %1703 = vmatpush1.msra.mxu0 0.0
      %1704 = vmatprep.subr.mxu0 0.0
      %1705 = vmatpush1.msra.mxu0 0.0
      %1706 = vmatprep.subr.mxu0 0.0
      %1707 = vmatpush1.msra.mxu0 0.0
      %1708 = vmatprep.subr.mxu0 0.0
      %1709 = vmatpush1.msra.mxu0 0.0
      %1710 = vmatprep.subr.mxu0 0.0
      %1711 = vmatpush1.msra.mxu0 0.0
      %1712 = vmatprep.subr.mxu0 0.0
      %1713 = vmatpush1.msra.mxu0 0.0
      %1714 = vmatprep.subr.mxu0 0.0
      %1715 = vmatpush1.msra.mxu0 0.0
      %1716 = vmatprep.subr.mxu0 0.0
      %1717 = vmatpush1.msra.mxu0 0.0
      %1718 = vmatprep.subr.mxu0 0.0
      %1719 = vmatpush1.msra.mxu0 0.0
      %1720 = vmatprep.subr.mxu0 0.0
      %1721 = vmatpush1.msra.mxu0 0.0
      %1722 = vmatprep.subr.mxu0 0.0
      %1723 = vmatpush1.msra.mxu0 0.0
      %1724 = vmatprep.subr.mxu0 0.0
      %1725 = vmatpush1.msra.mxu0 0.0
      %1726 = vmatprep.subr.mxu0 0.0
      %1727 = vmatpush1.msra.mxu0 0.0
      %1728 = vmatprep.subr.mxu0 0.0
      %1729 = vmatpush1.msra.mxu0 0.0
      %1730 = vmatprep.subr.mxu0 0.0
      %1731 = vmatpush1.msra.mxu0 0.0
      %1732 = vmatprep.subr.mxu0 0.0
      %1733 = vmatpush1.msra.mxu0 0.0
      %1734 = vmatprep.subr.mxu0 0.0
      %1735 = vmatpush1.msra.mxu0 0.0
      %1736 = vmatprep.mubr.f32.mxu0 0.0
      %1737 = vmatmul.mubr.f32.gmra.mrb[0].mxu0 %v1667
      %v1738 = vpop.f32.mrb[0].mxu0
      %v1739 = vadd.f32 %v1658, %v1738
      %v1740 = vpop.f32.mrb[0].mxu0
      %1741 = vmatprep.mubr.f32.mxu0 0.0
      %1742 = vmatmul.mubr.f32.gmra.mrb[0].mxu0 %v1670
      %v1743 = vpop.f32.mrb[0].mxu0
      %v1744 = vadd.f32 %v1663, %v1743
      %v1745 = vpop.f32.mrb[0].mxu0
      %1746 = vdwg.mxu0
      %1747 = vrot.lane.b32.xlu0 %v922, 112
      %v1748 = vpop.permute.xlu0 %1747
      %1749 = vrot.lane.b32.xlu0 %v909, 80
      %v1750 = vpop.permute.xlu0 %1749
      %v1751 = vsel %vm927, %v1748, 0
      %v1753 = vsel %vm927, %v1750, 0
      %1755 = vmatprep.subr.mxu0 0.0
      %1756 = vmatpush1.xpose.msra.mxu0 %v1753
      %1757 = vmatprep.subr.mxu0 0.0
      %1758 = vmatpush1.xpose.msra.mxu0 0.0
      %1759 = vmatprep.subr.mxu0 0.0
      %1760 = vmatpush1.xpose.msra.mxu0 0.0
      %1761 = vmatprep.subr.mxu0 0.0
      %1762 = vmatpush1.xpose.msra.mxu0 0.0
      %1763 = vmatprep.subr.mxu0 0.0
      %1764 = vmatpush1.xpose.msra.mxu0 0.0
      %1765 = vmatprep.subr.mxu0 0.0
      %1766 = vmatpush1.xpose.msra.mxu0 0.0
      %1767 = vmatprep.subr.mxu0 0.0
      %1768 = vmatpush1.xpose.msra.mxu0 0.0
      %1769 = vmatprep.subr.mxu0 0.0
      %1770 = vmatpush1.xpose.msra.mxu0 0.0
      %1771 = vmatprep.subr.mxu0 0.0
      %1772 = vmatpush1.xpose.msra.mxu0 0.0
      %1773 = vmatprep.subr.mxu0 0.0
      %1774 = vmatpush1.xpose.msra.mxu0 0.0
      %1775 = vmatprep.subr.mxu0 0.0
      %1776 = vmatpush1.xpose.msra.mxu0 0.0
      %1777 = vmatprep.subr.mxu0 0.0
      %1778 = vmatpush1.xpose.msra.mxu0 0.0
      %1779 = vmatprep.subr.mxu0 0.0
      %1780 = vmatpush1.xpose.msra.mxu0 0.0
      %1781 = vmatprep.subr.mxu0 0.0
      %1782 = vmatpush1.xpose.msra.mxu0 0.0
      %1783 = vmatprep.subr.mxu0 0.0
      %1784 = vmatpush1.xpose.msra.mxu0 0.0
      %1785 = vmatprep.subr.mxu0 0.0
      %1786 = vmatpush1.xpose.msra.mxu0 0.0
      %1787 = vmatprep.subr.mxu0 0.0
      %1788 = vmatpush1.xpose.msra.mxu0 0.0
      %1789 = vmatprep.subr.mxu0 0.0
      %1790 = vmatpush1.xpose.msra.mxu0 0.0
      %1791 = vmatprep.subr.mxu0 0.0
      %1792 = vmatpush1.xpose.msra.mxu0 0.0
      %1793 = vmatprep.subr.mxu0 0.0
      %1794 = vmatpush1.xpose.msra.mxu0 0.0
      %1795 = vmatprep.subr.mxu0 0.0
      %1796 = vmatpush1.xpose.msra.mxu0 0.0
      %1797 = vmatprep.subr.mxu0 0.0
      %1798 = vmatpush1.xpose.msra.mxu0 0.0
      %1799 = vmatprep.subr.mxu0 0.0
      %1800 = vmatpush1.xpose.msra.mxu0 0.0
      %1801 = vmatprep.subr.mxu0 0.0
      %1802 = vmatpush1.xpose.msra.mxu0 0.0
      %1803 = vmatprep.subr.mxu0 0.0
      %1804 = vmatpush1.xpose.msra.mxu0 0.0
      %1805 = vmatprep.subr.mxu0 0.0
      %1806 = vmatpush1.xpose.msra.mxu0 0.0
      %1807 = vmatprep.subr.mxu0 0.0
      %1808 = vmatpush1.xpose.msra.mxu0 0.0
      %1809 = vmatprep.subr.mxu0 0.0
      %1810 = vmatpush1.xpose.msra.mxu0 0.0
      %1811 = vmatprep.subr.mxu0 0.0
      %1812 = vmatpush1.xpose.msra.mxu0 0.0
      %1813 = vmatprep.subr.mxu0 0.0
      %1814 = vmatpush1.xpose.msra.mxu0 0.0
      %1815 = vmatprep.subr.mxu0 0.0
      %1816 = vmatpush1.xpose.msra.mxu0 0.0
      %1817 = vmatprep.subr.mxu0 0.0
      %1818 = vmatpush1.xpose.msra.mxu0 0.0
      %1819 = vmatprep.mubr.f32.mxu0 0.0
      %1820 = vmatmul.mubr.f32.gmra.mrb[0].mxu0 %v1751
      %v1821 = vpop.f32.mrb[0].mxu0
      %v1822 = vadd.f32 0.0, %v1821
      %v1823 = vpop.f32.mrb[0].mxu0
      %1824 = vdwg.mxu0
      %1825 = vrot.lane.b32.xlu0 %v923, 112
      %v1826 = vpop.permute.xlu0 %1825
      %1827 = vrot.lane.b32.xlu0 %v914, 80
      %v1828 = vpop.permute.xlu0 %1827
      %v1829 = vsel %vm927, %v1826, 0
      %v1831 = vsel %vm927, %v1828, 0
      %1833 = vmatprep.subr.mxu0 0.0
      %1834 = vmatpush1.xpose.msra.mxu0 %v1831
      %1835 = vmatprep.subr.mxu0 0.0
      %1836 = vmatpush1.xpose.msra.mxu0 0.0
      %1837 = vmatprep.subr.mxu0 0.0
      %1838 = vmatpush1.xpose.msra.mxu0 0.0
      %1839 = vmatprep.subr.mxu0 0.0
      %1840 = vmatpush1.xpose.msra.mxu0 0.0
      %1841 = vmatprep.subr.mxu0 0.0
      %1842 = vmatpush1.xpose.msra.mxu0 0.0
      %1843 = vmatprep.subr.mxu0 0.0
      %1844 = vmatpush1.xpose.msra.mxu0 0.0
      %1845 = vmatprep.subr.mxu0 0.0
      %1846 = vmatpush1.xpose.msra.mxu0 0.0
      %1847 = vmatprep.subr.mxu0 0.0
      %1848 = vmatpush1.xpose.msra.mxu0 0.0
      %1849 = vmatprep.subr.mxu0 0.0
      %1850 = vmatpush1.xpose.msra.mxu0 0.0
      %1851 = vmatprep.subr.mxu0 0.0
      %1852 = vmatpush1.xpose.msra.mxu0 0.0
      %1853 = vmatprep.subr.mxu0 0.0
      %1854 = vmatpush1.xpose.msra.mxu0 0.0
      %1855 = vmatprep.subr.mxu0 0.0
      %1856 = vmatpush1.xpose.msra.mxu0 0.0
      %1857 = vmatprep.subr.mxu0 0.0
      %1858 = vmatpush1.xpose.msra.mxu0 0.0
      %1859 = vmatprep.subr.mxu0 0.0
      %1860 = vmatpush1.xpose.msra.mxu0 0.0
      %1861 = vmatprep.subr.mxu0 0.0
      %1862 = vmatpush1.xpose.msra.mxu0 0.0
      %1863 = vmatprep.subr.mxu0 0.0
      %1864 = vmatpush1.xpose.msra.mxu0 0.0
      %1865 = vmatprep.subr.mxu0 0.0
      %1866 = vmatpush1.xpose.msra.mxu0 0.0
      %1867 = vmatprep.subr.mxu0 0.0
      %1868 = vmatpush1.xpose.msra.mxu0 0.0
      %1869 = vmatprep.subr.mxu0 0.0
      %1870 = vmatpush1.xpose.msra.mxu0 0.0
      %1871 = vmatprep.subr.mxu0 0.0
      %1872 = vmatpush1.xpose.msra.mxu0 0.0
      %1873 = vmatprep.subr.mxu0 0.0
      %1874 = vmatpush1.xpose.msra.mxu0 0.0
      %1875 = vmatprep.subr.mxu0 0.0
      %1876 = vmatpush1.xpose.msra.mxu0 0.0
      %1877 = vmatprep.subr.mxu0 0.0
      %1878 = vmatpush1.xpose.msra.mxu0 0.0
      %1879 = vmatprep.subr.mxu0 0.0
      %1880 = vmatpush1.xpose.msra.mxu0 0.0
      %1881 = vmatprep.subr.mxu0 0.0
      %1882 = vmatpush1.xpose.msra.mxu0 0.0
      %1883 = vmatprep.subr.mxu0 0.0
      %1884 = vmatpush1.xpose.msra.mxu0 0.0
      %1885 = vmatprep.subr.mxu0 0.0
      %1886 = vmatpush1.xpose.msra.mxu0 0.0
      %1887 = vmatprep.subr.mxu0 0.0
      %1888 = vmatpush1.xpose.msra.mxu0 0.0
      %1889 = vmatprep.subr.mxu0 0.0
      %1890 = vmatpush1.xpose.msra.mxu0 0.0
      %1891 = vmatprep.subr.mxu0 0.0
      %1892 = vmatpush1.xpose.msra.mxu0 0.0
      %1893 = vmatprep.subr.mxu0 0.0
      %1894 = vmatpush1.xpose.msra.mxu0 0.0
      %1895 = vmatprep.subr.mxu0 0.0
      %1896 = vmatpush1.xpose.msra.mxu0 0.0
      %1897 = vmatprep.mubr.f32.mxu0 0.0
      %1898 = vmatmul.mubr.f32.gmra.mrb[0].mxu0 %v1829
      %v1899 = vpop.f32.mrb[0].mxu0
      %v1900 = vadd.f32 0.0, %v1899
      %v1901 = vpop.f32.mrb[0].mxu0
      %1902 = vdwg.mxu0
      %v1903 = vsel %vm927, %v1822, -inf
      %1904 = vmax.xlane.f32.xlu0 %v1903
      %v1905 = vpop.xlane.xlu0 %1904
      %v1906 = vsel %vm927, %v1900, -inf
      %1907 = vmax.xlane.f32.xlu0 %v1906
      %v1908 = vpop.xlane.xlu0 %1907
      %v1909 = vsub.f32 %v1822, %v1905
      %v1910 = vsub.f32 %v1900, %v1908
      %v1911 = vmul.f32 %v1909, 1.442695
      %v1912 = vpow.pop %v1911
      %v1913 = vmul.f32 %v1910, 1.442695
      %v1914 = vpow.pop %v1913
      %v1915 = vsel %vm927, %v1912, 0.0
      %1916 = vadd.xlane.f32.xlu0 %v1915
      %v1917 = vpop.xlane.xlu0 %1916
      %v1918 = vsel %vm927, %v1914, 0.0
      %1919 = vadd.xlane.f32.xlu0 %v1918
      %v1920 = vpop.xlane.xlu0 %1919
      %v1921 = vrcp.pop %v1917
      %v1922 = vrcp.pop %v1920
      %v1923 = vmul.f32 %v1912, %v1921
      %v1924 = vmul.f32 %v1914, %v1922
      %1925 = vrot.lane.b32.xlu0 %v909, 48
      %v1926 = vpop.permute.xlu0 %1925
      %v1929 = vsel %vm927, %v1923, 0
      %1931 = vmatprep.subr.mxu0 0.0
      %1932 = vmatpush1.msra.mxu0 %v1926
      %1933 = vmatprep.subr.mxu0 0.0
      %1934 = vmatpush1.msra.mxu0 0.0
      %1935 = vmatprep.subr.mxu0 0.0
      %1936 = vmatpush1.msra.mxu0 0.0
      %1937 = vmatprep.subr.mxu0 0.0
      %1938 = vmatpush1.msra.mxu0 0.0
      %1939 = vmatprep.subr.mxu0 0.0
      %1940 = vmatpush1.msra.mxu0 0.0
      %1941 = vmatprep.subr.mxu0 0.0
      %1942 = vmatpush1.msra.mxu0 0.0
      %1943 = vmatprep.subr.mxu0 0.0
      %1944 = vmatpush1.msra.mxu0 0.0
      %1945 = vmatprep.subr.mxu0 0.0
      %1946 = vmatpush1.msra.mxu0 0.0
      %1947 = vmatprep.subr.mxu0 0.0
      %1948 = vmatpush1.msra.mxu0 0.0
      %1949 = vmatprep.subr.mxu0 0.0
      %1950 = vmatpush1.msra.mxu0 0.0
      %1951 = vmatprep.subr.mxu0 0.0
      %1952 = vmatpush1.msra.mxu0 0.0
      %1953 = vmatprep.subr.mxu0 0.0
      %1954 = vmatpush1.msra.mxu0 0.0
      %1955 = vmatprep.subr.mxu0 0.0
      %1956 = vmatpush1.msra.mxu0 0.0
      %1957 = vmatprep.subr.mxu0 0.0
      %1958 = vmatpush1.msra.mxu0 0.0
      %1959 = vmatprep.subr.mxu0 0.0
      %1960 = vmatpush1.msra.mxu0 0.0
      %1961 = vmatprep.subr.mxu0 0.0
      %1962 = vmatpush1.msra.mxu0 0.0
      %1963 = vmatprep.subr.mxu0 0.0
      %1964 = vmatpush1.msra.mxu0 0.0
      %1965 = vmatprep.subr.mxu0 0.0
      %1966 = vmatpush1.msra.mxu0 0.0
      %1967 = vmatprep.subr.mxu0 0.0
      %1968 = vmatpush1.msra.mxu0 0.0
      %1969 = vmatprep.subr.mxu0 0.0
      %1970 = vmatpush1.msra.mxu0 0.0
      %1971 = vmatprep.subr.mxu0 0.0
      %1972 = vmatpush1.msra.mxu0 0.0
      %1973 = vmatprep.subr.mxu0 0.0
      %1974 = vmatpush1.msra.mxu0 0.0
      %1975 = vmatprep.subr.mxu0 0.0
      %1976 = vmatpush1.msra.mxu0 0.0
      %1977 = vmatprep.subr.mxu0 0.0
      %1978 = vmatpush1.msra.mxu0 0.0
      %1979 = vmatprep.subr.mxu0 0.0
      %1980 = vmatpush1.msra.mxu0 0.0
      %1981 = vmatprep.subr.mxu0 0.0
      %1982 = vmatpush1.msra.mxu0 0.0
      %1983 = vmatprep.subr.mxu0 0.0
      %1984 = vmatpush1.msra.mxu0 0.0
      %1985 = vmatprep.subr.mxu0 0.0
      %1986 = vmatpush1.msra.mxu0 0.0
      %1987 = vmatprep.subr.mxu0 0.0
      %1988 = vmatpush1.msra.mxu0 0.0
      %1989 = vmatprep.subr.mxu0 0.0
      %1990 = vmatpush1.msra.mxu0 0.0
      %1991 = vmatprep.subr.mxu0 0.0
      %1992 = vmatpush1.msra.mxu0 0.0
      %1993 = vmatprep.subr.mxu0 0.0
      %1994 = vmatpush1.msra.mxu0 0.0
      %1995 = vmatprep.mubr.f32.mxu0 0.0
      %1996 = vmatmul.mubr.f32.gmra.mrb[0].mxu0 %v1929
      %v1997 = vpop.f32.mrb[0].mxu0
      %v1998 = vadd.f32 0.0, %v1997
      %v1999 = vpop.f32.mrb[0].mxu0
      %2000 = vdwg.mxu0
      %2001 = vrot.lane.b32.xlu0 %v914, 48
      %v2002 = vpop.permute.xlu0 %2001
      %v2005 = vsel %vm927, %v1924, 0
      %2007 = vmatprep.subr.mxu0 0.0
      %2008 = vmatpush1.msra.mxu0 %v2002
      %2009 = vmatprep.subr.mxu0 0.0
      %2010 = vmatpush1.msra.mxu0 0.0
      %2011 = vmatprep.subr.mxu0 0.0
      %2012 = vmatpush1.msra.mxu0 0.0
      %2013 = vmatprep.subr.mxu0 0.0
      %2014 = vmatpush1.msra.mxu0 0.0
      %2015 = vmatprep.subr.mxu0 0.0
      %2016 = vmatpush1.msra.mxu0 0.0
      %2017 = vmatprep.subr.mxu0 0.0
      %2018 = vmatpush1.msra.mxu0 0.0
      %2019 = vmatprep.subr.mxu0 0.0
      %2020 = vmatpush1.msra.mxu0 0.0
      %2021 = vmatprep.subr.mxu0 0.0
      %2022 = vmatpush1.msra.mxu0 0.0
      %2023 = vmatprep.subr.mxu0 0.0
      %2024 = vmatpush1.msra.mxu0 0.0
      %2025 = vmatprep.subr.mxu0 0.0
      %2026 = vmatpush1.msra.mxu0 0.0
      %2027 = vmatprep.subr.mxu0 0.0
      %2028 = vmatpush1.msra.mxu0 0.0
      %2029 = vmatprep.subr.mxu0 0.0
      %2030 = vmatpush1.msra.mxu0 0.0
      %2031 = vmatprep.subr.mxu0 0.0
      %2032 = vmatpush1.msra.mxu0 0.0
      %2033 = vmatprep.subr.mxu0 0.0
      %2034 = vmatpush1.msra.mxu0 0.0
      %2035 = vmatprep.subr.mxu0 0.0
      %2036 = vmatpush1.msra.mxu0 0.0
      %2037 = vmatprep.subr.mxu0 0.0
      %2038 = vmatpush1.msra.mxu0 0.0
      %2039 = vmatprep.subr.mxu0 0.0
      %2040 = vmatpush1.msra.mxu0 0.0
      %2041 = vmatprep.subr.mxu0 0.0
      %2042 = vmatpush1.msra.mxu0 0.0
      %2043 = vmatprep.subr.mxu0 0.0
      %2044 = vmatpush1.msra.mxu0 0.0
      %2045 = vmatprep.subr.mxu0 0.0
      %2046 = vmatpush1.msra.mxu0 0.0
      %2047 = vmatprep.subr.mxu0 0.0
      %2048 = vmatpush1.msra.mxu0 0.0
      %2049 = vmatprep.subr.mxu0 0.0
      %2050 = vmatpush1.msra.mxu0 0.0
      %2051 = vmatprep.subr.mxu0 0.0
      %2052 = vmatpush1.msra.mxu0 0.0
      %2053 = vmatprep.subr.mxu0 0.0
      %2054 = vmatpush1.msra.mxu0 0.0
      %2055 = vmatprep.subr.mxu0 0.0
      %2056 = vmatpush1.msra.mxu0 0.0
      %2057 = vmatprep.subr.mxu0 0.0
      %2058 = vmatpush1.msra.mxu0 0.0
      %2059 = vmatprep.subr.mxu0 0.0
      %2060 = vmatpush1.msra.mxu0 0.0
      %2061 = vmatprep.subr.mxu0 0.0
      %2062 = vmatpush1.msra.mxu0 0.0
      %2063 = vmatprep.subr.mxu0 0.0
      %2064 = vmatpush1.msra.mxu0 0.0
      %2065 = vmatprep.subr.mxu0 0.0
      %2066 = vmatpush1.msra.mxu0 0.0
      %2067 = vmatprep.subr.mxu0 0.0
      %2068 = vmatpush1.msra.mxu0 0.0
      %2069 = vmatprep.subr.mxu0 0.0
      %2070 = vmatpush1.msra.mxu0 0.0
      %2071 = vmatprep.mubr.f32.mxu0 0.0
      %2072 = vmatmul.mubr.f32.gmra.mrb[0].mxu0 %v2005
      %v2073 = vpop.f32.mrb[0].mxu0
      %v2074 = vadd.f32 0.0, %v2073
      %v2075 = vpop.f32.mrb[0].mxu0
      %2076 = vdwg.mxu0
      %v2078 = vsel %vm927, %v1998, 0
      %v2081 = vsel %vm927, %v2074, 0
      %2083 = vmatprep.subr.mxu0 0.0
      %2084 = vmatpush1.msra.mxu0 %v919
      %2085 = vmatprep.subr.mxu0 0.0
      %2086 = vmatpush1.msra.mxu0 0.0
      %2087 = vmatprep.subr.mxu0 0.0
      %2088 = vmatpush1.msra.mxu0 0.0
      %2089 = vmatprep.subr.mxu0 0.0
      %2090 = vmatpush1.msra.mxu0 0.0
      %2091 = vmatprep.subr.mxu0 0.0
      %2092 = vmatpush1.msra.mxu0 0.0
      %2093 = vmatprep.subr.mxu0 0.0
      %2094 = vmatpush1.msra.mxu0 0.0
      %2095 = vmatprep.subr.mxu0 0.0
      %2096 = vmatpush1.msra.mxu0 0.0
      %2097 = vmatprep.subr.mxu0 0.0
      %2098 = vmatpush1.msra.mxu0 0.0
      %2099 = vmatprep.subr.mxu0 0.0
      %2100 = vmatpush1.msra.mxu0 0.0
      %2101 = vmatprep.subr.mxu0 0.0
      %2102 = vmatpush1.msra.mxu0 0.0
      %2103 = vmatprep.subr.mxu0 0.0
      %2104 = vmatpush1.msra.mxu0 0.0
      %2105 = vmatprep.subr.mxu0 0.0
      %2106 = vmatpush1.msra.mxu0 0.0
      %2107 = vmatprep.subr.mxu0 0.0
      %2108 = vmatpush1.msra.mxu0 0.0
      %2109 = vmatprep.subr.mxu0 0.0
      %2110 = vmatpush1.msra.mxu0 0.0
      %2111 = vmatprep.subr.mxu0 0.0
      %2112 = vmatpush1.msra.mxu0 0.0
      %2113 = vmatprep.subr.mxu0 0.0
      %2114 = vmatpush1.msra.mxu0 0.0
      %2115 = vmatprep.subr.mxu0 0.0
      %2116 = vmatpush1.msra.mxu0 0.0
      %2117 = vmatprep.subr.mxu0 0.0
      %2118 = vmatpush1.msra.mxu0 0.0
      %2119 = vmatprep.subr.mxu0 0.0
      %2120 = vmatpush1.msra.mxu0 0.0
      %2121 = vmatprep.subr.mxu0 0.0
      %2122 = vmatpush1.msra.mxu0 0.0
      %2123 = vmatprep.subr.mxu0 0.0
      %2124 = vmatpush1.msra.mxu0 0.0
      %2125 = vmatprep.subr.mxu0 0.0
      %2126 = vmatpush1.msra.mxu0 0.0
      %2127 = vmatprep.subr.mxu0 0.0
      %2128 = vmatpush1.msra.mxu0 0.0
      %2129 = vmatprep.subr.mxu0 0.0
      %2130 = vmatpush1.msra.mxu0 0.0
      %2131 = vmatprep.subr.mxu0 0.0
      %2132 = vmatpush1.msra.mxu0 0.0
      %2133 = vmatprep.subr.mxu0 0.0
      %2134 = vmatpush1.msra.mxu0 0.0
      %2135 = vmatprep.subr.mxu0 0.0
      %2136 = vmatpush1.msra.mxu0 0.0
      %2137 = vmatprep.subr.mxu0 0.0
      %2138 = vmatpush1.msra.mxu0 0.0
      %2139 = vmatprep.subr.mxu0 0.0
      %2140 = vmatpush1.msra.mxu0 0.0
      %2141 = vmatprep.subr.mxu0 0.0
      %2142 = vmatpush1.msra.mxu0 0.0
      %2143 = vmatprep.subr.mxu0 0.0
      %2144 = vmatpush1.msra.mxu0 0.0
      %2145 = vmatprep.subr.mxu0 0.0
      %2146 = vmatpush1.msra.mxu0 0.0
      %2147 = vmatprep.mubr.f32.mxu0 0.0
      %2148 = vmatmul.mubr.f32.gmra.mrb[0].mxu0 %v2078
      %v2149 = vpop.f32.mrb[0].mxu0
      %v2150 = vadd.f32 0.0, %v2149
      %v2151 = vpop.f32.mrb[0].mxu0
      %2152 = vmatprep.mubr.f32.mxu0 0.0
      %2153 = vmatmul.mubr.f32.gmra.mrb[0].mxu0 %v2081
      %v2154 = vpop.f32.mrb[0].mxu0
      %v2155 = vadd.f32 0.0, %v2154
      %v2156 = vpop.f32.mrb[0].mxu0
      %2157 = vdwg.mxu0
      %v2158 = vadd.f32 %v1739, %v2150
      %v2159 = vadd.f32 %v1744, %v2155
      %2160 = vrot.lane.b32.xlu0 %v922, 104
      %v2161 = vpop.permute.xlu0 %2160
      %2162 = vrot.lane.b32.xlu0 %v909, 72
      %v2163 = vpop.permute.xlu0 %2162
      %v2164 = vsel %vm927, %v2161, 0
      %v2166 = vsel %vm927, %v2163, 0
      %2168 = vmatprep.subr.mxu0 0.0
      %2169 = vmatpush1.xpose.msra.mxu0 %v2166
      %2170 = vmatprep.subr.mxu0 0.0
      %2171 = vmatpush1.xpose.msra.mxu0 0.0
      %2172 = vmatprep.subr.mxu0 0.0
      %2173 = vmatpush1.xpose.msra.mxu0 0.0
      %2174 = vmatprep.subr.mxu0 0.0
      %2175 = vmatpush1.xpose.msra.mxu0 0.0
      %2176 = vmatprep.subr.mxu0 0.0
      %2177 = vmatpush1.xpose.msra.mxu0 0.0
      %2178 = vmatprep.subr.mxu0 0.0
      %2179 = vmatpush1.xpose.msra.mxu0 0.0
      %2180 = vmatprep.subr.mxu0 0.0
      %2181 = vmatpush1.xpose.msra.mxu0 0.0
      %2182 = vmatprep.subr.mxu0 0.0
      %2183 = vmatpush1.xpose.msra.mxu0 0.0
      %2184 = vmatprep.subr.mxu0 0.0
      %2185 = vmatpush1.xpose.msra.mxu0 0.0
      %2186 = vmatprep.subr.mxu0 0.0
      %2187 = vmatpush1.xpose.msra.mxu0 0.0
      %2188 = vmatprep.subr.mxu0 0.0
      %2189 = vmatpush1.xpose.msra.mxu0 0.0
      %2190 = vmatprep.subr.mxu0 0.0
      %2191 = vmatpush1.xpose.msra.mxu0 0.0
      %2192 = vmatprep.subr.mxu0 0.0
      %2193 = vmatpush1.xpose.msra.mxu0 0.0
      %2194 = vmatprep.subr.mxu0 0.0
      %2195 = vmatpush1.xpose.msra.mxu0 0.0
      %2196 = vmatprep.subr.mxu0 0.0
      %2197 = vmatpush1.xpose.msra.mxu0 0.0
      %2198 = vmatprep.subr.mxu0 0.0
      %2199 = vmatpush1.xpose.msra.mxu0 0.0
      %2200 = vmatprep.subr.mxu0 0.0
      %2201 = vmatpush1.xpose.msra.mxu0 0.0
      %2202 = vmatprep.subr.mxu0 0.0
      %2203 = vmatpush1.xpose.msra.mxu0 0.0
      %2204 = vmatprep.subr.mxu0 0.0
      %2205 = vmatpush1.xpose.msra.mxu0 0.0
      %2206 = vmatprep.subr.mxu0 0.0
      %2207 = vmatpush1.xpose.msra.mxu0 0.0
      %2208 = vmatprep.subr.mxu0 0.0
      %2209 = vmatpush1.xpose.msra.mxu0 0.0
      %2210 = vmatprep.subr.mxu0 0.0
      %2211 = vmatpush1.xpose.msra.mxu0 0.0
      %2212 = vmatprep.subr.mxu0 0.0
      %2213 = vmatpush1.xpose.msra.mxu0 0.0
      %2214 = vmatprep.subr.mxu0 0.0
      %2215 = vmatpush1.xpose.msra.mxu0 0.0
      %2216 = vmatprep.subr.mxu0 0.0
      %2217 = vmatpush1.xpose.msra.mxu0 0.0
      %2218 = vmatprep.subr.mxu0 0.0
      %2219 = vmatpush1.xpose.msra.mxu0 0.0
      %2220 = vmatprep.subr.mxu0 0.0
      %2221 = vmatpush1.xpose.msra.mxu0 0.0
      %2222 = vmatprep.subr.mxu0 0.0
      %2223 = vmatpush1.xpose.msra.mxu0 0.0
      %2224 = vmatprep.subr.mxu0 0.0
      %2225 = vmatpush1.xpose.msra.mxu0 0.0
      %2226 = vmatprep.subr.mxu0 0.0
      %2227 = vmatpush1.xpose.msra.mxu0 0.0
      %2228 = vmatprep.subr.mxu0 0.0
      %2229 = vmatpush1.xpose.msra.mxu0 0.0
      %2230 = vmatprep.subr.mxu0 0.0
      %2231 = vmatpush1.xpose.msra.mxu0 0.0
      %2232 = vmatprep.mubr.f32.mxu0 0.0
      %2233 = vmatmul.mubr.f32.gmra.mrb[0].mxu0 %v2164
      %v2234 = vpop.f32.mrb[0].mxu0
      %v2235 = vadd.f32 0.0, %v2234
      %v2236 = vpop.f32.mrb[0].mxu0
      %2237 = vdwg.mxu0
      %2238 = vrot.lane.b32.xlu0 %v923, 104
      %v2239 = vpop.permute.xlu0 %2238
      %2240 = vrot.lane.b32.xlu0 %v914, 72
      %v2241 = vpop.permute.xlu0 %2240
      %v2242 = vsel %vm927, %v2239, 0
      %v2244 = vsel %vm927, %v2241, 0
      %2246 = vmatprep.subr.mxu0 0.0
      %2247 = vmatpush1.xpose.msra.mxu0 %v2244
      %2248 = vmatprep.subr.mxu0 0.0
      %2249 = vmatpush1.xpose.msra.mxu0 0.0
      %2250 = vmatprep.subr.mxu0 0.0
      %2251 = vmatpush1.xpose.msra.mxu0 0.0
      %2252 = vmatprep.subr.mxu0 0.0
      %2253 = vmatpush1.xpose.msra.mxu0 0.0
      %2254 = vmatprep.subr.mxu0 0.0
      %2255 = vmatpush1.xpose.msra.mxu0 0.0
      %2256 = vmatprep.subr.mxu0 0.0
      %2257 = vmatpush1.xpose.msra.mxu0 0.0
      %2258 = vmatprep.subr.mxu0 0.0
      %2259 = vmatpush1.xpose.msra.mxu0 0.0
      %2260 = vmatprep.subr.mxu0 0.0
      %2261 = vmatpush1.xpose.msra.mxu0 0.0
      %2262 = vmatprep.subr.mxu0 0.0
      %2263 = vmatpush1.xpose.msra.mxu0 0.0
      %2264 = vmatprep.subr.mxu0 0.0
      %2265 = vmatpush1.xpose.msra.mxu0 0.0
      %2266 = vmatprep.subr.mxu0 0.0
      %2267 = vmatpush1.xpose.msra.mxu0 0.0
      %2268 = vmatprep.subr.mxu0 0.0
      %2269 = vmatpush1.xpose.msra.mxu0 0.0
      %2270 = vmatprep.subr.mxu0 0.0
      %2271 = vmatpush1.xpose.msra.mxu0 0.0
      %2272 = vmatprep.subr.mxu0 0.0
      %2273 = vmatpush1.xpose.msra.mxu0 0.0
      %2274 = vmatprep.subr.mxu0 0.0
      %2275 = vmatpush1.xpose.msra.mxu0 0.0
      %2276 = vmatprep.subr.mxu0 0.0
      %2277 = vmatpush1.xpose.msra.mxu0 0.0
      %2278 = vmatprep.subr.mxu0 0.0
      %2279 = vmatpush1.xpose.msra.mxu0 0.0
      %2280 = vmatprep.subr.mxu0 0.0
      %2281 = vmatpush1.xpose.msra.mxu0 0.0
      %2282 = vmatprep.subr.mxu0 0.0
      %2283 = vmatpush1.xpose.msra.mxu0 0.0
      %2284 = vmatprep.subr.mxu0 0.0
      %2285 = vmatpush1.xpose.msra.mxu0 0.0
      %2286 = vmatprep.subr.mxu0 0.0
      %2287 = vmatpush1.xpose.msra.mxu0 0.0
      %2288 = vmatprep.subr.mxu0 0.0
      %2289 = vmatpush1.xpose.msra.mxu0 0.0
      %2290 = vmatprep.subr.mxu0 0.0
      %2291 = vmatpush1.xpose.msra.mxu0 0.0
      %2292 = vmatprep.subr.mxu0 0.0
      %2293 = vmatpush1.xpose.msra.mxu0 0.0
      %2294 = vmatprep.subr.mxu0 0.0
      %2295 = vmatpush1.xpose.msra.mxu0 0.0
      %2296 = vmatprep.subr.mxu0 0.0
      %2297 = vmatpush1.xpose.msra.mxu0 0.0
      %2298 = vmatprep.subr.mxu0 0.0
      %2299 = vmatpush1.xpose.msra.mxu0 0.0
      %2300 = vmatprep.subr.mxu0 0.0
      %2301 = vmatpush1.xpose.msra.mxu0 0.0
      %2302 = vmatprep.subr.mxu0 0.0
      %2303 = vmatpush1.xpose.msra.mxu0 0.0
      %2304 = vmatprep.subr.mxu0 0.0
      %2305 = vmatpush1.xpose.msra.mxu0 0.0
      %2306 = vmatprep.subr.mxu0 0.0
      %2307 = vmatpush1.xpose.msra.mxu0 0.0
      %2308 = vmatprep.subr.mxu0 0.0
      %2309 = vmatpush1.xpose.msra.mxu0 0.0
      %2310 = vmatprep.mubr.f32.mxu0 0.0
      %2311 = vmatmul.mubr.f32.gmra.mrb[0].mxu0 %v2242
      %v2312 = vpop.f32.mrb[0].mxu0
      %v2313 = vadd.f32 0.0, %v2312
      %v2314 = vpop.f32.mrb[0].mxu0
      %2315 = vdwg.mxu0
      %v2316 = vsel %vm927, %v2235, -inf
      %2317 = vmax.xlane.f32.xlu0 %v2316
      %v2318 = vpop.xlane.xlu0 %2317
      %v2319 = vsel %vm927, %v2313, -inf
      %2320 = vmax.xlane.f32.xlu0 %v2319
      %v2321 = vpop.xlane.xlu0 %2320
      %v2322 = vsub.f32 %v2235, %v2318
      %v2323 = vsub.f32 %v2313, %v2321
      %v2324 = vmul.f32 %v2322, 1.442695
      %v2325 = vpow.pop %v2324
      %v2326 = vmul.f32 %v2323, 1.442695
      %v2327 = vpow.pop %v2326
      %v2328 = vsel %vm927, %v2325, 0.0
      %2329 = vadd.xlane.f32.xlu0 %v2328
      %v2330 = vpop.xlane.xlu0 %2329
      %v2331 = vsel %vm927, %v2327, 0.0
      %2332 = vadd.xlane.f32.xlu0 %v2331
      %v2333 = vpop.xlane.xlu0 %2332
      %v2334 = vrcp.pop %v2330
      %v2335 = vrcp.pop %v2333
      %v2336 = vmul.f32 %v2325, %v2334
      %v2337 = vmul.f32 %v2327, %v2335
      %2338 = vrot.lane.b32.xlu0 %v909, 40
      %v2339 = vpop.permute.xlu0 %2338
      %v2342 = vsel %vm927, %v2336, 0
      %2344 = vmatprep.subr.mxu0 0.0
      %2345 = vmatpush1.msra.mxu0 %v2339
      %2346 = vmatprep.subr.mxu0 0.0
      %2347 = vmatpush1.msra.mxu0 0.0
      %2348 = vmatprep.subr.mxu0 0.0
      %2349 = vmatpush1.msra.mxu0 0.0
      %2350 = vmatprep.subr.mxu0 0.0
      %2351 = vmatpush1.msra.mxu0 0.0
      %2352 = vmatprep.subr.mxu0 0.0
      %2353 = vmatpush1.msra.mxu0 0.0
      %2354 = vmatprep.subr.mxu0 0.0
      %2355 = vmatpush1.msra.mxu0 0.0
      %2356 = vmatprep.subr.mxu0 0.0
      %2357 = vmatpush1.msra.mxu0 0.0
      %2358 = vmatprep.subr.mxu0 0.0
      %2359 = vmatpush1.msra.mxu0 0.0
      %2360 = vmatprep.subr.mxu0 0.0
      %2361 = vmatpush1.msra.mxu0 0.0
      %2362 = vmatprep.subr.mxu0 0.0
      %2363 = vmatpush1.msra.mxu0 0.0
      %2364 = vmatprep.subr.mxu0 0.0
      %2365 = vmatpush1.msra.mxu0 0.0
      %2366 = vmatprep.subr.mxu0 0.0
      %2367 = vmatpush1.msra.mxu0 0.0
      %2368 = vmatprep.subr.mxu0 0.0
      %2369 = vmatpush1.msra.mxu0 0.0
      %2370 = vmatprep.subr.mxu0 0.0
      %2371 = vmatpush1.msra.mxu0 0.0
      %2372 = vmatprep.subr.mxu0 0.0
      %2373 = vmatpush1.msra.mxu0 0.0
      %2374 = vmatprep.subr.mxu0 0.0
      %2375 = vmatpush1.msra.mxu0 0.0
      %2376 = vmatprep.subr.mxu0 0.0
      %2377 = vmatpush1.msra.mxu0 0.0
      %2378 = vmatprep.subr.mxu0 0.0
      %2379 = vmatpush1.msra.mxu0 0.0
      %2380 = vmatprep.subr.mxu0 0.0
      %2381 = vmatpush1.msra.mxu0 0.0
      %2382 = vmatprep.subr.mxu0 0.0
      %2383 = vmatpush1.msra.mxu0 0.0
      %2384 = vmatprep.subr.mxu0 0.0
      %2385 = vmatpush1.msra.mxu0 0.0
      %2386 = vmatprep.subr.mxu0 0.0
      %2387 = vmatpush1.msra.mxu0 0.0
      %2388 = vmatprep.subr.mxu0 0.0
      %2389 = vmatpush1.msra.mxu0 0.0
      %2390 = vmatprep.subr.mxu0 0.0
      %2391 = vmatpush1.msra.mxu0 0.0
      %2392 = vmatprep.subr.mxu0 0.0
      %2393 = vmatpush1.msra.mxu0 0.0
      %2394 = vmatprep.subr.mxu0 0.0
      %2395 = vmatpush1.msra.mxu0 0.0
      %2396 = vmatprep.subr.mxu0 0.0
      %2397 = vmatpush1.msra.mxu0 0.0
      %2398 = vmatprep.subr.mxu0 0.0
      %2399 = vmatpush1.msra.mxu0 0.0
      %2400 = vmatprep.subr.mxu0 0.0
      %2401 = vmatpush1.msra.mxu0 0.0
      %2402 = vmatprep.subr.mxu0 0.0
      %2403 = vmatpush1.msra.mxu0 0.0
      %2404 = vmatprep.subr.mxu0 0.0
      %2405 = vmatpush1.msra.mxu0 0.0
      %2406 = vmatprep.subr.mxu0 0.0
      %2407 = vmatpush1.msra.mxu0 0.0
      %2408 = vmatprep.mubr.f32.mxu0 0.0
      %2409 = vmatmul.mubr.f32.gmra.mrb[0].mxu0 %v2342
      %v2410 = vpop.f32.mrb[0].mxu0
      %v2411 = vadd.f32 0.0, %v2410
      %v2412 = vpop.f32.mrb[0].mxu0
      %2413 = vdwg.mxu0
      %2414 = vrot.lane.b32.xlu0 %v914, 40
      %v2415 = vpop.permute.xlu0 %2414
      %v2418 = vsel %vm927, %v2337, 0
      %2420 = vmatprep.subr.mxu0 0.0
      %2421 = vmatpush1.msra.mxu0 %v2415
      %2422 = vmatprep.subr.mxu0 0.0
      %2423 = vmatpush1.msra.mxu0 0.0
      %2424 = vmatprep.subr.mxu0 0.0
      %2425 = vmatpush1.msra.mxu0 0.0
      %2426 = vmatprep.subr.mxu0 0.0
      %2427 = vmatpush1.msra.mxu0 0.0
      %2428 = vmatprep.subr.mxu0 0.0
      %2429 = vmatpush1.msra.mxu0 0.0
      %2430 = vmatprep.subr.mxu0 0.0
      %2431 = vmatpush1.msra.mxu0 0.0
      %2432 = vmatprep.subr.mxu0 0.0
      %2433 = vmatpush1.msra.mxu0 0.0
      %2434 = vmatprep.subr.mxu0 0.0
      %2435 = vmatpush1.msra.mxu0 0.0
      %2436 = vmatprep.subr.mxu0 0.0
      %2437 = vmatpush1.msra.mxu0 0.0
      %2438 = vmatprep.subr.mxu0 0.0
      %2439 = vmatpush1.msra.mxu0 0.0
      %2440 = vmatprep.subr.mxu0 0.0
      %2441 = vmatpush1.msra.mxu0 0.0
      %2442 = vmatprep.subr.mxu0 0.0
      %2443 = vmatpush1.msra.mxu0 0.0
      %2444 = vmatprep.subr.mxu0 0.0
      %2445 = vmatpush1.msra.mxu0 0.0
      %2446 = vmatprep.subr.mxu0 0.0
      %2447 = vmatpush1.msra.mxu0 0.0
      %2448 = vmatprep.subr.mxu0 0.0
      %2449 = vmatpush1.msra.mxu0 0.0
      %2450 = vmatprep.subr.mxu0 0.0
      %2451 = vmatpush1.msra.mxu0 0.0
      %2452 = vmatprep.subr.mxu0 0.0
      %2453 = vmatpush1.msra.mxu0 0.0
      %2454 = vmatprep.subr.mxu0 0.0
      %2455 = vmatpush1.msra.mxu0 0.0
      %2456 = vmatprep.subr.mxu0 0.0
      %2457 = vmatpush1.msra.mxu0 0.0
      %2458 = vmatprep.subr.mxu0 0.0
      %2459 = vmatpush1.msra.mxu0 0.0
      %2460 = vmatprep.subr.mxu0 0.0
      %2461 = vmatpush1.msra.mxu0 0.0
      %2462 = vmatprep.subr.mxu0 0.0
      %2463 = vmatpush1.msra.mxu0 0.0
      %2464 = vmatprep.subr.mxu0 0.0
      %2465 = vmatpush1.msra.mxu0 0.0
      %2466 = vmatprep.subr.mxu0 0.0
      %2467 = vmatpush1.msra.mxu0 0.0
      %2468 = vmatprep.subr.mxu0 0.0
      %2469 = vmatpush1.msra.mxu0 0.0
      %2470 = vmatprep.subr.mxu0 0.0
      %2471 = vmatpush1.msra.mxu0 0.0
      %2472 = vmatprep.subr.mxu0 0.0
      %2473 = vmatpush1.msra.mxu0 0.0
      %2474 = vmatprep.subr.mxu0 0.0
      %2475 = vmatpush1.msra.mxu0 0.0
      %2476 = vmatprep.subr.mxu0 0.0
      %2477 = vmatpush1.msra.mxu0 0.0
      %2478 = vmatprep.subr.mxu0 0.0
      %2479 = vmatpush1.msra.mxu0 0.0
      %2480 = vmatprep.subr.mxu0 0.0
      %2481 = vmatpush1.msra.mxu0 0.0
      %2482 = vmatprep.subr.mxu0 0.0
      %2483 = vmatpush1.msra.mxu0 0.0
      %2484 = vmatprep.mubr.f32.mxu0 0.0
      %2485 = vmatmul.mubr.f32.gmra.mrb[0].mxu0 %v2418
      %v2486 = vpop.f32.mrb[0].mxu0
      %v2487 = vadd.f32 0.0, %v2486
      %v2488 = vpop.f32.mrb[0].mxu0
      %2489 = vdwg.mxu0
      %v2491 = vsel %vm927, %v2411, 0
      %v2494 = vsel %vm927, %v2487, 0
      %2496 = vmatprep.subr.mxu0 0.0
      %2497 = vmatpush1.msra.mxu0 %v920
      %2498 = vmatprep.subr.mxu0 0.0
      %2499 = vmatpush1.msra.mxu0 0.0
      %2500 = vmatprep.subr.mxu0 0.0
      %2501 = vmatpush1.msra.mxu0 0.0
      %2502 = vmatprep.subr.mxu0 0.0
      %2503 = vmatpush1.msra.mxu0 0.0
      %2504 = vmatprep.subr.mxu0 0.0
      %2505 = vmatpush1.msra.mxu0 0.0
      %2506 = vmatprep.subr.mxu0 0.0
      %2507 = vmatpush1.msra.mxu0 0.0
      %2508 = vmatprep.subr.mxu0 0.0
      %2509 = vmatpush1.msra.mxu0 0.0
      %2510 = vmatprep.subr.mxu0 0.0
      %2511 = vmatpush1.msra.mxu0 0.0
      %2512 = vmatprep.subr.mxu0 0.0
      %2513 = vmatpush1.msra.mxu0 0.0
      %2514 = vmatprep.subr.mxu0 0.0
      %2515 = vmatpush1.msra.mxu0 0.0
      %2516 = vmatprep.subr.mxu0 0.0
      %2517 = vmatpush1.msra.mxu0 0.0
      %2518 = vmatprep.subr.mxu0 0.0
      %2519 = vmatpush1.msra.mxu0 0.0
      %2520 = vmatprep.subr.mxu0 0.0
      %2521 = vmatpush1.msra.mxu0 0.0
      %2522 = vmatprep.subr.mxu0 0.0
      %2523 = vmatpush1.msra.mxu0 0.0
      %2524 = vmatprep.subr.mxu0 0.0
      %2525 = vmatpush1.msra.mxu0 0.0
      %2526 = vmatprep.subr.mxu0 0.0
      %2527 = vmatpush1.msra.mxu0 0.0
      %2528 = vmatprep.subr.mxu0 0.0
      %2529 = vmatpush1.msra.mxu0 0.0
      %2530 = vmatprep.subr.mxu0 0.0
      %2531 = vmatpush1.msra.mxu0 0.0
      %2532 = vmatprep.subr.mxu0 0.0
      %2533 = vmatpush1.msra.mxu0 0.0
      %2534 = vmatprep.subr.mxu0 0.0
      %2535 = vmatpush1.msra.mxu0 0.0
      %2536 = vmatprep.subr.mxu0 0.0
      %2537 = vmatpush1.msra.mxu0 0.0
      %2538 = vmatprep.subr.mxu0 0.0
      %2539 = vmatpush1.msra.mxu0 0.0
      %2540 = vmatprep.subr.mxu0 0.0
      %2541 = vmatpush1.msra.mxu0 0.0
      %2542 = vmatprep.subr.mxu0 0.0
      %2543 = vmatpush1.msra.mxu0 0.0
      %2544 = vmatprep.subr.mxu0 0.0
      %2545 = vmatpush1.msra.mxu0 0.0
      %2546 = vmatprep.subr.mxu0 0.0
      %2547 = vmatpush1.msra.mxu0 0.0
      %2548 = vmatprep.subr.mxu0 0.0
      %2549 = vmatpush1.msra.mxu0 0.0
      %2550 = vmatprep.subr.mxu0 0.0
      %2551 = vmatpush1.msra.mxu0 0.0
      %2552 = vmatprep.subr.mxu0 0.0
      %2553 = vmatpush1.msra.mxu0 0.0
      %2554 = vmatprep.subr.mxu0 0.0
      %2555 = vmatpush1.msra.mxu0 0.0
      %2556 = vmatprep.subr.mxu0 0.0
      %2557 = vmatpush1.msra.mxu0 0.0
      %2558 = vmatprep.subr.mxu0 0.0
      %2559 = vmatpush1.msra.mxu0 0.0
      %2560 = vmatprep.mubr.f32.mxu0 0.0
      %2561 = vmatmul.mubr.f32.gmra.mrb[0].mxu0 %v2491
      %v2562 = vpop.f32.mrb[0].mxu0
      %v2563 = vadd.f32 0.0, %v2562
      %v2564 = vpop.f32.mrb[0].mxu0
      %2565 = vmatprep.mubr.f32.mxu0 0.0
      %2566 = vmatmul.mubr.f32.gmra.mrb[0].mxu0 %v2494
      %v2567 = vpop.f32.mrb[0].mxu0
      %v2568 = vadd.f32 0.0, %v2567
      %v2569 = vpop.f32.mrb[0].mxu0
      %2570 = vdwg.mxu0
      %v2571 = vadd.f32 %v2158, %v2563
      %v2572 = vadd.f32 %v2159, %v2568
      %v2574 = vlaneseq
      %v2575 = vshrl.u32 %v2574, 7
      %v2576 = vsub.s32 0, %v2575
      %v2577 = vrot.slane %v921, %v2576
      %v2579 = vadd.f32 %v2571, %v2577
      %v2580 = vadd.f32 %v2572, %v2577
      %v2581 = vld [vmem:[%s786] sm:$0x1]
      %v2582 = vld [vmem:[%s793] sm:$0x1]
      %v2583 = vadd.f32 %v822, %v2579
      %v2584 = vadd.f32 %v823, %v2580
      %v2585 = vsel %vm835, %v2583, 0.0
      %2586 = vadd.xlane.f32.xlu0 %v2585
      %v2587 = vpop.xlane.xlu0 %2586
      %v2588 = vsel %vm835, %v2584, 0.0
      %2589 = vadd.xlane.f32.xlu0 %v2588
      %v2590 = vpop.xlane.xlu0 %2589
      %v2591 = vrcp.pop 32.0
      %v2592 = vmul.f32 %v2587, %v2591
      %v2593 = vmul.f32 %v2590, %v2591
      %v2594 = vsub.f32 %v2583, %v2592
      %v2595 = vsub.f32 %v2584, %v2593
      %v2596 = vmul.f32 %v2594, %v2594
      %v2597 = vmul.f32 %v2595, %v2595
      %v2598 = vsel %vm835, %v2596, 0.0
      %2599 = vadd.xlane.f32.xlu0 %v2598
      %v2600 = vpop.xlane.xlu0 %2599
      %v2601 = vsel %vm835, %v2597, 0.0
      %2602 = vadd.xlane.f32.xlu0 %v2601
      %v2603 = vpop.xlane.xlu0 %2602
      %v2604 = vmul.f32 %v2600, %v2591
      %v2605 = vmul.f32 %v2603, %v2591
      %v2606 = vadd.f32 %v2604, 1e-05
      %v2607 = vadd.f32 %v2605, 1e-05
      %v2608 = vrsqrt.pop %v2606
      %v2609 = vrsqrt.pop %v2607
      %v2610 = vmul.f32 %v2594, %v2608
      %v2611 = vmul.f32 %v2595, %v2609
      %v2613 = vlaneseq
      %v2614 = vshrl.u32 %v2613, 7
      %v2615 = vsub.s32 0, %v2614
      %v2616 = vrot.slane %v2581, %v2615
      %v2618 = vmul.f32 %v2610, %v2616
      %v2619 = vmul.f32 %v2611, %v2616
      %v2621 = vlaneseq
      %v2622 = vshrl.u32 %v2621, 7
      %v2623 = vsub.s32 0, %v2622
      %v2624 = vrot.slane %v2582, %v2623
      %v2626 = vadd.f32 %v2618, %v2624
      %v2627 = vadd.f32 %v2619, %v2624
      %v2628 = vld [vmem:[%s756] sm:$0xff]
      %v2629 = vld [vmem:[%s756 + $0x8] sm:$0xff]
      %v2630 = vld [vmem:[%s756 + $0x10] sm:$0xff]
      %v2631 = vld [vmem:[%s756 + $0x18] sm:$0xff]
      %v2632 = vld [vmem:[%s763] sm:$0x1]
      %v2633 = vld [vmem:[%s772] sm:$0xff]
      %v2634 = vld [vmem:[%s772 + $0x8] sm:$0xff]
      %v2635 = vld [vmem:[%s772 + $0x10] sm:$0xff]
      %v2636 = vld [vmem:[%s772 + $0x18] sm:$0xff]
      %v2637 = vld [vmem:[%s772 + $0x20] sm:$0xff]
      %v2638 = vld [vmem:[%s772 + $0x28] sm:$0xff]
      %v2639 = vld [vmem:[%s772 + $0x30] sm:$0xff]
      %v2640 = vld [vmem:[%s772 + $0x38] sm:$0xff]
      %v2641 = vld [vmem:[%s779] sm:$0x1]
      %v2643 = vlaneseq
      %v2644 = vshrl.u32 %v2643, 7
      %v2645 = vsub.s32 0, %v2644
      %v2646 = vrot.slane %v2632, %v2645
      %v2649 = vsel %vm835, %v2626, 0
      %v2652 = vsel %vm835, %v2627, 0
      %2654 = vmatprep.subr.mxu0 0.0
      %2655 = vmatpush1.msra.mxu0 %v2628
      %2656 = vmatprep.subr.mxu0 0.0
      %2657 = vmatpush1.msra.mxu0 %v2629
      %2658 = vmatprep.subr.mxu0 0.0
      %2659 = vmatpush1.msra.mxu0 %v2630
      %2660 = vmatprep.subr.mxu0 0.0
      %2661 = vmatpush1.msra.mxu0 %v2631
      %2662 = vmatprep.subr.mxu0 0.0
      %2663 = vmatpush1.msra.mxu0 0.0
      %2664 = vmatprep.subr.mxu0 0.0
      %2665 = vmatpush1.msra.mxu0 0.0
      %2666 = vmatprep.subr.mxu0 0.0
      %2667 = vmatpush1.msra.mxu0 0.0
      %2668 = vmatprep.subr.mxu0 0.0
      %2669 = vmatpush1.msra.mxu0 0.0
      %2670 = vmatprep.subr.mxu0 0.0
      %2671 = vmatpush1.msra.mxu0 0.0
      %2672 = vmatprep.subr.mxu0 0.0
      %2673 = vmatpush1.msra.mxu0 0.0
      %2674 = vmatprep.subr.mxu0 0.0
      %2675 = vmatpush1.msra.mxu0 0.0
      %2676 = vmatprep.subr.mxu0 0.0
      %2677 = vmatpush1.msra.mxu0 0.0
      %2678 = vmatprep.subr.mxu0 0.0
      %2679 = vmatpush1.msra.mxu0 0.0
      %2680 = vmatprep.subr.mxu0 0.0
      %2681 = vmatpush1.msra.mxu0 0.0
      %2682 = vmatprep.subr.mxu0 0.0
      %2683 = vmatpush1.msra.mxu0 0.0
      %2684 = vmatprep.subr.mxu0 0.0
      %2685 = vmatpush1.msra.mxu0 0.0
      %2686 = vmatprep.subr.mxu0 0.0
      %2687 = vmatpush1.msra.mxu0 0.0
      %2688 = vmatprep.subr.mxu0 0.0
      %2689 = vmatpush1.msra.mxu0 0.0
      %2690 = vmatprep.subr.mxu0 0.0
      %2691 = vmatpush1.msra.mxu0 0.0
      %2692 = vmatprep.subr.mxu0 0.0
      %2693 = vmatpush1.msra.mxu0 0.0
      %2694 = vmatprep.subr.mxu0 0.0
      %2695 = vmatpush1.msra.mxu0 0.0
      %2696 = vmatprep.subr.mxu0 0.0
      %2697 = vmatpush1.msra.mxu0 0.0
      %2698 = vmatprep.subr.mxu0 0.0
      %2699 = vmatpush1.msra.mxu0 0.0
      %2700 = vmatprep.subr.mxu0 0.0
      %2701 = vmatpush1.msra.mxu0 0.0
      %2702 = vmatprep.subr.mxu0 0.0
      %2703 = vmatpush1.msra.mxu0 0.0
      %2704 = vmatprep.subr.mxu0 0.0
      %2705 = vmatpush1.msra.mxu0 0.0
      %2706 = vmatprep.subr.mxu0 0.0
      %2707 = vmatpush1.msra.mxu0 0.0
      %2708 = vmatprep.subr.mxu0 0.0
      %2709 = vmatpush1.msra.mxu0 0.0
      %2710 = vmatprep.subr.mxu0 0.0
      %2711 = vmatpush1.msra.mxu0 0.0
      %2712 = vmatprep.subr.mxu0 0.0
      %2713 = vmatpush1.msra.mxu0 0.0
      %2714 = vmatprep.subr.mxu0 0.0
      %2715 = vmatpush1.msra.mxu0 0.0
      %2716 = vmatprep.subr.mxu0 0.0
      %2717 = vmatpush1.msra.mxu0 0.0
      %2718 = vmatprep.mubr.f32.mxu0 0.0
      %2719 = vmatmul.mubr.f32.gmra.mrb[0].mxu0 %v2649
      %v2720 = vpop.f32.mrb[0].mxu0
      %v2721 = vadd.f32 %v2646, %v2720
      %v2722 = vpop.f32.mrb[0].mxu0
      %2723 = vmatprep.mubr.f32.mxu0 0.0
      %2724 = vmatmul.mubr.f32.gmra.mrb[0].mxu0 %v2652
      %v2725 = vpop.f32.mrb[0].mxu0
      %v2726 = vadd.f32 %v2646, %v2725
      %v2727 = vpop.f32.mrb[0].mxu0
      %2728 = vdwg.mxu0
      %v2729 = vmax.f32 %v2721, 0.0
      %v2730 = vmax.f32 %v2726, 0.0
      %v2732 = vlaneseq
      %v2733 = vshrl.u32 %v2732, 7
      %v2734 = vsub.s32 0, %v2733
      %v2735 = vrot.slane %v2641, %v2734
      %vm2737 = vcmask 523264
      %v2739 = vsel %vm2737, %v2729, 0
      %v2742 = vsel %vm2737, %v2730, 0
      %2744 = vmatprep.subr.mxu0 0.0
      %2745 = vmatpush1.msra.mxu0 %v2633
      %2746 = vmatprep.subr.mxu0 0.0
      %2747 = vmatpush1.msra.mxu0 %v2634
      %2748 = vmatprep.subr.mxu0 0.0
      %2749 = vmatpush1.msra.mxu0 %v2635
      %2750 = vmatprep.subr.mxu0 0.0
      %2751 = vmatpush1.msra.mxu0 %v2636
      %2752 = vmatprep.subr.mxu0 0.0
      %2753 = vmatpush1.msra.mxu0 %v2637
      %2754 = vmatprep.subr.mxu0 0.0
      %2755 = vmatpush1.msra.mxu0 %v2638
      %2756 = vmatprep.subr.mxu0 0.0
      %2757 = vmatpush1.msra.mxu0 %v2639
      %2758 = vmatprep.subr.mxu0 0.0
      %2759 = vmatpush1.msra.mxu0 %v2640
      %2760 = vmatprep.subr.mxu0 0.0
      %2761 = vmatpush1.msra.mxu0 0.0
      %2762 = vmatprep.subr.mxu0 0.0
      %2763 = vmatpush1.msra.mxu0 0.0
      %2764 = vmatprep.subr.mxu0 0.0
      %2765 = vmatpush1.msra.mxu0 0.0
      %2766 = vmatprep.subr.mxu0 0.0
      %2767 = vmatpush1.msra.mxu0 0.0
      %2768 = vmatprep.subr.mxu0 0.0
      %2769 = vmatpush1.msra.mxu0 0.0
      %2770 = vmatprep.subr.mxu0 0.0
      %2771 = vmatpush1.msra.mxu0 0.0
      %2772 = vmatprep.subr.mxu0 0.0
      %2773 = vmatpush1.msra.mxu0 0.0
      %2774 = vmatprep.subr.mxu0 0.0
      %2775 = vmatpush1.msra.mxu0 0.0
      %2776 = vmatprep.subr.mxu0 0.0
      %2777 = vmatpush1.msra.mxu0 0.0
      %2778 = vmatprep.subr.mxu0 0.0
      %2779 = vmatpush1.msra.mxu0 0.0
      %2780 = vmatprep.subr.mxu0 0.0
      %2781 = vmatpush1.msra.mxu0 0.0
      %2782 = vmatprep.subr.mxu0 0.0
      %2783 = vmatpush1.msra.mxu0 0.0
      %2784 = vmatprep.subr.mxu0 0.0
      %2785 = vmatpush1.msra.mxu0 0.0
      %2786 = vmatprep.subr.mxu0 0.0
      %2787 = vmatpush1.msra.mxu0 0.0
      %2788 = vmatprep.subr.mxu0 0.0
      %2789 = vmatpush1.msra.mxu0 0.0
      %2790 = vmatprep.subr.mxu0 0.0
      %2791 = vmatpush1.msra.mxu0 0.0
      %2792 = vmatprep.subr.mxu0 0.0
      %2793 = vmatpush1.msra.mxu0 0.0
      %2794 = vmatprep.subr.mxu0 0.0
      %2795 = vmatpush1.msra.mxu0 0.0
      %2796 = vmatprep.subr.mxu0 0.0
      %2797 = vmatpush1.msra.mxu0 0.0
      %2798 = vmatprep.subr.mxu0 0.0
      %2799 = vmatpush1.msra.mxu0 0.0
      %2800 = vmatprep.subr.mxu0 0.0
      %2801 = vmatpush1.msra.mxu0 0.0
      %2802 = vmatprep.subr.mxu0 0.0
      %2803 = vmatpush1.msra.mxu0 0.0
      %2804 = vmatprep.subr.mxu0 0.0
      %2805 = vmatpush1.msra.mxu0 0.0
      %2806 = vmatprep.subr.mxu0 0.0
      %2807 = vmatpush1.msra.mxu0 0.0
      %2808 = vmatprep.mubr.f32.mxu0 0.0
      %2809 = vmatmul.mubr.f32.gmra.mrb[0].mxu0 %v2739
      %v2810 = vpop.f32.mrb[0].mxu0
      %v2811 = vadd.f32 %v2735, %v2810
      %v2812 = vpop.f32.mrb[0].mxu0
      %2813 = vmatprep.mubr.f32.mxu0 0.0
      %2814 = vmatmul.mubr.f32.gmra.mrb[0].mxu0 %v2742
      %v2815 = vpop.f32.mrb[0].mxu0
      %v2816 = vadd.f32 %v2735, %v2815
      %v2817 = vpop.f32.mrb[0].mxu0
      %2818 = vdwg.mxu0
      %v2819 = vld [vmem:[%s800] sm:$0x1]
      %v2820 = vld [vmem:[%s807] sm:$0x1]
      %v2821 = vadd.f32 %v2626, %v2811
      %v2822 = vadd.f32 %v2627, %v2816
      %v2823 = vsel %vm835, %v2821, 0.0
      %2824 = vadd.xlane.f32.xlu0 %v2823
      %v2825 = vpop.xlane.xlu0 %2824
      %v2826 = vsel %vm835, %v2822, 0.0
      %2827 = vadd.xlane.f32.xlu0 %v2826
      %v2828 = vpop.xlane.xlu0 %2827
      %v2829 = vmul.f32 %v2825, %v2591
      %v2830 = vmul.f32 %v2828, %v2591
      %v2831 = vsub.f32 %v2821, %v2829
      %v2832 = vsub.f32 %v2822, %v2830
      %v2833 = vmul.f32 %v2831, %v2831
      %v2834 = vmul.f32 %v2832, %v2832
      %v2835 = vsel %vm835, %v2833, 0.0
      %2836 = vadd.xlane.f32.xlu0 %v2835
      %v2837 = vpop.xlane.xlu0 %2836
      %v2838 = vsel %vm835, %v2834, 0.0
      %2839 = vadd.xlane.f32.xlu0 %v2838
      %v2840 = vpop.xlane.xlu0 %2839
      %v2841 = vmul.f32 %v2837, %v2591
      %v2842 = vmul.f32 %v2840, %v2591
      %v2843 = vadd.f32 %v2841, 1e-05
      %v2844 = vadd.f32 %v2842, 1e-05
      %v2845 = vrsqrt.pop %v2843
      %v2846 = vrsqrt.pop %v2844
      %v2847 = vmul.f32 %v2831, %v2845
      %v2848 = vmul.f32 %v2832, %v2846
      %v2850 = vlaneseq
      %v2851 = vshrl.u32 %v2850, 7
      %v2852 = vsub.s32 0, %v2851
      %v2853 = vrot.slane %v2819, %v2852
      %v2855 = vmul.f32 %v2847, %v2853
      %v2856 = vmul.f32 %v2848, %v2853
      %v2858 = vlaneseq
      %v2859 = vshrl.u32 %v2858, 7
      %v2860 = vsub.s32 0, %v2859
      %v2861 = vrot.slane %v2820, %v2860
      %v2863 = vadd.f32 %v2855, %v2861
      %v2864 = vadd.f32 %v2856, %v2861
      %2865 = vst.msk [vmem:[#allocation2] sm:$0xff] %vm835, %v2863
      %2866 = vst.msk [vmem:[#allocation2 + $0x8] sm:$0xff] %vm835, %v2864
      %p2867 = scmp.eq.s32.totalorder %s29, 1
      // Predicated region
      $region77: #{omics_transformer_forward.2} parent=71 // pred_check
        %p2868 = pneg %p2867
      $region78: #{omics_transformer_forward.2} parent=71 // pred_check_branch
        %2870 = sbr.rel (%p2868) target = $region80
      $region79: #{omics_transformer_forward.2} parent=71 // pred_region
        %2871 = vst.msk [vmem:[%s812] sm:$0xff] %vm835, %v2863
        %2872 = vst.msk [vmem:[%s812 + $0x8] sm:$0xff] %vm835, %v2864
      $region80: #{omics_transformer_forward.2} parent=71 // pred_fallthru
        _
      %p2873 = scmp.lt.s32.totalorder %s28, 1
      %s2874 = scalar_select %p2873, %s28, 1
      %s2875 = smul.addr %s2874, 2
      %s2876 = smul.addr %s2875, 8
      %s2877 = scalar_lea.vmem %s13, %s2876
      // Predicated region
      $region81: #{omics_transformer_forward.2} parent=71 // pred_check
        %p2878 = pneg %p416
      $region82: #{omics_transformer_forward.2} parent=71 // pred_check_branch
        %2880 = sbr.rel (%p2878) target = $region84
      $region83: #{omics_transformer_forward.2} parent=71 // pred_region
        _
      $region84: #{omics_transformer_forward.2} parent=71 // pred_fallthru
        _
    $region72: #{omics_transformer_forward.2} parent=5 // pred_fallthru
      _
    %p2881 = scmp.le.s32.totalorder 2, %s19
    // Predicated region
    $region85: #{omics_transformer_forward.2} parent=5 // pred_check
      %p2882 = pneg %p2881
    $region86: #{omics_transformer_forward.2} parent=5 // pred_check_branch
      %2884 = sbr.rel (%p2882) target = $region88
    $region87: #{omics_transformer_forward.2} parent=5 // pred_region
      %s2885 = ssub.s32 %s19, 2
      // Predicated region
      $region89: #{omics_transformer_forward.2} parent=87 // pred_check
        %p2886 = pneg %p422
      $region90: #{omics_transformer_forward.2} parent=87 // pred_check_branch
        %2888 = sbr.rel (%p2886) target = $region92
      $region91: #{omics_transformer_forward.2} parent=87 // pred_region
        %p2889 = scmp.lt.s32.totalorder %s30, 1
        %s2890 = scalar_select %p2889, %s30, 1
        %s2891 = smul.addr %s2890, 2
        %s2892 = smul.addr %s2891, 8
        %s2893 = scalar_lea.vmem %s13, %s2892
      $region92: #{omics_transformer_forward.2} parent=87 // pred_fallthru
        _
    $region88: #{omics_transformer_forward.2} parent=5 // pred_fallthru
      _
  $region6: #{omics_transformer_forward.2} parent=0 // loop_footer
    %s23 = sadd.s32 1, %s19
  $region7: #{omics_transformer_forward.2} parent=0 // loop_footer_branch
    %18 = sbr.rel target = $region3
  $region8: #{omics_transformer_forward.2} parent=0 // loop_exit
    _

// kernel: omics_transformer_forward.3
$region0: #{omics_transformer_forward.3}
  #allocation0 [shape = 'u32[]', space=smem, size = 0x4, offset = 0x4, fixed_abs, tag = 'smem constant byte address 0x4 - core index']
  #allocation1 [shape = 'u32[144,128]{1,0:T(1,128)}', space=vmem, size = 0x12000, scoped, tag = 'internal scratch']
  %s0 = inlined_call_operand.smem [shape: u32[31], index: -1, kind: input, shape index: {}]
  %s1 = sld [smem:[%s0]]
  %s2 = scalar_lea.smem %s0, 1
  %s3 = sld [smem:[%s2]]
  %s4 = scalar_lea.smem %s0, 2
  %s5 = sld [smem:[%s4]]
  %s6 = scalar_lea.smem %s0, 3
  %s7 = sld [smem:[%s6]]
  %s8 = scalar_lea.smem %s0, 4
  %s9 = sld [smem:[%s8]]
  %s10 = scalar_lea.smem %s0, 5
  %s11 = sld [smem:[%s10]]
  %s12 = scalar_lea.smem %s0, 6
  %s13 = sld [smem:[%s12]]
  %s14 = scalar_lea.smem %s0, 7
  %s15 = sld [smem:[%s14]]
  %s16 = scalar_lea.smem %s0, 8
  %s17 = sld [smem:[%s16]]
  %s18 = scalar_lea.smem %s0, 9
  %s19 = sld [smem:[%s18]]
  %s20 = scalar_lea.smem %s0, 10
  %s21 = sld [smem:[%s20]]
  %s22 = scalar_lea.smem %s0, 11
  %s23 = sld [smem:[%s22]]
  %s24 = scalar_lea.smem %s0, 12
  %s25 = sld [smem:[%s24]]
  %s26 = scalar_lea.smem %s0, 13
  %s27 = sld [smem:[%s26]]
  %s28 = scalar_lea.smem %s0, 14
  %s29 = sld [smem:[%s28]]
  %s30 = scalar_lea.smem %s0, 15
  %s31 = sld [smem:[%s30]]
  %s32 = scalar_lea.smem %s0, 16
  %s33 = sld [smem:[%s32]]
  %s34 = scalar_lea.smem %s0, 17
  %s35 = sld [smem:[%s34]]
  %s36 = scalar_lea.smem %s0, 18
  %s37 = sld [smem:[%s36]]
  %s38 = scalar_lea.smem %s0, 19
  %s39 = sld [smem:[%s38]]
  %s40 = scalar_lea.smem %s0, 20
  %s41 = sld [smem:[%s40]]
  %s42 = scalar_lea.smem %s0, 21
  %s43 = sld [smem:[%s42]]
  %s44 = scalar_lea.smem %s0, 22
  %s45 = sld [smem:[%s44]]
  %s46 = scalar_lea.smem %s0, 23
  %s47 = sld [smem:[%s46]]
  %s48 = scalar_lea.smem %s0, 24
  %s49 = sld [smem:[%s48]]
  %s50 = scalar_lea.smem %s0, 25
  %s51 = sld [smem:[%s50]]
  %s52 = scalar_lea.smem %s0, 26
  %s53 = sld [smem:[%s52]]
  %s54 = scalar_lea.smem %s0, 27
  %s55 = sld [smem:[%s54]]
  %s56 = scalar_lea.smem %s0, 28
  %s57 = sld [smem:[%s56]]
  %s58 = scalar_lea.smem %s0, 29
  %s59 = sld [smem:[%s58]]
  %s60 = scalar_lea.smem %s0, 30
  %s61 = sld [smem:[%s60]]
  %s62 = sld [smem:[#allocation0]]
  $region130: #{omics_transformer_forward.3} parent=0
    _
  %s64 = ssub.s32 1, %s62
  %s65 = scalar_select 0, %s64, %s62
  $region1: #{omics_transformer_forward.3} parent=0
    #allocation2 [shape = 'u8[4096]{0}', space=vmem, size = 0x1000, scoped, tag = 'output window, operand 0, single buffered']
    #allocation3 [shape = 's32[1]{0}', space=sflag, size = 0x4, scoped, tag = 'scoped memory for omics_transformer_forward.3']
    %66 = vsyncpa [#allocation3], 0
    // Predicated region
    $region2: #{omics_transformer_forward.3} parent=1 // pred_check
      _
    $region3: #{omics_transformer_forward.3} parent=1 // pred_check_branch
      %68 = sbr.rel (0) target = $region5
    $region4: #{omics_transformer_forward.3} parent=1 // pred_region
      _
    $region5: #{omics_transformer_forward.3} parent=1 // pred_fallthru
      _
    // Predicated region
    $region6: #{omics_transformer_forward.3} parent=1 // pred_check
      _
    $region7: #{omics_transformer_forward.3} parent=1 // pred_check_branch
      %70 = sbr.rel (0) target = $region9
    $region8: #{omics_transformer_forward.3} parent=1 // pred_region
      _
    $region9: #{omics_transformer_forward.3} parent=1 // pred_fallthru
      _
    // Predicated region
    $region10: #{omics_transformer_forward.3} parent=1 // pred_check
      _
    $region11: #{omics_transformer_forward.3} parent=1 // pred_check_branch
      %72 = sbr.rel (0) target = $region13
    $region12: #{omics_transformer_forward.3} parent=1 // pred_region
      _
    $region13: #{omics_transformer_forward.3} parent=1 // pred_fallthru
      _
    // Predicated region
    $region14: #{omics_transformer_forward.3} parent=1 // pred_check
      _
    $region15: #{omics_transformer_forward.3} parent=1 // pred_check_branch
      %74 = sbr.rel (0) target = $region17
    $region16: #{omics_transformer_forward.3} parent=1 // pred_region
      _
    $region17: #{omics_transformer_forward.3} parent=1 // pred_fallthru
      _
    // Predicated region
    $region18: #{omics_transformer_forward.3} parent=1 // pred_check
      _
    $region19: #{omics_transformer_forward.3} parent=1 // pred_check_branch
      %76 = sbr.rel (0) target = $region21
    $region20: #{omics_transformer_forward.3} parent=1 // pred_region
      _
    $region21: #{omics_transformer_forward.3} parent=1 // pred_fallthru
      _
    // Predicated region
    $region22: #{omics_transformer_forward.3} parent=1 // pred_check
      _
    $region23: #{omics_transformer_forward.3} parent=1 // pred_check_branch
      %78 = sbr.rel (0) target = $region25
    $region24: #{omics_transformer_forward.3} parent=1 // pred_region
      _
    $region25: #{omics_transformer_forward.3} parent=1 // pred_fallthru
      _
    // Predicated region
    $region26: #{omics_transformer_forward.3} parent=1 // pred_check
      _
    $region27: #{omics_transformer_forward.3} parent=1 // pred_check_branch
      %80 = sbr.rel (0) target = $region29
    $region28: #{omics_transformer_forward.3} parent=1 // pred_region
      _
    $region29: #{omics_transformer_forward.3} parent=1 // pred_fallthru
      _
    // Predicated region
    $region30: #{omics_transformer_forward.3} parent=1 // pred_check
      _
    $region31: #{omics_transformer_forward.3} parent=1 // pred_check_branch
      %82 = sbr.rel (0) target = $region33
    $region32: #{omics_transformer_forward.3} parent=1 // pred_region
      _
    $region33: #{omics_transformer_forward.3} parent=1 // pred_fallthru
      _
    // Predicated region
    $region34: #{omics_transformer_forward.3} parent=1 // pred_check
      _
    $region35: #{omics_transformer_forward.3} parent=1 // pred_check_branch
      %84 = sbr.rel (0) target = $region37
    $region36: #{omics_transformer_forward.3} parent=1 // pred_region
      _
    $region37: #{omics_transformer_forward.3} parent=1 // pred_fallthru
      _
    // Predicated region
    $region38: #{omics_transformer_forward.3} parent=1 // pred_check
      _
    $region39: #{omics_transformer_forward.3} parent=1 // pred_check_branch
      %86 = sbr.rel (0) target = $region41
    $region40: #{omics_transformer_forward.3} parent=1 // pred_region
      _
    $region41: #{omics_transformer_forward.3} parent=1 // pred_fallthru
      _
    // Predicated region
    $region42: #{omics_transformer_forward.3} parent=1 // pred_check
      _
    $region43: #{omics_transformer_forward.3} parent=1 // pred_check_branch
      %88 = sbr.rel (0) target = $region45
    $region44: #{omics_transformer_forward.3} parent=1 // pred_region
      _
    $region45: #{omics_transformer_forward.3} parent=1 // pred_fallthru
      _
    // Predicated region
    $region46: #{omics_transformer_forward.3} parent=1 // pred_check
      _
    $region47: #{omics_transformer_forward.3} parent=1 // pred_check_branch
      %90 = sbr.rel (0) target = $region49
    $region48: #{omics_transformer_forward.3} parent=1 // pred_region
      _
    $region49: #{omics_transformer_forward.3} parent=1 // pred_fallthru
      _
    // Predicated region
    $region50: #{omics_transformer_forward.3} parent=1 // pred_check
      _
    $region51: #{omics_transformer_forward.3} parent=1 // pred_check_branch
      %92 = sbr.rel (0) target = $region53
    $region52: #{omics_transformer_forward.3} parent=1 // pred_region
      _
    $region53: #{omics_transformer_forward.3} parent=1 // pred_fallthru
      _
    // Predicated region
    $region54: #{omics_transformer_forward.3} parent=1 // pred_check
      _
    $region55: #{omics_transformer_forward.3} parent=1 // pred_check_branch
      %94 = sbr.rel (0) target = $region57
    $region56: #{omics_transformer_forward.3} parent=1 // pred_region
      _
    $region57: #{omics_transformer_forward.3} parent=1 // pred_fallthru
      _
    // Predicated region
    $region58: #{omics_transformer_forward.3} parent=1 // pred_check
      _
    $region59: #{omics_transformer_forward.3} parent=1 // pred_check_branch
      %96 = sbr.rel (0) target = $region61
    $region60: #{omics_transformer_forward.3} parent=1 // pred_region
      _
    $region61: #{omics_transformer_forward.3} parent=1 // pred_fallthru
      _
    // Predicated region
    $region62: #{omics_transformer_forward.3} parent=1 // pred_check
      _
    $region63: #{omics_transformer_forward.3} parent=1 // pred_check_branch
      %98 = sbr.rel (0) target = $region65
    $region64: #{omics_transformer_forward.3} parent=1 // pred_region
      _
    $region65: #{omics_transformer_forward.3} parent=1 // pred_fallthru
      _
    // Predicated region
    $region66: #{omics_transformer_forward.3} parent=1 // pred_check
      _
    $region67: #{omics_transformer_forward.3} parent=1 // pred_check_branch
      %100 = sbr.rel (0) target = $region69
    $region68: #{omics_transformer_forward.3} parent=1 // pred_region
      _
    $region69: #{omics_transformer_forward.3} parent=1 // pred_fallthru
      _
    // Predicated region
    $region70: #{omics_transformer_forward.3} parent=1 // pred_check
      _
    $region71: #{omics_transformer_forward.3} parent=1 // pred_check_branch
      %102 = sbr.rel (0) target = $region73
    $region72: #{omics_transformer_forward.3} parent=1 // pred_region
      _
    $region73: #{omics_transformer_forward.3} parent=1 // pred_fallthru
      _
    // Predicated region
    $region74: #{omics_transformer_forward.3} parent=1 // pred_check
      _
    $region75: #{omics_transformer_forward.3} parent=1 // pred_check_branch
      %104 = sbr.rel (0) target = $region77
    $region76: #{omics_transformer_forward.3} parent=1 // pred_region
      _
    $region77: #{omics_transformer_forward.3} parent=1 // pred_fallthru
      _
    // Predicated region
    $region78: #{omics_transformer_forward.3} parent=1 // pred_check
      _
    $region79: #{omics_transformer_forward.3} parent=1 // pred_check_branch
      %106 = sbr.rel (0) target = $region81
    $region80: #{omics_transformer_forward.3} parent=1 // pred_region
      _
    $region81: #{omics_transformer_forward.3} parent=1 // pred_fallthru
      _
    // Predicated region
    $region82: #{omics_transformer_forward.3} parent=1 // pred_check
      _
    $region83: #{omics_transformer_forward.3} parent=1 // pred_check_branch
      %108 = sbr.rel (0) target = $region85
    $region84: #{omics_transformer_forward.3} parent=1 // pred_region
      _
    $region85: #{omics_transformer_forward.3} parent=1 // pred_fallthru
      _
    // Predicated region
    $region86: #{omics_transformer_forward.3} parent=1 // pred_check
      _
    $region87: #{omics_transformer_forward.3} parent=1 // pred_check_branch
      %110 = sbr.rel (0) target = $region89
    $region88: #{omics_transformer_forward.3} parent=1 // pred_region
      _
    $region89: #{omics_transformer_forward.3} parent=1 // pred_fallthru
      _
    // Predicated region
    $region90: #{omics_transformer_forward.3} parent=1 // pred_check
      _
    $region91: #{omics_transformer_forward.3} parent=1 // pred_check_branch
      %112 = sbr.rel (0) target = $region93
    $region92: #{omics_transformer_forward.3} parent=1 // pred_region
      _
    $region93: #{omics_transformer_forward.3} parent=1 // pred_fallthru
      _
    // Predicated region
    $region94: #{omics_transformer_forward.3} parent=1 // pred_check
      _
    $region95: #{omics_transformer_forward.3} parent=1 // pred_check_branch
      %114 = sbr.rel (0) target = $region97
    $region96: #{omics_transformer_forward.3} parent=1 // pred_region
      _
    $region97: #{omics_transformer_forward.3} parent=1 // pred_fallthru
      _
    // Predicated region
    $region98: #{omics_transformer_forward.3} parent=1 // pred_check
      _
    $region99: #{omics_transformer_forward.3} parent=1 // pred_check_branch
      %116 = sbr.rel (0) target = $region101
    $region100: #{omics_transformer_forward.3} parent=1 // pred_region
      _
    $region101: #{omics_transformer_forward.3} parent=1 // pred_fallthru
      _
    // Predicated region
    $region102: #{omics_transformer_forward.3} parent=1 // pred_check
      _
    $region103: #{omics_transformer_forward.3} parent=1 // pred_check_branch
      %118 = sbr.rel (0) target = $region105
    $region104: #{omics_transformer_forward.3} parent=1 // pred_region
      _
    $region105: #{omics_transformer_forward.3} parent=1 // pred_fallthru
      _
    // Predicated region
    $region106: #{omics_transformer_forward.3} parent=1 // pred_check
      _
    $region107: #{omics_transformer_forward.3} parent=1 // pred_check_branch
      %120 = sbr.rel (0) target = $region109
    $region108: #{omics_transformer_forward.3} parent=1 // pred_region
      _
    $region109: #{omics_transformer_forward.3} parent=1 // pred_fallthru
      _
    // Predicated region
    $region110: #{omics_transformer_forward.3} parent=1 // pred_check
      _
    $region111: #{omics_transformer_forward.3} parent=1 // pred_check_branch
      %122 = sbr.rel (0) target = $region113
    $region112: #{omics_transformer_forward.3} parent=1 // pred_region
      _
    $region113: #{omics_transformer_forward.3} parent=1 // pred_fallthru
      _
    // Predicated region
    $region114: #{omics_transformer_forward.3} parent=1 // pred_check
      _
    $region115: #{omics_transformer_forward.3} parent=1 // pred_check_branch
      %124 = sbr.rel (0) target = $region117
    $region116: #{omics_transformer_forward.3} parent=1 // pred_region
      _
    $region117: #{omics_transformer_forward.3} parent=1 // pred_fallthru
      _
    // Predicated region
    $region118: #{omics_transformer_forward.3} parent=1 // pred_check
      _
    $region119: #{omics_transformer_forward.3} parent=1 // pred_check_branch
      %126 = sbr.rel (0) target = $region121
    $region120: #{omics_transformer_forward.3} parent=1 // pred_region
      _
    $region121: #{omics_transformer_forward.3} parent=1 // pred_fallthru
      _
    %v127 = vld [vmem:[%s1] sm:$0xff]
    %v128 = vld [vmem:[%s1 + $0x8] sm:$0xff]
    %s129 = scalar_lea.vmem %s1, 16
    %v130 = vld [vmem:[%s129] sm:$0xff]
    %v131 = vld [vmem:[%s129 + $0x8] sm:$0xff]
    %v132 = vld [vmem:[%s3] sm:$0xff]
    %v133 = vld [vmem:[%s3 + $0x8] sm:$0xff]
    %v134 = vld [vmem:[%s3 + $0x10] sm:$0xff]
    %v135 = vld [vmem:[%s3 + $0x18] sm:$0xff]
    %v136 = vld [vmem:[%s5] sm:$0x1]
    %v138 = vlaneseq
    %v139 = vshrl.u32 %v138, 7
    %v140 = vsub.s32 0, %v139
    %v141 = vrot.slane %v136, %v140
    %vm143 = vcmask 261120
    %v145 = vsel %vm143, %v127, 0
    %v148 = vsel %vm143, %v128, 0
    %150 = vmatprep.subr.mxu0 0.0
    %151 = vmatpush1.msra.mxu0 %v132
    %152 = vmatprep.subr.mxu0 0.0
    %153 = vmatpush1.msra.mxu0 %v133
    %154 = vmatprep.subr.mxu0 0.0
    %155 = vmatpush1.msra.mxu0 %v134
    %156 = vmatprep.subr.mxu0 0.0
    %157 = vmatpush1.msra.mxu0 %v135
    %158 = vmatprep.subr.mxu0 0.0
    %159 = vmatpush1.msra.mxu0 0.0
    %160 = vmatprep.subr.mxu0 0.0
    %161 = vmatpush1.msra.mxu0 0.0
    %162 = vmatprep.subr.mxu0 0.0
    %163 = vmatpush1.msra.mxu0 0.0
    %164 = vmatprep.subr.mxu0 0.0
    %165 = vmatpush1.msra.mxu0 0.0
    %166 = vmatprep.subr.mxu0 0.0
    %167 = vmatpush1.msra.mxu0 0.0
    %168 = vmatprep.subr.mxu0 0.0
    %169 = vmatpush1.msra.mxu0 0.0
    %170 = vmatprep.subr.mxu0 0.0
    %171 = vmatpush1.msra.mxu0 0.0
    %172 = vmatprep.subr.mxu0 0.0
    %173 = vmatpush1.msra.mxu0 0.0
    %174 = vmatprep.subr.mxu0 0.0
    %175 = vmatpush1.msra.mxu0 0.0
    %176 = vmatprep.subr.mxu0 0.0
    %177 = vmatpush1.msra.mxu0 0.0
    %178 = vmatprep.subr.mxu0 0.0
    %179 = vmatpush1.msra.mxu0 0.0
    %180 = vmatprep.subr.mxu0 0.0
    %181 = vmatpush1.msra.mxu0 0.0
    %182 = vmatprep.subr.mxu0 0.0
    %183 = vmatpush1.msra.mxu0 0.0
    %184 = vmatprep.subr.mxu0 0.0
    %185 = vmatpush1.msra.mxu0 0.0
    %186 = vmatprep.subr.mxu0 0.0
    %187 = vmatpush1.msra.mxu0 0.0
    %188 = vmatprep.subr.mxu0 0.0
    %189 = vmatpush1.msra.mxu0 0.0
    %190 = vmatprep.subr.mxu0 0.0
    %191 = vmatpush1.msra.mxu0 0.0
    %192 = vmatprep.subr.mxu0 0.0
    %193 = vmatpush1.msra.mxu0 0.0
    %194 = vmatprep.subr.mxu0 0.0
    %195 = vmatpush1.msra.mxu0 0.0
    %196 = vmatprep.subr.mxu0 0.0
    %197 = vmatpush1.msra.mxu0 0.0
    %198 = vmatprep.subr.mxu0 0.0
    %199 = vmatpush1.msra.mxu0 0.0
    %200 = vmatprep.subr.mxu0 0.0
    %201 = vmatpush1.msra.mxu0 0.0
    %202 = vmatprep.subr.mxu0 0.0
    %203 = vmatpush1.msra.mxu0 0.0
    %204 = vmatprep.subr.mxu0 0.0
    %205 = vmatpush1.msra.mxu0 0.0
    %206 = vmatprep.subr.mxu0 0.0
    %207 = vmatpush1.msra.mxu0 0.0
    %208 = vmatprep.subr.mxu0 0.0
    %209 = vmatpush1.msra.mxu0 0.0
    %210 = vmatprep.subr.mxu0 0.0
    %211 = vmatpush1.msra.mxu0 0.0
    %212 = vmatprep.subr.mxu0 0.0
    %213 = vmatpush1.msra.mxu0 0.0
    %214 = vmatprep.mubr.f32.mxu0 0.0
    %215 = vmatmul.mubr.f32.gmra.mrb[0].mxu0 %v145
    %v216 = vpop.f32.mrb[0].mxu0
    %v217 = vadd.f32 %v141, %v216
    %v218 = vpop.f32.mrb[0].mxu0
    %219 = vmatprep.mubr.f32.mxu0 0.0
    %220 = vmatmul.mubr.f32.gmra.mrb[0].mxu0 %v148
    %v221 = vpop.f32.mrb[0].mxu0
    %v222 = vadd.f32 %v141, %v221
    %v223 = vpop.f32.mrb[0].mxu0
    %224 = vdwg.mxu0
    %v225 = vld [vmem:[%s7] sm:$0xff]
    %v226 = vld [vmem:[%s7 + $0x8] sm:$0xff]
    %v227 = vld [vmem:[%s7 + $0x10] sm:$0xff]
    %v228 = vld [vmem:[%s7 + $0x18] sm:$0xff]
    %v229 = vld [vmem:[%s9] sm:$0x1]
    %v231 = vlaneseq
    %v232 = vshrl.u32 %v231, 7
    %v233 = vsub.s32 0, %v232
    %v234 = vrot.slane %v229, %v233
    %v237 = vsel %vm143, %v130, 0
    %v240 = vsel %vm143, %v131, 0
    %242 = vmatprep.subr.mxu0 0.0
    %243 = vmatpush1.msra.mxu0 %v225
    %244 = vmatprep.subr.mxu0 0.0
    %245 = vmatpush1.msra.mxu0 %v226
    %246 = vmatprep.subr.mxu0 0.0
    %247 = vmatpush1.msra.mxu0 %v227
    %248 = vmatprep.subr.mxu0 0.0
    %249 = vmatpush1.msra.mxu0 %v228
    %250 = vmatprep.subr.mxu0 0.0
    %251 = vmatpush1.msra.mxu0 0.0
    %252 = vmatprep.subr.mxu0 0.0
    %253 = vmatpush1.msra.mxu0 0.0
    %254 = vmatprep.subr.mxu0 0.0
    %255 = vmatpush1.msra.mxu0 0.0
    %256 = vmatprep.subr.mxu0 0.0
    %257 = vmatpush1.msra.mxu0 0.0
    %258 = vmatprep.subr.mxu0 0.0
    %259 = vmatpush1.msra.mxu0 0.0
    %260 = vmatprep.subr.mxu0 0.0
    %261 = vmatpush1.msra.mxu0 0.0
    %262 = vmatprep.subr.mxu0 0.0
    %263 = vmatpush1.msra.mxu0 0.0
    %264 = vmatprep.subr.mxu0 0.0
    %265 = vmatpush1.msra.mxu0 0.0
    %266 = vmatprep.subr.mxu0 0.0
    %267 = vmatpush1.msra.mxu0 0.0
    %268 = vmatprep.subr.mxu0 0.0
    %269 = vmatpush1.msra.mxu0 0.0
    %270 = vmatprep.subr.mxu0 0.0
    %271 = vmatpush1.msra.mxu0 0.0
    %272 = vmatprep.subr.mxu0 0.0
    %273 = vmatpush1.msra.mxu0 0.0
    %274 = vmatprep.subr.mxu0 0.0
    %275 = vmatpush1.msra.mxu0 0.0
    %276 = vmatprep.subr.mxu0 0.0
    %277 = vmatpush1.msra.mxu0 0.0
    %278 = vmatprep.subr.mxu0 0.0
    %279 = vmatpush1.msra.mxu0 0.0
    %280 = vmatprep.subr.mxu0 0.0
    %281 = vmatpush1.msra.mxu0 0.0
    %282 = vmatprep.subr.mxu0 0.0
    %283 = vmatpush1.msra.mxu0 0.0
    %284 = vmatprep.subr.mxu0 0.0
    %285 = vmatpush1.msra.mxu0 0.0
    %286 = vmatprep.subr.mxu0 0.0
    %287 = vmatpush1.msra.mxu0 0.0
    %288 = vmatprep.subr.mxu0 0.0
    %289 = vmatpush1.msra.mxu0 0.0
    %290 = vmatprep.subr.mxu0 0.0
    %291 = vmatpush1.msra.mxu0 0.0
    %292 = vmatprep.subr.mxu0 0.0
    %293 = vmatpush1.msra.mxu0 0.0
    %294 = vmatprep.subr.mxu0 0.0
    %295 = vmatpush1.msra.mxu0 0.0
    %296 = vmatprep.subr.mxu0 0.0
    %297 = vmatpush1.msra.mxu0 0.0
    %298 = vmatprep.subr.mxu0 0.0
    %299 = vmatpush1.msra.mxu0 0.0
    %300 = vmatprep.subr.mxu0 0.0
    %301 = vmatpush1.msra.mxu0 0.0
    %302 = vmatprep.subr.mxu0 0.0
    %303 = vmatpush1.msra.mxu0 0.0
    %304 = vmatprep.subr.mxu0 0.0
    %305 = vmatpush1.msra.mxu0 0.0
    %306 = vmatprep.mubr.f32.mxu0 0.0
    %307 = vmatmul.mubr.f32.gmra.mrb[0].mxu0 %v237
    %v308 = vpop.f32.mrb[0].mxu0
    %v309 = vadd.f32 %v234, %v308
    %v310 = vpop.f32.mrb[0].mxu0
    %311 = vmatprep.mubr.f32.mxu0 0.0
    %312 = vmatmul.mubr.f32.gmra.mrb[0].mxu0 %v240
    %v313 = vpop.f32.mrb[0].mxu0
    %v314 = vadd.f32 %v234, %v313
    %v315 = vpop.f32.mrb[0].mxu0
    %316 = vdwg.mxu0
    %v317 = vld [vmem:[%s11] sm:$0xff]
    %v318 = vld [vmem:[%s11 + $0x8] sm:$0xff]
    %v319 = vld [vmem:[%s11 + $0x10] sm:$0xff]
    %v320 = vld [vmem:[%s11 + $0x18] sm:$0xff]
    %v321 = vld [vmem:[%s13] sm:$0x1]
    %v322 = vmul.f32 %v217, 0.35355338
    %v323 = vmul.f32 %v222, 0.35355338
    %vm324 = vcmask 64512
    %v326 = vsel %vm324, %v322, 0
    %v329 = vsel %vm324, %v309, 0
    %331 = vmatprep.subr.mxu0 0.0
    %332 = vmatpush1.xpose.msra.mxu0 %v329
    %333 = vmatprep.subr.mxu0 0.0
    %334 = vmatpush1.xpose.msra.mxu0 0.0
    %335 = vmatprep.subr.mxu0 0.0
    %336 = vmatpush1.xpose.msra.mxu0 0.0
    %337 = vmatprep.subr.mxu0 0.0
    %338 = vmatpush1.xpose.msra.mxu0 0.0
    %339 = vmatprep.subr.mxu0 0.0
    %340 = vmatpush1.xpose.msra.mxu0 0.0
    %341 = vmatprep.subr.mxu0 0.0
    %342 = vmatpush1.xpose.msra.mxu0 0.0
    %343 = vmatprep.subr.mxu0 0.0
    %344 = vmatpush1.xpose.msra.mxu0 0.0
    %345 = vmatprep.subr.mxu0 0.0
    %346 = vmatpush1.xpose.msra.mxu0 0.0
    %347 = vmatprep.subr.mxu0 0.0
    %348 = vmatpush1.xpose.msra.mxu0 0.0
    %349 = vmatprep.subr.mxu0 0.0
    %350 = vmatpush1.xpose.msra.mxu0 0.0
    %351 = vmatprep.subr.mxu0 0.0
    %352 = vmatpush1.xpose.msra.mxu0 0.0
    %353 = vmatprep.subr.mxu0 0.0
    %354 = vmatpush1.xpose.msra.mxu0 0.0
    %355 = vmatprep.subr.mxu0 0.0
    %356 = vmatpush1.xpose.msra.mxu0 0.0
    %357 = vmatprep.subr.mxu0 0.0
    %358 = vmatpush1.xpose.msra.mxu0 0.0
    %359 = vmatprep.subr.mxu0 0.0
    %360 = vmatpush1.xpose.msra.mxu0 0.0
    %361 = vmatprep.subr.mxu0 0.0
    %362 = vmatpush1.xpose.msra.mxu0 0.0
    %363 = vmatprep.subr.mxu0 0.0
    %364 = vmatpush1.xpose.msra.mxu0 0.0
    %365 = vmatprep.subr.mxu0 0.0
    %366 = vmatpush1.xpose.msra.mxu0 0.0
    %367 = vmatprep.subr.mxu0 0.0
    %368 = vmatpush1.xpose.msra.mxu0 0.0
    %369 = vmatprep.subr.mxu0 0.0
    %370 = vmatpush1.xpose.msra.mxu0 0.0
    %371 = vmatprep.subr.mxu0 0.0
    %372 = vmatpush1.xpose.msra.mxu0 0.0
    %373 = vmatprep.subr.mxu0 0.0
    %374 = vmatpush1.xpose.msra.mxu0 0.0
    %375 = vmatprep.subr.mxu0 0.0
    %376 = vmatpush1.xpose.msra.mxu0 0.0
    %377 = vmatprep.subr.mxu0 0.0
    %378 = vmatpush1.xpose.msra.mxu0 0.0
    %379 = vmatprep.subr.mxu0 0.0
    %380 = vmatpush1.xpose.msra.mxu0 0.0
    %381 = vmatprep.subr.mxu0 0.0
    %382 = vmatpush1.xpose.msra.mxu0 0.0
    %383 = vmatprep.subr.mxu0 0.0
    %384 = vmatpush1.xpose.msra.mxu0 0.0
    %385 = vmatprep.subr.mxu0 0.0
    %386 = vmatpush1.xpose.msra.mxu0 0.0
    %387 = vmatprep.subr.mxu0 0.0
    %388 = vmatpush1.xpose.msra.mxu0 0.0
    %389 = vmatprep.subr.mxu0 0.0
    %390 = vmatpush1.xpose.msra.mxu0 0.0
    %391 = vmatprep.subr.mxu0 0.0
    %392 = vmatpush1.xpose.msra.mxu0 0.0
    %393 = vmatprep.subr.mxu0 0.0
    %394 = vmatpush1.xpose.msra.mxu0 0.0
    %395 = vmatprep.mubr.f32.mxu0 0.0
    %396 = vmatmul.mubr.f32.gmra.mrb[0].mxu0 %v326
    %v397 = vpop.f32.mrb[0].mxu0
    %v398 = vadd.f32 0.0, %v397
    %v399 = vpop.f32.mrb[0].mxu0
    %400 = vdwg.mxu0
    %v402 = vsel %vm324, %v323, 0
    %v405 = vsel %vm324, %v314, 0
    %407 = vmatprep.subr.mxu0 0.0
    %408 = vmatpush1.xpose.msra.mxu0 %v405
    %409 = vmatprep.subr.mxu0 0.0
    %410 = vmatpush1.xpose.msra.mxu0 0.0
    %411 = vmatprep.subr.mxu0 0.0
    %412 = vmatpush1.xpose.msra.mxu0 0.0
    %413 = vmatprep.subr.mxu0 0.0
    %414 = vmatpush1.xpose.msra.mxu0 0.0
    %415 = vmatprep.subr.mxu0 0.0
    %416 = vmatpush1.xpose.msra.mxu0 0.0
    %417 = vmatprep.subr.mxu0 0.0
    %418 = vmatpush1.xpose.msra.mxu0 0.0
    %419 = vmatprep.subr.mxu0 0.0
    %420 = vmatpush1.xpose.msra.mxu0 0.0
    %421 = vmatprep.subr.mxu0 0.0
    %422 = vmatpush1.xpose.msra.mxu0 0.0
    %423 = vmatprep.subr.mxu0 0.0
    %424 = vmatpush1.xpose.msra.mxu0 0.0
    %425 = vmatprep.subr.mxu0 0.0
    %426 = vmatpush1.xpose.msra.mxu0 0.0
    %427 = vmatprep.subr.mxu0 0.0
    %428 = vmatpush1.xpose.msra.mxu0 0.0
    %429 = vmatprep.subr.mxu0 0.0
    %430 = vmatpush1.xpose.msra.mxu0 0.0
    %431 = vmatprep.subr.mxu0 0.0
    %432 = vmatpush1.xpose.msra.mxu0 0.0
    %433 = vmatprep.subr.mxu0 0.0
    %434 = vmatpush1.xpose.msra.mxu0 0.0
    %435 = vmatprep.subr.mxu0 0.0
    %436 = vmatpush1.xpose.msra.mxu0 0.0
    %437 = vmatprep.subr.mxu0 0.0
    %438 = vmatpush1.xpose.msra.mxu0 0.0
    %439 = vmatprep.subr.mxu0 0.0
    %440 = vmatpush1.xpose.msra.mxu0 0.0
    %441 = vmatprep.subr.mxu0 0.0
    %442 = vmatpush1.xpose.msra.mxu0 0.0
    %443 = vmatprep.subr.mxu0 0.0
    %444 = vmatpush1.xpose.msra.mxu0 0.0
    %445 = vmatprep.subr.mxu0 0.0
    %446 = vmatpush1.xpose.msra.mxu0 0.0
    %447 = vmatprep.subr.mxu0 0.0
    %448 = vmatpush1.xpose.msra.mxu0 0.0
    %449 = vmatprep.subr.mxu0 0.0
    %450 = vmatpush1.xpose.msra.mxu0 0.0
    %451 = vmatprep.subr.mxu0 0.0
    %452 = vmatpush1.xpose.msra.mxu0 0.0
    %453 = vmatprep.subr.mxu0 0.0
    %454 = vmatpush1.xpose.msra.mxu0 0.0
    %455 = vmatprep.subr.mxu0 0.0
    %456 = vmatpush1.xpose.msra.mxu0 0.0
    %457 = vmatprep.subr.mxu0 0.0
    %458 = vmatpush1.xpose.msra.mxu0 0.0
    %459 = vmatprep.subr.mxu0 0.0
    %460 = vmatpush1.xpose.msra.mxu0 0.0
    %461 = vmatprep.subr.mxu0 0.0
    %462 = vmatpush1.xpose.msra.mxu0 0.0
    %463 = vmatprep.subr.mxu0 0.0
    %464 = vmatpush1.xpose.msra.mxu0 0.0
    %465 = vmatprep.subr.mxu0 0.0
    %466 = vmatpush1.xpose.msra.mxu0 0.0
    %467 = vmatprep.subr.mxu0 0.0
    %468 = vmatpush1.xpose.msra.mxu0 0.0
    %469 = vmatprep.subr.mxu0 0.0
    %470 = vmatpush1.xpose.msra.mxu0 0.0
    %471 = vmatprep.mubr.f32.mxu0 0.0
    %472 = vmatmul.mubr.f32.gmra.mrb[0].mxu0 %v402
    %v473 = vpop.f32.mrb[0].mxu0
    %v474 = vadd.f32 0.0, %v473
    %v475 = vpop.f32.mrb[0].mxu0
    %476 = vdwg.mxu0
    %v477 = vsel %vm324, %v398, -inf
    %478 = vmax.xlane.f32.xlu0 %v477
    %v479 = vpop.xlane.xlu0 %478
    %v480 = vsel %vm324, %v474, -inf
    %481 = vmax.xlane.f32.xlu0 %v480
    %v482 = vpop.xlane.xlu0 %481
    %v483 = vsub.f32 %v398, %v479
    %v484 = vsub.f32 %v474, %v482
    %v485 = vmul.f32 %v483, 1.442695
    %v486 = vpow.pop %v485
    %v487 = vmul.f32 %v484, 1.442695
    %v488 = vpow.pop %v487
    %v489 = vsel %vm324, %v486, 0.0
    %490 = vadd.xlane.f32.xlu0 %v489
    %v491 = vpop.xlane.xlu0 %490
    %v492 = vsel %vm324, %v488, 0.0
    %493 = vadd.xlane.f32.xlu0 %v492
    %v494 = vpop.xlane.xlu0 %493
    %v495 = vrcp.pop %v491
    %v496 = vrcp.pop %v494
    %v497 = vmul.f32 %v486, %v495
    %v498 = vmul.f32 %v488, %v496
    %499 = vrot.lane.b32.xlu0 %v309, 96
    %v500 = vpop.permute.xlu0 %499
    %v503 = vsel %vm324, %v497, 0
    %505 = vmatprep.subr.mxu0 0.0
    %506 = vmatpush1.msra.mxu0 %v500
    %507 = vmatprep.subr.mxu0 0.0
    %508 = vmatpush1.msra.mxu0 0.0
    %509 = vmatprep.subr.mxu0 0.0
    %510 = vmatpush1.msra.mxu0 0.0
    %511 = vmatprep.subr.mxu0 0.0
    %512 = vmatpush1.msra.mxu0 0.0
    %513 = vmatprep.subr.mxu0 0.0
    %514 = vmatpush1.msra.mxu0 0.0
    %515 = vmatprep.subr.mxu0 0.0
    %516 = vmatpush1.msra.mxu0 0.0
    %517 = vmatprep.subr.mxu0 0.0
    %518 = vmatpush1.msra.mxu0 0.0
    %519 = vmatprep.subr.mxu0 0.0
    %520 = vmatpush1.msra.mxu0 0.0
    %521 = vmatprep.subr.mxu0 0.0
    %522 = vmatpush1.msra.mxu0 0.0
    %523 = vmatprep.subr.mxu0 0.0
    %524 = vmatpush1.msra.mxu0 0.0
    %525 = vmatprep.subr.mxu0 0.0
    %526 = vmatpush1.msra.mxu0 0.0
    %527 = vmatprep.subr.mxu0 0.0
    %528 = vmatpush1.msra.mxu0 0.0
    %529 = vmatprep.subr.mxu0 0.0
    %530 = vmatpush1.msra.mxu0 0.0
    %531 = vmatprep.subr.mxu0 0.0
    %532 = vmatpush1.msra.mxu0 0.0
    %533 = vmatprep.subr.mxu0 0.0
    %534 = vmatpush1.msra.mxu0 0.0
    %535 = vmatprep.subr.mxu0 0.0
    %536 = vmatpush1.msra.mxu0 0.0
    %537 = vmatprep.subr.mxu0 0.0
    %538 = vmatpush1.msra.mxu0 0.0
    %539 = vmatprep.subr.mxu0 0.0
    %540 = vmatpush1.msra.mxu0 0.0
    %541 = vmatprep.subr.mxu0 0.0
    %542 = vmatpush1.msra.mxu0 0.0
    %543 = vmatprep.subr.mxu0 0.0
    %544 = vmatpush1.msra.mxu0 0.0
    %545 = vmatprep.subr.mxu0 0.0
    %546 = vmatpush1.msra.mxu0 0.0
    %547 = vmatprep.subr.mxu0 0.0
    %548 = vmatpush1.msra.mxu0 0.0
    %549 = vmatprep.subr.mxu0 0.0
    %550 = vmatpush1.msra.mxu0 0.0
    %551 = vmatprep.subr.mxu0 0.0
    %552 = vmatpush1.msra.mxu0 0.0
    %553 = vmatprep.subr.mxu0 0.0
    %554 = vmatpush1.msra.mxu0 0.0
    %555 = vmatprep.subr.mxu0 0.0
    %556 = vmatpush1.msra.mxu0 0.0
    %557 = vmatprep.subr.mxu0 0.0
    %558 = vmatpush1.msra.mxu0 0.0
    %559 = vmatprep.subr.mxu0 0.0
    %560 = vmatpush1.msra.mxu0 0.0
    %561 = vmatprep.subr.mxu0 0.0
    %562 = vmatpush1.msra.mxu0 0.0
    %563 = vmatprep.subr.mxu0 0.0
    %564 = vmatpush1.msra.mxu0 0.0
    %565 = vmatprep.subr.mxu0 0.0
    %566 = vmatpush1.msra.mxu0 0.0
    %567 = vmatprep.subr.mxu0 0.0
    %568 = vmatpush1.msra.mxu0 0.0
    %569 = vmatprep.mubr.f32.mxu0 0.0
    %570 = vmatmul.mubr.f32.gmra.mrb[0].mxu0 %v503
    %v571 = vpop.f32.mrb[0].mxu0
    %v572 = vadd.f32 0.0, %v571
    %v573 = vpop.f32.mrb[0].mxu0
    %574 = vdwg.mxu0
    %575 = vrot.lane.b32.xlu0 %v314, 96
    %v576 = vpop.permute.xlu0 %575
    %v579 = vsel %vm324, %v498, 0
    %581 = vmatprep.subr.mxu0 0.0
    %582 = vmatpush1.msra.mxu0 %v576
    %583 = vmatprep.subr.mxu0 0.0
    %584 = vmatpush1.msra.mxu0 0.0
    %585 = vmatprep.subr.mxu0 0.0
    %586 = vmatpush1.msra.mxu0 0.0
    %587 = vmatprep.subr.mxu0 0.0
    %588 = vmatpush1.msra.mxu0 0.0
    %589 = vmatprep.subr.mxu0 0.0
    %590 = vmatpush1.msra.mxu0 0.0
    %591 = vmatprep.subr.mxu0 0.0
    %592 = vmatpush1.msra.mxu0 0.0
    %593 = vmatprep.subr.mxu0 0.0
    %594 = vmatpush1.msra.mxu0 0.0
    %595 = vmatprep.subr.mxu0 0.0
    %596 = vmatpush1.msra.mxu0 0.0
    %597 = vmatprep.subr.mxu0 0.0
    %598 = vmatpush1.msra.mxu0 0.0
    %599 = vmatprep.subr.mxu0 0.0
    %600 = vmatpush1.msra.mxu0 0.0
    %601 = vmatprep.subr.mxu0 0.0
    %602 = vmatpush1.msra.mxu0 0.0
    %603 = vmatprep.subr.mxu0 0.0
    %604 = vmatpush1.msra.mxu0 0.0
    %605 = vmatprep.subr.mxu0 0.0
    %606 = vmatpush1.msra.mxu0 0.0
    %607 = vmatprep.subr.mxu0 0.0
    %608 = vmatpush1.msra.mxu0 0.0
    %609 = vmatprep.subr.mxu0 0.0
    %610 = vmatpush1.msra.mxu0 0.0
    %611 = vmatprep.subr.mxu0 0.0
    %612 = vmatpush1.msra.mxu0 0.0
    %613 = vmatprep.subr.mxu0 0.0
    %614 = vmatpush1.msra.mxu0 0.0
    %615 = vmatprep.subr.mxu0 0.0
    %616 = vmatpush1.msra.mxu0 0.0
    %617 = vmatprep.subr.mxu0 0.0
    %618 = vmatpush1.msra.mxu0 0.0
    %619 = vmatprep.subr.mxu0 0.0
    %620 = vmatpush1.msra.mxu0 0.0
    %621 = vmatprep.subr.mxu0 0.0
    %622 = vmatpush1.msra.mxu0 0.0
    %623 = vmatprep.subr.mxu0 0.0
    %624 = vmatpush1.msra.mxu0 0.0
    %625 = vmatprep.subr.mxu0 0.0
    %626 = vmatpush1.msra.mxu0 0.0
    %627 = vmatprep.subr.mxu0 0.0
    %628 = vmatpush1.msra.mxu0 0.0
    %629 = vmatprep.subr.mxu0 0.0
    %630 = vmatpush1.msra.mxu0 0.0
    %631 = vmatprep.subr.mxu0 0.0
    %632 = vmatpush1.msra.mxu0 0.0
    %633 = vmatprep.subr.mxu0 0.0
    %634 = vmatpush1.msra.mxu0 0.0
    %635 = vmatprep.subr.mxu0 0.0
    %636 = vmatpush1.msra.mxu0 0.0
    %637 = vmatprep.subr.mxu0 0.0
    %638 = vmatpush1.msra.mxu0 0.0
    %639 = vmatprep.subr.mxu0 0.0
    %640 = vmatpush1.msra.mxu0 0.0
    %641 = vmatprep.subr.mxu0 0.0
    %642 = vmatpush1.msra.mxu0 0.0
    %643 = vmatprep.subr.mxu0 0.0
    %644 = vmatpush1.msra.mxu0 0.0
    %645 = vmatprep.mubr.f32.mxu0 0.0
    %646 = vmatmul.mubr.f32.gmra.mrb[0].mxu0 %v579
    %v647 = vpop.f32.mrb[0].mxu0
    %v648 = vadd.f32 0.0, %v647
    %v649 = vpop.f32.mrb[0].mxu0
    %650 = vdwg.mxu0
    %651 = vrot.lane.b32.xlu0 %v322, 120
    %v652 = vpop.permute.xlu0 %651
    %653 = vrot.lane.b32.xlu0 %v309, 120
    %v654 = vpop.permute.xlu0 %653
    %v655 = vsel %vm324, %v652, 0
    %v657 = vsel %vm324, %v654, 0
    %659 = vmatprep.subr.mxu0 0.0
    %660 = vmatpush1.xpose.msra.mxu0 %v657
    %661 = vmatprep.subr.mxu0 0.0
    %662 = vmatpush1.xpose.msra.mxu0 0.0
    %663 = vmatprep.subr.mxu0 0.0
    %664 = vmatpush1.xpose.msra.mxu0 0.0
    %665 = vmatprep.subr.mxu0 0.0
    %666 = vmatpush1.xpose.msra.mxu0 0.0
    %667 = vmatprep.subr.mxu0 0.0
    %668 = vmatpush1.xpose.msra.mxu0 0.0
    %669 = vmatprep.subr.mxu0 0.0
    %670 = vmatpush1.xpose.msra.mxu0 0.0
    %671 = vmatprep.subr.mxu0 0.0
    %672 = vmatpush1.xpose.msra.mxu0 0.0
    %673 = vmatprep.subr.mxu0 0.0
    %674 = vmatpush1.xpose.msra.mxu0 0.0
    %675 = vmatprep.subr.mxu0 0.0
    %676 = vmatpush1.xpose.msra.mxu0 0.0
    %677 = vmatprep.subr.mxu0 0.0
    %678 = vmatpush1.xpose.msra.mxu0 0.0
    %679 = vmatprep.subr.mxu0 0.0
    %680 = vmatpush1.xpose.msra.mxu0 0.0
    %681 = vmatprep.subr.mxu0 0.0
    %682 = vmatpush1.xpose.msra.mxu0 0.0
    %683 = vmatprep.subr.mxu0 0.0
    %684 = vmatpush1.xpose.msra.mxu0 0.0
    %685 = vmatprep.subr.mxu0 0.0
    %686 = vmatpush1.xpose.msra.mxu0 0.0
    %687 = vmatprep.subr.mxu0 0.0
    %688 = vmatpush1.xpose.msra.mxu0 0.0
    %689 = vmatprep.subr.mxu0 0.0
    %690 = vmatpush1.xpose.msra.mxu0 0.0
    %691 = vmatprep.subr.mxu0 0.0
    %692 = vmatpush1.xpose.msra.mxu0 0.0
    %693 = vmatprep.subr.mxu0 0.0
    %694 = vmatpush1.xpose.msra.mxu0 0.0
    %695 = vmatprep.subr.mxu0 0.0
    %696 = vmatpush1.xpose.msra.mxu0 0.0
    %697 = vmatprep.subr.mxu0 0.0
    %698 = vmatpush1.xpose.msra.mxu0 0.0
    %699 = vmatprep.subr.mxu0 0.0
    %700 = vmatpush1.xpose.msra.mxu0 0.0
    %701 = vmatprep.subr.mxu0 0.0
    %702 = vmatpush1.xpose.msra.mxu0 0.0
    %703 = vmatprep.subr.mxu0 0.0
    %704 = vmatpush1.xpose.msra.mxu0 0.0
    %705 = vmatprep.subr.mxu0 0.0
    %706 = vmatpush1.xpose.msra.mxu0 0.0
    %707 = vmatprep.subr.mxu0 0.0
    %708 = vmatpush1.xpose.msra.mxu0 0.0
    %709 = vmatprep.subr.mxu0 0.0
    %710 = vmatpush1.xpose.msra.mxu0 0.0
    %711 = vmatprep.subr.mxu0 0.0
    %712 = vmatpush1.xpose.msra.mxu0 0.0
    %713 = vmatprep.subr.mxu0 0.0
    %714 = vmatpush1.xpose.msra.mxu0 0.0
    %715 = vmatprep.subr.mxu0 0.0
    %716 = vmatpush1.xpose.msra.mxu0 0.0
    %717 = vmatprep.subr.mxu0 0.0
    %718 = vmatpush1.xpose.msra.mxu0 0.0
    %719 = vmatprep.subr.mxu0 0.0
    %720 = vmatpush1.xpose.msra.mxu0 0.0
    %721 = vmatprep.subr.mxu0 0.0
    %722 = vmatpush1.xpose.msra.mxu0 0.0
    %723 = vmatprep.mubr.f32.mxu0 0.0
    %724 = vmatmul.mubr.f32.gmra.mrb[0].mxu0 %v655
    %v725 = vpop.f32.mrb[0].mxu0
    %v726 = vadd.f32 0.0, %v725
    %v727 = vpop.f32.mrb[0].mxu0
    %728 = vdwg.mxu0
    %729 = vrot.lane.b32.xlu0 %v323, 120
    %v730 = vpop.permute.xlu0 %729
    %731 = vrot.lane.b32.xlu0 %v314, 120
    %v732 = vpop.permute.xlu0 %731
    %v733 = vsel %vm324, %v730, 0
    %v735 = vsel %vm324, %v732, 0
    %737 = vmatprep.subr.mxu0 0.0
    %738 = vmatpush1.xpose.msra.mxu0 %v735
    %739 = vmatprep.subr.mxu0 0.0
    %740 = vmatpush1.xpose.msra.mxu0 0.0
    %741 = vmatprep.subr.mxu0 0.0
    %742 = vmatpush1.xpose.msra.mxu0 0.0
    %743 = vmatprep.subr.mxu0 0.0
    %744 = vmatpush1.xpose.msra.mxu0 0.0
    %745 = vmatprep.subr.mxu0 0.0
    %746 = vmatpush1.xpose.msra.mxu0 0.0
    %747 = vmatprep.subr.mxu0 0.0
    %748 = vmatpush1.xpose.msra.mxu0 0.0
    %749 = vmatprep.subr.mxu0 0.0
    %750 = vmatpush1.xpose.msra.mxu0 0.0
    %751 = vmatprep.subr.mxu0 0.0
    %752 = vmatpush1.xpose.msra.mxu0 0.0
    %753 = vmatprep.subr.mxu0 0.0
    %754 = vmatpush1.xpose.msra.mxu0 0.0
    %755 = vmatprep.subr.mxu0 0.0
    %756 = vmatpush1.xpose.msra.mxu0 0.0
    %757 = vmatprep.subr.mxu0 0.0
    %758 = vmatpush1.xpose.msra.mxu0 0.0
    %759 = vmatprep.subr.mxu0 0.0
    %760 = vmatpush1.xpose.msra.mxu0 0.0
    %761 = vmatprep.subr.mxu0 0.0
    %762 = vmatpush1.xpose.msra.mxu0 0.0
    %763 = vmatprep.subr.mxu0 0.0
    %764 = vmatpush1.xpose.msra.mxu0 0.0
    %765 = vmatprep.subr.mxu0 0.0
    %766 = vmatpush1.xpose.msra.mxu0 0.0
    %767 = vmatprep.subr.mxu0 0.0
    %768 = vmatpush1.xpose.msra.mxu0 0.0
    %769 = vmatprep.subr.mxu0 0.0
    %770 = vmatpush1.xpose.msra.mxu0 0.0
    %771 = vmatprep.subr.mxu0 0.0
    %772 = vmatpush1.xpose.msra.mxu0 0.0
    %773 = vmatprep.subr.mxu0 0.0
    %774 = vmatpush1.xpose.msra.mxu0 0.0
    %775 = vmatprep.subr.mxu0 0.0
    %776 = vmatpush1.xpose.msra.mxu0 0.0
    %777 = vmatprep.subr.mxu0 0.0
    %778 = vmatpush1.xpose.msra.mxu0 0.0
    %779 = vmatprep.subr.mxu0 0.0
    %780 = vmatpush1.xpose.msra.mxu0 0.0
    %781 = vmatprep.subr.mxu0 0.0
    %782 = vmatpush1.xpose.msra.mxu0 0.0
    %783 = vmatprep.subr.mxu0 0.0
    %784 = vmatpush1.xpose.msra.mxu0 0.0
    %785 = vmatprep.subr.mxu0 0.0
    %786 = vmatpush1.xpose.msra.mxu0 0.0
    %787 = vmatprep.subr.mxu0 0.0
    %788 = vmatpush1.xpose.msra.mxu0 0.0
    %789 = vmatprep.subr.mxu0 0.0
    %790 = vmatpush1.xpose.msra.mxu0 0.0
    %791 = vmatprep.subr.mxu0 0.0
    %792 = vmatpush1.xpose.msra.mxu0 0.0
    %793 = vmatprep.subr.mxu0 0.0
    %794 = vmatpush1.xpose.msra.mxu0 0.0
    %795 = vmatprep.subr.mxu0 0.0
    %796 = vmatpush1.xpose.msra.mxu0 0.0
    %797 = vmatprep.subr.mxu0 0.0
    %798 = vmatpush1.xpose.msra.mxu0 0.0
    %799 = vmatprep.subr.mxu0 0.0
    %800 = vmatpush1.xpose.msra.mxu0 0.0
    %801 = vmatprep.mubr.f32.mxu0 0.0
    %802 = vmatmul.mubr.f32.gmra.mrb[0].mxu0 %v733
    %v803 = vpop.f32.mrb[0].mxu0
    %v804 = vadd.f32 0.0, %v803
    %v805 = vpop.f32.mrb[0].mxu0
    %806 = vdwg.mxu0
    %v807 = vsel %vm324, %v726, -inf
    %808 = vmax.xlane.f32.xlu0 %v807
    %v809 = vpop.xlane.xlu0 %808
    %v810 = vsel %vm324, %v804, -inf
    %811 = vmax.xlane.f32.xlu0 %v810
    %v812 = vpop.xlane.xlu0 %811
    %v813 = vsub.f32 %v726, %v809
    %v814 = vsub.f32 %v804, %v812
    %v815 = vmul.f32 %v813, 1.442695
    %v816 = vpow.pop %v815
    %v817 = vmul.f32 %v814, 1.442695
    %v818 = vpow.pop %v817
    %v819 = vsel %vm324, %v816, 0.0
    %820 = vadd.xlane.f32.xlu0 %v819
    %v821 = vpop.xlane.xlu0 %820
    %v822 = vsel %vm324, %v818, 0.0
    %823 = vadd.xlane.f32.xlu0 %v822
    %v824 = vpop.xlane.xlu0 %823
    %v825 = vrcp.pop %v821
    %v826 = vrcp.pop %v824
    %v827 = vmul.f32 %v816, %v825
    %v828 = vmul.f32 %v818, %v826
    %829 = vrot.lane.b32.xlu0 %v309, 88
    %v830 = vpop.permute.xlu0 %829
    %v833 = vsel %vm324, %v827, 0
    %835 = vmatprep.subr.mxu0 0.0
    %836 = vmatpush1.msra.mxu0 %v830
    %837 = vmatprep.subr.mxu0 0.0
    %838 = vmatpush1.msra.mxu0 0.0
    %839 = vmatprep.subr.mxu0 0.0
    %840 = vmatpush1.msra.mxu0 0.0
    %841 = vmatprep.subr.mxu0 0.0
    %842 = vmatpush1.msra.mxu0 0.0
    %843 = vmatprep.subr.mxu0 0.0
    %844 = vmatpush1.msra.mxu0 0.0
    %845 = vmatprep.subr.mxu0 0.0
    %846 = vmatpush1.msra.mxu0 0.0
    %847 = vmatprep.subr.mxu0 0.0
    %848 = vmatpush1.msra.mxu0 0.0
    %849 = vmatprep.subr.mxu0 0.0
    %850 = vmatpush1.msra.mxu0 0.0
    %851 = vmatprep.subr.mxu0 0.0
    %852 = vmatpush1.msra.mxu0 0.0
    %853 = vmatprep.subr.mxu0 0.0
    %854 = vmatpush1.msra.mxu0 0.0
    %855 = vmatprep.subr.mxu0 0.0
    %856 = vmatpush1.msra.mxu0 0.0
    %857 = vmatprep.subr.mxu0 0.0
    %858 = vmatpush1.msra.mxu0 0.0
    %859 = vmatprep.subr.mxu0 0.0
    %860 = vmatpush1.msra.mxu0 0.0
    %861 = vmatprep.subr.mxu0 0.0
    %862 = vmatpush1.msra.mxu0 0.0
    %863 = vmatprep.subr.mxu0 0.0
    %864 = vmatpush1.msra.mxu0 0.0
    %865 = vmatprep.subr.mxu0 0.0
    %866 = vmatpush1.msra.mxu0 0.0
    %867 = vmatprep.subr.mxu0 0.0
    %868 = vmatpush1.msra.mxu0 0.0
    %869 = vmatprep.subr.mxu0 0.0
    %870 = vmatpush1.msra.mxu0 0.0
    %871 = vmatprep.subr.mxu0 0.0
    %872 = vmatpush1.msra.mxu0 0.0
    %873 = vmatprep.subr.mxu0 0.0
    %874 = vmatpush1.msra.mxu0 0.0
    %875 = vmatprep.subr.mxu0 0.0
    %876 = vmatpush1.msra.mxu0 0.0
    %877 = vmatprep.subr.mxu0 0.0
    %878 = vmatpush1.msra.mxu0 0.0
    %879 = vmatprep.subr.mxu0 0.0
    %880 = vmatpush1.msra.mxu0 0.0
    %881 = vmatprep.subr.mxu0 0.0
    %882 = vmatpush1.msra.mxu0 0.0
    %883 = vmatprep.subr.mxu0 0.0
    %884 = vmatpush1.msra.mxu0 0.0
    %885 = vmatprep.subr.mxu0 0.0
    %886 = vmatpush1.msra.mxu0 0.0
    %887 = vmatprep.subr.mxu0 0.0
    %888 = vmatpush1.msra.mxu0 0.0
    %889 = vmatprep.subr.mxu0 0.0
    %890 = vmatpush1.msra.mxu0 0.0
    %891 = vmatprep.subr.mxu0 0.0
    %892 = vmatpush1.msra.mxu0 0.0
    %893 = vmatprep.subr.mxu0 0.0
    %894 = vmatpush1.msra.mxu0 0.0
    %895 = vmatprep.subr.mxu0 0.0
    %896 = vmatpush1.msra.mxu0 0.0
    %897 = vmatprep.subr.mxu0 0.0
    %898 = vmatpush1.msra.mxu0 0.0
    %899 = vmatprep.mubr.f32.mxu0 0.0
    %900 = vmatmul.mubr.f32.gmra.mrb[0].mxu0 %v833
    %v901 = vpop.f32.mrb[0].mxu0
    %v902 = vadd.f32 0.0, %v901
    %v903 = vpop.f32.mrb[0].mxu0
    %904 = vdwg.mxu0
    %905 = vrot.lane.b32.xlu0 %v314, 88
    %v906 = vpop.permute.xlu0 %905
    %v909 = vsel %vm324, %v828, 0
    %911 = vmatprep.subr.mxu0 0.0
    %912 = vmatpush1.msra.mxu0 %v906
    %913 = vmatprep.subr.mxu0 0.0
    %914 = vmatpush1.msra.mxu0 0.0
    %915 = vmatprep.subr.mxu0 0.0
    %916 = vmatpush1.msra.mxu0 0.0
    %917 = vmatprep.subr.mxu0 0.0
    %918 = vmatpush1.msra.mxu0 0.0
    %919 = vmatprep.subr.mxu0 0.0
    %920 = vmatpush1.msra.mxu0 0.0
    %921 = vmatprep.subr.mxu0 0.0
    %922 = vmatpush1.msra.mxu0 0.0
    %923 = vmatprep.subr.mxu0 0.0
    %924 = vmatpush1.msra.mxu0 0.0
    %925 = vmatprep.subr.mxu0 0.0
    %926 = vmatpush1.msra.mxu0 0.0
    %927 = vmatprep.subr.mxu0 0.0
    %928 = vmatpush1.msra.mxu0 0.0
    %929 = vmatprep.subr.mxu0 0.0
    %930 = vmatpush1.msra.mxu0 0.0
    %931 = vmatprep.subr.mxu0 0.0
    %932 = vmatpush1.msra.mxu0 0.0
    %933 = vmatprep.subr.mxu0 0.0
    %934 = vmatpush1.msra.mxu0 0.0
    %935 = vmatprep.subr.mxu0 0.0
    %936 = vmatpush1.msra.mxu0 0.0
    %937 = vmatprep.subr.mxu0 0.0
    %938 = vmatpush1.msra.mxu0 0.0
    %939 = vmatprep.subr.mxu0 0.0
    %940 = vmatpush1.msra.mxu0 0.0
    %941 = vmatprep.subr.mxu0 0.0
    %942 = vmatpush1.msra.mxu0 0.0
    %943 = vmatprep.subr.mxu0 0.0
    %944 = vmatpush1.msra.mxu0 0.0
    %945 = vmatprep.subr.mxu0 0.0
    %946 = vmatpush1.msra.mxu0 0.0
    %947 = vmatprep.subr.mxu0 0.0
    %948 = vmatpush1.msra.mxu0 0.0
    %949 = vmatprep.subr.mxu0 0.0
    %950 = vmatpush1.msra.mxu0 0.0
    %951 = vmatprep.subr.mxu0 0.0
    %952 = vmatpush1.msra.mxu0 0.0
    %953 = vmatprep.subr.mxu0 0.0
    %954 = vmatpush1.msra.mxu0 0.0
    %955 = vmatprep.subr.mxu0 0.0
    %956 = vmatpush1.msra.mxu0 0.0
    %957 = vmatprep.subr.mxu0 0.0
    %958 = vmatpush1.msra.mxu0 0.0
    %959 = vmatprep.subr.mxu0 0.0
    %960 = vmatpush1.msra.mxu0 0.0
    %961 = vmatprep.subr.mxu0 0.0
    %962 = vmatpush1.msra.mxu0 0.0
    %963 = vmatprep.subr.mxu0 0.0
    %964 = vmatpush1.msra.mxu0 0.0
    %965 = vmatprep.subr.mxu0 0.0
    %966 = vmatpush1.msra.mxu0 0.0
    %967 = vmatprep.subr.mxu0 0.0
    %968 = vmatpush1.msra.mxu0 0.0
    %969 = vmatprep.subr.mxu0 0.0
    %970 = vmatpush1.msra.mxu0 0.0
    %971 = vmatprep.subr.mxu0 0.0
    %972 = vmatpush1.msra.mxu0 0.0
    %973 = vmatprep.subr.mxu0 0.0
    %974 = vmatpush1.msra.mxu0 0.0
    %975 = vmatprep.mubr.f32.mxu0 0.0
    %976 = vmatmul.mubr.f32.gmra.mrb[0].mxu0 %v909
    %v977 = vpop.f32.mrb[0].mxu0
    %v978 = vadd.f32 0.0, %v977
    %v979 = vpop.f32.mrb[0].mxu0
    %980 = vdwg.mxu0
    %v982 = vsel %vm324, %v902, 0
    %v985 = vsel %vm324, %v978, 0
    %987 = vmatprep.subr.mxu0 0.0
    %988 = vmatpush1.msra.mxu0 %v318
    %989 = vmatprep.subr.mxu0 0.0
    %990 = vmatpush1.msra.mxu0 0.0
    %991 = vmatprep.subr.mxu0 0.0
    %992 = vmatpush1.msra.mxu0 0.0
    %993 = vmatprep.subr.mxu0 0.0
    %994 = vmatpush1.msra.mxu0 0.0
    %995 = vmatprep.subr.mxu0 0.0
    %996 = vmatpush1.msra.mxu0 0.0
    %997 = vmatprep.subr.mxu0 0.0
    %998 = vmatpush1.msra.mxu0 0.0
    %999 = vmatprep.subr.mxu0 0.0
    %1000 = vmatpush1.msra.mxu0 0.0
    %1001 = vmatprep.subr.mxu0 0.0
    %1002 = vmatpush1.msra.mxu0 0.0
    %1003 = vmatprep.subr.mxu0 0.0
    %1004 = vmatpush1.msra.mxu0 0.0
    %1005 = vmatprep.subr.mxu0 0.0
    %1006 = vmatpush1.msra.mxu0 0.0
    %1007 = vmatprep.subr.mxu0 0.0
    %1008 = vmatpush1.msra.mxu0 0.0
    %1009 = vmatprep.subr.mxu0 0.0
    %1010 = vmatpush1.msra.mxu0 0.0
    %1011 = vmatprep.subr.mxu0 0.0
    %1012 = vmatpush1.msra.mxu0 0.0
    %1013 = vmatprep.subr.mxu0 0.0
    %1014 = vmatpush1.msra.mxu0 0.0
    %1015 = vmatprep.subr.mxu0 0.0
    %1016 = vmatpush1.msra.mxu0 0.0
    %1017 = vmatprep.subr.mxu0 0.0
    %1018 = vmatpush1.msra.mxu0 0.0
    %1019 = vmatprep.subr.mxu0 0.0
    %1020 = vmatpush1.msra.mxu0 0.0
    %1021 = vmatprep.subr.mxu0 0.0
    %1022 = vmatpush1.msra.mxu0 0.0
    %1023 = vmatprep.subr.mxu0 0.0
    %1024 = vmatpush1.msra.mxu0 0.0
    %1025 = vmatprep.subr.mxu0 0.0
    %1026 = vmatpush1.msra.mxu0 0.0
    %1027 = vmatprep.subr.mxu0 0.0
    %1028 = vmatpush1.msra.mxu0 0.0
    %1029 = vmatprep.subr.mxu0 0.0
    %1030 = vmatpush1.msra.mxu0 0.0
    %1031 = vmatprep.subr.mxu0 0.0
    %1032 = vmatpush1.msra.mxu0 0.0
    %1033 = vmatprep.subr.mxu0 0.0
    %1034 = vmatpush1.msra.mxu0 0.0
    %1035 = vmatprep.subr.mxu0 0.0
    %1036 = vmatpush1.msra.mxu0 0.0
    %1037 = vmatprep.subr.mxu0 0.0
    %1038 = vmatpush1.msra.mxu0 0.0
    %1039 = vmatprep.subr.mxu0 0.0
    %1040 = vmatpush1.msra.mxu0 0.0
    %1041 = vmatprep.subr.mxu0 0.0
    %1042 = vmatpush1.msra.mxu0 0.0
    %1043 = vmatprep.subr.mxu0 0.0
    %1044 = vmatpush1.msra.mxu0 0.0
    %1045 = vmatprep.subr.mxu0 0.0
    %1046 = vmatpush1.msra.mxu0 0.0
    %1047 = vmatprep.subr.mxu0 0.0
    %1048 = vmatpush1.msra.mxu0 0.0
    %1049 = vmatprep.subr.mxu0 0.0
    %1050 = vmatpush1.msra.mxu0 0.0
    %1051 = vmatprep.mubr.f32.mxu0 0.0
    %1052 = vmatmul.mubr.f32.gmra.mrb[0].mxu0 %v982
    %v1053 = vpop.f32.mrb[0].mxu0
    %v1054 = vadd.f32 0.0, %v1053
    %v1055 = vpop.f32.mrb[0].mxu0
    %1056 = vmatprep.mubr.f32.mxu0 0.0
    %1057 = vmatmul.mubr.f32.gmra.mrb[0].mxu0 %v985
    %v1058 = vpop.f32.mrb[0].mxu0
    %v1059 = vadd.f32 0.0, %v1058
    %v1060 = vpop.f32.mrb[0].mxu0
    %1061 = vdwg.mxu0
    %v1063 = vsel %vm324, %v572, 0
    %v1066 = vsel %vm324, %v648, 0
    %1068 = vmatprep.subr.mxu0 0.0
    %1069 = vmatpush1.msra.mxu0 %v317
    %1070 = vmatprep.subr.mxu0 0.0
    %1071 = vmatpush1.msra.mxu0 0.0
    %1072 = vmatprep.subr.mxu0 0.0
    %1073 = vmatpush1.msra.mxu0 0.0
    %1074 = vmatprep.subr.mxu0 0.0
    %1075 = vmatpush1.msra.mxu0 0.0
    %1076 = vmatprep.subr.mxu0 0.0
    %1077 = vmatpush1.msra.mxu0 0.0
    %1078 = vmatprep.subr.mxu0 0.0
    %1079 = vmatpush1.msra.mxu0 0.0
    %1080 = vmatprep.subr.mxu0 0.0
    %1081 = vmatpush1.msra.mxu0 0.0
    %1082 = vmatprep.subr.mxu0 0.0
    %1083 = vmatpush1.msra.mxu0 0.0
    %1084 = vmatprep.subr.mxu0 0.0
    %1085 = vmatpush1.msra.mxu0 0.0
    %1086 = vmatprep.subr.mxu0 0.0
    %1087 = vmatpush1.msra.mxu0 0.0
    %1088 = vmatprep.subr.mxu0 0.0
    %1089 = vmatpush1.msra.mxu0 0.0
    %1090 = vmatprep.subr.mxu0 0.0
    %1091 = vmatpush1.msra.mxu0 0.0
    %1092 = vmatprep.subr.mxu0 0.0
    %1093 = vmatpush1.msra.mxu0 0.0
    %1094 = vmatprep.subr.mxu0 0.0
    %1095 = vmatpush1.msra.mxu0 0.0
    %1096 = vmatprep.subr.mxu0 0.0
    %1097 = vmatpush1.msra.mxu0 0.0
    %1098 = vmatprep.subr.mxu0 0.0
    %1099 = vmatpush1.msra.mxu0 0.0
    %1100 = vmatprep.subr.mxu0 0.0
    %1101 = vmatpush1.msra.mxu0 0.0
    %1102 = vmatprep.subr.mxu0 0.0
    %1103 = vmatpush1.msra.mxu0 0.0
    %1104 = vmatprep.subr.mxu0 0.0
    %1105 = vmatpush1.msra.mxu0 0.0
    %1106 = vmatprep.subr.mxu0 0.0
    %1107 = vmatpush1.msra.mxu0 0.0
    %1108 = vmatprep.subr.mxu0 0.0
    %1109 = vmatpush1.msra.mxu0 0.0
    %1110 = vmatprep.subr.mxu0 0.0
    %1111 = vmatpush1.msra.mxu0 0.0
    %1112 = vmatprep.subr.mxu0 0.0
    %1113 = vmatpush1.msra.mxu0 0.0
    %1114 = vmatprep.subr.mxu0 0.0
    %1115 = vmatpush1.msra.mxu0 0.0
    %1116 = vmatprep.subr.mxu0 0.0
    %1117 = vmatpush1.msra.mxu0 0.0
    %1118 = vmatprep.subr.mxu0 0.0
    %1119 = vmatpush1.msra.mxu0 0.0
    %1120 = vmatprep.subr.mxu0 0.0
    %1121 = vmatpush1.msra.mxu0 0.0
    %1122 = vmatprep.subr.mxu0 0.0
    %1123 = vmatpush1.msra.mxu0 0.0
    %1124 = vmatprep.subr.mxu0 0.0
    %1125 = vmatpush1.msra.mxu0 0.0
    %1126 = vmatprep.subr.mxu0 0.0
    %1127 = vmatpush1.msra.mxu0 0.0
    %1128 = vmatprep.subr.mxu0 0.0
    %1129 = vmatpush1.msra.mxu0 0.0
    %1130 = vmatprep.subr.mxu0 0.0
    %1131 = vmatpush1.msra.mxu0 0.0
    %1132 = vmatprep.mubr.f32.mxu0 0.0
    %1133 = vmatmul.mubr.f32.gmra.mrb[0].mxu0 %v1063
    %v1134 = vpop.f32.mrb[0].mxu0
    %v1135 = vadd.f32 %v1054, %v1134
    %v1136 = vpop.f32.mrb[0].mxu0
    %1137 = vmatprep.mubr.f32.mxu0 0.0
    %1138 = vmatmul.mubr.f32.gmra.mrb[0].mxu0 %v1066
    %v1139 = vpop.f32.mrb[0].mxu0
    %v1140 = vadd.f32 %v1059, %v1139
    %v1141 = vpop.f32.mrb[0].mxu0
    %1142 = vdwg.mxu0
    %1143 = vrot.lane.b32.xlu0 %v322, 112
    %v1144 = vpop.permute.xlu0 %1143
    %1145 = vrot.lane.b32.xlu0 %v309, 112
    %v1146 = vpop.permute.xlu0 %1145
    %v1147 = vsel %vm324, %v1144, 0
    %v1149 = vsel %vm324, %v1146, 0
    %1151 = vmatprep.subr.mxu0 0.0
    %1152 = vmatpush1.xpose.msra.mxu0 %v1149
    %1153 = vmatprep.subr.mxu0 0.0
    %1154 = vmatpush1.xpose.msra.mxu0 0.0
    %1155 = vmatprep.subr.mxu0 0.0
    %1156 = vmatpush1.xpose.msra.mxu0 0.0
    %1157 = vmatprep.subr.mxu0 0.0
    %1158 = vmatpush1.xpose.msra.mxu0 0.0
    %1159 = vmatprep.subr.mxu0 0.0
    %1160 = vmatpush1.xpose.msra.mxu0 0.0
    %1161 = vmatprep.subr.mxu0 0.0
    %1162 = vmatpush1.xpose.msra.mxu0 0.0
    %1163 = vmatprep.subr.mxu0 0.0
    %1164 = vmatpush1.xpose.msra.mxu0 0.0
    %1165 = vmatprep.subr.mxu0 0.0
    %1166 = vmatpush1.xpose.msra.mxu0 0.0
    %1167 = vmatprep.subr.mxu0 0.0
    %1168 = vmatpush1.xpose.msra.mxu0 0.0
    %1169 = vmatprep.subr.mxu0 0.0
    %1170 = vmatpush1.xpose.msra.mxu0 0.0
    %1171 = vmatprep.subr.mxu0 0.0
    %1172 = vmatpush1.xpose.msra.mxu0 0.0
    %1173 = vmatprep.subr.mxu0 0.0
    %1174 = vmatpush1.xpose.msra.mxu0 0.0
    %1175 = vmatprep.subr.mxu0 0.0
    %1176 = vmatpush1.xpose.msra.mxu0 0.0
    %1177 = vmatprep.subr.mxu0 0.0
    %1178 = vmatpush1.xpose.msra.mxu0 0.0
    %1179 = vmatprep.subr.mxu0 0.0
    %1180 = vmatpush1.xpose.msra.mxu0 0.0
    %1181 = vmatprep.subr.mxu0 0.0
    %1182 = vmatpush1.xpose.msra.mxu0 0.0
    %1183 = vmatprep.subr.mxu0 0.0
    %1184 = vmatpush1.xpose.msra.mxu0 0.0
    %1185 = vmatprep.subr.mxu0 0.0
    %1186 = vmatpush1.xpose.msra.mxu0 0.0
    %1187 = vmatprep.subr.mxu0 0.0
    %1188 = vmatpush1.xpose.msra.mxu0 0.0
    %1189 = vmatprep.subr.mxu0 0.0
    %1190 = vmatpush1.xpose.msra.mxu0 0.0
    %1191 = vmatprep.subr.mxu0 0.0
    %1192 = vmatpush1.xpose.msra.mxu0 0.0
    %1193 = vmatprep.subr.mxu0 0.0
    %1194 = vmatpush1.xpose.msra.mxu0 0.0
    %1195 = vmatprep.subr.mxu0 0.0
    %1196 = vmatpush1.xpose.msra.mxu0 0.0
    %1197 = vmatprep.subr.mxu0 0.0
    %1198 = vmatpush1.xpose.msra.mxu0 0.0
    %1199 = vmatprep.subr.mxu0 0.0
    %1200 = vmatpush1.xpose.msra.mxu0 0.0
    %1201 = vmatprep.subr.mxu0 0.0
    %1202 = vmatpush1.xpose.msra.mxu0 0.0
    %1203 = vmatprep.subr.mxu0 0.0
    %1204 = vmatpush1.xpose.msra.mxu0 0.0
    %1205 = vmatprep.subr.mxu0 0.0
    %1206 = vmatpush1.xpose.msra.mxu0 0.0
    %1207 = vmatprep.subr.mxu0 0.0
    %1208 = vmatpush1.xpose.msra.mxu0 0.0
    %1209 = vmatprep.subr.mxu0 0.0
    %1210 = vmatpush1.xpose.msra.mxu0 0.0
    %1211 = vmatprep.subr.mxu0 0.0
    %1212 = vmatpush1.xpose.msra.mxu0 0.0
    %1213 = vmatprep.subr.mxu0 0.0
    %1214 = vmatpush1.xpose.msra.mxu0 0.0
    %1215 = vmatprep.mubr.f32.mxu0 0.0
    %1216 = vmatmul.mubr.f32.gmra.mrb[0].mxu0 %v1147
    %v1217 = vpop.f32.mrb[0].mxu0
    %v1218 = vadd.f32 0.0, %v1217
    %v1219 = vpop.f32.mrb[0].mxu0
    %1220 = vdwg.mxu0
    %1221 = vrot.lane.b32.xlu0 %v323, 112
    %v1222 = vpop.permute.xlu0 %1221
    %1223 = vrot.lane.b32.xlu0 %v314, 112
    %v1224 = vpop.permute.xlu0 %1223
    %v1225 = vsel %vm324, %v1222, 0
    %v1227 = vsel %vm324, %v1224, 0
    %1229 = vmatprep.subr.mxu0 0.0
    %1230 = vmatpush1.xpose.msra.mxu0 %v1227
    %1231 = vmatprep.subr.mxu0 0.0
    %1232 = vmatpush1.xpose.msra.mxu0 0.0
    %1233 = vmatprep.subr.mxu0 0.0
    %1234 = vmatpush1.xpose.msra.mxu0 0.0
    %1235 = vmatprep.subr.mxu0 0.0
    %1236 = vmatpush1.xpose.msra.mxu0 0.0
    %1237 = vmatprep.subr.mxu0 0.0
    %1238 = vmatpush1.xpose.msra.mxu0 0.0
    %1239 = vmatprep.subr.mxu0 0.0
    %1240 = vmatpush1.xpose.msra.mxu0 0.0
    %1241 = vmatprep.subr.mxu0 0.0
    %1242 = vmatpush1.xpose.msra.mxu0 0.0
    %1243 = vmatprep.subr.mxu0 0.0
    %1244 = vmatpush1.xpose.msra.mxu0 0.0
    %1245 = vmatprep.subr.mxu0 0.0
    %1246 = vmatpush1.xpose.msra.mxu0 0.0
    %1247 = vmatprep.subr.mxu0 0.0
    %1248 = vmatpush1.xpose.msra.mxu0 0.0
    %1249 = vmatprep.subr.mxu0 0.0
    %1250 = vmatpush1.xpose.msra.mxu0 0.0
    %1251 = vmatprep.subr.mxu0 0.0
    %1252 = vmatpush1.xpose.msra.mxu0 0.0
    %1253 = vmatprep.subr.mxu0 0.0
    %1254 = vmatpush1.xpose.msra.mxu0 0.0
    %1255 = vmatprep.subr.mxu0 0.0
    %1256 = vmatpush1.xpose.msra.mxu0 0.0
    %1257 = vmatprep.subr.mxu0 0.0
    %1258 = vmatpush1.xpose.msra.mxu0 0.0
    %1259 = vmatprep.subr.mxu0 0.0
    %1260 = vmatpush1.xpose.msra.mxu0 0.0
    %1261 = vmatprep.subr.mxu0 0.0
    %1262 = vmatpush1.xpose.msra.mxu0 0.0
    %1263 = vmatprep.subr.mxu0 0.0
    %1264 = vmatpush1.xpose.msra.mxu0 0.0
    %1265 = vmatprep.subr.mxu0 0.0
    %1266 = vmatpush1.xpose.msra.mxu0 0.0
    %1267 = vmatprep.subr.mxu0 0.0
    %1268 = vmatpush1.xpose.msra.mxu0 0.0
    %1269 = vmatprep.subr.mxu0 0.0
    %1270 = vmatpush1.xpose.msra.mxu0 0.0
    %1271 = vmatprep.subr.mxu0 0.0
    %1272 = vmatpush1.xpose.msra.mxu0 0.0
    %1273 = vmatprep.subr.mxu0 0.0
    %1274 = vmatpush1.xpose.msra.mxu0 0.0
    %1275 = vmatprep.subr.mxu0 0.0
    %1276 = vmatpush1.xpose.msra.mxu0 0.0
    %1277 = vmatprep.subr.mxu0 0.0
    %1278 = vmatpush1.xpose.msra.mxu0 0.0
    %1279 = vmatprep.subr.mxu0 0.0
    %1280 = vmatpush1.xpose.msra.mxu0 0.0
    %1281 = vmatprep.subr.mxu0 0.0
    %1282 = vmatpush1.xpose.msra.mxu0 0.0
    %1283 = vmatprep.subr.mxu0 0.0
    %1284 = vmatpush1.xpose.msra.mxu0 0.0
    %1285 = vmatprep.subr.mxu0 0.0
    %1286 = vmatpush1.xpose.msra.mxu0 0.0
    %1287 = vmatprep.subr.mxu0 0.0
    %1288 = vmatpush1.xpose.msra.mxu0 0.0
    %1289 = vmatprep.subr.mxu0 0.0
    %1290 = vmatpush1.xpose.msra.mxu0 0.0
    %1291 = vmatprep.subr.mxu0 0.0
    %1292 = vmatpush1.xpose.msra.mxu0 0.0
    %1293 = vmatprep.mubr.f32.mxu0 0.0
    %1294 = vmatmul.mubr.f32.gmra.mrb[0].mxu0 %v1225
    %v1295 = vpop.f32.mrb[0].mxu0
    %v1296 = vadd.f32 0.0, %v1295
    %v1297 = vpop.f32.mrb[0].mxu0
    %1298 = vdwg.mxu0
    %v1299 = vsel %vm324, %v1218, -inf
    %1300 = vmax.xlane.f32.xlu0 %v1299
    %v1301 = vpop.xlane.xlu0 %1300
    %v1302 = vsel %vm324, %v1296, -inf
    %1303 = vmax.xlane.f32.xlu0 %v1302
    %v1304 = vpop.xlane.xlu0 %1303
    %v1305 = vsub.f32 %v1218, %v1301
    %v1306 = vsub.f32 %v1296, %v1304
    %v1307 = vmul.f32 %v1305, 1.442695
    %v1308 = vpow.pop %v1307
    %v1309 = vmul.f32 %v1306, 1.442695
    %v1310 = vpow.pop %v1309
    %v1311 = vsel %vm324, %v1308, 0.0
    %1312 = vadd.xlane.f32.xlu0 %v1311
    %v1313 = vpop.xlane.xlu0 %1312
    %v1314 = vsel %vm324, %v1310, 0.0
    %1315 = vadd.xlane.f32.xlu0 %v1314
    %v1316 = vpop.xlane.xlu0 %1315
    %v1317 = vrcp.pop %v1313
    %v1318 = vrcp.pop %v1316
    %v1319 = vmul.f32 %v1308, %v1317
    %v1320 = vmul.f32 %v1310, %v1318
    %1321 = vrot.lane.b32.xlu0 %v309, 80
    %v1322 = vpop.permute.xlu0 %1321
    %v1325 = vsel %vm324, %v1319, 0
    %1327 = vmatprep.subr.mxu0 0.0
    %1328 = vmatpush1.msra.mxu0 %v1322
    %1329 = vmatprep.subr.mxu0 0.0
    %1330 = vmatpush1.msra.mxu0 0.0
    %1331 = vmatprep.subr.mxu0 0.0
    %1332 = vmatpush1.msra.mxu0 0.0
    %1333 = vmatprep.subr.mxu0 0.0
    %1334 = vmatpush1.msra.mxu0 0.0
    %1335 = vmatprep.subr.mxu0 0.0
    %1336 = vmatpush1.msra.mxu0 0.0
    %1337 = vmatprep.subr.mxu0 0.0
    %1338 = vmatpush1.msra.mxu0 0.0
    %1339 = vmatprep.subr.mxu0 0.0
    %1340 = vmatpush1.msra.mxu0 0.0
    %1341 = vmatprep.subr.mxu0 0.0
    %1342 = vmatpush1.msra.mxu0 0.0
    %1343 = vmatprep.subr.mxu0 0.0
    %1344 = vmatpush1.msra.mxu0 0.0
    %1345 = vmatprep.subr.mxu0 0.0
    %1346 = vmatpush1.msra.mxu0 0.0
    %1347 = vmatprep.subr.mxu0 0.0
    %1348 = vmatpush1.msra.mxu0 0.0
    %1349 = vmatprep.subr.mxu0 0.0
    %1350 = vmatpush1.msra.mxu0 0.0
    %1351 = vmatprep.subr.mxu0 0.0
    %1352 = vmatpush1.msra.mxu0 0.0
    %1353 = vmatprep.subr.mxu0 0.0
    %1354 = vmatpush1.msra.mxu0 0.0
    %1355 = vmatprep.subr.mxu0 0.0
    %1356 = vmatpush1.msra.mxu0 0.0
    %1357 = vmatprep.subr.mxu0 0.0
    %1358 = vmatpush1.msra.mxu0 0.0
    %1359 = vmatprep.subr.mxu0 0.0
    %1360 = vmatpush1.msra.mxu0 0.0
    %1361 = vmatprep.subr.mxu0 0.0
    %1362 = vmatpush1.msra.mxu0 0.0
    %1363 = vmatprep.subr.mxu0 0.0
    %1364 = vmatpush1.msra.mxu0 0.0
    %1365 = vmatprep.subr.mxu0 0.0
    %1366 = vmatpush1.msra.mxu0 0.0
    %1367 = vmatprep.subr.mxu0 0.0
    %1368 = vmatpush1.msra.mxu0 0.0
    %1369 = vmatprep.subr.mxu0 0.0
    %1370 = vmatpush1.msra.mxu0 0.0
    %1371 = vmatprep.subr.mxu0 0.0
    %1372 = vmatpush1.msra.mxu0 0.0
    %1373 = vmatprep.subr.mxu0 0.0
    %1374 = vmatpush1.msra.mxu0 0.0
    %1375 = vmatprep.subr.mxu0 0.0
    %1376 = vmatpush1.msra.mxu0 0.0
    %1377 = vmatprep.subr.mxu0 0.0
    %1378 = vmatpush1.msra.mxu0 0.0
    %1379 = vmatprep.subr.mxu0 0.0
    %1380 = vmatpush1.msra.mxu0 0.0
    %1381 = vmatprep.subr.mxu0 0.0
    %1382 = vmatpush1.msra.mxu0 0.0
    %1383 = vmatprep.subr.mxu0 0.0
    %1384 = vmatpush1.msra.mxu0 0.0
    %1385 = vmatprep.subr.mxu0 0.0
    %1386 = vmatpush1.msra.mxu0 0.0
    %1387 = vmatprep.subr.mxu0 0.0
    %1388 = vmatpush1.msra.mxu0 0.0
    %1389 = vmatprep.subr.mxu0 0.0
    %1390 = vmatpush1.msra.mxu0 0.0
    %1391 = vmatprep.mubr.f32.mxu0 0.0
    %1392 = vmatmul.mubr.f32.gmra.mrb[0].mxu0 %v1325
    %v1393 = vpop.f32.mrb[0].mxu0
    %v1394 = vadd.f32 0.0, %v1393
    %v1395 = vpop.f32.mrb[0].mxu0
    %1396 = vdwg.mxu0
    %1397 = vrot.lane.b32.xlu0 %v314, 80
    %v1398 = vpop.permute.xlu0 %1397
    %v1401 = vsel %vm324, %v1320, 0
    %1403 = vmatprep.subr.mxu0 0.0
    %1404 = vmatpush1.msra.mxu0 %v1398
    %1405 = vmatprep.subr.mxu0 0.0
    %1406 = vmatpush1.msra.mxu0 0.0
    %1407 = vmatprep.subr.mxu0 0.0
    %1408 = vmatpush1.msra.mxu0 0.0
    %1409 = vmatprep.subr.mxu0 0.0
    %1410 = vmatpush1.msra.mxu0 0.0
    %1411 = vmatprep.subr.mxu0 0.0
    %1412 = vmatpush1.msra.mxu0 0.0
    %1413 = vmatprep.subr.mxu0 0.0
    %1414 = vmatpush1.msra.mxu0 0.0
    %1415 = vmatprep.subr.mxu0 0.0
    %1416 = vmatpush1.msra.mxu0 0.0
    %1417 = vmatprep.subr.mxu0 0.0
    %1418 = vmatpush1.msra.mxu0 0.0
    %1419 = vmatprep.subr.mxu0 0.0
    %1420 = vmatpush1.msra.mxu0 0.0
    %1421 = vmatprep.subr.mxu0 0.0
    %1422 = vmatpush1.msra.mxu0 0.0
    %1423 = vmatprep.subr.mxu0 0.0
    %1424 = vmatpush1.msra.mxu0 0.0
    %1425 = vmatprep.subr.mxu0 0.0
    %1426 = vmatpush1.msra.mxu0 0.0
    %1427 = vmatprep.subr.mxu0 0.0
    %1428 = vmatpush1.msra.mxu0 0.0
    %1429 = vmatprep.subr.mxu0 0.0
    %1430 = vmatpush1.msra.mxu0 0.0
    %1431 = vmatprep.subr.mxu0 0.0
    %1432 = vmatpush1.msra.mxu0 0.0
    %1433 = vmatprep.subr.mxu0 0.0
    %1434 = vmatpush1.msra.mxu0 0.0
    %1435 = vmatprep.subr.mxu0 0.0
    %1436 = vmatpush1.msra.mxu0 0.0
    %1437 = vmatprep.subr.mxu0 0.0
    %1438 = vmatpush1.msra.mxu0 0.0
    %1439 = vmatprep.subr.mxu0 0.0
    %1440 = vmatpush1.msra.mxu0 0.0
    %1441 = vmatprep.subr.mxu0 0.0
    %1442 = vmatpush1.msra.mxu0 0.0
    %1443 = vmatprep.subr.mxu0 0.0
    %1444 = vmatpush1.msra.mxu0 0.0
    %1445 = vmatprep.subr.mxu0 0.0
    %1446 = vmatpush1.msra.mxu0 0.0
    %1447 = vmatprep.subr.mxu0 0.0
    %1448 = vmatpush1.msra.mxu0 0.0
    %1449 = vmatprep.subr.mxu0 0.0
    %1450 = vmatpush1.msra.mxu0 0.0
    %1451 = vmatprep.subr.mxu0 0.0
    %1452 = vmatpush1.msra.mxu0 0.0
    %1453 = vmatprep.subr.mxu0 0.0
    %1454 = vmatpush1.msra.mxu0 0.0
    %1455 = vmatprep.subr.mxu0 0.0
    %1456 = vmatpush1.msra.mxu0 0.0
    %1457 = vmatprep.subr.mxu0 0.0
    %1458 = vmatpush1.msra.mxu0 0.0
    %1459 = vmatprep.subr.mxu0 0.0
    %1460 = vmatpush1.msra.mxu0 0.0
    %1461 = vmatprep.subr.mxu0 0.0
    %1462 = vmatpush1.msra.mxu0 0.0
    %1463 = vmatprep.subr.mxu0 0.0
    %1464 = vmatpush1.msra.mxu0 0.0
    %1465 = vmatprep.subr.mxu0 0.0
    %1466 = vmatpush1.msra.mxu0 0.0
    %1467 = vmatprep.mubr.f32.mxu0 0.0
    %1468 = vmatmul.mubr.f32.gmra.mrb[0].mxu0 %v1401
    %v1469 = vpop.f32.mrb[0].mxu0
    %v1470 = vadd.f32 0.0, %v1469
    %v1471 = vpop.f32.mrb[0].mxu0
    %1472 = vdwg.mxu0
    %v1474 = vsel %vm324, %v1394, 0
    %v1477 = vsel %vm324, %v1470, 0
    %1479 = vmatprep.subr.mxu0 0.0
    %1480 = vmatpush1.msra.mxu0 %v319
    %1481 = vmatprep.subr.mxu0 0.0
    %1482 = vmatpush1.msra.mxu0 0.0
    %1483 = vmatprep.subr.mxu0 0.0
    %1484 = vmatpush1.msra.mxu0 0.0
    %1485 = vmatprep.subr.mxu0 0.0
    %1486 = vmatpush1.msra.mxu0 0.0
    %1487 = vmatprep.subr.mxu0 0.0
    %1488 = vmatpush1.msra.mxu0 0.0
    %1489 = vmatprep.subr.mxu0 0.0
    %1490 = vmatpush1.msra.mxu0 0.0
    %1491 = vmatprep.subr.mxu0 0.0
    %1492 = vmatpush1.msra.mxu0 0.0
    %1493 = vmatprep.subr.mxu0 0.0
    %1494 = vmatpush1.msra.mxu0 0.0
    %1495 = vmatprep.subr.mxu0 0.0
    %1496 = vmatpush1.msra.mxu0 0.0
    %1497 = vmatprep.subr.mxu0 0.0
    %1498 = vmatpush1.msra.mxu0 0.0
    %1499 = vmatprep.subr.mxu0 0.0
    %1500 = vmatpush1.msra.mxu0 0.0
    %1501 = vmatprep.subr.mxu0 0.0
    %1502 = vmatpush1.msra.mxu0 0.0
    %1503 = vmatprep.subr.mxu0 0.0
    %1504 = vmatpush1.msra.mxu0 0.0
    %1505 = vmatprep.subr.mxu0 0.0
    %1506 = vmatpush1.msra.mxu0 0.0
    %1507 = vmatprep.subr.mxu0 0.0
    %1508 = vmatpush1.msra.mxu0 0.0
    %1509 = vmatprep.subr.mxu0 0.0
    %1510 = vmatpush1.msra.mxu0 0.0
    %1511 = vmatprep.subr.mxu0 0.0
    %1512 = vmatpush1.msra.mxu0 0.0
    %1513 = vmatprep.subr.mxu0 0.0
    %1514 = vmatpush1.msra.mxu0 0.0
    %1515 = vmatprep.subr.mxu0 0.0
    %1516 = vmatpush1.msra.mxu0 0.0
    %1517 = vmatprep.subr.mxu0 0.0
    %1518 = vmatpush1.msra.mxu0 0.0
    %1519 = vmatprep.subr.mxu0 0.0
    %1520 = vmatpush1.msra.mxu0 0.0
    %1521 = vmatprep.subr.mxu0 0.0
    %1522 = vmatpush1.msra.mxu0 0.0
    %1523 = vmatprep.subr.mxu0 0.0
    %1524 = vmatpush1.msra.mxu0 0.0
    %1525 = vmatprep.subr.mxu0 0.0
    %1526 = vmatpush1.msra.mxu0 0.0
    %1527 = vmatprep.subr.mxu0 0.0
    %1528 = vmatpush1.msra.mxu0 0.0
    %1529 = vmatprep.subr.mxu0 0.0
    %1530 = vmatpush1.msra.mxu0 0.0
    %1531 = vmatprep.subr.mxu0 0.0
    %1532 = vmatpush1.msra.mxu0 0.0
    %1533 = vmatprep.subr.mxu0 0.0
    %1534 = vmatpush1.msra.mxu0 0.0
    %1535 = vmatprep.subr.mxu0 0.0
    %1536 = vmatpush1.msra.mxu0 0.0
    %1537 = vmatprep.subr.mxu0 0.0
    %1538 = vmatpush1.msra.mxu0 0.0
    %1539 = vmatprep.subr.mxu0 0.0
    %1540 = vmatpush1.msra.mxu0 0.0
    %1541 = vmatprep.subr.mxu0 0.0
    %1542 = vmatpush1.msra.mxu0 0.0
    %1543 = vmatprep.mubr.f32.mxu0 0.0
    %1544 = vmatmul.mubr.f32.gmra.mrb[0].mxu0 %v1474
    %v1545 = vpop.f32.mrb[0].mxu0
    %v1546 = vadd.f32 0.0, %v1545
    %v1547 = vpop.f32.mrb[0].mxu0
    %1548 = vmatprep.mubr.f32.mxu0 0.0
    %1549 = vmatmul.mubr.f32.gmra.mrb[0].mxu0 %v1477
    %v1550 = vpop.f32.mrb[0].mxu0
    %v1551 = vadd.f32 0.0, %v1550
    %v1552 = vpop.f32.mrb[0].mxu0
    %1553 = vdwg.mxu0
    %v1554 = vadd.f32 %v1135, %v1546
    %v1555 = vadd.f32 %v1140, %v1551
    %1556 = vrot.lane.b32.xlu0 %v322, 104
    %v1557 = vpop.permute.xlu0 %1556
    %1558 = vrot.lane.b32.xlu0 %v309, 104
    %v1559 = vpop.permute.xlu0 %1558
    %v1560 = vsel %vm324, %v1557, 0
    %v1562 = vsel %vm324, %v1559, 0
    %1564 = vmatprep.subr.mxu0 0.0
    %1565 = vmatpush1.xpose.msra.mxu0 %v1562
    %1566 = vmatprep.subr.mxu0 0.0
    %1567 = vmatpush1.xpose.msra.mxu0 0.0
    %1568 = vmatprep.subr.mxu0 0.0
    %1569 = vmatpush1.xpose.msra.mxu0 0.0
    %1570 = vmatprep.subr.mxu0 0.0
    %1571 = vmatpush1.xpose.msra.mxu0 0.0
    %1572 = vmatprep.subr.mxu0 0.0
    %1573 = vmatpush1.xpose.msra.mxu0 0.0
    %1574 = vmatprep.subr.mxu0 0.0
    %1575 = vmatpush1.xpose.msra.mxu0 0.0
    %1576 = vmatprep.subr.mxu0 0.0
    %1577 = vmatpush1.xpose.msra.mxu0 0.0
    %1578 = vmatprep.subr.mxu0 0.0
    %1579 = vmatpush1.xpose.msra.mxu0 0.0
    %1580 = vmatprep.subr.mxu0 0.0
    %1581 = vmatpush1.xpose.msra.mxu0 0.0
    %1582 = vmatprep.subr.mxu0 0.0
    %1583 = vmatpush1.xpose.msra.mxu0 0.0
    %1584 = vmatprep.subr.mxu0 0.0
    %1585 = vmatpush1.xpose.msra.mxu0 0.0
    %1586 = vmatprep.subr.mxu0 0.0
    %1587 = vmatpush1.xpose.msra.mxu0 0.0
    %1588 = vmatprep.subr.mxu0 0.0
    %1589 = vmatpush1.xpose.msra.mxu0 0.0
    %1590 = vmatprep.subr.mxu0 0.0
    %1591 = vmatpush1.xpose.msra.mxu0 0.0
    %1592 = vmatprep.subr.mxu0 0.0
    %1593 = vmatpush1.xpose.msra.mxu0 0.0
    %1594 = vmatprep.subr.mxu0 0.0
    %1595 = vmatpush1.xpose.msra.mxu0 0.0
    %1596 = vmatprep.subr.mxu0 0.0
    %1597 = vmatpush1.xpose.msra.mxu0 0.0
    %1598 = vmatprep.subr.mxu0 0.0
    %1599 = vmatpush1.xpose.msra.mxu0 0.0
    %1600 = vmatprep.subr.mxu0 0.0
    %1601 = vmatpush1.xpose.msra.mxu0 0.0
    %1602 = vmatprep.subr.mxu0 0.0
    %1603 = vmatpush1.xpose.msra.mxu0 0.0
    %1604 = vmatprep.subr.mxu0 0.0
    %1605 = vmatpush1.xpose.msra.mxu0 0.0
    %1606 = vmatprep.subr.mxu0 0.0
    %1607 = vmatpush1.xpose.msra.mxu0 0.0
    %1608 = vmatprep.subr.mxu0 0.0
    %1609 = vmatpush1.xpose.msra.mxu0 0.0
    %1610 = vmatprep.subr.mxu0 0.0
    %1611 = vmatpush1.xpose.msra.mxu0 0.0
    %1612 = vmatprep.subr.mxu0 0.0
    %1613 = vmatpush1.xpose.msra.mxu0 0.0
    %1614 = vmatprep.subr.mxu0 0.0
    %1615 = vmatpush1.xpose.msra.mxu0 0.0
    %1616 = vmatprep.subr.mxu0 0.0
    %1617 = vmatpush1.xpose.msra.mxu0 0.0
    %1618 = vmatprep.subr.mxu0 0.0
    %1619 = vmatpush1.xpose.msra.mxu0 0.0
    %1620 = vmatprep.subr.mxu0 0.0
    %1621 = vmatpush1.xpose.msra.mxu0 0.0
    %1622 = vmatprep.subr.mxu0 0.0
    %1623 = vmatpush1.xpose.msra.mxu0 0.0
    %1624 = vmatprep.subr.mxu0 0.0
    %1625 = vmatpush1.xpose.msra.mxu0 0.0
    %1626 = vmatprep.subr.mxu0 0.0
    %1627 = vmatpush1.xpose.msra.mxu0 0.0
    %1628 = vmatprep.mubr.f32.mxu0 0.0
    %1629 = vmatmul.mubr.f32.gmra.mrb[0].mxu0 %v1560
    %v1630 = vpop.f32.mrb[0].mxu0
    %v1631 = vadd.f32 0.0, %v1630
    %v1632 = vpop.f32.mrb[0].mxu0
    %1633 = vdwg.mxu0
    %1634 = vrot.lane.b32.xlu0 %v323, 104
    %v1635 = vpop.permute.xlu0 %1634
    %1636 = vrot.lane.b32.xlu0 %v314, 104
    %v1637 = vpop.permute.xlu0 %1636
    %v1638 = vsel %vm324, %v1635, 0
    %v1640 = vsel %vm324, %v1637, 0
    %1642 = vmatprep.subr.mxu0 0.0
    %1643 = vmatpush1.xpose.msra.mxu0 %v1640
    %1644 = vmatprep.subr.mxu0 0.0
    %1645 = vmatpush1.xpose.msra.mxu0 0.0
    %1646 = vmatprep.subr.mxu0 0.0
    %1647 = vmatpush1.xpose.msra.mxu0 0.0
    %1648 = vmatprep.subr.mxu0 0.0
    %1649 = vmatpush1.xpose.msra.mxu0 0.0
    %1650 = vmatprep.subr.mxu0 0.0
    %1651 = vmatpush1.xpose.msra.mxu0 0.0
    %1652 = vmatprep.subr.mxu0 0.0
    %1653 = vmatpush1.xpose.msra.mxu0 0.0
    %1654 = vmatprep.subr.mxu0 0.0
    %1655 = vmatpush1.xpose.msra.mxu0 0.0
    %1656 = vmatprep.subr.mxu0 0.0
    %1657 = vmatpush1.xpose.msra.mxu0 0.0
    %1658 = vmatprep.subr.mxu0 0.0
    %1659 = vmatpush1.xpose.msra.mxu0 0.0
    %1660 = vmatprep.subr.mxu0 0.0
    %1661 = vmatpush1.xpose.msra.mxu0 0.0
    %1662 = vmatprep.subr.mxu0 0.0
    %1663 = vmatpush1.xpose.msra.mxu0 0.0
    %1664 = vmatprep.subr.mxu0 0.0
    %1665 = vmatpush1.xpose.msra.mxu0 0.0
    %1666 = vmatprep.subr.mxu0 0.0
    %1667 = vmatpush1.xpose.msra.mxu0 0.0
    %1668 = vmatprep.subr.mxu0 0.0
    %1669 = vmatpush1.xpose.msra.mxu0 0.0
    %1670 = vmatprep.subr.mxu0 0.0
    %1671 = vmatpush1.xpose.msra.mxu0 0.0
    %1672 = vmatprep.subr.mxu0 0.0
    %1673 = vmatpush1.xpose.msra.mxu0 0.0
    %1674 = vmatprep.subr.mxu0 0.0
    %1675 = vmatpush1.xpose.msra.mxu0 0.0
    %1676 = vmatprep.subr.mxu0 0.0
    %1677 = vmatpush1.xpose.msra.mxu0 0.0
    %1678 = vmatprep.subr.mxu0 0.0
    %1679 = vmatpush1.xpose.msra.mxu0 0.0
    %1680 = vmatprep.subr.mxu0 0.0
    %1681 = vmatpush1.xpose.msra.mxu0 0.0
    %1682 = vmatprep.subr.mxu0 0.0
    %1683 = vmatpush1.xpose.msra.mxu0 0.0
    %1684 = vmatprep.subr.mxu0 0.0
    %1685 = vmatpush1.xpose.msra.mxu0 0.0
    %1686 = vmatprep.subr.mxu0 0.0
    %1687 = vmatpush1.xpose.msra.mxu0 0.0
    %1688 = vmatprep.subr.mxu0 0.0
    %1689 = vmatpush1.xpose.msra.mxu0 0.0
    %1690 = vmatprep.subr.mxu0 0.0
    %1691 = vmatpush1.xpose.msra.mxu0 0.0
    %1692 = vmatprep.subr.mxu0 0.0
    %1693 = vmatpush1.xpose.msra.mxu0 0.0
    %1694 = vmatprep.subr.mxu0 0.0
    %1695 = vmatpush1.xpose.msra.mxu0 0.0
    %1696 = vmatprep.subr.mxu0 0.0
    %1697 = vmatpush1.xpose.msra.mxu0 0.0
    %1698 = vmatprep.subr.mxu0 0.0
    %1699 = vmatpush1.xpose.msra.mxu0 0.0
    %1700 = vmatprep.subr.mxu0 0.0
    %1701 = vmatpush1.xpose.msra.mxu0 0.0
    %1702 = vmatprep.subr.mxu0 0.0
    %1703 = vmatpush1.xpose.msra.mxu0 0.0
    %1704 = vmatprep.subr.mxu0 0.0
    %1705 = vmatpush1.xpose.msra.mxu0 0.0
    %1706 = vmatprep.mubr.f32.mxu0 0.0
    %1707 = vmatmul.mubr.f32.gmra.mrb[0].mxu0 %v1638
    %v1708 = vpop.f32.mrb[0].mxu0
    %v1709 = vadd.f32 0.0, %v1708
    %v1710 = vpop.f32.mrb[0].mxu0
    %1711 = vdwg.mxu0
    %v1712 = vsel %vm324, %v1631, -inf
    %1713 = vmax.xlane.f32.xlu0 %v1712
    %v1714 = vpop.xlane.xlu0 %1713
    %v1715 = vsel %vm324, %v1709, -inf
    %1716 = vmax.xlane.f32.xlu0 %v1715
    %v1717 = vpop.xlane.xlu0 %1716
    %v1718 = vsub.f32 %v1631, %v1714
    %v1719 = vsub.f32 %v1709, %v1717
    %v1720 = vmul.f32 %v1718, 1.442695
    %v1721 = vpow.pop %v1720
    %v1722 = vmul.f32 %v1719, 1.442695
    %v1723 = vpow.pop %v1722
    %v1724 = vsel %vm324, %v1721, 0.0
    %1725 = vadd.xlane.f32.xlu0 %v1724
    %v1726 = vpop.xlane.xlu0 %1725
    %v1727 = vsel %vm324, %v1723, 0.0
    %1728 = vadd.xlane.f32.xlu0 %v1727
    %v1729 = vpop.xlane.xlu0 %1728
    %v1730 = vrcp.pop %v1726
    %v1731 = vrcp.pop %v1729
    %v1732 = vmul.f32 %v1721, %v1730
    %v1733 = vmul.f32 %v1723, %v1731
    %1734 = vrot.lane.b32.xlu0 %v309, 72
    %v1735 = vpop.permute.xlu0 %1734
    %v1738 = vsel %vm324, %v1732, 0
    %1740 = vmatprep.subr.mxu0 0.0
    %1741 = vmatpush1.msra.mxu0 %v1735
    %1742 = vmatprep.subr.mxu0 0.0
    %1743 = vmatpush1.msra.mxu0 0.0
    %1744 = vmatprep.subr.mxu0 0.0
    %1745 = vmatpush1.msra.mxu0 0.0
    %1746 = vmatprep.subr.mxu0 0.0
    %1747 = vmatpush1.msra.mxu0 0.0
    %1748 = vmatprep.subr.mxu0 0.0
    %1749 = vmatpush1.msra.mxu0 0.0
    %1750 = vmatprep.subr.mxu0 0.0
    %1751 = vmatpush1.msra.mxu0 0.0
    %1752 = vmatprep.subr.mxu0 0.0
    %1753 = vmatpush1.msra.mxu0 0.0
    %1754 = vmatprep.subr.mxu0 0.0
    %1755 = vmatpush1.msra.mxu0 0.0
    %1756 = vmatprep.subr.mxu0 0.0
    %1757 = vmatpush1.msra.mxu0 0.0
    %1758 = vmatprep.subr.mxu0 0.0
    %1759 = vmatpush1.msra.mxu0 0.0
    %1760 = vmatprep.subr.mxu0 0.0
    %1761 = vmatpush1.msra.mxu0 0.0
    %1762 = vmatprep.subr.mxu0 0.0
    %1763 = vmatpush1.msra.mxu0 0.0
    %1764 = vmatprep.subr.mxu0 0.0
    %1765 = vmatpush1.msra.mxu0 0.0
    %1766 = vmatprep.subr.mxu0 0.0
    %1767 = vmatpush1.msra.mxu0 0.0
    %1768 = vmatprep.subr.mxu0 0.0
    %1769 = vmatpush1.msra.mxu0 0.0
    %1770 = vmatprep.subr.mxu0 0.0
    %1771 = vmatpush1.msra.mxu0 0.0
    %1772 = vmatprep.subr.mxu0 0.0
    %1773 = vmatpush1.msra.mxu0 0.0
    %1774 = vmatprep.subr.mxu0 0.0
    %1775 = vmatpush1.msra.mxu0 0.0
    %1776 = vmatprep.subr.mxu0 0.0
    %1777 = vmatpush1.msra.mxu0 0.0
    %1778 = vmatprep.subr.mxu0 0.0
    %1779 = vmatpush1.msra.mxu0 0.0
    %1780 = vmatprep.subr.mxu0 0.0
    %1781 = vmatpush1.msra.mxu0 0.0
    %1782 = vmatprep.subr.mxu0 0.0
    %1783 = vmatpush1.msra.mxu0 0.0
    %1784 = vmatprep.subr.mxu0 0.0
    %1785 = vmatpush1.msra.mxu0 0.0
    %1786 = vmatprep.subr.mxu0 0.0
    %1787 = vmatpush1.msra.mxu0 0.0
    %1788 = vmatprep.subr.mxu0 0.0
    %1789 = vmatpush1.msra.mxu0 0.0
    %1790 = vmatprep.subr.mxu0 0.0
    %1791 = vmatpush1.msra.mxu0 0.0
    %1792 = vmatprep.subr.mxu0 0.0
    %1793 = vmatpush1.msra.mxu0 0.0
    %1794 = vmatprep.subr.mxu0 0.0
    %1795 = vmatpush1.msra.mxu0 0.0
    %1796 = vmatprep.subr.mxu0 0.0
    %1797 = vmatpush1.msra.mxu0 0.0
    %1798 = vmatprep.subr.mxu0 0.0
    %1799 = vmatpush1.msra.mxu0 0.0
    %1800 = vmatprep.subr.mxu0 0.0
    %1801 = vmatpush1.msra.mxu0 0.0
    %1802 = vmatprep.subr.mxu0 0.0
    %1803 = vmatpush1.msra.mxu0 0.0
    %1804 = vmatprep.mubr.f32.mxu0 0.0
    %1805 = vmatmul.mubr.f32.gmra.mrb[0].mxu0 %v1738
    %v1806 = vpop.f32.mrb[0].mxu0
    %v1807 = vadd.f32 0.0, %v1806
    %v1808 = vpop.f32.mrb[0].mxu0
    %1809 = vdwg.mxu0
    %1810 = vrot.lane.b32.xlu0 %v314, 72
    %v1811 = vpop.permute.xlu0 %1810
    %v1814 = vsel %vm324, %v1733, 0
    %1816 = vmatprep.subr.mxu0 0.0
    %1817 = vmatpush1.msra.mxu0 %v1811
    %1818 = vmatprep.subr.mxu0 0.0
    %1819 = vmatpush1.msra.mxu0 0.0
    %1820 = vmatprep.subr.mxu0 0.0
    %1821 = vmatpush1.msra.mxu0 0.0
    %1822 = vmatprep.subr.mxu0 0.0
    %1823 = vmatpush1.msra.mxu0 0.0
    %1824 = vmatprep.subr.mxu0 0.0
    %1825 = vmatpush1.msra.mxu0 0.0
    %1826 = vmatprep.subr.mxu0 0.0
    %1827 = vmatpush1.msra.mxu0 0.0
    %1828 = vmatprep.subr.mxu0 0.0
    %1829 = vmatpush1.msra.mxu0 0.0
    %1830 = vmatprep.subr.mxu0 0.0
    %1831 = vmatpush1.msra.mxu0 0.0
    %1832 = vmatprep.subr.mxu0 0.0
    %1833 = vmatpush1.msra.mxu0 0.0
    %1834 = vmatprep.subr.mxu0 0.0
    %1835 = vmatpush1.msra.mxu0 0.0
    %1836 = vmatprep.subr.mxu0 0.0
    %1837 = vmatpush1.msra.mxu0 0.0
    %1838 = vmatprep.subr.mxu0 0.0
    %1839 = vmatpush1.msra.mxu0 0.0
    %1840 = vmatprep.subr.mxu0 0.0
    %1841 = vmatpush1.msra.mxu0 0.0
    %1842 = vmatprep.subr.mxu0 0.0
    %1843 = vmatpush1.msra.mxu0 0.0
    %1844 = vmatprep.subr.mxu0 0.0
    %1845 = vmatpush1.msra.mxu0 0.0
    %1846 = vmatprep.subr.mxu0 0.0
    %1847 = vmatpush1.msra.mxu0 0.0
    %1848 = vmatprep.subr.mxu0 0.0
    %1849 = vmatpush1.msra.mxu0 0.0
    %1850 = vmatprep.subr.mxu0 0.0
    %1851 = vmatpush1.msra.mxu0 0.0
    %1852 = vmatprep.subr.mxu0 0.0
    %1853 = vmatpush1.msra.mxu0 0.0
    %1854 = vmatprep.subr.mxu0 0.0
    %1855 = vmatpush1.msra.mxu0 0.0
    %1856 = vmatprep.subr.mxu0 0.0
    %1857 = vmatpush1.msra.mxu0 0.0
    %1858 = vmatprep.subr.mxu0 0.0
    %1859 = vmatpush1.msra.mxu0 0.0
    %1860 = vmatprep.subr.mxu0 0.0
    %1861 = vmatpush1.msra.mxu0 0.0
    %1862 = vmatprep.subr.mxu0 0.0
    %1863 = vmatpush1.msra.mxu0 0.0
    %1864 = vmatprep.subr.mxu0 0.0
    %1865 = vmatpush1.msra.mxu0 0.0
    %1866 = vmatprep.subr.mxu0 0.0
    %1867 = vmatpush1.msra.mxu0 0.0
    %1868 = vmatprep.subr.mxu0 0.0
    %1869 = vmatpush1.msra.mxu0 0.0
    %1870 = vmatprep.subr.mxu0 0.0
    %1871 = vmatpush1.msra.mxu0 0.0
    %1872 = vmatprep.subr.mxu0 0.0
    %1873 = vmatpush1.msra.mxu0 0.0
    %1874 = vmatprep.subr.mxu0 0.0
    %1875 = vmatpush1.msra.mxu0 0.0
    %1876 = vmatprep.subr.mxu0 0.0
    %1877 = vmatpush1.msra.mxu0 0.0
    %1878 = vmatprep.subr.mxu0 0.0
    %1879 = vmatpush1.msra.mxu0 0.0
    %1880 = vmatprep.mubr.f32.mxu0 0.0
    %1881 = vmatmul.mubr.f32.gmra.mrb[0].mxu0 %v1814
    %v1882 = vpop.f32.mrb[0].mxu0
    %v1883 = vadd.f32 0.0, %v1882
    %v1884 = vpop.f32.mrb[0].mxu0
    %1885 = vdwg.mxu0
    %v1887 = vsel %vm324, %v1807, 0
    %v1890 = vsel %vm324, %v1883, 0
    %1892 = vmatprep.subr.mxu0 0.0
    %1893 = vmatpush1.msra.mxu0 %v320
    %1894 = vmatprep.subr.mxu0 0.0
    %1895 = vmatpush1.msra.mxu0 0.0
    %1896 = vmatprep.subr.mxu0 0.0
    %1897 = vmatpush1.msra.mxu0 0.0
    %1898 = vmatprep.subr.mxu0 0.0
    %1899 = vmatpush1.msra.mxu0 0.0
    %1900 = vmatprep.subr.mxu0 0.0
    %1901 = vmatpush1.msra.mxu0 0.0
    %1902 = vmatprep.subr.mxu0 0.0
    %1903 = vmatpush1.msra.mxu0 0.0
    %1904 = vmatprep.subr.mxu0 0.0
    %1905 = vmatpush1.msra.mxu0 0.0
    %1906 = vmatprep.subr.mxu0 0.0
    %1907 = vmatpush1.msra.mxu0 0.0
    %1908 = vmatprep.subr.mxu0 0.0
    %1909 = vmatpush1.msra.mxu0 0.0
    %1910 = vmatprep.subr.mxu0 0.0
    %1911 = vmatpush1.msra.mxu0 0.0
    %1912 = vmatprep.subr.mxu0 0.0
    %1913 = vmatpush1.msra.mxu0 0.0
    %1914 = vmatprep.subr.mxu0 0.0
    %1915 = vmatpush1.msra.mxu0 0.0
    %1916 = vmatprep.subr.mxu0 0.0
    %1917 = vmatpush1.msra.mxu0 0.0
    %1918 = vmatprep.subr.mxu0 0.0
    %1919 = vmatpush1.msra.mxu0 0.0
    %1920 = vmatprep.subr.mxu0 0.0
    %1921 = vmatpush1.msra.mxu0 0.0
    %1922 = vmatprep.subr.mxu0 0.0
    %1923 = vmatpush1.msra.mxu0 0.0
    %1924 = vmatprep.subr.mxu0 0.0
    %1925 = vmatpush1.msra.mxu0 0.0
    %1926 = vmatprep.subr.mxu0 0.0
    %1927 = vmatpush1.msra.mxu0 0.0
    %1928 = vmatprep.subr.mxu0 0.0
    %1929 = vmatpush1.msra.mxu0 0.0
    %1930 = vmatprep.subr.mxu0 0.0
    %1931 = vmatpush1.msra.mxu0 0.0
    %1932 = vmatprep.subr.mxu0 0.0
    %1933 = vmatpush1.msra.mxu0 0.0
    %1934 = vmatprep.subr.mxu0 0.0
    %1935 = vmatpush1.msra.mxu0 0.0
    %1936 = vmatprep.subr.mxu0 0.0
    %1937 = vmatpush1.msra.mxu0 0.0
    %1938 = vmatprep.subr.mxu0 0.0
    %1939 = vmatpush1.msra.mxu0 0.0
    %1940 = vmatprep.subr.mxu0 0.0
    %1941 = vmatpush1.msra.mxu0 0.0
    %1942 = vmatprep.subr.mxu0 0.0
    %1943 = vmatpush1.msra.mxu0 0.0
    %1944 = vmatprep.subr.mxu0 0.0
    %1945 = vmatpush1.msra.mxu0 0.0
    %1946 = vmatprep.subr.mxu0 0.0
    %1947 = vmatpush1.msra.mxu0 0.0
    %1948 = vmatprep.subr.mxu0 0.0
    %1949 = vmatpush1.msra.mxu0 0.0
    %1950 = vmatprep.subr.mxu0 0.0
    %1951 = vmatpush1.msra.mxu0 0.0
    %1952 = vmatprep.subr.mxu0 0.0
    %1953 = vmatpush1.msra.mxu0 0.0
    %1954 = vmatprep.subr.mxu0 0.0
    %1955 = vmatpush1.msra.mxu0 0.0
    %1956 = vmatprep.mubr.f32.mxu0 0.0
    %1957 = vmatmul.mubr.f32.gmra.mrb[0].mxu0 %v1887
    %v1958 = vpop.f32.mrb[0].mxu0
    %v1959 = vadd.f32 0.0, %v1958
    %v1960 = vpop.f32.mrb[0].mxu0
    %1961 = vmatprep.mubr.f32.mxu0 0.0
    %1962 = vmatmul.mubr.f32.gmra.mrb[0].mxu0 %v1890
    %v1963 = vpop.f32.mrb[0].mxu0
    %v1964 = vadd.f32 0.0, %v1963
    %v1965 = vpop.f32.mrb[0].mxu0
    %1966 = vdwg.mxu0
    %v1967 = vadd.f32 %v1554, %v1959
    %v1968 = vadd.f32 %v1555, %v1964
    %v1970 = vlaneseq
    %v1971 = vshrl.u32 %v1970, 7
    %v1972 = vsub.s32 0, %v1971
    %v1973 = vrot.slane %v321, %v1972
    %v1975 = vadd.f32 %v1967, %v1973
    %v1976 = vadd.f32 %v1968, %v1973
    %v1977 = vld [vmem:[%s15] sm:$0x1]
    %v1978 = vld [vmem:[%s17] sm:$0x1]
    %v1979 = vadd.f32 %v127, %v1975
    %v1980 = vadd.f32 %v128, %v1976
    %v1981 = vsel %vm143, %v1979, 0.0
    %1982 = vadd.xlane.f32.xlu0 %v1981
    %v1983 = vpop.xlane.xlu0 %1982
    %v1984 = vsel %vm143, %v1980, 0.0
    %1985 = vadd.xlane.f32.xlu0 %v1984
    %v1986 = vpop.xlane.xlu0 %1985
    %v1987 = vrcp.pop 32.0
    %v1988 = vmul.f32 %v1983, %v1987
    %v1989 = vmul.f32 %v1986, %v1987
    %v1990 = vsub.f32 %v1979, %v1988
    %v1991 = vsub.f32 %v1980, %v1989
    %v1992 = vmul.f32 %v1990, %v1990
    %v1993 = vmul.f32 %v1991, %v1991
    %v1994 = vsel %vm143, %v1992, 0.0
    %1995 = vadd.xlane.f32.xlu0 %v1994
    %v1996 = vpop.xlane.xlu0 %1995
    %v1997 = vsel %vm143, %v1993, 0.0
    %1998 = vadd.xlane.f32.xlu0 %v1997
    %v1999 = vpop.xlane.xlu0 %1998
    %v2000 = vmul.f32 %v1996, %v1987
    %v2001 = vmul.f32 %v1999, %v1987
    %v2002 = vadd.f32 %v2000, 1e-05
    %v2003 = vadd.f32 %v2001, 1e-05
    %v2004 = vrsqrt.pop %v2002
    %v2005 = vrsqrt.pop %v2003
    %v2006 = vmul.f32 %v1990, %v2004
    %v2007 = vmul.f32 %v1991, %v2005
    %v2009 = vlaneseq
    %v2010 = vshrl.u32 %v2009, 7
    %v2011 = vsub.s32 0, %v2010
    %v2012 = vrot.slane %v1977, %v2011
    %v2014 = vmul.f32 %v2006, %v2012
    %v2015 = vmul.f32 %v2007, %v2012
    %v2017 = vlaneseq
    %v2018 = vshrl.u32 %v2017, 7
    %v2019 = vsub.s32 0, %v2018
    %v2020 = vrot.slane %v1978, %v2019
    %v2022 = vadd.f32 %v2014, %v2020
    %v2023 = vadd.f32 %v2015, %v2020
    %v2024 = vld [vmem:[%s19] sm:$0xff]
    %v2025 = vld [vmem:[%s19 + $0x8] sm:$0xff]
    %v2026 = vld [vmem:[%s19 + $0x10] sm:$0xff]
    %v2027 = vld [vmem:[%s19 + $0x18] sm:$0xff]
    %v2028 = vld [vmem:[%s21] sm:$0x1]
    %v2029 = vld [vmem:[%s23] sm:$0xff]
    %v2030 = vld [vmem:[%s23 + $0x8] sm:$0xff]
    %v2031 = vld [vmem:[%s23 + $0x10] sm:$0xff]
    %v2032 = vld [vmem:[%s23 + $0x18] sm:$0xff]
    %v2033 = vld [vmem:[%s23 + $0x20] sm:$0xff]
    %v2034 = vld [vmem:[%s23 + $0x28] sm:$0xff]
    %v2035 = vld [vmem:[%s23 + $0x30] sm:$0xff]
    %v2036 = vld [vmem:[%s23 + $0x38] sm:$0xff]
    %v2037 = vld [vmem:[%s23 + $0x40] sm:$0xff]
    %v2038 = vld [vmem:[%s23 + $0x48] sm:$0xff]
    %v2039 = vld [vmem:[%s23 + $0x50] sm:$0xff]
    %v2040 = vld [vmem:[%s23 + $0x58] sm:$0xff]
    %v2041 = vld [vmem:[%s23 + $0x60] sm:$0xff]
    %v2042 = vld [vmem:[%s23 + $0x68] sm:$0xff]
    %v2043 = vld [vmem:[%s23 + $0x70] sm:$0xff]
    %v2044 = vld [vmem:[%s23 + $0x78] sm:$0xff]
    %v2045 = vld [vmem:[%s25] sm:$0x1]
    %v2047 = vlaneseq
    %v2048 = vshrl.u32 %v2047, 7
    %v2049 = vsub.s32 0, %v2048
    %v2050 = vrot.slane %v2028, %v2049
    %v2053 = vsel %vm143, %v2022, 0
    %v2056 = vsel %vm143, %v2023, 0
    %2058 = vmatprep.subr.mxu0 0.0
    %2059 = vmatpush1.msra.mxu0 %v2024
    %2060 = vmatprep.subr.mxu0 0.0
    %2061 = vmatpush1.msra.mxu0 %v2025
    %2062 = vmatprep.subr.mxu0 0.0
    %2063 = vmatpush1.msra.mxu0 %v2026
    %2064 = vmatprep.subr.mxu0 0.0
    %2065 = vmatpush1.msra.mxu0 %v2027
    %2066 = vmatprep.subr.mxu0 0.0
    %2067 = vmatpush1.msra.mxu0 0.0
    %2068 = vmatprep.subr.mxu0 0.0
    %2069 = vmatpush1.msra.mxu0 0.0
    %2070 = vmatprep.subr.mxu0 0.0
    %2071 = vmatpush1.msra.mxu0 0.0
    %2072 = vmatprep.subr.mxu0 0.0
    %2073 = vmatpush1.msra.mxu0 0.0
    %2074 = vmatprep.subr.mxu0 0.0
    %2075 = vmatpush1.msra.mxu0 0.0
    %2076 = vmatprep.subr.mxu0 0.0
    %2077 = vmatpush1.msra.mxu0 0.0
    %2078 = vmatprep.subr.mxu0 0.0
    %2079 = vmatpush1.msra.mxu0 0.0
    %2080 = vmatprep.subr.mxu0 0.0
    %2081 = vmatpush1.msra.mxu0 0.0
    %2082 = vmatprep.subr.mxu0 0.0
    %2083 = vmatpush1.msra.mxu0 0.0
    %2084 = vmatprep.subr.mxu0 0.0
    %2085 = vmatpush1.msra.mxu0 0.0
    %2086 = vmatprep.subr.mxu0 0.0
    %2087 = vmatpush1.msra.mxu0 0.0
    %2088 = vmatprep.subr.mxu0 0.0
    %2089 = vmatpush1.msra.mxu0 0.0
    %2090 = vmatprep.subr.mxu0 0.0
    %2091 = vmatpush1.msra.mxu0 0.0
    %2092 = vmatprep.subr.mxu0 0.0
    %2093 = vmatpush1.msra.mxu0 0.0
    %2094 = vmatprep.subr.mxu0 0.0
    %2095 = vmatpush1.msra.mxu0 0.0
    %2096 = vmatprep.subr.mxu0 0.0
    %2097 = vmatpush1.msra.mxu0 0.0
    %2098 = vmatprep.subr.mxu0 0.0
    %2099 = vmatpush1.msra.mxu0 0.0
    %2100 = vmatprep.subr.mxu0 0.0
    %2101 = vmatpush1.msra.mxu0 0.0
    %2102 = vmatprep.subr.mxu0 0.0
    %2103 = vmatpush1.msra.mxu0 0.0
    %2104 = vmatprep.subr.mxu0 0.0
    %2105 = vmatpush1.msra.mxu0 0.0
    %2106 = vmatprep.subr.mxu0 0.0
    %2107 = vmatpush1.msra.mxu0 0.0
    %2108 = vmatprep.subr.mxu0 0.0
    %2109 = vmatpush1.msra.mxu0 0.0
    %2110 = vmatprep.subr.mxu0 0.0
    %2111 = vmatpush1.msra.mxu0 0.0
    %2112 = vmatprep.subr.mxu0 0.0
    %2113 = vmatpush1.msra.mxu0 0.0
    %2114 = vmatprep.subr.mxu0 0.0
    %2115 = vmatpush1.msra.mxu0 0.0
    %2116 = vmatprep.subr.mxu0 0.0
    %2117 = vmatpush1.msra.mxu0 0.0
    %2118 = vmatprep.subr.mxu0 0.0
    %2119 = vmatpush1.msra.mxu0 0.0
    %2120 = vmatprep.subr.mxu0 0.0
    %2121 = vmatpush1.msra.mxu0 0.0
    %2122 = vmatprep.mubr.f32.mxu0 0.0
    %2123 = vmatmul.mubr.f32.gmra.mrb[0].mxu0 %v2053
    %v2124 = vpop.f32.mrb[0].mxu0
    %v2125 = vadd.f32 %v2050, %v2124
    %v2126 = vpop.f32.mrb[0].mxu0
    %2127 = vmatprep.mubr.f32.mxu0 0.0
    %2128 = vmatmul.mubr.f32.gmra.mrb[0].mxu0 %v2056
    %v2129 = vpop.f32.mrb[0].mxu0
    %v2130 = vadd.f32 %v2050, %v2129
    %v2131 = vpop.f32.mrb[0].mxu0
    %2132 = vdwg.mxu0
    %v2133 = vmax.f32 %v2125, 0.0
    %v2134 = vmax.f32 %v2130, 0.0
    %v2136 = vlaneseq
    %v2137 = vshrl.u32 %v2136, 7
    %v2138 = vsub.s32 0, %v2137
    %v2139 = vrot.slane %v2045, %v2138
    %2141 = vmatprep.subr.mxu0 0.0
    %2142 = vmatpush1.msra.mxu0 %v2029
    %2143 = vmatprep.subr.mxu0 0.0
    %2144 = vmatpush1.msra.mxu0 %v2030
    %2145 = vmatprep.subr.mxu0 0.0
    %2146 = vmatpush1.msra.mxu0 %v2031
    %2147 = vmatprep.subr.mxu0 0.0
    %2148 = vmatpush1.msra.mxu0 %v2032
    %2149 = vmatprep.subr.mxu0 0.0
    %2150 = vmatpush1.msra.mxu0 %v2033
    %2151 = vmatprep.subr.mxu0 0.0
    %2152 = vmatpush1.msra.mxu0 %v2034
    %2153 = vmatprep.subr.mxu0 0.0
    %2154 = vmatpush1.msra.mxu0 %v2035
    %2155 = vmatprep.subr.mxu0 0.0
    %2156 = vmatpush1.msra.mxu0 %v2036
    %2157 = vmatprep.subr.mxu0 0.0
    %2158 = vmatpush1.msra.mxu0 %v2037
    %2159 = vmatprep.subr.mxu0 0.0
    %2160 = vmatpush1.msra.mxu0 %v2038
    %2161 = vmatprep.subr.mxu0 0.0
    %2162 = vmatpush1.msra.mxu0 %v2039
    %2163 = vmatprep.subr.mxu0 0.0
    %2164 = vmatpush1.msra.mxu0 %v2040
    %2165 = vmatprep.subr.mxu0 0.0
    %2166 = vmatpush1.msra.mxu0 %v2041
    %2167 = vmatprep.subr.mxu0 0.0
    %2168 = vmatpush1.msra.mxu0 %v2042
    %2169 = vmatprep.subr.mxu0 0.0
    %2170 = vmatpush1.msra.mxu0 %v2043
    %2171 = vmatprep.subr.mxu0 0.0
    %2172 = vmatpush1.msra.mxu0 %v2044
    %2173 = vmatprep.subr.mxu0 0.0
    %2174 = vmatpush1.msra.mxu0 0.0
    %2175 = vmatprep.subr.mxu0 0.0
    %2176 = vmatpush1.msra.mxu0 0.0
    %2177 = vmatprep.subr.mxu0 0.0
    %2178 = vmatpush1.msra.mxu0 0.0
    %2179 = vmatprep.subr.mxu0 0.0
    %2180 = vmatpush1.msra.mxu0 0.0
    %2181 = vmatprep.subr.mxu0 0.0
    %2182 = vmatpush1.msra.mxu0 0.0
    %2183 = vmatprep.subr.mxu0 0.0
    %2184 = vmatpush1.msra.mxu0 0.0
    %2185 = vmatprep.subr.mxu0 0.0
    %2186 = vmatpush1.msra.mxu0 0.0
    %2187 = vmatprep.subr.mxu0 0.0
    %2188 = vmatpush1.msra.mxu0 0.0
    %2189 = vmatprep.subr.mxu0 0.0
    %2190 = vmatpush1.msra.mxu0 0.0
    %2191 = vmatprep.subr.mxu0 0.0
    %2192 = vmatpush1.msra.mxu0 0.0
    %2193 = vmatprep.subr.mxu0 0.0
    %2194 = vmatpush1.msra.mxu0 0.0
    %2195 = vmatprep.subr.mxu0 0.0
    %2196 = vmatpush1.msra.mxu0 0.0
    %2197 = vmatprep.subr.mxu0 0.0
    %2198 = vmatpush1.msra.mxu0 0.0
    %2199 = vmatprep.subr.mxu0 0.0
    %2200 = vmatpush1.msra.mxu0 0.0
    %2201 = vmatprep.subr.mxu0 0.0
    %2202 = vmatpush1.msra.mxu0 0.0
    %2203 = vmatprep.subr.mxu0 0.0
    %2204 = vmatpush1.msra.mxu0 0.0
    %2205 = vmatprep.mubr.f32.mxu0 0.0
    %2206 = vmatmul.mubr.f32.gmra.mrb[0].mxu0 %v2133
    %v2207 = vpop.f32.mrb[0].mxu0
    %v2208 = vadd.f32 %v2139, %v2207
    %v2209 = vpop.f32.mrb[0].mxu0
    %2210 = vmatprep.mubr.f32.mxu0 0.0
    %2211 = vmatmul.mubr.f32.gmra.mrb[0].mxu0 %v2134
    %v2212 = vpop.f32.mrb[0].mxu0
    %v2213 = vadd.f32 %v2139, %v2212
    %v2214 = vpop.f32.mrb[0].mxu0
    %2215 = vdwg.mxu0
    %v2216 = vadd.f32 %v2022, %v2208
    %v2217 = vadd.f32 %v2023, %v2213
    %v2218 = vsel %vm143, %v2216, 0.0
    %2219 = vadd.xlane.f32.xlu0 %v2218
    %v2220 = vpop.xlane.xlu0 %2219
    %v2221 = vsel %vm143, %v2217, 0.0
    %2222 = vadd.xlane.f32.xlu0 %v2221
    %v2223 = vpop.xlane.xlu0 %2222
    %v2224 = vmul.f32 %v2220, %v1987
    %v2225 = vmul.f32 %v2223, %v1987
    %v2226 = vsub.f32 %v2216, %v2224
    %v2227 = vsub.f32 %v2217, %v2225
    %v2228 = vmul.f32 %v2226, %v2226
    %v2229 = vmul.f32 %v2227, %v2227
    %v2230 = vsel %vm143, %v2228, 0.0
    %2231 = vadd.xlane.f32.xlu0 %v2230
    %v2232 = vpop.xlane.xlu0 %2231
    %v2233 = vsel %vm143, %v2229, 0.0
    %2234 = vadd.xlane.f32.xlu0 %v2233
    %v2235 = vpop.xlane.xlu0 %2234
    %v2236 = vmul.f32 %v2232, %v1987
    %v2237 = vmul.f32 %v2235, %v1987
    %v2238 = vadd.f32 %v2236, 1e-05
    %v2239 = vadd.f32 %v2237, 1e-05
    %v2240 = vrsqrt.pop %v2238
    %v2241 = vrsqrt.pop %v2239
    %v2242 = vmul.f32 %v2226, %v2240
    %v2243 = vmul.f32 %v2227, %v2241
    %v2244 = vmul.f32 %v2242, %v2012
    %v2245 = vmul.f32 %v2243, %v2012
    %v2246 = vadd.f32 %v2244, %v2020
    %v2247 = vadd.f32 %v2245, %v2020
    %v2248 = vld [vmem:[%s27] sm:$0xff]
    %v2249 = vld [vmem:[%s27 + $0x8] sm:$0xff]
    %v2250 = vld [vmem:[%s27 + $0x10] sm:$0xff]
    %v2251 = vld [vmem:[%s27 + $0x18] sm:$0xff]
    %v2252 = vld [vmem:[%s29] sm:$0x1]
    %v2254 = vlaneseq
    %v2255 = vshrl.u32 %v2254, 7
    %v2256 = vsub.s32 0, %v2255
    %v2257 = vrot.slane %v2252, %v2256
    %2259 = vmatprep.subr.mxu0 0.0
    %2260 = vmatpush1.msra.mxu0 %v2248
    %2261 = vmatprep.subr.mxu0 0.0
    %2262 = vmatpush1.msra.mxu0 %v2249
    %2263 = vmatprep.subr.mxu0 0.0
    %2264 = vmatpush1.msra.mxu0 %v2250
    %2265 = vmatprep.subr.mxu0 0.0
    %2266 = vmatpush1.msra.mxu0 %v2251
    %2267 = vmatprep.subr.mxu0 0.0
    %2268 = vmatpush1.msra.mxu0 0.0
    %2269 = vmatprep.subr.mxu0 0.0
    %2270 = vmatpush1.msra.mxu0 0.0
    %2271 = vmatprep.subr.mxu0 0.0
    %2272 = vmatpush1.msra.mxu0 0.0
    %2273 = vmatprep.subr.mxu0 0.0
    %2274 = vmatpush1.msra.mxu0 0.0
    %2275 = vmatprep.subr.mxu0 0.0
    %2276 = vmatpush1.msra.mxu0 0.0
    %2277 = vmatprep.subr.mxu0 0.0
    %2278 = vmatpush1.msra.mxu0 0.0
    %2279 = vmatprep.subr.mxu0 0.0
    %2280 = vmatpush1.msra.mxu0 0.0
    %2281 = vmatprep.subr.mxu0 0.0
    %2282 = vmatpush1.msra.mxu0 0.0
    %2283 = vmatprep.subr.mxu0 0.0
    %2284 = vmatpush1.msra.mxu0 0.0
    %2285 = vmatprep.subr.mxu0 0.0
    %2286 = vmatpush1.msra.mxu0 0.0
    %2287 = vmatprep.subr.mxu0 0.0
    %2288 = vmatpush1.msra.mxu0 0.0
    %2289 = vmatprep.subr.mxu0 0.0
    %2290 = vmatpush1.msra.mxu0 0.0
    %2291 = vmatprep.subr.mxu0 0.0
    %2292 = vmatpush1.msra.mxu0 0.0
    %2293 = vmatprep.subr.mxu0 0.0
    %2294 = vmatpush1.msra.mxu0 0.0
    %2295 = vmatprep.subr.mxu0 0.0
    %2296 = vmatpush1.msra.mxu0 0.0
    %2297 = vmatprep.subr.mxu0 0.0
    %2298 = vmatpush1.msra.mxu0 0.0
    %2299 = vmatprep.subr.mxu0 0.0
    %2300 = vmatpush1.msra.mxu0 0.0
    %2301 = vmatprep.subr.mxu0 0.0
    %2302 = vmatpush1.msra.mxu0 0.0
    %2303 = vmatprep.subr.mxu0 0.0
    %2304 = vmatpush1.msra.mxu0 0.0
    %2305 = vmatprep.subr.mxu0 0.0
    %2306 = vmatpush1.msra.mxu0 0.0
    %2307 = vmatprep.subr.mxu0 0.0
    %2308 = vmatpush1.msra.mxu0 0.0
    %2309 = vmatprep.subr.mxu0 0.0
    %2310 = vmatpush1.msra.mxu0 0.0
    %2311 = vmatprep.subr.mxu0 0.0
    %2312 = vmatpush1.msra.mxu0 0.0
    %2313 = vmatprep.subr.mxu0 0.0
    %2314 = vmatpush1.msra.mxu0 0.0
    %2315 = vmatprep.subr.mxu0 0.0
    %2316 = vmatpush1.msra.mxu0 0.0
    %2317 = vmatprep.subr.mxu0 0.0
    %2318 = vmatpush1.msra.mxu0 0.0
    %2319 = vmatprep.subr.mxu0 0.0
    %2320 = vmatpush1.msra.mxu0 0.0
    %2321 = vmatprep.subr.mxu0 0.0
    %2322 = vmatpush1.msra.mxu0 0.0
    %2323 = vmatprep.mubr.f32.mxu0 0.0
    %2324 = vmatmul.mubr.f32.gmra.mrb[0].mxu0 %v237
    %v2325 = vpop.f32.mrb[0].mxu0
    %v2326 = vadd.f32 %v2257, %v2325
    %v2327 = vpop.f32.mrb[0].mxu0
    %2328 = vmatprep.mubr.f32.mxu0 0.0
    %2329 = vmatmul.mubr.f32.gmra.mrb[0].mxu0 %v240
    %v2330 = vpop.f32.mrb[0].mxu0
    %v2331 = vadd.f32 %v2257, %v2330
    %v2332 = vpop.f32.mrb[0].mxu0
    %2333 = vdwg.mxu0
    %v2334 = vld [vmem:[%s31] sm:$0xff]
    %v2335 = vld [vmem:[%s31 + $0x8] sm:$0xff]
    %v2336 = vld [vmem:[%s31 + $0x10] sm:$0xff]
    %v2337 = vld [vmem:[%s31 + $0x18] sm:$0xff]
    %v2338 = vld [vmem:[%s33] sm:$0x1]
    %v2340 = vlaneseq
    %v2341 = vshrl.u32 %v2340, 7
    %v2342 = vsub.s32 0, %v2341
    %v2343 = vrot.slane %v2338, %v2342
    %v2346 = vsel %vm143, %v2246, 0
    %v2349 = vsel %vm143, %v2247, 0
    %2351 = vmatprep.subr.mxu0 0.0
    %2352 = vmatpush1.msra.mxu0 %v2334
    %2353 = vmatprep.subr.mxu0 0.0
    %2354 = vmatpush1.msra.mxu0 %v2335
    %2355 = vmatprep.subr.mxu0 0.0
    %2356 = vmatpush1.msra.mxu0 %v2336
    %2357 = vmatprep.subr.mxu0 0.0
    %2358 = vmatpush1.msra.mxu0 %v2337
    %2359 = vmatprep.subr.mxu0 0.0
    %2360 = vmatpush1.msra.mxu0 0.0
    %2361 = vmatprep.subr.mxu0 0.0
    %2362 = vmatpush1.msra.mxu0 0.0
    %2363 = vmatprep.subr.mxu0 0.0
    %2364 = vmatpush1.msra.mxu0 0.0
    %2365 = vmatprep.subr.mxu0 0.0
    %2366 = vmatpush1.msra.mxu0 0.0
    %2367 = vmatprep.subr.mxu0 0.0
    %2368 = vmatpush1.msra.mxu0 0.0
    %2369 = vmatprep.subr.mxu0 0.0
    %2370 = vmatpush1.msra.mxu0 0.0
    %2371 = vmatprep.subr.mxu0 0.0
    %2372 = vmatpush1.msra.mxu0 0.0
    %2373 = vmatprep.subr.mxu0 0.0
    %2374 = vmatpush1.msra.mxu0 0.0
    %2375 = vmatprep.subr.mxu0 0.0
    %2376 = vmatpush1.msra.mxu0 0.0
    %2377 = vmatprep.subr.mxu0 0.0
    %2378 = vmatpush1.msra.mxu0 0.0
    %2379 = vmatprep.subr.mxu0 0.0
    %2380 = vmatpush1.msra.mxu0 0.0
    %2381 = vmatprep.subr.mxu0 0.0
    %2382 = vmatpush1.msra.mxu0 0.0
    %2383 = vmatprep.subr.mxu0 0.0
    %2384 = vmatpush1.msra.mxu0 0.0
    %2385 = vmatprep.subr.mxu0 0.0
    %2386 = vmatpush1.msra.mxu0 0.0
    %2387 = vmatprep.subr.mxu0 0.0
    %2388 = vmatpush1.msra.mxu0 0.0
    %2389 = vmatprep.subr.mxu0 0.0
    %2390 = vmatpush1.msra.mxu0 0.0
    %2391 = vmatprep.subr.mxu0 0.0
    %2392 = vmatpush1.msra.mxu0 0.0
    %2393 = vmatprep.subr.mxu0 0.0
    %2394 = vmatpush1.msra.mxu0 0.0
    %2395 = vmatprep.subr.mxu0 0.0
    %2396 = vmatpush1.msra.mxu0 0.0
    %2397 = vmatprep.subr.mxu0 0.0
    %2398 = vmatpush1.msra.mxu0 0.0
    %2399 = vmatprep.subr.mxu0 0.0
    %2400 = vmatpush1.msra.mxu0 0.0
    %2401 = vmatprep.subr.mxu0 0.0
    %2402 = vmatpush1.msra.mxu0 0.0
    %2403 = vmatprep.subr.mxu0 0.0
    %2404 = vmatpush1.msra.mxu0 0.0
    %2405 = vmatprep.subr.mxu0 0.0
    %2406 = vmatpush1.msra.mxu0 0.0
    %2407 = vmatprep.subr.mxu0 0.0
    %2408 = vmatpush1.msra.mxu0 0.0
    %2409 = vmatprep.subr.mxu0 0.0
    %2410 = vmatpush1.msra.mxu0 0.0
    %2411 = vmatprep.subr.mxu0 0.0
    %2412 = vmatpush1.msra.mxu0 0.0
    %2413 = vmatprep.subr.mxu0 0.0
    %2414 = vmatpush1.msra.mxu0 0.0
    %2415 = vmatprep.mubr.f32.mxu0 0.0
    %2416 = vmatmul.mubr.f32.gmra.mrb[0].mxu0 %v2346
    %v2417 = vpop.f32.mrb[0].mxu0
    %v2418 = vadd.f32 %v2343, %v2417
    %v2419 = vpop.f32.mrb[0].mxu0
    %2420 = vmatprep.mubr.f32.mxu0 0.0
    %2421 = vmatmul.mubr.f32.gmra.mrb[0].mxu0 %v2349
    %v2422 = vpop.f32.mrb[0].mxu0
    %v2423 = vadd.f32 %v2343, %v2422
    %v2424 = vpop.f32.mrb[0].mxu0
    %2425 = vdwg.mxu0
    %v2426 = vld [vmem:[%s35] sm:$0xff]
    %v2427 = vld [vmem:[%s35 + $0x8] sm:$0xff]
    %v2428 = vld [vmem:[%s35 + $0x10] sm:$0xff]
    %v2429 = vld [vmem:[%s35 + $0x18] sm:$0xff]
    %v2430 = vld [vmem:[%s37] sm:$0x1]
    %v2431 = vmul.f32 %v2326, 0.35355338
    %v2432 = vmul.f32 %v2331, 0.35355338
    %v2434 = vsel %vm324, %v2431, 0
    %v2437 = vsel %vm324, %v2418, 0
    %2439 = vmatprep.subr.mxu0 0.0
    %2440 = vmatpush1.xpose.msra.mxu0 %v2437
    %2441 = vmatprep.subr.mxu0 0.0
    %2442 = vmatpush1.xpose.msra.mxu0 0.0
    %2443 = vmatprep.subr.mxu0 0.0
    %2444 = vmatpush1.xpose.msra.mxu0 0.0
    %2445 = vmatprep.subr.mxu0 0.0
    %2446 = vmatpush1.xpose.msra.mxu0 0.0
    %2447 = vmatprep.subr.mxu0 0.0
    %2448 = vmatpush1.xpose.msra.mxu0 0.0
    %2449 = vmatprep.subr.mxu0 0.0
    %2450 = vmatpush1.xpose.msra.mxu0 0.0
    %2451 = vmatprep.subr.mxu0 0.0
    %2452 = vmatpush1.xpose.msra.mxu0 0.0
    %2453 = vmatprep.subr.mxu0 0.0
    %2454 = vmatpush1.xpose.msra.mxu0 0.0
    %2455 = vmatprep.subr.mxu0 0.0
    %2456 = vmatpush1.xpose.msra.mxu0 0.0
    %2457 = vmatprep.subr.mxu0 0.0
    %2458 = vmatpush1.xpose.msra.mxu0 0.0
    %2459 = vmatprep.subr.mxu0 0.0
    %2460 = vmatpush1.xpose.msra.mxu0 0.0
    %2461 = vmatprep.subr.mxu0 0.0
    %2462 = vmatpush1.xpose.msra.mxu0 0.0
    %2463 = vmatprep.subr.mxu0 0.0
    %2464 = vmatpush1.xpose.msra.mxu0 0.0
    %2465 = vmatprep.subr.mxu0 0.0
    %2466 = vmatpush1.xpose.msra.mxu0 0.0
    %2467 = vmatprep.subr.mxu0 0.0
    %2468 = vmatpush1.xpose.msra.mxu0 0.0
    %2469 = vmatprep.subr.mxu0 0.0
    %2470 = vmatpush1.xpose.msra.mxu0 0.0
    %2471 = vmatprep.subr.mxu0 0.0
    %2472 = vmatpush1.xpose.msra.mxu0 0.0
    %2473 = vmatprep.subr.mxu0 0.0
    %2474 = vmatpush1.xpose.msra.mxu0 0.0
    %2475 = vmatprep.subr.mxu0 0.0
    %2476 = vmatpush1.xpose.msra.mxu0 0.0
    %2477 = vmatprep.subr.mxu0 0.0
    %2478 = vmatpush1.xpose.msra.mxu0 0.0
    %2479 = vmatprep.subr.mxu0 0.0
    %2480 = vmatpush1.xpose.msra.mxu0 0.0
    %2481 = vmatprep.subr.mxu0 0.0
    %2482 = vmatpush1.xpose.msra.mxu0 0.0
    %2483 = vmatprep.subr.mxu0 0.0
    %2484 = vmatpush1.xpose.msra.mxu0 0.0
    %2485 = vmatprep.subr.mxu0 0.0
    %2486 = vmatpush1.xpose.msra.mxu0 0.0
    %2487 = vmatprep.subr.mxu0 0.0
    %2488 = vmatpush1.xpose.msra.mxu0 0.0
    %2489 = vmatprep.subr.mxu0 0.0
    %2490 = vmatpush1.xpose.msra.mxu0 0.0
    %2491 = vmatprep.subr.mxu0 0.0
    %2492 = vmatpush1.xpose.msra.mxu0 0.0
    %2493 = vmatprep.subr.mxu0 0.0
    %2494 = vmatpush1.xpose.msra.mxu0 0.0
    %2495 = vmatprep.subr.mxu0 0.0
    %2496 = vmatpush1.xpose.msra.mxu0 0.0
    %2497 = vmatprep.subr.mxu0 0.0
    %2498 = vmatpush1.xpose.msra.mxu0 0.0
    %2499 = vmatprep.subr.mxu0 0.0
    %2500 = vmatpush1.xpose.msra.mxu0 0.0
    %2501 = vmatprep.subr.mxu0 0.0
    %2502 = vmatpush1.xpose.msra.mxu0 0.0
    %2503 = vmatprep.mubr.f32.mxu0 0.0
    %2504 = vmatmul.mubr.f32.gmra.mrb[0].mxu0 %v2434
    %v2505 = vpop.f32.mrb[0].mxu0
    %v2506 = vadd.f32 0.0, %v2505
    %v2507 = vpop.f32.mrb[0].mxu0
    %2508 = vdwg.mxu0
    %v2510 = vsel %vm324, %v2432, 0
    %v2513 = vsel %vm324, %v2423, 0
    %2515 = vmatprep.subr.mxu0 0.0
    %2516 = vmatpush1.xpose.msra.mxu0 %v2513
    %2517 = vmatprep.subr.mxu0 0.0
    %2518 = vmatpush1.xpose.msra.mxu0 0.0
    %2519 = vmatprep.subr.mxu0 0.0
    %2520 = vmatpush1.xpose.msra.mxu0 0.0
    %2521 = vmatprep.subr.mxu0 0.0
    %2522 = vmatpush1.xpose.msra.mxu0 0.0
    %2523 = vmatprep.subr.mxu0 0.0
    %2524 = vmatpush1.xpose.msra.mxu0 0.0
    %2525 = vmatprep.subr.mxu0 0.0
    %2526 = vmatpush1.xpose.msra.mxu0 0.0
    %2527 = vmatprep.subr.mxu0 0.0
    %2528 = vmatpush1.xpose.msra.mxu0 0.0
    %2529 = vmatprep.subr.mxu0 0.0
    %2530 = vmatpush1.xpose.msra.mxu0 0.0
    %2531 = vmatprep.subr.mxu0 0.0
    %2532 = vmatpush1.xpose.msra.mxu0 0.0
    %2533 = vmatprep.subr.mxu0 0.0
    %2534 = vmatpush1.xpose.msra.mxu0 0.0
    %2535 = vmatprep.subr.mxu0 0.0
    %2536 = vmatpush1.xpose.msra.mxu0 0.0
    %2537 = vmatprep.subr.mxu0 0.0
    %2538 = vmatpush1.xpose.msra.mxu0 0.0
    %2539 = vmatprep.subr.mxu0 0.0
    %2540 = vmatpush1.xpose.msra.mxu0 0.0
    %2541 = vmatprep.subr.mxu0 0.0
    %2542 = vmatpush1.xpose.msra.mxu0 0.0
    %2543 = vmatprep.subr.mxu0 0.0
    %2544 = vmatpush1.xpose.msra.mxu0 0.0
    %2545 = vmatprep.subr.mxu0 0.0
    %2546 = vmatpush1.xpose.msra.mxu0 0.0
    %2547 = vmatprep.subr.mxu0 0.0
    %2548 = vmatpush1.xpose.msra.mxu0 0.0
    %2549 = vmatprep.subr.mxu0 0.0
    %2550 = vmatpush1.xpose.msra.mxu0 0.0
    %2551 = vmatprep.subr.mxu0 0.0
    %2552 = vmatpush1.xpose.msra.mxu0 0.0
    %2553 = vmatprep.subr.mxu0 0.0
    %2554 = vmatpush1.xpose.msra.mxu0 0.0
    %2555 = vmatprep.subr.mxu0 0.0
    %2556 = vmatpush1.xpose.msra.mxu0 0.0
    %2557 = vmatprep.subr.mxu0 0.0
    %2558 = vmatpush1.xpose.msra.mxu0 0.0
    %2559 = vmatprep.subr.mxu0 0.0
    %2560 = vmatpush1.xpose.msra.mxu0 0.0
    %2561 = vmatprep.subr.mxu0 0.0
    %2562 = vmatpush1.xpose.msra.mxu0 0.0
    %2563 = vmatprep.subr.mxu0 0.0
    %2564 = vmatpush1.xpose.msra.mxu0 0.0
    %2565 = vmatprep.subr.mxu0 0.0
    %2566 = vmatpush1.xpose.msra.mxu0 0.0
    %2567 = vmatprep.subr.mxu0 0.0
    %2568 = vmatpush1.xpose.msra.mxu0 0.0
    %2569 = vmatprep.subr.mxu0 0.0
    %2570 = vmatpush1.xpose.msra.mxu0 0.0
    %2571 = vmatprep.subr.mxu0 0.0
    %2572 = vmatpush1.xpose.msra.mxu0 0.0
    %2573 = vmatprep.subr.mxu0 0.0
    %2574 = vmatpush1.xpose.msra.mxu0 0.0
    %2575 = vmatprep.subr.mxu0 0.0
    %2576 = vmatpush1.xpose.msra.mxu0 0.0
    %2577 = vmatprep.subr.mxu0 0.0
    %2578 = vmatpush1.xpose.msra.mxu0 0.0
    %2579 = vmatprep.mubr.f32.mxu0 0.0
    %2580 = vmatmul.mubr.f32.gmra.mrb[0].mxu0 %v2510
    %v2581 = vpop.f32.mrb[0].mxu0
    %v2582 = vadd.f32 0.0, %v2581
    %v2583 = vpop.f32.mrb[0].mxu0
    %2584 = vdwg.mxu0
    %v2585 = vsel %vm324, %v2506, -inf
    %2586 = vmax.xlane.f32.xlu0 %v2585
    %v2587 = vpop.xlane.xlu0 %2586
    %v2588 = vsel %vm324, %v2582, -inf
    %2589 = vmax.xlane.f32.xlu0 %v2588
    %v2590 = vpop.xlane.xlu0 %2589
    %v2591 = vsub.f32 %v2506, %v2587
    %v2592 = vsub.f32 %v2582, %v2590
    %v2593 = vmul.f32 %v2591, 1.442695
    %v2594 = vpow.pop %v2593
    %v2595 = vmul.f32 %v2592, 1.442695
    %v2596 = vpow.pop %v2595
    %v2597 = vsel %vm324, %v2594, 0.0
    %2598 = vadd.xlane.f32.xlu0 %v2597
    %v2599 = vpop.xlane.xlu0 %2598
    %v2600 = vsel %vm324, %v2596, 0.0
    %2601 = vadd.xlane.f32.xlu0 %v2600
    %v2602 = vpop.xlane.xlu0 %2601
    %v2603 = vrcp.pop %v2599
    %v2604 = vrcp.pop %v2602
    %v2605 = vmul.f32 %v2594, %v2603
    %v2606 = vmul.f32 %v2596, %v2604
    %2607 = vrot.lane.b32.xlu0 %v2418, 96
    %v2608 = vpop.permute.xlu0 %2607
    %v2611 = vsel %vm324, %v2605, 0
    %2613 = vmatprep.subr.mxu0 0.0
    %2614 = vmatpush1.msra.mxu0 %v2608
    %2615 = vmatprep.subr.mxu0 0.0
    %2616 = vmatpush1.msra.mxu0 0.0
    %2617 = vmatprep.subr.mxu0 0.0
    %2618 = vmatpush1.msra.mxu0 0.0
    %2619 = vmatprep.subr.mxu0 0.0
    %2620 = vmatpush1.msra.mxu0 0.0
    %2621 = vmatprep.subr.mxu0 0.0
    %2622 = vmatpush1.msra.mxu0 0.0
    %2623 = vmatprep.subr.mxu0 0.0
    %2624 = vmatpush1.msra.mxu0 0.0
    %2625 = vmatprep.subr.mxu0 0.0
    %2626 = vmatpush1.msra.mxu0 0.0
    %2627 = vmatprep.subr.mxu0 0.0
    %2628 = vmatpush1.msra.mxu0 0.0
    %2629 = vmatprep.subr.mxu0 0.0
    %2630 = vmatpush1.msra.mxu0 0.0
    %2631 = vmatprep.subr.mxu0 0.0
    %2632 = vmatpush1.msra.mxu0 0.0
    %2633 = vmatprep.subr.mxu0 0.0
    %2634 = vmatpush1.msra.mxu0 0.0
    %2635 = vmatprep.subr.mxu0 0.0
    %2636 = vmatpush1.msra.mxu0 0.0
    %2637 = vmatprep.subr.mxu0 0.0
    %2638 = vmatpush1.msra.mxu0 0.0
    %2639 = vmatprep.subr.mxu0 0.0
    %2640 = vmatpush1.msra.mxu0 0.0
    %2641 = vmatprep.subr.mxu0 0.0
    %2642 = vmatpush1.msra.mxu0 0.0
    %2643 = vmatprep.subr.mxu0 0.0
    %2644 = vmatpush1.msra.mxu0 0.0
    %2645 = vmatprep.subr.mxu0 0.0
    %2646 = vmatpush1.msra.mxu0 0.0
    %2647 = vmatprep.subr.mxu0 0.0
    %2648 = vmatpush1.msra.mxu0 0.0
    %2649 = vmatprep.subr.mxu0 0.0
    %2650 = vmatpush1.msra.mxu0 0.0
    %2651 = vmatprep.subr.mxu0 0.0
    %2652 = vmatpush1.msra.mxu0 0.0
    %2653 = vmatprep.subr.mxu0 0.0
    %2654 = vmatpush1.msra.mxu0 0.0
    %2655 = vmatprep.subr.mxu0 0.0
    %2656 = vmatpush1.msra.mxu0 0.0
    %2657 = vmatprep.subr.mxu0 0.0
    %2658 = vmatpush1.msra.mxu0 0.0
    %2659 = vmatprep.subr.mxu0 0.0
    %2660 = vmatpush1.msra.mxu0 0.0
    %2661 = vmatprep.subr.mxu0 0.0
    %2662 = vmatpush1.msra.mxu0 0.0
    %2663 = vmatprep.subr.mxu0 0.0
    %2664 = vmatpush1.msra.mxu0 0.0
    %2665 = vmatprep.subr.mxu0 0.0
    %2666 = vmatpush1.msra.mxu0 0.0
    %2667 = vmatprep.subr.mxu0 0.0
    %2668 = vmatpush1.msra.mxu0 0.0
    %2669 = vmatprep.subr.mxu0 0.0
    %2670 = vmatpush1.msra.mxu0 0.0
    %2671 = vmatprep.subr.mxu0 0.0
    %2672 = vmatpush1.msra.mxu0 0.0
    %2673 = vmatprep.subr.mxu0 0.0
    %2674 = vmatpush1.msra.mxu0 0.0
    %2675 = vmatprep.subr.mxu0 0.0
    %2676 = vmatpush1.msra.mxu0 0.0
    %2677 = vmatprep.mubr.f32.mxu0 0.0
    %2678 = vmatmul.mubr.f32.gmra.mrb[0].mxu0 %v2611
    %v2679 = vpop.f32.mrb[0].mxu0
    %v2680 = vadd.f32 0.0, %v2679
    %v2681 = vpop.f32.mrb[0].mxu0
    %2682 = vdwg.mxu0
    %2683 = vrot.lane.b32.xlu0 %v2423, 96
    %v2684 = vpop.permute.xlu0 %2683
    %v2687 = vsel %vm324, %v2606, 0
    %2689 = vmatprep.subr.mxu0 0.0
    %2690 = vmatpush1.msra.mxu0 %v2684
    %2691 = vmatprep.subr.mxu0 0.0
    %2692 = vmatpush1.msra.mxu0 0.0
    %2693 = vmatprep.subr.mxu0 0.0
    %2694 = vmatpush1.msra.mxu0 0.0
    %2695 = vmatprep.subr.mxu0 0.0
    %2696 = vmatpush1.msra.mxu0 0.0
    %2697 = vmatprep.subr.mxu0 0.0
    %2698 = vmatpush1.msra.mxu0 0.0
    %2699 = vmatprep.subr.mxu0 0.0
    %2700 = vmatpush1.msra.mxu0 0.0
    %2701 = vmatprep.subr.mxu0 0.0
    %2702 = vmatpush1.msra.mxu0 0.0
    %2703 = vmatprep.subr.mxu0 0.0
    %2704 = vmatpush1.msra.mxu0 0.0
    %2705 = vmatprep.subr.mxu0 0.0
    %2706 = vmatpush1.msra.mxu0 0.0
    %2707 = vmatprep.subr.mxu0 0.0
    %2708 = vmatpush1.msra.mxu0 0.0
    %2709 = vmatprep.subr.mxu0 0.0
    %2710 = vmatpush1.msra.mxu0 0.0
    %2711 = vmatprep.subr.mxu0 0.0
    %2712 = vmatpush1.msra.mxu0 0.0
    %2713 = vmatprep.subr.mxu0 0.0
    %2714 = vmatpush1.msra.mxu0 0.0
    %2715 = vmatprep.subr.mxu0 0.0
    %2716 = vmatpush1.msra.mxu0 0.0
    %2717 = vmatprep.subr.mxu0 0.0
    %2718 = vmatpush1.msra.mxu0 0.0
    %2719 = vmatprep.subr.mxu0 0.0
    %2720 = vmatpush1.msra.mxu0 0.0
    %2721 = vmatprep.subr.mxu0 0.0
    %2722 = vmatpush1.msra.mxu0 0.0
    %2723 = vmatprep.subr.mxu0 0.0
    %2724 = vmatpush1.msra.mxu0 0.0
    %2725 = vmatprep.subr.mxu0 0.0
    %2726 = vmatpush1.msra.mxu0 0.0
    %2727 = vmatprep.subr.mxu0 0.0
    %2728 = vmatpush1.msra.mxu0 0.0
    %2729 = vmatprep.subr.mxu0 0.0
    %2730 = vmatpush1.msra.mxu0 0.0
    %2731 = vmatprep.subr.mxu0 0.0
    %2732 = vmatpush1.msra.mxu0 0.0
    %2733 = vmatprep.subr.mxu0 0.0
    %2734 = vmatpush1.msra.mxu0 0.0
    %2735 = vmatprep.subr.mxu0 0.0
    %2736 = vmatpush1.msra.mxu0 0.0
    %2737 = vmatprep.subr.mxu0 0.0
    %2738 = vmatpush1.msra.mxu0 0.0
    %2739 = vmatprep.subr.mxu0 0.0
    %2740 = vmatpush1.msra.mxu0 0.0
    %2741 = vmatprep.subr.mxu0 0.0
    %2742 = vmatpush1.msra.mxu0 0.0
    %2743 = vmatprep.subr.mxu0 0.0
    %2744 = vmatpush1.msra.mxu0 0.0
    %2745 = vmatprep.subr.mxu0 0.0
    %2746 = vmatpush1.msra.mxu0 0.0
    %2747 = vmatprep.subr.mxu0 0.0
    %2748 = vmatpush1.msra.mxu0 0.0
    %2749 = vmatprep.subr.mxu0 0.0
    %2750 = vmatpush1.msra.mxu0 0.0
    %2751 = vmatprep.subr.mxu0 0.0
    %2752 = vmatpush1.msra.mxu0 0.0
    %2753 = vmatprep.mubr.f32.mxu0 0.0
    %2754 = vmatmul.mubr.f32.gmra.mrb[0].mxu0 %v2687
    %v2755 = vpop.f32.mrb[0].mxu0
    %v2756 = vadd.f32 0.0, %v2755
    %v2757 = vpop.f32.mrb[0].mxu0
    %2758 = vdwg.mxu0
    %2759 = vrot.lane.b32.xlu0 %v2431, 120
    %v2760 = vpop.permute.xlu0 %2759
    %2761 = vrot.lane.b32.xlu0 %v2418, 120
    %v2762 = vpop.permute.xlu0 %2761
    %v2763 = vsel %vm324, %v2760, 0
    %v2765 = vsel %vm324, %v2762, 0
    %2767 = vmatprep.subr.mxu0 0.0
    %2768 = vmatpush1.xpose.msra.mxu0 %v2765
    %2769 = vmatprep.subr.mxu0 0.0
    %2770 = vmatpush1.xpose.msra.mxu0 0.0
    %2771 = vmatprep.subr.mxu0 0.0
    %2772 = vmatpush1.xpose.msra.mxu0 0.0
    %2773 = vmatprep.subr.mxu0 0.0
    %2774 = vmatpush1.xpose.msra.mxu0 0.0
    %2775 = vmatprep.subr.mxu0 0.0
    %2776 = vmatpush1.xpose.msra.mxu0 0.0
    %2777 = vmatprep.subr.mxu0 0.0
    %2778 = vmatpush1.xpose.msra.mxu0 0.0
    %2779 = vmatprep.subr.mxu0 0.0
    %2780 = vmatpush1.xpose.msra.mxu0 0.0
    %2781 = vmatprep.subr.mxu0 0.0
    %2782 = vmatpush1.xpose.msra.mxu0 0.0
    %2783 = vmatprep.subr.mxu0 0.0
    %2784 = vmatpush1.xpose.msra.mxu0 0.0
    %2785 = vmatprep.subr.mxu0 0.0
    %2786 = vmatpush1.xpose.msra.mxu0 0.0
    %2787 = vmatprep.subr.mxu0 0.0
    %2788 = vmatpush1.xpose.msra.mxu0 0.0
    %2789 = vmatprep.subr.mxu0 0.0
    %2790 = vmatpush1.xpose.msra.mxu0 0.0
    %2791 = vmatprep.subr.mxu0 0.0
    %2792 = vmatpush1.xpose.msra.mxu0 0.0
    %2793 = vmatprep.subr.mxu0 0.0
    %2794 = vmatpush1.xpose.msra.mxu0 0.0
    %2795 = vmatprep.subr.mxu0 0.0
    %2796 = vmatpush1.xpose.msra.mxu0 0.0
    %2797 = vmatprep.subr.mxu0 0.0
    %2798 = vmatpush1.xpose.msra.mxu0 0.0
    %2799 = vmatprep.subr.mxu0 0.0
    %2800 = vmatpush1.xpose.msra.mxu0 0.0
    %2801 = vmatprep.subr.mxu0 0.0
    %2802 = vmatpush1.xpose.msra.mxu0 0.0
    %2803 = vmatprep.subr.mxu0 0.0
    %2804 = vmatpush1.xpose.msra.mxu0 0.0
    %2805 = vmatprep.subr.mxu0 0.0
    %2806 = vmatpush1.xpose.msra.mxu0 0.0
    %2807 = vmatprep.subr.mxu0 0.0
    %2808 = vmatpush1.xpose.msra.mxu0 0.0
    %2809 = vmatprep.subr.mxu0 0.0
    %2810 = vmatpush1.xpose.msra.mxu0 0.0
    %2811 = vmatprep.subr.mxu0 0.0
    %2812 = vmatpush1.xpose.msra.mxu0 0.0
    %2813 = vmatprep.subr.mxu0 0.0
    %2814 = vmatpush1.xpose.msra.mxu0 0.0
    %2815 = vmatprep.subr.mxu0 0.0
    %2816 = vmatpush1.xpose.msra.mxu0 0.0
    %2817 = vmatprep.subr.mxu0 0.0
    %2818 = vmatpush1.xpose.msra.mxu0 0.0
    %2819 = vmatprep.subr.mxu0 0.0
    %2820 = vmatpush1.xpose.msra.mxu0 0.0
    %2821 = vmatprep.subr.mxu0 0.0
    %2822 = vmatpush1.xpose.msra.mxu0 0.0
    %2823 = vmatprep.subr.mxu0 0.0
    %2824 = vmatpush1.xpose.msra.mxu0 0.0
    %2825 = vmatprep.subr.mxu0 0.0
    %2826 = vmatpush1.xpose.msra.mxu0 0.0
    %2827 = vmatprep.subr.mxu0 0.0
    %2828 = vmatpush1.xpose.msra.mxu0 0.0
    %2829 = vmatprep.subr.mxu0 0.0
    %2830 = vmatpush1.xpose.msra.mxu0 0.0
    %2831 = vmatprep.mubr.f32.mxu0 0.0
    %2832 = vmatmul.mubr.f32.gmra.mrb[0].mxu0 %v2763
    %v2833 = vpop.f32.mrb[0].mxu0
    %v2834 = vadd.f32 0.0, %v2833
    %v2835 = vpop.f32.mrb[0].mxu0
    %2836 = vdwg.mxu0
    %2837 = vrot.lane.b32.xlu0 %v2432, 120
    %v2838 = vpop.permute.xlu0 %2837
    %2839 = vrot.lane.b32.xlu0 %v2423, 120
    %v2840 = vpop.permute.xlu0 %2839
    %v2841 = vsel %vm324, %v2838, 0
    %v2843 = vsel %vm324, %v2840, 0
    %2845 = vmatprep.subr.mxu0 0.0
    %2846 = vmatpush1.xpose.msra.mxu0 %v2843
    %2847 = vmatprep.subr.mxu0 0.0
    %2848 = vmatpush1.xpose.msra.mxu0 0.0
    %2849 = vmatprep.subr.mxu0 0.0
    %2850 = vmatpush1.xpose.msra.mxu0 0.0
    %2851 = vmatprep.subr.mxu0 0.0
    %2852 = vmatpush1.xpose.msra.mxu0 0.0
    %2853 = vmatprep.subr.mxu0 0.0
    %2854 = vmatpush1.xpose.msra.mxu0 0.0
    %2855 = vmatprep.subr.mxu0 0.0
    %2856 = vmatpush1.xpose.msra.mxu0 0.0
    %2857 = vmatprep.subr.mxu0 0.0
    %2858 = vmatpush1.xpose.msra.mxu0 0.0
    %2859 = vmatprep.subr.mxu0 0.0
    %2860 = vmatpush1.xpose.msra.mxu0 0.0
    %2861 = vmatprep.subr.mxu0 0.0
    %2862 = vmatpush1.xpose.msra.mxu0 0.0
    %2863 = vmatprep.subr.mxu0 0.0
    %2864 = vmatpush1.xpose.msra.mxu0 0.0
    %2865 = vmatprep.subr.mxu0 0.0
    %2866 = vmatpush1.xpose.msra.mxu0 0.0
    %2867 = vmatprep.subr.mxu0 0.0
    %2868 = vmatpush1.xpose.msra.mxu0 0.0
    %2869 = vmatprep.subr.mxu0 0.0
    %2870 = vmatpush1.xpose.msra.mxu0 0.0
    %2871 = vmatprep.subr.mxu0 0.0
    %2872 = vmatpush1.xpose.msra.mxu0 0.0
    %2873 = vmatprep.subr.mxu0 0.0
    %2874 = vmatpush1.xpose.msra.mxu0 0.0
    %2875 = vmatprep.subr.mxu0 0.0
    %2876 = vmatpush1.xpose.msra.mxu0 0.0
    %2877 = vmatprep.subr.mxu0 0.0
    %2878 = vmatpush1.xpose.msra.mxu0 0.0
    %2879 = vmatprep.subr.mxu0 0.0
    %2880 = vmatpush1.xpose.msra.mxu0 0.0
    %2881 = vmatprep.subr.mxu0 0.0
    %2882 = vmatpush1.xpose.msra.mxu0 0.0
    %2883 = vmatprep.subr.mxu0 0.0
    %2884 = vmatpush1.xpose.msra.mxu0 0.0
    %2885 = vmatprep.subr.mxu0 0.0
    %2886 = vmatpush1.xpose.msra.mxu0 0.0
    %2887 = vmatprep.subr.mxu0 0.0
    %2888 = vmatpush1.xpose.msra.mxu0 0.0
    %2889 = vmatprep.subr.mxu0 0.0
    %2890 = vmatpush1.xpose.msra.mxu0 0.0
    %2891 = vmatprep.subr.mxu0 0.0
    %2892 = vmatpush1.xpose.msra.mxu0 0.0
    %2893 = vmatprep.subr.mxu0 0.0
    %2894 = vmatpush1.xpose.msra.mxu0 0.0
    %2895 = vmatprep.subr.mxu0 0.0
    %2896 = vmatpush1.xpose.msra.mxu0 0.0
    %2897 = vmatprep.subr.mxu0 0.0
    %2898 = vmatpush1.xpose.msra.mxu0 0.0
    %2899 = vmatprep.subr.mxu0 0.0
    %2900 = vmatpush1.xpose.msra.mxu0 0.0
    %2901 = vmatprep.subr.mxu0 0.0
    %2902 = vmatpush1.xpose.msra.mxu0 0.0
    %2903 = vmatprep.subr.mxu0 0.0
    %2904 = vmatpush1.xpose.msra.mxu0 0.0
    %2905 = vmatprep.subr.mxu0 0.0
    %2906 = vmatpush1.xpose.msra.mxu0 0.0
    %2907 = vmatprep.subr.mxu0 0.0
    %2908 = vmatpush1.xpose.msra.mxu0 0.0
    %2909 = vmatprep.mubr.f32.mxu0 0.0
    %2910 = vmatmul.mubr.f32.gmra.mrb[0].mxu0 %v2841
    %v2911 = vpop.f32.mrb[0].mxu0
    %v2912 = vadd.f32 0.0, %v2911
    %v2913 = vpop.f32.mrb[0].mxu0
    %2914 = vdwg.mxu0
    %v2915 = vsel %vm324, %v2834, -inf
    %2916 = vmax.xlane.f32.xlu0 %v2915
    %v2917 = vpop.xlane.xlu0 %2916
    %v2918 = vsel %vm324, %v2912, -inf
    %2919 = vmax.xlane.f32.xlu0 %v2918
    %v2920 = vpop.xlane.xlu0 %2919
    %v2921 = vsub.f32 %v2834, %v2917
    %v2922 = vsub.f32 %v2912, %v2920
    %v2923 = vmul.f32 %v2921, 1.442695
    %v2924 = vpow.pop %v2923
    %v2925 = vmul.f32 %v2922, 1.442695
    %v2926 = vpow.pop %v2925
    %v2927 = vsel %vm324, %v2924, 0.0
    %2928 = vadd.xlane.f32.xlu0 %v2927
    %v2929 = vpop.xlane.xlu0 %2928
    %v2930 = vsel %vm324, %v2926, 0.0
    %2931 = vadd.xlane.f32.xlu0 %v2930
    %v2932 = vpop.xlane.xlu0 %2931
    %v2933 = vrcp.pop %v2929
    %v2934 = vrcp.pop %v2932
    %v2935 = vmul.f32 %v2924, %v2933
    %v2936 = vmul.f32 %v2926, %v2934
    %2937 = vrot.lane.b32.xlu0 %v2418, 88
    %v2938 = vpop.permute.xlu0 %2937
    %v2941 = vsel %vm324, %v2935, 0
    %2943 = vmatprep.subr.mxu0 0.0
    %2944 = vmatpush1.msra.mxu0 %v2938
    %2945 = vmatprep.subr.mxu0 0.0
    %2946 = vmatpush1.msra.mxu0 0.0
    %2947 = vmatprep.subr.mxu0 0.0
    %2948 = vmatpush1.msra.mxu0 0.0
    %2949 = vmatprep.subr.mxu0 0.0
    %2950 = vmatpush1.msra.mxu0 0.0
    %2951 = vmatprep.subr.mxu0 0.0
    %2952 = vmatpush1.msra.mxu0 0.0
    %2953 = vmatprep.subr.mxu0 0.0
    %2954 = vmatpush1.msra.mxu0 0.0
    %2955 = vmatprep.subr.mxu0 0.0
    %2956 = vmatpush1.msra.mxu0 0.0
    %2957 = vmatprep.subr.mxu0 0.0
    %2958 = vmatpush1.msra.mxu0 0.0
    %2959 = vmatprep.subr.mxu0 0.0
    %2960 = vmatpush1.msra.mxu0 0.0
    %2961 = vmatprep.subr.mxu0 0.0
    %2962 = vmatpush1.msra.mxu0 0.0
    %2963 = vmatprep.subr.mxu0 0.0
    %2964 = vmatpush1.msra.mxu0 0.0
    %2965 = vmatprep.subr.mxu0 0.0
    %2966 = vmatpush1.msra.mxu0 0.0
    %2967 = vmatprep.subr.mxu0 0.0
    %2968 = vmatpush1.msra.mxu0 0.0
    %2969 = vmatprep.subr.mxu0 0.0
    %2970 = vmatpush1.msra.mxu0 0.0
    %2971 = vmatprep.subr.mxu0 0.0
    %2972 = vmatpush1.msra.mxu0 0.0
    %2973 = vmatprep.subr.mxu0 0.0
    %2974 = vmatpush1.msra.mxu0 0.0
    %2975 = vmatprep.subr.mxu0 0.0
    %2976 = vmatpush1.msra.mxu0 0.0
    %2977 = vmatprep.subr.mxu0 0.0
    %2978 = vmatpush1.msra.mxu0 0.0
    %2979 = vmatprep.subr.mxu0 0.0
    %2980 = vmatpush1.msra.mxu0 0.0
    %2981 = vmatprep.subr.mxu0 0.0
    %2982 = vmatpush1.msra.mxu0 0.0
    %2983 = vmatprep.subr.mxu0 0.0
    %2984 = vmatpush1.msra.mxu0 0.0
    %2985 = vmatprep.subr.mxu0 0.0
    %2986 = vmatpush1.msra.mxu0 0.0
    %2987 = vmatprep.subr.mxu0 0.0
    %2988 = vmatpush1.msra.mxu0 0.0
    %2989 = vmatprep.subr.mxu0 0.0
    %2990 = vmatpush1.msra.mxu0 0.0
    %2991 = vmatprep.subr.mxu0 0.0
    %2992 = vmatpush1.msra.mxu0 0.0
    %2993 = vmatprep.subr.mxu0 0.0
    %2994 = vmatpush1.msra.mxu0 0.0
    %2995 = vmatprep.subr.mxu0 0.0
    %2996 = vmatpush1.msra.mxu0 0.0
    %2997 = vmatprep.subr.mxu0 0.0
    %2998 = vmatpush1.msra.mxu0 0.0
    %2999 = vmatprep.subr.mxu0 0.0
    %3000 = vmatpush1.msra.mxu0 0.0
    %3001 = vmatprep.subr.mxu0 0.0
    %3002 = vmatpush1.msra.mxu0 0.0
    %3003 = vmatprep.subr.mxu0 0.0
    %3004 = vmatpush1.msra.mxu0 0.0
    %3005 = vmatprep.subr.mxu0 0.0
    %3006 = vmatpush1.msra.mxu0 0.0
    %3007 = vmatprep.mubr.f32.mxu0 0.0
    %3008 = vmatmul.mubr.f32.gmra.mrb[0].mxu0 %v2941
    %v3009 = vpop.f32.mrb[0].mxu0
    %v3010 = vadd.f32 0.0, %v3009
    %v3011 = vpop.f32.mrb[0].mxu0
    %3012 = vdwg.mxu0
    %3013 = vrot.lane.b32.xlu0 %v2423, 88
    %v3014 = vpop.permute.xlu0 %3013
    %v3017 = vsel %vm324, %v2936, 0
    %3019 = vmatprep.subr.mxu0 0.0
    %3020 = vmatpush1.msra.mxu0 %v3014
    %3021 = vmatprep.subr.mxu0 0.0
    %3022 = vmatpush1.msra.mxu0 0.0
    %3023 = vmatprep.subr.mxu0 0.0
    %3024 = vmatpush1.msra.mxu0 0.0
    %3025 = vmatprep.subr.mxu0 0.0
    %3026 = vmatpush1.msra.mxu0 0.0
    %3027 = vmatprep.subr.mxu0 0.0
    %3028 = vmatpush1.msra.mxu0 0.0
    %3029 = vmatprep.subr.mxu0 0.0
    %3030 = vmatpush1.msra.mxu0 0.0
    %3031 = vmatprep.subr.mxu0 0.0
    %3032 = vmatpush1.msra.mxu0 0.0
    %3033 = vmatprep.subr.mxu0 0.0
    %3034 = vmatpush1.msra.mxu0 0.0
    %3035 = vmatprep.subr.mxu0 0.0
    %3036 = vmatpush1.msra.mxu0 0.0
    %3037 = vmatprep.subr.mxu0 0.0
    %3038 = vmatpush1.msra.mxu0 0.0
    %3039 = vmatprep.subr.mxu0 0.0
    %3040 = vmatpush1.msra.mxu0 0.0
    %3041 = vmatprep.subr.mxu0 0.0
    %3042 = vmatpush1.msra.mxu0 0.0
    %3043 = vmatprep.subr.mxu0 0.0
    %3044 = vmatpush1.msra.mxu0 0.0
    %3045 = vmatprep.subr.mxu0 0.0
    %3046 = vmatpush1.msra.mxu0 0.0
    %3047 = vmatprep.subr.mxu0 0.0
    %3048 = vmatpush1.msra.mxu0 0.0
    %3049 = vmatprep.subr.mxu0 0.0
    %3050 = vmatpush1.msra.mxu0 0.0
    %3051 = vmatprep.subr.mxu0 0.0
    %3052 = vmatpush1.msra.mxu0 0.0
    %3053 = vmatprep.subr.mxu0 0.0
    %3054 = vmatpush1.msra.mxu0 0.0
    %3055 = vmatprep.subr.mxu0 0.0
    %3056 = vmatpush1.msra.mxu0 0.0
    %3057 = vmatprep.subr.mxu0 0.0
    %3058 = vmatpush1.msra.mxu0 0.0
    %3059 = vmatprep.subr.mxu0 0.0
    %3060 = vmatpush1.msra.mxu0 0.0
    %3061 = vmatprep.subr.mxu0 0.0
    %3062 = vmatpush1.msra.mxu0 0.0
    %3063 = vmatprep.subr.mxu0 0.0
    %3064 = vmatpush1.msra.mxu0 0.0
    %3065 = vmatprep.subr.mxu0 0.0
    %3066 = vmatpush1.msra.mxu0 0.0
    %3067 = vmatprep.subr.mxu0 0.0
    %3068 = vmatpush1.msra.mxu0 0.0
    %3069 = vmatprep.subr.mxu0 0.0
    %3070 = vmatpush1.msra.mxu0 0.0
    %3071 = vmatprep.subr.mxu0 0.0
    %3072 = vmatpush1.msra.mxu0 0.0
    %3073 = vmatprep.subr.mxu0 0.0
    %3074 = vmatpush1.msra.mxu0 0.0
    %3075 = vmatprep.subr.mxu0 0.0
    %3076 = vmatpush1.msra.mxu0 0.0
    %3077 = vmatprep.subr.mxu0 0.0
    %3078 = vmatpush1.msra.mxu0 0.0
    %3079 = vmatprep.subr.mxu0 0.0
    %3080 = vmatpush1.msra.mxu0 0.0
    %3081 = vmatprep.subr.mxu0 0.0
    %3082 = vmatpush1.msra.mxu0 0.0
    %3083 = vmatprep.mubr.f32.mxu0 0.0
    %3084 = vmatmul.mubr.f32.gmra.mrb[0].mxu0 %v3017
    %v3085 = vpop.f32.mrb[0].mxu0
    %v3086 = vadd.f32 0.0, %v3085
    %v3087 = vpop.f32.mrb[0].mxu0
    %3088 = vdwg.mxu0
    %v3090 = vsel %vm324, %v3010, 0
    %v3093 = vsel %vm324, %v3086, 0
    %3095 = vmatprep.subr.mxu0 0.0
    %3096 = vmatpush1.msra.mxu0 %v2427
    %3097 = vmatprep.subr.mxu0 0.0
    %3098 = vmatpush1.msra.mxu0 0.0
    %3099 = vmatprep.subr.mxu0 0.0
    %3100 = vmatpush1.msra.mxu0 0.0
    %3101 = vmatprep.subr.mxu0 0.0
    %3102 = vmatpush1.msra.mxu0 0.0
    %3103 = vmatprep.subr.mxu0 0.0
    %3104 = vmatpush1.msra.mxu0 0.0
    %3105 = vmatprep.subr.mxu0 0.0
    %3106 = vmatpush1.msra.mxu0 0.0
    %3107 = vmatprep.subr.mxu0 0.0
    %3108 = vmatpush1.msra.mxu0 0.0
    %3109 = vmatprep.subr.mxu0 0.0
    %3110 = vmatpush1.msra.mxu0 0.0
    %3111 = vmatprep.subr.mxu0 0.0
    %3112 = vmatpush1.msra.mxu0 0.0
    %3113 = vmatprep.subr.mxu0 0.0
    %3114 = vmatpush1.msra.mxu0 0.0
    %3115 = vmatprep.subr.mxu0 0.0
    %3116 = vmatpush1.msra.mxu0 0.0
    %3117 = vmatprep.subr.mxu0 0.0
    %3118 = vmatpush1.msra.mxu0 0.0
    %3119 = vmatprep.subr.mxu0 0.0
    %3120 = vmatpush1.msra.mxu0 0.0
    %3121 = vmatprep.subr.mxu0 0.0
    %3122 = vmatpush1.msra.mxu0 0.0
    %3123 = vmatprep.subr.mxu0 0.0
    %3124 = vmatpush1.msra.mxu0 0.0
    %3125 = vmatprep.subr.mxu0 0.0
    %3126 = vmatpush1.msra.mxu0 0.0
    %3127 = vmatprep.subr.mxu0 0.0
    %3128 = vmatpush1.msra.mxu0 0.0
    %3129 = vmatprep.subr.mxu0 0.0
    %3130 = vmatpush1.msra.mxu0 0.0
    %3131 = vmatprep.subr.mxu0 0.0
    %3132 = vmatpush1.msra.mxu0 0.0
    %3133 = vmatprep.subr.mxu0 0.0
    %3134 = vmatpush1.msra.mxu0 0.0
    %3135 = vmatprep.subr.mxu0 0.0
    %3136 = vmatpush1.msra.mxu0 0.0
    %3137 = vmatprep.subr.mxu0 0.0
    %3138 = vmatpush1.msra.mxu0 0.0
    %3139 = vmatprep.subr.mxu0 0.0
    %3140 = vmatpush1.msra.mxu0 0.0
    %3141 = vmatprep.subr.mxu0 0.0
    %3142 = vmatpush1.msra.mxu0 0.0
    %3143 = vmatprep.subr.mxu0 0.0
    %3144 = vmatpush1.msra.mxu0 0.0
    %3145 = vmatprep.subr.mxu0 0.0
    %3146 = vmatpush1.msra.mxu0 0.0
    %3147 = vmatprep.subr.mxu0 0.0
    %3148 = vmatpush1.msra.mxu0 0.0
    %3149 = vmatprep.subr.mxu0 0.0
    %3150 = vmatpush1.msra.mxu0 0.0
    %3151 = vmatprep.subr.mxu0 0.0
    %3152 = vmatpush1.msra.mxu0 0.0
    %3153 = vmatprep.subr.mxu0 0.0
    %3154 = vmatpush1.msra.mxu0 0.0
    %3155 = vmatprep.subr.mxu0 0.0
    %3156 = vmatpush1.msra.mxu0 0.0
    %3157 = vmatprep.subr.mxu0 0.0
    %3158 = vmatpush1.msra.mxu0 0.0
    %3159 = vmatprep.mubr.f32.mxu0 0.0
    %3160 = vmatmul.mubr.f32.gmra.mrb[0].mxu0 %v3090
    %v3161 = vpop.f32.mrb[0].mxu0
    %v3162 = vadd.f32 0.0, %v3161
    %v3163 = vpop.f32.mrb[0].mxu0
    %3164 = vmatprep.mubr.f32.mxu0 0.0
    %3165 = vmatmul.mubr.f32.gmra.mrb[0].mxu0 %v3093
    %v3166 = vpop.f32.mrb[0].mxu0
    %v3167 = vadd.f32 0.0, %v3166
    %v3168 = vpop.f32.mrb[0].mxu0
    %3169 = vdwg.mxu0
    %v3171 = vsel %vm324, %v2680, 0
    %v3174 = vsel %vm324, %v2756, 0
    %3176 = vmatprep.subr.mxu0 0.0
    %3177 = vmatpush1.msra.mxu0 %v2426
    %3178 = vmatprep.subr.mxu0 0.0
    %3179 = vmatpush1.msra.mxu0 0.0
    %3180 = vmatprep.subr.mxu0 0.0
    %3181 = vmatpush1.msra.mxu0 0.0
    %3182 = vmatprep.subr.mxu0 0.0
    %3183 = vmatpush1.msra.mxu0 0.0
    %3184 = vmatprep.subr.mxu0 0.0
    %3185 = vmatpush1.msra.mxu0 0.0
    %3186 = vmatprep.subr.mxu0 0.0
    %3187 = vmatpush1.msra.mxu0 0.0
    %3188 = vmatprep.subr.mxu0 0.0
    %3189 = vmatpush1.msra.mxu0 0.0
    %3190 = vmatprep.subr.mxu0 0.0
    %3191 = vmatpush1.msra.mxu0 0.0
    %3192 = vmatprep.subr.mxu0 0.0
    %3193 = vmatpush1.msra.mxu0 0.0
    %3194 = vmatprep.subr.mxu0 0.0
    %3195 = vmatpush1.msra.mxu0 0.0
    %3196 = vmatprep.subr.mxu0 0.0
    %3197 = vmatpush1.msra.mxu0 0.0
    %3198 = vmatprep.subr.mxu0 0.0
    %3199 = vmatpush1.msra.mxu0 0.0
    %3200 = vmatprep.subr.mxu0 0.0
    %3201 = vmatpush1.msra.mxu0 0.0
    %3202 = vmatprep.subr.mxu0 0.0
    %3203 = vmatpush1.msra.mxu0 0.0
    %3204 = vmatprep.subr.mxu0 0.0
    %3205 = vmatpush1.msra.mxu0 0.0
    %3206 = vmatprep.subr.mxu0 0.0
    %3207 = vmatpush1.msra.mxu0 0.0
    %3208 = vmatprep.subr.mxu0 0.0
    %3209 = vmatpush1.msra.mxu0 0.0
    %3210 = vmatprep.subr.mxu0 0.0
    %3211 = vmatpush1.msra.mxu0 0.0
    %3212 = vmatprep.subr.mxu0 0.0
    %3213 = vmatpush1.msra.mxu0 0.0
    %3214 = vmatprep.subr.mxu0 0.0
    %3215 = vmatpush1.msra.mxu0 0.0
    %3216 = vmatprep.subr.mxu0 0.0
    %3217 = vmatpush1.msra.mxu0 0.0
    %3218 = vmatprep.subr.mxu0 0.0
    %3219 = vmatpush1.msra.mxu0 0.0
    %3220 = vmatprep.subr.mxu0 0.0
    %3221 = vmatpush1.msra.mxu0 0.0
    %3222 = vmatprep.subr.mxu0 0.0
    %3223 = vmatpush1.msra.mxu0 0.0
    %3224 = vmatprep.subr.mxu0 0.0
    %3225 = vmatpush1.msra.mxu0 0.0
    %3226 = vmatprep.subr.mxu0 0.0
    %3227 = vmatpush1.msra.mxu0 0.0
    %3228 = vmatprep.subr.mxu0 0.0
    %3229 = vmatpush1.msra.mxu0 0.0
    %3230 = vmatprep.subr.mxu0 0.0
    %3231 = vmatpush1.msra.mxu0 0.0
    %3232 = vmatprep.subr.mxu0 0.0
    %3233 = vmatpush1.msra.mxu0 0.0
    %3234 = vmatprep.subr.mxu0 0.0
    %3235 = vmatpush1.msra.mxu0 0.0
    %3236 = vmatprep.subr.mxu0 0.0
    %3237 = vmatpush1.msra.mxu0 0.0
    %3238 = vmatprep.subr.mxu0 0.0
    %3239 = vmatpush1.msra.mxu0 0.0
    %3240 = vmatprep.mubr.f32.mxu0 0.0
    %3241 = vmatmul.mubr.f32.gmra.mrb[0].mxu0 %v3171
    %v3242 = vpop.f32.mrb[0].mxu0
    %v3243 = vadd.f32 %v3162, %v3242
    %v3244 = vpop.f32.mrb[0].mxu0
    %3245 = vmatprep.mubr.f32.mxu0 0.0
    %3246 = vmatmul.mubr.f32.gmra.mrb[0].mxu0 %v3174
    %v3247 = vpop.f32.mrb[0].mxu0
    %v3248 = vadd.f32 %v3167, %v3247
    %v3249 = vpop.f32.mrb[0].mxu0
    %3250 = vdwg.mxu0
    %3251 = vrot.lane.b32.xlu0 %v2431, 112
    %v3252 = vpop.permute.xlu0 %3251
    %3253 = vrot.lane.b32.xlu0 %v2418, 112
    %v3254 = vpop.permute.xlu0 %3253
    %v3255 = vsel %vm324, %v3252, 0
    %v3257 = vsel %vm324, %v3254, 0
    %3259 = vmatprep.subr.mxu0 0.0
    %3260 = vmatpush1.xpose.msra.mxu0 %v3257
    %3261 = vmatprep.subr.mxu0 0.0
    %3262 = vmatpush1.xpose.msra.mxu0 0.0
    %3263 = vmatprep.subr.mxu0 0.0
    %3264 = vmatpush1.xpose.msra.mxu0 0.0
    %3265 = vmatprep.subr.mxu0 0.0
    %3266 = vmatpush1.xpose.msra.mxu0 0.0
    %3267 = vmatprep.subr.mxu0 0.0
    %3268 = vmatpush1.xpose.msra.mxu0 0.0
    %3269 = vmatprep.subr.mxu0 0.0
    %3270 = vmatpush1.xpose.msra.mxu0 0.0
    %3271 = vmatprep.subr.mxu0 0.0
    %3272 = vmatpush1.xpose.msra.mxu0 0.0
    %3273 = vmatprep.subr.mxu0 0.0
    %3274 = vmatpush1.xpose.msra.mxu0 0.0
    %3275 = vmatprep.subr.mxu0 0.0
    %3276 = vmatpush1.xpose.msra.mxu0 0.0
    %3277 = vmatprep.subr.mxu0 0.0
    %3278 = vmatpush1.xpose.msra.mxu0 0.0
    %3279 = vmatprep.subr.mxu0 0.0
    %3280 = vmatpush1.xpose.msra.mxu0 0.0
    %3281 = vmatprep.subr.mxu0 0.0
    %3282 = vmatpush1.xpose.msra.mxu0 0.0
    %3283 = vmatprep.subr.mxu0 0.0
    %3284 = vmatpush1.xpose.msra.mxu0 0.0
    %3285 = vmatprep.subr.mxu0 0.0
    %3286 = vmatpush1.xpose.msra.mxu0 0.0
    %3287 = vmatprep.subr.mxu0 0.0
    %3288 = vmatpush1.xpose.msra.mxu0 0.0
    %3289 = vmatprep.subr.mxu0 0.0
    %3290 = vmatpush1.xpose.msra.mxu0 0.0
    %3291 = vmatprep.subr.mxu0 0.0
    %3292 = vmatpush1.xpose.msra.mxu0 0.0
    %3293 = vmatprep.subr.mxu0 0.0
    %3294 = vmatpush1.xpose.msra.mxu0 0.0
    %3295 = vmatprep.subr.mxu0 0.0
    %3296 = vmatpush1.xpose.msra.mxu0 0.0
    %3297 = vmatprep.subr.mxu0 0.0
    %3298 = vmatpush1.xpose.msra.mxu0 0.0
    %3299 = vmatprep.subr.mxu0 0.0
    %3300 = vmatpush1.xpose.msra.mxu0 0.0
    %3301 = vmatprep.subr.mxu0 0.0
    %3302 = vmatpush1.xpose.msra.mxu0 0.0
    %3303 = vmatprep.subr.mxu0 0.0
    %3304 = vmatpush1.xpose.msra.mxu0 0.0
    %3305 = vmatprep.subr.mxu0 0.0
    %3306 = vmatpush1.xpose.msra.mxu0 0.0
    %3307 = vmatprep.subr.mxu0 0.0
    %3308 = vmatpush1.xpose.msra.mxu0 0.0
    %3309 = vmatprep.subr.mxu0 0.0
    %3310 = vmatpush1.xpose.msra.mxu0 0.0
    %3311 = vmatprep.subr.mxu0 0.0
    %3312 = vmatpush1.xpose.msra.mxu0 0.0
    %3313 = vmatprep.subr.mxu0 0.0
    %3314 = vmatpush1.xpose.msra.mxu0 0.0
    %3315 = vmatprep.subr.mxu0 0.0
    %3316 = vmatpush1.xpose.msra.mxu0 0.0
    %3317 = vmatprep.subr.mxu0 0.0
    %3318 = vmatpush1.xpose.msra.mxu0 0.0
    %3319 = vmatprep.subr.mxu0 0.0
    %3320 = vmatpush1.xpose.msra.mxu0 0.0
    %3321 = vmatprep.subr.mxu0 0.0
    %3322 = vmatpush1.xpose.msra.mxu0 0.0
    %3323 = vmatprep.mubr.f32.mxu0 0.0
    %3324 = vmatmul.mubr.f32.gmra.mrb[0].mxu0 %v3255
    %v3325 = vpop.f32.mrb[0].mxu0
    %v3326 = vadd.f32 0.0, %v3325
    %v3327 = vpop.f32.mrb[0].mxu0
    %3328 = vdwg.mxu0
    %3329 = vrot.lane.b32.xlu0 %v2432, 112
    %v3330 = vpop.permute.xlu0 %3329
    %3331 = vrot.lane.b32.xlu0 %v2423, 112
    %v3332 = vpop.permute.xlu0 %3331
    %v3333 = vsel %vm324, %v3330, 0
    %v3335 = vsel %vm324, %v3332, 0
    %3337 = vmatprep.subr.mxu0 0.0
    %3338 = vmatpush1.xpose.msra.mxu0 %v3335
    %3339 = vmatprep.subr.mxu0 0.0
    %3340 = vmatpush1.xpose.msra.mxu0 0.0
    %3341 = vmatprep.subr.mxu0 0.0
    %3342 = vmatpush1.xpose.msra.mxu0 0.0
    %3343 = vmatprep.subr.mxu0 0.0
    %3344 = vmatpush1.xpose.msra.mxu0 0.0
    %3345 = vmatprep.subr.mxu0 0.0
    %3346 = vmatpush1.xpose.msra.mxu0 0.0
    %3347 = vmatprep.subr.mxu0 0.0
    %3348 = vmatpush1.xpose.msra.mxu0 0.0
    %3349 = vmatprep.subr.mxu0 0.0
    %3350 = vmatpush1.xpose.msra.mxu0 0.0
    %3351 = vmatprep.subr.mxu0 0.0
    %3352 = vmatpush1.xpose.msra.mxu0 0.0
    %3353 = vmatprep.subr.mxu0 0.0
    %3354 = vmatpush1.xpose.msra.mxu0 0.0
    %3355 = vmatprep.subr.mxu0 0.0
    %3356 = vmatpush1.xpose.msra.mxu0 0.0
    %3357 = vmatprep.subr.mxu0 0.0
    %3358 = vmatpush1.xpose.msra.mxu0 0.0
    %3359 = vmatprep.subr.mxu0 0.0
    %3360 = vmatpush1.xpose.msra.mxu0 0.0
    %3361 = vmatprep.subr.mxu0 0.0
    %3362 = vmatpush1.xpose.msra.mxu0 0.0
    %3363 = vmatprep.subr.mxu0 0.0
    %3364 = vmatpush1.xpose.msra.mxu0 0.0
    %3365 = vmatprep.subr.mxu0 0.0
    %3366 = vmatpush1.xpose.msra.mxu0 0.0
    %3367 = vmatprep.subr.mxu0 0.0
    %3368 = vmatpush1.xpose.msra.mxu0 0.0
    %3369 = vmatprep.subr.mxu0 0.0
    %3370 = vmatpush1.xpose.msra.mxu0 0.0
    %3371 = vmatprep.subr.mxu0 0.0
    %3372 = vmatpush1.xpose.msra.mxu0 0.0
    %3373 = vmatprep.subr.mxu0 0.0
    %3374 = vmatpush1.xpose.msra.mxu0 0.0
    %3375 = vmatprep.subr.mxu0 0.0
    %3376 = vmatpush1.xpose.msra.mxu0 0.0
    %3377 = vmatprep.subr.mxu0 0.0
    %3378 = vmatpush1.xpose.msra.mxu0 0.0
    %3379 = vmatprep.subr.mxu0 0.0
    %3380 = vmatpush1.xpose.msra.mxu0 0.0
    %3381 = vmatprep.subr.mxu0 0.0
    %3382 = vmatpush1.xpose.msra.mxu0 0.0
    %3383 = vmatprep.subr.mxu0 0.0
    %3384 = vmatpush1.xpose.msra.mxu0 0.0
    %3385 = vmatprep.subr.mxu0 0.0
    %3386 = vmatpush1.xpose.msra.mxu0 0.0
    %3387 = vmatprep.subr.mxu0 0.0
    %3388 = vmatpush1.xpose.msra.mxu0 0.0
    %3389 = vmatprep.subr.mxu0 0.0
    %3390 = vmatpush1.xpose.msra.mxu0 0.0
    %3391 = vmatprep.subr.mxu0 0.0
    %3392 = vmatpush1.xpose.msra.mxu0 0.0
    %3393 = vmatprep.subr.mxu0 0.0
    %3394 = vmatpush1.xpose.msra.mxu0 0.0
    %3395 = vmatprep.subr.mxu0 0.0
    %3396 = vmatpush1.xpose.msra.mxu0 0.0
    %3397 = vmatprep.subr.mxu0 0.0
    %3398 = vmatpush1.xpose.msra.mxu0 0.0
    %3399 = vmatprep.subr.mxu0 0.0
    %3400 = vmatpush1.xpose.msra.mxu0 0.0
    %3401 = vmatprep.mubr.f32.mxu0 0.0
    %3402 = vmatmul.mubr.f32.gmra.mrb[0].mxu0 %v3333
    %v3403 = vpop.f32.mrb[0].mxu0
    %v3404 = vadd.f32 0.0, %v3403
    %v3405 = vpop.f32.mrb[0].mxu0
    %3406 = vdwg.mxu0
    %v3407 = vsel %vm324, %v3326, -inf
    %3408 = vmax.xlane.f32.xlu0 %v3407
    %v3409 = vpop.xlane.xlu0 %3408
    %v3410 = vsel %vm324, %v3404, -inf
    %3411 = vmax.xlane.f32.xlu0 %v3410
    %v3412 = vpop.xlane.xlu0 %3411
    %v3413 = vsub.f32 %v3326, %v3409
    %v3414 = vsub.f32 %v3404, %v3412
    %v3415 = vmul.f32 %v3413, 1.442695
    %v3416 = vpow.pop %v3415
    %v3417 = vmul.f32 %v3414, 1.442695
    %v3418 = vpow.pop %v3417
    %v3419 = vsel %vm324, %v3416, 0.0
    %3420 = vadd.xlane.f32.xlu0 %v3419
    %v3421 = vpop.xlane.xlu0 %3420
    %v3422 = vsel %vm324, %v3418, 0.0
    %3423 = vadd.xlane.f32.xlu0 %v3422
    %v3424 = vpop.xlane.xlu0 %3423
    %v3425 = vrcp.pop %v3421
    %v3426 = vrcp.pop %v3424
    %v3427 = vmul.f32 %v3416, %v3425
    %v3428 = vmul.f32 %v3418, %v3426
    %3429 = vrot.lane.b32.xlu0 %v2418, 80
    %v3430 = vpop.permute.xlu0 %3429
    %v3433 = vsel %vm324, %v3427, 0
    %3435 = vmatprep.subr.mxu0 0.0
    %3436 = vmatpush1.msra.mxu0 %v3430
    %3437 = vmatprep.subr.mxu0 0.0
    %3438 = vmatpush1.msra.mxu0 0.0
    %3439 = vmatprep.subr.mxu0 0.0
    %3440 = vmatpush1.msra.mxu0 0.0
    %3441 = vmatprep.subr.mxu0 0.0
    %3442 = vmatpush1.msra.mxu0 0.0
    %3443 = vmatprep.subr.mxu0 0.0
    %3444 = vmatpush1.msra.mxu0 0.0
    %3445 = vmatprep.subr.mxu0 0.0
    %3446 = vmatpush1.msra.mxu0 0.0
    %3447 = vmatprep.subr.mxu0 0.0
    %3448 = vmatpush1.msra.mxu0 0.0
    %3449 = vmatprep.subr.mxu0 0.0
    %3450 = vmatpush1.msra.mxu0 0.0
    %3451 = vmatprep.subr.mxu0 0.0
    %3452 = vmatpush1.msra.mxu0 0.0
    %3453 = vmatprep.subr.mxu0 0.0
    %3454 = vmatpush1.msra.mxu0 0.0
    %3455 = vmatprep.subr.mxu0 0.0
    %3456 = vmatpush1.msra.mxu0 0.0
    %3457 = vmatprep.subr.mxu0 0.0
    %3458 = vmatpush1.msra.mxu0 0.0
    %3459 = vmatprep.subr.mxu0 0.0
    %3460 = vmatpush1.msra.mxu0 0.0
    %3461 = vmatprep.subr.mxu0 0.0
    %3462 = vmatpush1.msra.mxu0 0.0
    %3463 = vmatprep.subr.mxu0 0.0
    %3464 = vmatpush1.msra.mxu0 0.0
    %3465 = vmatprep.subr.mxu0 0.0
    %3466 = vmatpush1.msra.mxu0 0.0
    %3467 = vmatprep.subr.mxu0 0.0
    %3468 = vmatpush1.msra.mxu0 0.0
    %3469 = vmatprep.subr.mxu0 0.0
    %3470 = vmatpush1.msra.mxu0 0.0
    %3471 = vmatprep.subr.mxu0 0.0
    %3472 = vmatpush1.msra.mxu0 0.0
    %3473 = vmatprep.subr.mxu0 0.0
    %3474 = vmatpush1.msra.mxu0 0.0
    %3475 = vmatprep.subr.mxu0 0.0
    %3476 = vmatpush1.msra.mxu0 0.0
    %3477 = vmatprep.subr.mxu0 0.0
    %3478 = vmatpush1.msra.mxu0 0.0
    %3479 = vmatprep.subr.mxu0 0.0
    %3480 = vmatpush1.msra.mxu0 0.0
    %3481 = vmatprep.subr.mxu0 0.0
    %3482 = vmatpush1.msra.mxu0 0.0
    %3483 = vmatprep.subr.mxu0 0.0
    %3484 = vmatpush1.msra.mxu0 0.0
    %3485 = vmatprep.subr.mxu0 0.0
    %3486 = vmatpush1.msra.mxu0 0.0
    %3487 = vmatprep.subr.mxu0 0.0
    %3488 = vmatpush1.msra.mxu0 0.0
    %3489 = vmatprep.subr.mxu0 0.0
    %3490 = vmatpush1.msra.mxu0 0.0
    %3491 = vmatprep.subr.mxu0 0.0
    %3492 = vmatpush1.msra.mxu0 0.0
    %3493 = vmatprep.subr.mxu0 0.0
    %3494 = vmatpush1.msra.mxu0 0.0
    %3495 = vmatprep.subr.mxu0 0.0
    %3496 = vmatpush1.msra.mxu0 0.0
    %3497 = vmatprep.subr.mxu0 0.0
    %3498 = vmatpush1.msra.mxu0 0.0
    %3499 = vmatprep.mubr.f32.mxu0 0.0
    %3500 = vmatmul.mubr.f32.gmra.mrb[0].mxu0 %v3433
    %v3501 = vpop.f32.mrb[0].mxu0
    %v3502 = vadd.f32 0.0, %v3501
    %v3503 = vpop.f32.mrb[0].mxu0
    %3504 = vdwg.mxu0
    %3505 = vrot.lane.b32.xlu0 %v2423, 80
    %v3506 = vpop.permute.xlu0 %3505
    %v3509 = vsel %vm324, %v3428, 0
    %3511 = vmatprep.subr.mxu0 0.0
    %3512 = vmatpush1.msra.mxu0 %v3506
    %3513 = vmatprep.subr.mxu0 0.0
    %3514 = vmatpush1.msra.mxu0 0.0
    %3515 = vmatprep.subr.mxu0 0.0
    %3516 = vmatpush1.msra.mxu0 0.0
    %3517 = vmatprep.subr.mxu0 0.0
    %3518 = vmatpush1.msra.mxu0 0.0
    %3519 = vmatprep.subr.mxu0 0.0
    %3520 = vmatpush1.msra.mxu0 0.0
    %3521 = vmatprep.subr.mxu0 0.0
    %3522 = vmatpush1.msra.mxu0 0.0
    %3523 = vmatprep.subr.mxu0 0.0
    %3524 = vmatpush1.msra.mxu0 0.0
    %3525 = vmatprep.subr.mxu0 0.0
    %3526 = vmatpush1.msra.mxu0 0.0
    %3527 = vmatprep.subr.mxu0 0.0
    %3528 = vmatpush1.msra.mxu0 0.0
    %3529 = vmatprep.subr.mxu0 0.0
    %3530 = vmatpush1.msra.mxu0 0.0
    %3531 = vmatprep.subr.mxu0 0.0
    %3532 = vmatpush1.msra.mxu0 0.0
    %3533 = vmatprep.subr.mxu0 0.0
    %3534 = vmatpush1.msra.mxu0 0.0
    %3535 = vmatprep.subr.mxu0 0.0
    %3536 = vmatpush1.msra.mxu0 0.0
    %3537 = vmatprep.subr.mxu0 0.0
    %3538 = vmatpush1.msra.mxu0 0.0
    %3539 = vmatprep.subr.mxu0 0.0
    %3540 = vmatpush1.msra.mxu0 0.0
    %3541 = vmatprep.subr.mxu0 0.0
    %3542 = vmatpush1.msra.mxu0 0.0
    %3543 = vmatprep.subr.mxu0 0.0
    %3544 = vmatpush1.msra.mxu0 0.0
    %3545 = vmatprep.subr.mxu0 0.0
    %3546 = vmatpush1.msra.mxu0 0.0
    %3547 = vmatprep.subr.mxu0 0.0
    %3548 = vmatpush1.msra.mxu0 0.0
    %3549 = vmatprep.subr.mxu0 0.0
    %3550 = vmatpush1.msra.mxu0 0.0
    %3551 = vmatprep.subr.mxu0 0.0
    %3552 = vmatpush1.msra.mxu0 0.0
    %3553 = vmatprep.subr.mxu0 0.0
    %3554 = vmatpush1.msra.mxu0 0.0
    %3555 = vmatprep.subr.mxu0 0.0
    %3556 = vmatpush1.msra.mxu0 0.0
    %3557 = vmatprep.subr.mxu0 0.0
    %3558 = vmatpush1.msra.mxu0 0.0
    %3559 = vmatprep.subr.mxu0 0.0
    %3560 = vmatpush1.msra.mxu0 0.0
    %3561 = vmatprep.subr.mxu0 0.0
    %3562 = vmatpush1.msra.mxu0 0.0
    %3563 = vmatprep.subr.mxu0 0.0
    %3564 = vmatpush1.msra.mxu0 0.0
    %3565 = vmatprep.subr.mxu0 0.0
    %3566 = vmatpush1.msra.mxu0 0.0
    %3567 = vmatprep.subr.mxu0 0.0
    %3568 = vmatpush1.msra.mxu0 0.0
    %3569 = vmatprep.subr.mxu0 0.0
    %3570 = vmatpush1.msra.mxu0 0.0
    %3571 = vmatprep.subr.mxu0 0.0
    %3572 = vmatpush1.msra.mxu0 0.0
    %3573 = vmatprep.subr.mxu0 0.0
    %3574 = vmatpush1.msra.mxu0 0.0
    %3575 = vmatprep.mubr.f32.mxu0 0.0
    %3576 = vmatmul.mubr.f32.gmra.mrb[0].mxu0 %v3509
    %v3577 = vpop.f32.mrb[0].mxu0
    %v3578 = vadd.f32 0.0, %v3577
    %v3579 = vpop.f32.mrb[0].mxu0
    %3580 = vdwg.mxu0
    %v3582 = vsel %vm324, %v3502, 0
    %v3585 = vsel %vm324, %v3578, 0
    %3587 = vmatprep.subr.mxu0 0.0
    %3588 = vmatpush1.msra.mxu0 %v2428
    %3589 = vmatprep.subr.mxu0 0.0
    %3590 = vmatpush1.msra.mxu0 0.0
    %3591 = vmatprep.subr.mxu0 0.0
    %3592 = vmatpush1.msra.mxu0 0.0
    %3593 = vmatprep.subr.mxu0 0.0
    %3594 = vmatpush1.msra.mxu0 0.0
    %3595 = vmatprep.subr.mxu0 0.0
    %3596 = vmatpush1.msra.mxu0 0.0
    %3597 = vmatprep.subr.mxu0 0.0
    %3598 = vmatpush1.msra.mxu0 0.0
    %3599 = vmatprep.subr.mxu0 0.0
    %3600 = vmatpush1.msra.mxu0 0.0
    %3601 = vmatprep.subr.mxu0 0.0
    %3602 = vmatpush1.msra.mxu0 0.0
    %3603 = vmatprep.subr.mxu0 0.0
    %3604 = vmatpush1.msra.mxu0 0.0
    %3605 = vmatprep.subr.mxu0 0.0
    %3606 = vmatpush1.msra.mxu0 0.0
    %3607 = vmatprep.subr.mxu0 0.0
    %3608 = vmatpush1.msra.mxu0 0.0
    %3609 = vmatprep.subr.mxu0 0.0
    %3610 = vmatpush1.msra.mxu0 0.0
    %3611 = vmatprep.subr.mxu0 0.0
    %3612 = vmatpush1.msra.mxu0 0.0
    %3613 = vmatprep.subr.mxu0 0.0
    %3614 = vmatpush1.msra.mxu0 0.0
    %3615 = vmatprep.subr.mxu0 0.0
    %3616 = vmatpush1.msra.mxu0 0.0
    %3617 = vmatprep.subr.mxu0 0.0
    %3618 = vmatpush1.msra.mxu0 0.0
    %3619 = vmatprep.subr.mxu0 0.0
    %3620 = vmatpush1.msra.mxu0 0.0
    %3621 = vmatprep.subr.mxu0 0.0
    %3622 = vmatpush1.msra.mxu0 0.0
    %3623 = vmatprep.subr.mxu0 0.0
    %3624 = vmatpush1.msra.mxu0 0.0
    %3625 = vmatprep.subr.mxu0 0.0
    %3626 = vmatpush1.msra.mxu0 0.0
    %3627 = vmatprep.subr.mxu0 0.0
    %3628 = vmatpush1.msra.mxu0 0.0
    %3629 = vmatprep.subr.mxu0 0.0
    %3630 = vmatpush1.msra.mxu0 0.0
    %3631 = vmatprep.subr.mxu0 0.0
    %3632 = vmatpush1.msra.mxu0 0.0
    %3633 = vmatprep.subr.mxu0 0.0
    %3634 = vmatpush1.msra.mxu0 0.0
    %3635 = vmatprep.subr.mxu0 0.0
    %3636 = vmatpush1.msra.mxu0 0.0
    %3637 = vmatprep.subr.mxu0 0.0
    %3638 = vmatpush1.msra.mxu0 0.0
    %3639 = vmatprep.subr.mxu0 0.0
    %3640 = vmatpush1.msra.mxu0 0.0
    %3641 = vmatprep.subr.mxu0 0.0
    %3642 = vmatpush1.msra.mxu0 0.0
    %3643 = vmatprep.subr.mxu0 0.0
    %3644 = vmatpush1.msra.mxu0 0.0
    %3645 = vmatprep.subr.mxu0 0.0
    %3646 = vmatpush1.msra.mxu0 0.0
    %3647 = vmatprep.subr.mxu0 0.0
    %3648 = vmatpush1.msra.mxu0 0.0
    %3649 = vmatprep.subr.mxu0 0.0
    %3650 = vmatpush1.msra.mxu0 0.0
    %3651 = vmatprep.mubr.f32.mxu0 0.0
    %3652 = vmatmul.mubr.f32.gmra.mrb[0].mxu0 %v3582
    %v3653 = vpop.f32.mrb[0].mxu0
    %v3654 = vadd.f32 0.0, %v3653
    %v3655 = vpop.f32.mrb[0].mxu0
    %3656 = vmatprep.mubr.f32.mxu0 0.0
    %3657 = vmatmul.mubr.f32.gmra.mrb[0].mxu0 %v3585
    %v3658 = vpop.f32.mrb[0].mxu0
    %v3659 = vadd.f32 0.0, %v3658
    %v3660 = vpop.f32.mrb[0].mxu0
    %3661 = vdwg.mxu0
    %v3662 = vadd.f32 %v3243, %v3654
    %v3663 = vadd.f32 %v3248, %v3659
    %3664 = vrot.lane.b32.xlu0 %v2431, 104
    %v3665 = vpop.permute.xlu0 %3664
    %3666 = vrot.lane.b32.xlu0 %v2418, 104
    %v3667 = vpop.permute.xlu0 %3666
    %v3668 = vsel %vm324, %v3665, 0
    %v3670 = vsel %vm324, %v3667, 0
    %3672 = vmatprep.subr.mxu0 0.0
    %3673 = vmatpush1.xpose.msra.mxu0 %v3670
    %3674 = vmatprep.subr.mxu0 0.0
    %3675 = vmatpush1.xpose.msra.mxu0 0.0
    %3676 = vmatprep.subr.mxu0 0.0
    %3677 = vmatpush1.xpose.msra.mxu0 0.0
    %3678 = vmatprep.subr.mxu0 0.0
    %3679 = vmatpush1.xpose.msra.mxu0 0.0
    %3680 = vmatprep.subr.mxu0 0.0
    %3681 = vmatpush1.xpose.msra.mxu0 0.0
    %3682 = vmatprep.subr.mxu0 0.0
    %3683 = vmatpush1.xpose.msra.mxu0 0.0
    %3684 = vmatprep.subr.mxu0 0.0
    %3685 = vmatpush1.xpose.msra.mxu0 0.0
    %3686 = vmatprep.subr.mxu0 0.0
    %3687 = vmatpush1.xpose.msra.mxu0 0.0
    %3688 = vmatprep.subr.mxu0 0.0
    %3689 = vmatpush1.xpose.msra.mxu0 0.0
    %3690 = vmatprep.subr.mxu0 0.0
    %3691 = vmatpush1.xpose.msra.mxu0 0.0
    %3692 = vmatprep.subr.mxu0 0.0
    %3693 = vmatpush1.xpose.msra.mxu0 0.0
    %3694 = vmatprep.subr.mxu0 0.0
    %3695 = vmatpush1.xpose.msra.mxu0 0.0
    %3696 = vmatprep.subr.mxu0 0.0
    %3697 = vmatpush1.xpose.msra.mxu0 0.0
    %3698 = vmatprep.subr.mxu0 0.0
    %3699 = vmatpush1.xpose.msra.mxu0 0.0
    %3700 = vmatprep.subr.mxu0 0.0
    %3701 = vmatpush1.xpose.msra.mxu0 0.0
    %3702 = vmatprep.subr.mxu0 0.0
    %3703 = vmatpush1.xpose.msra.mxu0 0.0
    %3704 = vmatprep.subr.mxu0 0.0
    %3705 = vmatpush1.xpose.msra.mxu0 0.0
    %3706 = vmatprep.subr.mxu0 0.0
    %3707 = vmatpush1.xpose.msra.mxu0 0.0
    %3708 = vmatprep.subr.mxu0 0.0
    %3709 = vmatpush1.xpose.msra.mxu0 0.0
    %3710 = vmatprep.subr.mxu0 0.0
    %3711 = vmatpush1.xpose.msra.mxu0 0.0
    %3712 = vmatprep.subr.mxu0 0.0
    %3713 = vmatpush1.xpose.msra.mxu0 0.0
    %3714 = vmatprep.subr.mxu0 0.0
    %3715 = vmatpush1.xpose.msra.mxu0 0.0
    %3716 = vmatprep.subr.mxu0 0.0
    %3717 = vmatpush1.xpose.msra.mxu0 0.0
    %3718 = vmatprep.subr.mxu0 0.0
    %3719 = vmatpush1.xpose.msra.mxu0 0.0
    %3720 = vmatprep.subr.mxu0 0.0
    %3721 = vmatpush1.xpose.msra.mxu0 0.0
    %3722 = vmatprep.subr.mxu0 0.0
    %3723 = vmatpush1.xpose.msra.mxu0 0.0
    %3724 = vmatprep.subr.mxu0 0.0
    %3725 = vmatpush1.xpose.msra.mxu0 0.0
    %3726 = vmatprep.subr.mxu0 0.0
    %3727 = vmatpush1.xpose.msra.mxu0 0.0
    %3728 = vmatprep.subr.mxu0 0.0
    %3729 = vmatpush1.xpose.msra.mxu0 0.0
    %3730 = vmatprep.subr.mxu0 0.0
    %3731 = vmatpush1.xpose.msra.mxu0 0.0
    %3732 = vmatprep.subr.mxu0 0.0
    %3733 = vmatpush1.xpose.msra.mxu0 0.0
    %3734 = vmatprep.subr.mxu0 0.0
    %3735 = vmatpush1.xpose.msra.mxu0 0.0
    %3736 = vmatprep.mubr.f32.mxu0 0.0
    %3737 = vmatmul.mubr.f32.gmra.mrb[0].mxu0 %v3668
    %v3738 = vpop.f32.mrb[0].mxu0
    %v3739 = vadd.f32 0.0, %v3738
    %v3740 = vpop.f32.mrb[0].mxu0
    %3741 = vdwg.mxu0
    %3742 = vrot.lane.b32.xlu0 %v2432, 104
    %v3743 = vpop.permute.xlu0 %3742
    %3744 = vrot.lane.b32.xlu0 %v2423, 104
    %v3745 = vpop.permute.xlu0 %3744
    %v3746 = vsel %vm324, %v3743, 0
    %v3748 = vsel %vm324, %v3745, 0
    %3750 = vmatprep.subr.mxu0 0.0
    %3751 = vmatpush1.xpose.msra.mxu0 %v3748
    %3752 = vmatprep.subr.mxu0 0.0
    %3753 = vmatpush1.xpose.msra.mxu0 0.0
    %3754 = vmatprep.subr.mxu0 0.0
    %3755 = vmatpush1.xpose.msra.mxu0 0.0
    %3756 = vmatprep.subr.mxu0 0.0
    %3757 = vmatpush1.xpose.msra.mxu0 0.0
    %3758 = vmatprep.subr.mxu0 0.0
    %3759 = vmatpush1.xpose.msra.mxu0 0.0
    %3760 = vmatprep.subr.mxu0 0.0
    %3761 = vmatpush1.xpose.msra.mxu0 0.0
    %3762 = vmatprep.subr.mxu0 0.0
    %3763 = vmatpush1.xpose.msra.mxu0 0.0
    %3764 = vmatprep.subr.mxu0 0.0
    %3765 = vmatpush1.xpose.msra.mxu0 0.0
    %3766 = vmatprep.subr.mxu0 0.0
    %3767 = vmatpush1.xpose.msra.mxu0 0.0
    %3768 = vmatprep.subr.mxu0 0.0
    %3769 = vmatpush1.xpose.msra.mxu0 0.0
    %3770 = vmatprep.subr.mxu0 0.0
    %3771 = vmatpush1.xpose.msra.mxu0 0.0
    %3772 = vmatprep.subr.mxu0 0.0
    %3773 = vmatpush1.xpose.msra.mxu0 0.0
    %3774 = vmatprep.subr.mxu0 0.0
    %3775 = vmatpush1.xpose.msra.mxu0 0.0
    %3776 = vmatprep.subr.mxu0 0.0
    %3777 = vmatpush1.xpose.msra.mxu0 0.0
    %3778 = vmatprep.subr.mxu0 0.0
    %3779 = vmatpush1.xpose.msra.mxu0 0.0
    %3780 = vmatprep.subr.mxu0 0.0
    %3781 = vmatpush1.xpose.msra.mxu0 0.0
    %3782 = vmatprep.subr.mxu0 0.0
    %3783 = vmatpush1.xpose.msra.mxu0 0.0
    %3784 = vmatprep.subr.mxu0 0.0
    %3785 = vmatpush1.xpose.msra.mxu0 0.0
    %3786 = vmatprep.subr.mxu0 0.0
    %3787 = vmatpush1.xpose.msra.mxu0 0.0
    %3788 = vmatprep.subr.mxu0 0.0
    %3789 = vmatpush1.xpose.msra.mxu0 0.0
    %3790 = vmatprep.subr.mxu0 0.0
    %3791 = vmatpush1.xpose.msra.mxu0 0.0
    %3792 = vmatprep.subr.mxu0 0.0
    %3793 = vmatpush1.xpose.msra.mxu0 0.0
    %3794 = vmatprep.subr.mxu0 0.0
    %3795 = vmatpush1.xpose.msra.mxu0 0.0
    %3796 = vmatprep.subr.mxu0 0.0
    %3797 = vmatpush1.xpose.msra.mxu0 0.0
    %3798 = vmatprep.subr.mxu0 0.0
    %3799 = vmatpush1.xpose.msra.mxu0 0.0
    %3800 = vmatprep.subr.mxu0 0.0
    %3801 = vmatpush1.xpose.msra.mxu0 0.0
    %3802 = vmatprep.subr.mxu0 0.0
    %3803 = vmatpush1.xpose.msra.mxu0 0.0
    %3804 = vmatprep.subr.mxu0 0.0
    %3805 = vmatpush1.xpose.msra.mxu0 0.0
    %3806 = vmatprep.subr.mxu0 0.0
    %3807 = vmatpush1.xpose.msra.mxu0 0.0
    %3808 = vmatprep.subr.mxu0 0.0
    %3809 = vmatpush1.xpose.msra.mxu0 0.0
    %3810 = vmatprep.subr.mxu0 0.0
    %3811 = vmatpush1.xpose.msra.mxu0 0.0
    %3812 = vmatprep.subr.mxu0 0.0
    %3813 = vmatpush1.xpose.msra.mxu0 0.0
    %3814 = vmatprep.mubr.f32.mxu0 0.0
    %3815 = vmatmul.mubr.f32.gmra.mrb[0].mxu0 %v3746
    %v3816 = vpop.f32.mrb[0].mxu0
    %v3817 = vadd.f32 0.0, %v3816
    %v3818 = vpop.f32.mrb[0].mxu0
    %3819 = vdwg.mxu0
    %v3820 = vsel %vm324, %v3739, -inf
    %3821 = vmax.xlane.f32.xlu0 %v3820
    %v3822 = vpop.xlane.xlu0 %3821
    %v3823 = vsel %vm324, %v3817, -inf
    %3824 = vmax.xlane.f32.xlu0 %v3823
    %v3825 = vpop.xlane.xlu0 %3824
    %v3826 = vsub.f32 %v3739, %v3822
    %v3827 = vsub.f32 %v3817, %v3825
    %v3828 = vmul.f32 %v3826, 1.442695
    %v3829 = vpow.pop %v3828
    %v3830 = vmul.f32 %v3827, 1.442695
    %v3831 = vpow.pop %v3830
    %v3832 = vsel %vm324, %v3829, 0.0
    %3833 = vadd.xlane.f32.xlu0 %v3832
    %v3834 = vpop.xlane.xlu0 %3833
    %v3835 = vsel %vm324, %v3831, 0.0
    %3836 = vadd.xlane.f32.xlu0 %v3835
    %v3837 = vpop.xlane.xlu0 %3836
    %v3838 = vrcp.pop %v3834
    %v3839 = vrcp.pop %v3837
    %v3840 = vmul.f32 %v3829, %v3838
    %v3841 = vmul.f32 %v3831, %v3839
    %3842 = vrot.lane.b32.xlu0 %v2418, 72
    %v3843 = vpop.permute.xlu0 %3842
    %v3846 = vsel %vm324, %v3840, 0
    %3848 = vmatprep.subr.mxu0 0.0
    %3849 = vmatpush1.msra.mxu0 %v3843
    %3850 = vmatprep.subr.mxu0 0.0
    %3851 = vmatpush1.msra.mxu0 0.0
    %3852 = vmatprep.subr.mxu0 0.0
    %3853 = vmatpush1.msra.mxu0 0.0
    %3854 = vmatprep.subr.mxu0 0.0
    %3855 = vmatpush1.msra.mxu0 0.0
    %3856 = vmatprep.subr.mxu0 0.0
    %3857 = vmatpush1.msra.mxu0 0.0
    %3858 = vmatprep.subr.mxu0 0.0
    %3859 = vmatpush1.msra.mxu0 0.0
    %3860 = vmatprep.subr.mxu0 0.0
    %3861 = vmatpush1.msra.mxu0 0.0
    %3862 = vmatprep.subr.mxu0 0.0
    %3863 = vmatpush1.msra.mxu0 0.0
    %3864 = vmatprep.subr.mxu0 0.0
    %3865 = vmatpush1.msra.mxu0 0.0
    %3866 = vmatprep.subr.mxu0 0.0
    %3867 = vmatpush1.msra.mxu0 0.0
    %3868 = vmatprep.subr.mxu0 0.0
    %3869 = vmatpush1.msra.mxu0 0.0
    %3870 = vmatprep.subr.mxu0 0.0
    %3871 = vmatpush1.msra.mxu0 0.0
    %3872 = vmatprep.subr.mxu0 0.0
    %3873 = vmatpush1.msra.mxu0 0.0
    %3874 = vmatprep.subr.mxu0 0.0
    %3875 = vmatpush1.msra.mxu0 0.0
    %3876 = vmatprep.subr.mxu0 0.0
    %3877 = vmatpush1.msra.mxu0 0.0
    %3878 = vmatprep.subr.mxu0 0.0
    %3879 = vmatpush1.msra.mxu0 0.0
    %3880 = vmatprep.subr.mxu0 0.0
    %3881 = vmatpush1.msra.mxu0 0.0
    %3882 = vmatprep.subr.mxu0 0.0
    %3883 = vmatpush1.msra.mxu0 0.0
    %3884 = vmatprep.subr.mxu0 0.0
    %3885 = vmatpush1.msra.mxu0 0.0
    %3886 = vmatprep.subr.mxu0 0.0
    %3887 = vmatpush1.msra.mxu0 0.0
    %3888 = vmatprep.subr.mxu0 0.0
    %3889 = vmatpush1.msra.mxu0 0.0
    %3890 = vmatprep.subr.mxu0 0.0
    %3891 = vmatpush1.msra.mxu0 0.0
    %3892 = vmatprep.subr.mxu0 0.0
    %3893 = vmatpush1.msra.mxu0 0.0
    %3894 = vmatprep.subr.mxu0 0.0
    %3895 = vmatpush1.msra.mxu0 0.0
    %3896 = vmatprep.subr.mxu0 0.0
    %3897 = vmatpush1.msra.mxu0 0.0
    %3898 = vmatprep.subr.mxu0 0.0
    %3899 = vmatpush1.msra.mxu0 0.0
    %3900 = vmatprep.subr.mxu0 0.0
    %3901 = vmatpush1.msra.mxu0 0.0
    %3902 = vmatprep.subr.mxu0 0.0
    %3903 = vmatpush1.msra.mxu0 0.0
    %3904 = vmatprep.subr.mxu0 0.0
    %3905 = vmatpush1.msra.mxu0 0.0
    %3906 = vmatprep.subr.mxu0 0.0
    %3907 = vmatpush1.msra.mxu0 0.0
    %3908 = vmatprep.subr.mxu0 0.0
    %3909 = vmatpush1.msra.mxu0 0.0
    %3910 = vmatprep.subr.mxu0 0.0
    %3911 = vmatpush1.msra.mxu0 0.0
    %3912 = vmatprep.mubr.f32.mxu0 0.0
    %3913 = vmatmul.mubr.f32.gmra.mrb[0].mxu0 %v3846
    %v3914 = vpop.f32.mrb[0].mxu0
    %v3915 = vadd.f32 0.0, %v3914
    %v3916 = vpop.f32.mrb[0].mxu0
    %3917 = vdwg.mxu0
    %3918 = vrot.lane.b32.xlu0 %v2423, 72
    %v3919 = vpop.permute.xlu0 %3918
    %v3922 = vsel %vm324, %v3841, 0
    %3924 = vmatprep.subr.mxu0 0.0
    %3925 = vmatpush1.msra.mxu0 %v3919
    %3926 = vmatprep.subr.mxu0 0.0
    %3927 = vmatpush1.msra.mxu0 0.0
    %3928 = vmatprep.subr.mxu0 0.0
    %3929 = vmatpush1.msra.mxu0 0.0
    %3930 = vmatprep.subr.mxu0 0.0
    %3931 = vmatpush1.msra.mxu0 0.0
    %3932 = vmatprep.subr.mxu0 0.0
    %3933 = vmatpush1.msra.mxu0 0.0
    %3934 = vmatprep.subr.mxu0 0.0
    %3935 = vmatpush1.msra.mxu0 0.0
    %3936 = vmatprep.subr.mxu0 0.0
    %3937 = vmatpush1.msra.mxu0 0.0
    %3938 = vmatprep.subr.mxu0 0.0
    %3939 = vmatpush1.msra.mxu0 0.0
    %3940 = vmatprep.subr.mxu0 0.0
    %3941 = vmatpush1.msra.mxu0 0.0
    %3942 = vmatprep.subr.mxu0 0.0
    %3943 = vmatpush1.msra.mxu0 0.0
    %3944 = vmatprep.subr.mxu0 0.0
    %3945 = vmatpush1.msra.mxu0 0.0
    %3946 = vmatprep.subr.mxu0 0.0
    %3947 = vmatpush1.msra.mxu0 0.0
    %3948 = vmatprep.subr.mxu0 0.0
    %3949 = vmatpush1.msra.mxu0 0.0
    %3950 = vmatprep.subr.mxu0 0.0
    %3951 = vmatpush1.msra.mxu0 0.0
    %3952 = vmatprep.subr.mxu0 0.0
    %3953 = vmatpush1.msra.mxu0 0.0
    %3954 = vmatprep.subr.mxu0 0.0
    %3955 = vmatpush1.msra.mxu0 0.0
    %3956 = vmatprep.subr.mxu0 0.0
    %3957 = vmatpush1.msra.mxu0 0.0
    %3958 = vmatprep.subr.mxu0 0.0
    %3959 = vmatpush1.msra.mxu0 0.0
    %3960 = vmatprep.subr.mxu0 0.0
    %3961 = vmatpush1.msra.mxu0 0.0
    %3962 = vmatprep.subr.mxu0 0.0
    %3963 = vmatpush1.msra.mxu0 0.0
    %3964 = vmatprep.subr.mxu0 0.0
    %3965 = vmatpush1.msra.mxu0 0.0
    %3966 = vmatprep.subr.mxu0 0.0
    %3967 = vmatpush1.msra.mxu0 0.0
    %3968 = vmatprep.subr.mxu0 0.0
    %3969 = vmatpush1.msra.mxu0 0.0
    %3970 = vmatprep.subr.mxu0 0.0
    %3971 = vmatpush1.msra.mxu0 0.0
    %3972 = vmatprep.subr.mxu0 0.0
    %3973 = vmatpush1.msra.mxu0 0.0
    %3974 = vmatprep.subr.mxu0 0.0
    %3975 = vmatpush1.msra.mxu0 0.0
    %3976 = vmatprep.subr.mxu0 0.0
    %3977 = vmatpush1.msra.mxu0 0.0
    %3978 = vmatprep.subr.mxu0 0.0
    %3979 = vmatpush1.msra.mxu0 0.0
    %3980 = vmatprep.subr.mxu0 0.0
    %3981 = vmatpush1.msra.mxu0 0.0
    %3982 = vmatprep.subr.mxu0 0.0
    %3983 = vmatpush1.msra.mxu0 0.0
    %3984 = vmatprep.subr.mxu0 0.0
    %3985 = vmatpush1.msra.mxu0 0.0
    %3986 = vmatprep.subr.mxu0 0.0
    %3987 = vmatpush1.msra.mxu0 0.0
    %3988 = vmatprep.mubr.f32.mxu0 0.0
    %3989 = vmatmul.mubr.f32.gmra.mrb[0].mxu0 %v3922
    %v3990 = vpop.f32.mrb[0].mxu0
    %v3991 = vadd.f32 0.0, %v3990
    %v3992 = vpop.f32.mrb[0].mxu0
    %3993 = vdwg.mxu0
    %v3995 = vsel %vm324, %v3915, 0
    %v3998 = vsel %vm324, %v3991, 0
    %4000 = vmatprep.subr.mxu0 0.0
    %4001 = vmatpush1.msra.mxu0 %v2429
    %4002 = vmatprep.subr.mxu0 0.0
    %4003 = vmatpush1.msra.mxu0 0.0
    %4004 = vmatprep.subr.mxu0 0.0
    %4005 = vmatpush1.msra.mxu0 0.0
    %4006 = vmatprep.subr.mxu0 0.0
    %4007 = vmatpush1.msra.mxu0 0.0
    %4008 = vmatprep.subr.mxu0 0.0
    %4009 = vmatpush1.msra.mxu0 0.0
    %4010 = vmatprep.subr.mxu0 0.0
    %4011 = vmatpush1.msra.mxu0 0.0
    %4012 = vmatprep.subr.mxu0 0.0
    %4013 = vmatpush1.msra.mxu0 0.0
    %4014 = vmatprep.subr.mxu0 0.0
    %4015 = vmatpush1.msra.mxu0 0.0
    %4016 = vmatprep.subr.mxu0 0.0
    %4017 = vmatpush1.msra.mxu0 0.0
    %4018 = vmatprep.subr.mxu0 0.0
    %4019 = vmatpush1.msra.mxu0 0.0
    %4020 = vmatprep.subr.mxu0 0.0
    %4021 = vmatpush1.msra.mxu0 0.0
    %4022 = vmatprep.subr.mxu0 0.0
    %4023 = vmatpush1.msra.mxu0 0.0
    %4024 = vmatprep.subr.mxu0 0.0
    %4025 = vmatpush1.msra.mxu0 0.0
    %4026 = vmatprep.subr.mxu0 0.0
    %4027 = vmatpush1.msra.mxu0 0.0
    %4028 = vmatprep.subr.mxu0 0.0
    %4029 = vmatpush1.msra.mxu0 0.0
    %4030 = vmatprep.subr.mxu0 0.0
    %4031 = vmatpush1.msra.mxu0 0.0
    %4032 = vmatprep.subr.mxu0 0.0
    %4033 = vmatpush1.msra.mxu0 0.0
    %4034 = vmatprep.subr.mxu0 0.0
    %4035 = vmatpush1.msra.mxu0 0.0
    %4036 = vmatprep.subr.mxu0 0.0
    %4037 = vmatpush1.msra.mxu0 0.0
    %4038 = vmatprep.subr.mxu0 0.0
    %4039 = vmatpush1.msra.mxu0 0.0
    %4040 = vmatprep.subr.mxu0 0.0
    %4041 = vmatpush1.msra.mxu0 0.0
    %4042 = vmatprep.subr.mxu0 0.0
    %4043 = vmatpush1.msra.mxu0 0.0
    %4044 = vmatprep.subr.mxu0 0.0
    %4045 = vmatpush1.msra.mxu0 0.0
    %4046 = vmatprep.subr.mxu0 0.0
    %4047 = vmatpush1.msra.mxu0 0.0
    %4048 = vmatprep.subr.mxu0 0.0
    %4049 = vmatpush1.msra.mxu0 0.0
    %4050 = vmatprep.subr.mxu0 0.0
    %4051 = vmatpush1.msra.mxu0 0.0
    %4052 = vmatprep.subr.mxu0 0.0
    %4053 = vmatpush1.msra.mxu0 0.0
    %4054 = vmatprep.subr.mxu0 0.0
    %4055 = vmatpush1.msra.mxu0 0.0
    %4056 = vmatprep.subr.mxu0 0.0
    %4057 = vmatpush1.msra.mxu0 0.0
    %4058 = vmatprep.subr.mxu0 0.0
    %4059 = vmatpush1.msra.mxu0 0.0
    %4060 = vmatprep.subr.mxu0 0.0
    %4061 = vmatpush1.msra.mxu0 0.0
    %4062 = vmatprep.subr.mxu0 0.0
    %4063 = vmatpush1.msra.mxu0 0.0
    %4064 = vmatprep.mubr.f32.mxu0 0.0
    %4065 = vmatmul.mubr.f32.gmra.mrb[0].mxu0 %v3995
    %v4066 = vpop.f32.mrb[0].mxu0
    %v4067 = vadd.f32 0.0, %v4066
    %v4068 = vpop.f32.mrb[0].mxu0
    %4069 = vmatprep.mubr.f32.mxu0 0.0
    %4070 = vmatmul.mubr.f32.gmra.mrb[0].mxu0 %v3998
    %v4071 = vpop.f32.mrb[0].mxu0
    %v4072 = vadd.f32 0.0, %v4071
    %v4073 = vpop.f32.mrb[0].mxu0
    %4074 = vdwg.mxu0
    %v4075 = vadd.f32 %v3662, %v4067
    %v4076 = vadd.f32 %v3663, %v4072
    %v4078 = vlaneseq
    %v4079 = vshrl.u32 %v4078, 7
    %v4080 = vsub.s32 0, %v4079
    %v4081 = vrot.slane %v2430, %v4080
    %v4083 = vadd.f32 %v4075, %v4081
    %v4084 = vadd.f32 %v4076, %v4081
    %v4085 = vld [vmem:[%s39] sm:$0x1]
    %v4086 = vld [vmem:[%s41] sm:$0x1]
    %v4087 = vadd.f32 %v130, %v4083
    %v4088 = vadd.f32 %v131, %v4084
    %v4089 = vsel %vm143, %v4087, 0.0
    %4090 = vadd.xlane.f32.xlu0 %v4089
    %v4091 = vpop.xlane.xlu0 %4090
    %v4092 = vsel %vm143, %v4088, 0.0
    %4093 = vadd.xlane.f32.xlu0 %v4092
    %v4094 = vpop.xlane.xlu0 %4093
    %v4095 = vmul.f32 %v4091, %v1987
    %v4096 = vmul.f32 %v4094, %v1987
    %v4097 = vsub.f32 %v4087, %v4095
    %v4098 = vsub.f32 %v4088, %v4096
    %v4099 = vmul.f32 %v4097, %v4097
    %v4100 = vmul.f32 %v4098, %v4098
    %v4101 = vsel %vm143, %v4099, 0.0
    %4102 = vadd.xlane.f32.xlu0 %v4101
    %v4103 = vpop.xlane.xlu0 %4102
    %v4104 = vsel %vm143, %v4100, 0.0
    %4105 = vadd.xlane.f32.xlu0 %v4104
    %v4106 = vpop.xlane.xlu0 %4105
    %v4107 = vmul.f32 %v4103, %v1987
    %v4108 = vmul.f32 %v4106, %v1987
    %v4109 = vadd.f32 %v4107, 1e-05
    %v4110 = vadd.f32 %v4108, 1e-05
    %v4111 = vrsqrt.pop %v4109
    %v4112 = vrsqrt.pop %v4110
    %v4113 = vmul.f32 %v4097, %v4111
    %v4114 = vmul.f32 %v4098, %v4112
    %v4116 = vlaneseq
    %v4117 = vshrl.u32 %v4116, 7
    %v4118 = vsub.s32 0, %v4117
    %v4119 = vrot.slane %v4085, %v4118
    %v4121 = vmul.f32 %v4113, %v4119
    %v4122 = vmul.f32 %v4114, %v4119
    %v4124 = vlaneseq
    %v4125 = vshrl.u32 %v4124, 7
    %v4126 = vsub.s32 0, %v4125
    %v4127 = vrot.slane %v4086, %v4126
    %v4129 = vadd.f32 %v4121, %v4127
    %v4130 = vadd.f32 %v4122, %v4127
    %v4131 = vld [vmem:[%s43] sm:$0xff]
    %v4132 = vld [vmem:[%s43 + $0x8] sm:$0xff]
    %v4133 = vld [vmem:[%s43 + $0x10] sm:$0xff]
    %v4134 = vld [vmem:[%s43 + $0x18] sm:$0xff]
    %v4135 = vld [vmem:[%s45] sm:$0x1]
    %v4136 = vld [vmem:[%s47] sm:$0xff]
    %v4137 = vld [vmem:[%s47 + $0x8] sm:$0xff]
    %v4138 = vld [vmem:[%s47 + $0x10] sm:$0xff]
    %v4139 = vld [vmem:[%s47 + $0x18] sm:$0xff]
    %v4140 = vld [vmem:[%s47 + $0x20] sm:$0xff]
    %v4141 = vld [vmem:[%s47 + $0x28] sm:$0xff]
    %v4142 = vld [vmem:[%s47 + $0x30] sm:$0xff]
    %v4143 = vld [vmem:[%s47 + $0x38] sm:$0xff]
    %v4144 = vld [vmem:[%s47 + $0x40] sm:$0xff]
    %v4145 = vld [vmem:[%s47 + $0x48] sm:$0xff]
    %v4146 = vld [vmem:[%s47 + $0x50] sm:$0xff]
    %v4147 = vld [vmem:[%s47 + $0x58] sm:$0xff]
    %v4148 = vld [vmem:[%s47 + $0x60] sm:$0xff]
    %v4149 = vld [vmem:[%s47 + $0x68] sm:$0xff]
    %v4150 = vld [vmem:[%s47 + $0x70] sm:$0xff]
    %v4151 = vld [vmem:[%s47 + $0x78] sm:$0xff]
    %v4152 = vld [vmem:[%s49] sm:$0x1]
    %v4154 = vlaneseq
    %v4155 = vshrl.u32 %v4154, 7
    %v4156 = vsub.s32 0, %v4155
    %v4157 = vrot.slane %v4135, %v4156
    %v4160 = vsel %vm143, %v4129, 0
    %v4163 = vsel %vm143, %v4130, 0
    %4165 = vmatprep.subr.mxu0 0.0
    %4166 = vmatpush1.msra.mxu0 %v4131
    %4167 = vmatprep.subr.mxu0 0.0
    %4168 = vmatpush1.msra.mxu0 %v4132
    %4169 = vmatprep.subr.mxu0 0.0
    %4170 = vmatpush1.msra.mxu0 %v4133
    %4171 = vmatprep.subr.mxu0 0.0
    %4172 = vmatpush1.msra.mxu0 %v4134
    %4173 = vmatprep.subr.mxu0 0.0
    %4174 = vmatpush1.msra.mxu0 0.0
    %4175 = vmatprep.subr.mxu0 0.0
    %4176 = vmatpush1.msra.mxu0 0.0
    %4177 = vmatprep.subr.mxu0 0.0
    %4178 = vmatpush1.msra.mxu0 0.0
    %4179 = vmatprep.subr.mxu0 0.0
    %4180 = vmatpush1.msra.mxu0 0.0
    %4181 = vmatprep.subr.mxu0 0.0
    %4182 = vmatpush1.msra.mxu0 0.0
    %4183 = vmatprep.subr.mxu0 0.0
    %4184 = vmatpush1.msra.mxu0 0.0
    %4185 = vmatprep.subr.mxu0 0.0
    %4186 = vmatpush1.msra.mxu0 0.0
    %4187 = vmatprep.subr.mxu0 0.0
    %4188 = vmatpush1.msra.mxu0 0.0
    %4189 = vmatprep.subr.mxu0 0.0
    %4190 = vmatpush1.msra.mxu0 0.0
    %4191 = vmatprep.subr.mxu0 0.0
    %4192 = vmatpush1.msra.mxu0 0.0
    %4193 = vmatprep.subr.mxu0 0.0
    %4194 = vmatpush1.msra.mxu0 0.0
    %4195 = vmatprep.subr.mxu0 0.0
    %4196 = vmatpush1.msra.mxu0 0.0
    %4197 = vmatprep.subr.mxu0 0.0
    %4198 = vmatpush1.msra.mxu0 0.0
    %4199 = vmatprep.subr.mxu0 0.0
    %4200 = vmatpush1.msra.mxu0 0.0
    %4201 = vmatprep.subr.mxu0 0.0
    %4202 = vmatpush1.msra.mxu0 0.0
    %4203 = vmatprep.subr.mxu0 0.0
    %4204 = vmatpush1.msra.mxu0 0.0
    %4205 = vmatprep.subr.mxu0 0.0
    %4206 = vmatpush1.msra.mxu0 0.0
    %4207 = vmatprep.subr.mxu0 0.0
    %4208 = vmatpush1.msra.mxu0 0.0
    %4209 = vmatprep.subr.mxu0 0.0
    %4210 = vmatpush1.msra.mxu0 0.0
    %4211 = vmatprep.subr.mxu0 0.0
    %4212 = vmatpush1.msra.mxu0 0.0
    %4213 = vmatprep.subr.mxu0 0.0
    %4214 = vmatpush1.msra.mxu0 0.0
    %4215 = vmatprep.subr.mxu0 0.0
    %4216 = vmatpush1.msra.mxu0 0.0
    %4217 = vmatprep.subr.mxu0 0.0
    %4218 = vmatpush1.msra.mxu0 0.0
    %4219 = vmatprep.subr.mxu0 0.0
    %4220 = vmatpush1.msra.mxu0 0.0
    %4221 = vmatprep.subr.mxu0 0.0
    %4222 = vmatpush1.msra.mxu0 0.0
    %4223 = vmatprep.subr.mxu0 0.0
    %4224 = vmatpush1.msra.mxu0 0.0
    %4225 = vmatprep.subr.mxu0 0.0
    %4226 = vmatpush1.msra.mxu0 0.0
    %4227 = vmatprep.subr.mxu0 0.0
    %4228 = vmatpush1.msra.mxu0 0.0
    %4229 = vmatprep.mubr.f32.mxu0 0.0
    %4230 = vmatmul.mubr.f32.gmra.mrb[0].mxu0 %v4160
    %v4231 = vpop.f32.mrb[0].mxu0
    %v4232 = vadd.f32 %v4157, %v4231
    %v4233 = vpop.f32.mrb[0].mxu0
    %4234 = vmatprep.mubr.f32.mxu0 0.0
    %4235 = vmatmul.mubr.f32.gmra.mrb[0].mxu0 %v4163
    %v4236 = vpop.f32.mrb[0].mxu0
    %v4237 = vadd.f32 %v4157, %v4236
    %v4238 = vpop.f32.mrb[0].mxu0
    %4239 = vdwg.mxu0
    %v4240 = vmax.f32 %v4232, 0.0
    %v4241 = vmax.f32 %v4237, 0.0
    %v4243 = vlaneseq
    %v4244 = vshrl.u32 %v4243, 7
    %v4245 = vsub.s32 0, %v4244
    %v4246 = vrot.slane %v4152, %v4245
    %4248 = vmatprep.subr.mxu0 0.0
    %4249 = vmatpush1.msra.mxu0 %v4136
    %4250 = vmatprep.subr.mxu0 0.0
    %4251 = vmatpush1.msra.mxu0 %v4137
    %4252 = vmatprep.subr.mxu0 0.0
    %4253 = vmatpush1.msra.mxu0 %v4138
    %4254 = vmatprep.subr.mxu0 0.0
    %4255 = vmatpush1.msra.mxu0 %v4139
    %4256 = vmatprep.subr.mxu0 0.0
    %4257 = vmatpush1.msra.mxu0 %v4140
    %4258 = vmatprep.subr.mxu0 0.0
    %4259 = vmatpush1.msra.mxu0 %v4141
    %4260 = vmatprep.subr.mxu0 0.0
    %4261 = vmatpush1.msra.mxu0 %v4142
    %4262 = vmatprep.subr.mxu0 0.0
    %4263 = vmatpush1.msra.mxu0 %v4143
    %4264 = vmatprep.subr.mxu0 0.0
    %4265 = vmatpush1.msra.mxu0 %v4144
    %4266 = vmatprep.subr.mxu0 0.0
    %4267 = vmatpush1.msra.mxu0 %v4145
    %4268 = vmatprep.subr.mxu0 0.0
    %4269 = vmatpush1.msra.mxu0 %v4146
    %4270 = vmatprep.subr.mxu0 0.0
    %4271 = vmatpush1.msra.mxu0 %v4147
    %4272 = vmatprep.subr.mxu0 0.0
    %4273 = vmatpush1.msra.mxu0 %v4148
    %4274 = vmatprep.subr.mxu0 0.0
    %4275 = vmatpush1.msra.mxu0 %v4149
    %4276 = vmatprep.subr.mxu0 0.0
    %4277 = vmatpush1.msra.mxu0 %v4150
    %4278 = vmatprep.subr.mxu0 0.0
    %4279 = vmatpush1.msra.mxu0 %v4151
    %4280 = vmatprep.subr.mxu0 0.0
    %4281 = vmatpush1.msra.mxu0 0.0
    %4282 = vmatprep.subr.mxu0 0.0
    %4283 = vmatpush1.msra.mxu0 0.0
    %4284 = vmatprep.subr.mxu0 0.0
    %4285 = vmatpush1.msra.mxu0 0.0
    %4286 = vmatprep.subr.mxu0 0.0
    %4287 = vmatpush1.msra.mxu0 0.0
    %4288 = vmatprep.subr.mxu0 0.0
    %4289 = vmatpush1.msra.mxu0 0.0
    %4290 = vmatprep.subr.mxu0 0.0
    %4291 = vmatpush1.msra.mxu0 0.0
    %4292 = vmatprep.subr.mxu0 0.0
    %4293 = vmatpush1.msra.mxu0 0.0
    %4294 = vmatprep.subr.mxu0 0.0
    %4295 = vmatpush1.msra.mxu0 0.0
    %4296 = vmatprep.subr.mxu0 0.0
    %4297 = vmatpush1.msra.mxu0 0.0
    %4298 = vmatprep.subr.mxu0 0.0
    %4299 = vmatpush1.msra.mxu0 0.0
    %4300 = vmatprep.subr.mxu0 0.0
    %4301 = vmatpush1.msra.mxu0 0.0
    %4302 = vmatprep.subr.mxu0 0.0
    %4303 = vmatpush1.msra.mxu0 0.0
    %4304 = vmatprep.subr.mxu0 0.0
    %4305 = vmatpush1.msra.mxu0 0.0
    %4306 = vmatprep.subr.mxu0 0.0
    %4307 = vmatpush1.msra.mxu0 0.0
    %4308 = vmatprep.subr.mxu0 0.0
    %4309 = vmatpush1.msra.mxu0 0.0
    %4310 = vmatprep.subr.mxu0 0.0
    %4311 = vmatpush1.msra.mxu0 0.0
    %4312 = vmatprep.mubr.f32.mxu0 0.0
    %4313 = vmatmul.mubr.f32.gmra.mrb[0].mxu0 %v4240
    %v4314 = vpop.f32.mrb[0].mxu0
    %v4315 = vadd.f32 %v4246, %v4314
    %v4316 = vpop.f32.mrb[0].mxu0
    %4317 = vmatprep.mubr.f32.mxu0 0.0
    %4318 = vmatmul.mubr.f32.gmra.mrb[0].mxu0 %v4241
    %v4319 = vpop.f32.mrb[0].mxu0
    %v4320 = vadd.f32 %v4246, %v4319
    %v4321 = vpop.f32.mrb[0].mxu0
    %4322 = vdwg.mxu0
    %v4323 = vadd.f32 %v4129, %v4315
    %v4324 = vadd.f32 %v4130, %v4320
    %v4325 = vsel %vm143, %v4323, 0.0
    %4326 = vadd.xlane.f32.xlu0 %v4325
    %v4327 = vpop.xlane.xlu0 %4326
    %v4328 = vsel %vm143, %v4324, 0.0
    %4329 = vadd.xlane.f32.xlu0 %v4328
    %v4330 = vpop.xlane.xlu0 %4329
    %v4331 = vmul.f32 %v4327, %v1987
    %v4332 = vmul.f32 %v4330, %v1987
    %v4333 = vsub.f32 %v4323, %v4331
    %v4334 = vsub.f32 %v4324, %v4332
    %v4335 = vmul.f32 %v4333, %v4333
    %v4336 = vmul.f32 %v4334, %v4334
    %v4337 = vsel %vm143, %v4335, 0.0
    %4338 = vadd.xlane.f32.xlu0 %v4337
    %v4339 = vpop.xlane.xlu0 %4338
    %v4340 = vsel %vm143, %v4336, 0.0
    %4341 = vadd.xlane.f32.xlu0 %v4340
    %v4342 = vpop.xlane.xlu0 %4341
    %v4343 = vmul.f32 %v4339, %v1987
    %v4344 = vmul.f32 %v4342, %v1987
    %v4345 = vadd.f32 %v4343, 1e-05
    %v4346 = vadd.f32 %v4344, 1e-05
    %v4347 = vrsqrt.pop %v4345
    %v4348 = vrsqrt.pop %v4346
    %v4349 = vmul.f32 %v4333, %v4347
    %v4350 = vmul.f32 %v4334, %v4348
    %v4351 = vmul.f32 %v4349, %v4119
    %v4352 = vmul.f32 %v4350, %v4119
    %v4353 = vadd.f32 %v4351, %v4127
    %v4354 = vadd.f32 %v4352, %v4127
    %v4355 = vsel %vm143, %v2246, 0.0
    %v4356 = vsel %vm143, %v2247, 0.0
    %v4357 = vadd.f32 %v4355, %v4356
    %v4358 = vrcp.pop 2.0
    %v4359 = vmul.f32 %v4357, %v4358
    %v4360 = vsel %vm143, %v4353, 0.0
    %v4361 = vsel %vm143, %v4354, 0.0
    %v4362 = vadd.f32 %v4360, %v4361
    %v4363 = vmul.f32 %v4362, %v4358
    %v4364 = vld [vmem:[%s51] sm:$0xff]
    %v4365 = vld [vmem:[%s51 + $0x8] sm:$0xff]
    %v4366 = vld [vmem:[%s51 + $0x10] sm:$0xff]
    %v4367 = vld [vmem:[%s51 + $0x18] sm:$0xff]
    %v4368 = vld [vmem:[%s53] sm:$0xff]
    %v4369 = vld [vmem:[%s53 + $0x8] sm:$0xff]
    %v4370 = vld [vmem:[%s53 + $0x10] sm:$0xff]
    %v4371 = vld [vmem:[%s53 + $0x18] sm:$0xff]
    %v4373 = vsel %vm143, %v4363, 0
    %4375 = vmatprep.subr.mxu0 0.0
    %4376 = vmatpush1.msra.mxu0 %v4368
    %4377 = vmatprep.subr.mxu0 0.0
    %4378 = vmatpush1.msra.mxu0 %v4369
    %4379 = vmatprep.subr.mxu0 0.0
    %4380 = vmatpush1.msra.mxu0 %v4370
    %4381 = vmatprep.subr.mxu0 0.0
    %4382 = vmatpush1.msra.mxu0 %v4371
    %4383 = vmatprep.subr.mxu0 0.0
    %4384 = vmatpush1.msra.mxu0 0.0
    %4385 = vmatprep.subr.mxu0 0.0
    %4386 = vmatpush1.msra.mxu0 0.0
    %4387 = vmatprep.subr.mxu0 0.0
    %4388 = vmatpush1.msra.mxu0 0.0
    %4389 = vmatprep.subr.mxu0 0.0
    %4390 = vmatpush1.msra.mxu0 0.0
    %4391 = vmatprep.subr.mxu0 0.0
    %4392 = vmatpush1.msra.mxu0 0.0
    %4393 = vmatprep.subr.mxu0 0.0
    %4394 = vmatpush1.msra.mxu0 0.0
    %4395 = vmatprep.subr.mxu0 0.0
    %4396 = vmatpush1.msra.mxu0 0.0
    %4397 = vmatprep.subr.mxu0 0.0
    %4398 = vmatpush1.msra.mxu0 0.0
    %4399 = vmatprep.subr.mxu0 0.0
    %4400 = vmatpush1.msra.mxu0 0.0
    %4401 = vmatprep.subr.mxu0 0.0
    %4402 = vmatpush1.msra.mxu0 0.0
    %4403 = vmatprep.subr.mxu0 0.0
    %4404 = vmatpush1.msra.mxu0 0.0
    %4405 = vmatprep.subr.mxu0 0.0
    %4406 = vmatpush1.msra.mxu0 0.0
    %4407 = vmatprep.subr.mxu0 0.0
    %4408 = vmatpush1.msra.mxu0 0.0
    %4409 = vmatprep.subr.mxu0 0.0
    %4410 = vmatpush1.msra.mxu0 0.0
    %4411 = vmatprep.subr.mxu0 0.0
    %4412 = vmatpush1.msra.mxu0 0.0
    %4413 = vmatprep.subr.mxu0 0.0
    %4414 = vmatpush1.msra.mxu0 0.0
    %4415 = vmatprep.subr.mxu0 0.0
    %4416 = vmatpush1.msra.mxu0 0.0
    %4417 = vmatprep.subr.mxu0 0.0
    %4418 = vmatpush1.msra.mxu0 0.0
    %4419 = vmatprep.subr.mxu0 0.0
    %4420 = vmatpush1.msra.mxu0 0.0
    %4421 = vmatprep.subr.mxu0 0.0
    %4422 = vmatpush1.msra.mxu0 0.0
    %4423 = vmatprep.subr.mxu0 0.0
    %4424 = vmatpush1.msra.mxu0 0.0
    %4425 = vmatprep.subr.mxu0 0.0
    %4426 = vmatpush1.msra.mxu0 0.0
    %4427 = vmatprep.subr.mxu0 0.0
    %4428 = vmatpush1.msra.mxu0 0.0
    %4429 = vmatprep.subr.mxu0 0.0
    %4430 = vmatpush1.msra.mxu0 0.0
    %4431 = vmatprep.subr.mxu0 0.0
    %4432 = vmatpush1.msra.mxu0 0.0
    %4433 = vmatprep.subr.mxu0 0.0
    %4434 = vmatpush1.msra.mxu0 0.0
    %4435 = vmatprep.subr.mxu0 0.0
    %4436 = vmatpush1.msra.mxu0 0.0
    %4437 = vmatprep.subr.mxu0 0.0
    %4438 = vmatpush1.msra.mxu0 0.0
    %4439 = vmatprep.mubr.f32.mxu0 0.0
    %4440 = vmatmul.mubr.f32.gmra.mrb[0].mxu0 %v4373
    %v4441 = vpop.f32.mrb[0].mxu0
    %v4442 = vadd.f32 0.0, %v4441
    %v4443 = vpop.f32.mrb[0].mxu0
    %4444 = vdwg.mxu0
    %v4446 = vsel %vm143, %v4359, 0
    %4448 = vmatprep.subr.mxu0 0.0
    %4449 = vmatpush1.msra.mxu0 %v4364
    %4450 = vmatprep.subr.mxu0 0.0
    %4451 = vmatpush1.msra.mxu0 %v4365
    %4452 = vmatprep.subr.mxu0 0.0
    %4453 = vmatpush1.msra.mxu0 %v4366
    %4454 = vmatprep.subr.mxu0 0.0
    %4455 = vmatpush1.msra.mxu0 %v4367
    %4456 = vmatprep.subr.mxu0 0.0
    %4457 = vmatpush1.msra.mxu0 0.0
    %4458 = vmatprep.subr.mxu0 0.0
    %4459 = vmatpush1.msra.mxu0 0.0
    %4460 = vmatprep.subr.mxu0 0.0
    %4461 = vmatpush1.msra.mxu0 0.0
    %4462 = vmatprep.subr.mxu0 0.0
    %4463 = vmatpush1.msra.mxu0 0.0
    %4464 = vmatprep.subr.mxu0 0.0
    %4465 = vmatpush1.msra.mxu0 0.0
    %4466 = vmatprep.subr.mxu0 0.0
    %4467 = vmatpush1.msra.mxu0 0.0
    %4468 = vmatprep.subr.mxu0 0.0
    %4469 = vmatpush1.msra.mxu0 0.0
    %4470 = vmatprep.subr.mxu0 0.0
    %4471 = vmatpush1.msra.mxu0 0.0
    %4472 = vmatprep.subr.mxu0 0.0
    %4473 = vmatpush1.msra.mxu0 0.0
    %4474 = vmatprep.subr.mxu0 0.0
    %4475 = vmatpush1.msra.mxu0 0.0
    %4476 = vmatprep.subr.mxu0 0.0
    %4477 = vmatpush1.msra.mxu0 0.0
    %4478 = vmatprep.subr.mxu0 0.0
    %4479 = vmatpush1.msra.mxu0 0.0
    %4480 = vmatprep.subr.mxu0 0.0
    %4481 = vmatpush1.msra.mxu0 0.0
    %4482 = vmatprep.subr.mxu0 0.0
    %4483 = vmatpush1.msra.mxu0 0.0
    %4484 = vmatprep.subr.mxu0 0.0
    %4485 = vmatpush1.msra.mxu0 0.0
    %4486 = vmatprep.subr.mxu0 0.0
    %4487 = vmatpush1.msra.mxu0 0.0
    %4488 = vmatprep.subr.mxu0 0.0
    %4489 = vmatpush1.msra.mxu0 0.0
    %4490 = vmatprep.subr.mxu0 0.0
    %4491 = vmatpush1.msra.mxu0 0.0
    %4492 = vmatprep.subr.mxu0 0.0
    %4493 = vmatpush1.msra.mxu0 0.0
    %4494 = vmatprep.subr.mxu0 0.0
    %4495 = vmatpush1.msra.mxu0 0.0
    %4496 = vmatprep.subr.mxu0 0.0
    %4497 = vmatpush1.msra.mxu0 0.0
    %4498 = vmatprep.subr.mxu0 0.0
    %4499 = vmatpush1.msra.mxu0 0.0
    %4500 = vmatprep.subr.mxu0 0.0
    %4501 = vmatpush1.msra.mxu0 0.0
    %4502 = vmatprep.subr.mxu0 0.0
    %4503 = vmatpush1.msra.mxu0 0.0
    %4504 = vmatprep.subr.mxu0 0.0
    %4505 = vmatpush1.msra.mxu0 0.0
    %4506 = vmatprep.subr.mxu0 0.0
    %4507 = vmatpush1.msra.mxu0 0.0
    %4508 = vmatprep.subr.mxu0 0.0
    %4509 = vmatpush1.msra.mxu0 0.0
    %4510 = vmatprep.subr.mxu0 0.0
    %4511 = vmatpush1.msra.mxu0 0.0
    %4512 = vmatprep.mubr.f32.mxu0 0.0
    %4513 = vmatmul.mubr.f32.gmra.mrb[0].mxu0 %v4446
    %v4514 = vpop.f32.mrb[0].mxu0
    %v4515 = vadd.f32 %v4442, %v4514
    %v4516 = vpop.f32.mrb[0].mxu0
    %4517 = vdwg.mxu0
    %v4518 = vld [vmem:[%s55] sm:$0x1]
    %v4520 = vlaneseq
    %v4521 = vshrl.u32 %v4520, 7
    %v4522 = vsub.s32 0, %v4521
    %v4523 = vrot.slane %v4518, %v4522
    %v4525 = vadd.f32 %v4515, %v4523
    %v4526 = vld [vmem:[%s57] sm:$0xff]
    %v4527 = vld [vmem:[%s57 + $0x8] sm:$0xff]
    %v4528 = vld [vmem:[%s57 + $0x10] sm:$0xff]
    %v4529 = vld [vmem:[%s57 + $0x18] sm:$0xff]
    %v4530 = vld [vmem:[%s59] sm:$0x1]
    %v4532 = vlaneseq
    %v4533 = vshrl.u32 %v4532, 7
    %v4534 = vsub.s32 0, %v4533
    %v4535 = vrot.slane %v4530, %v4534
    %v4538 = vsel %vm143, %v4525, 0
    %4540 = vmatprep.subr.mxu0 0.0
    %4541 = vmatpush1.msra.mxu0 %v4526
    %4542 = vmatprep.subr.mxu0 0.0
    %4543 = vmatpush1.msra.mxu0 %v4527
    %4544 = vmatprep.subr.mxu0 0.0
    %4545 = vmatpush1.msra.mxu0 %v4528
    %4546 = vmatprep.subr.mxu0 0.0
    %4547 = vmatpush1.msra.mxu0 %v4529
    %4548 = vmatprep.subr.mxu0 0.0
    %4549 = vmatpush1.msra.mxu0 0.0
    %4550 = vmatprep.subr.mxu0 0.0
    %4551 = vmatpush1.msra.mxu0 0.0
    %4552 = vmatprep.subr.mxu0 0.0
    %4553 = vmatpush1.msra.mxu0 0.0
    %4554 = vmatprep.subr.mxu0 0.0
    %4555 = vmatpush1.msra.mxu0 0.0
    %4556 = vmatprep.subr.mxu0 0.0
    %4557 = vmatpush1.msra.mxu0 0.0
    %4558 = vmatprep.subr.mxu0 0.0
    %4559 = vmatpush1.msra.mxu0 0.0
    %4560 = vmatprep.subr.mxu0 0.0
    %4561 = vmatpush1.msra.mxu0 0.0
    %4562 = vmatprep.subr.mxu0 0.0
    %4563 = vmatpush1.msra.mxu0 0.0
    %4564 = vmatprep.subr.mxu0 0.0
    %4565 = vmatpush1.msra.mxu0 0.0
    %4566 = vmatprep.subr.mxu0 0.0
    %4567 = vmatpush1.msra.mxu0 0.0
    %4568 = vmatprep.subr.mxu0 0.0
    %4569 = vmatpush1.msra.mxu0 0.0
    %4570 = vmatprep.subr.mxu0 0.0
    %4571 = vmatpush1.msra.mxu0 0.0
    %4572 = vmatprep.subr.mxu0 0.0
    %4573 = vmatpush1.msra.mxu0 0.0
    %4574 = vmatprep.subr.mxu0 0.0
    %4575 = vmatpush1.msra.mxu0 0.0
    %4576 = vmatprep.subr.mxu0 0.0
    %4577 = vmatpush1.msra.mxu0 0.0
    %4578 = vmatprep.subr.mxu0 0.0
    %4579 = vmatpush1.msra.mxu0 0.0
    %4580 = vmatprep.subr.mxu0 0.0
    %4581 = vmatpush1.msra.mxu0 0.0
    %4582 = vmatprep.subr.mxu0 0.0
    %4583 = vmatpush1.msra.mxu0 0.0
    %4584 = vmatprep.subr.mxu0 0.0
    %4585 = vmatpush1.msra.mxu0 0.0
    %4586 = vmatprep.subr.mxu0 0.0
    %4587 = vmatpush1.msra.mxu0 0.0
    %4588 = vmatprep.subr.mxu0 0.0
    %4589 = vmatpush1.msra.mxu0 0.0
    %4590 = vmatprep.subr.mxu0 0.0
    %4591 = vmatpush1.msra.mxu0 0.0
    %4592 = vmatprep.subr.mxu0 0.0
    %4593 = vmatpush1.msra.mxu0 0.0
    %4594 = vmatprep.subr.mxu0 0.0
    %4595 = vmatpush1.msra.mxu0 0.0
    %4596 = vmatprep.subr.mxu0 0.0
    %4597 = vmatpush1.msra.mxu0 0.0
    %4598 = vmatprep.subr.mxu0 0.0
    %4599 = vmatpush1.msra.mxu0 0.0
    %4600 = vmatprep.subr.mxu0 0.0
    %4601 = vmatpush1.msra.mxu0 0.0
    %4602 = vmatprep.subr.mxu0 0.0
    %4603 = vmatpush1.msra.mxu0 0.0
    %4604 = vmatprep.mubr.f32.mxu0 0.0
    %4605 = vmatmul.mubr.f32.gmra.mrb[0].mxu0 %v4538
    %v4606 = vpop.f32.mrb[0].mxu0
    %v4607 = vadd.f32 %v4535, %v4606
    %v4608 = vpop.f32.mrb[0].mxu0
    %4609 = vdwg.mxu0
    %vm4610 = vcmask 39936
    %4611 = vst.msk [vmem:[#allocation2] sm:$0xff] %vm4610, %v4607
    // Predicated region
    $region122: #{omics_transformer_forward.3} parent=1 // pred_check
      _
    $region123: #{omics_transformer_forward.3} parent=1 // pred_check_branch
      %4613 = sbr.rel (0) target = $region125
    $region124: #{omics_transformer_forward.3} parent=1 // pred_region
      %s4615 = ssub.s32 128, 128
      %4616 = vsyncadd [#allocation3], %s4615
      %s4618 = sshll.u32 [#allocation2], 4
      %s4619 = int_to_ptr.vmem [resolvable:$true] %s4618
      %4621 = dma.vmem_to_hbm [thread:$0]  %s4619, 128, %s61, [#allocation3]
    $region125: #{omics_transformer_forward.3} parent=1 // pred_fallthru
      _
    // Predicated region
    $region126: #{omics_transformer_forward.3} parent=1 // pred_check
      _
    $region127: #{omics_transformer_forward.3} parent=1 // pred_check_branch
      %4623 = sbr.rel (0) target = $region129
    $region128: #{omics_transformer_forward.3} parent=1 // pred_region
      %4624 = dma.done [#allocation3], 128
    $region129: #{omics_transformer_forward.3} parent=1 // pred_fallthru
      _
    %4625 = vsyncpa [#allocation3], 1

</llo_original>
